<compile_context>
chip_gen: v7x
topology: tpu7x:2x2x1
jax: 0.10.0
libtpu: 0.0.40
codegen_flags: <defaults>
</compile_context>

<pallas_src>
import functools
import math

import jax
import jax.numpy as jnp
from jax import lax
from jax.experimental import pallas as pl
from jax.experimental.pallas import tpu as pltpu

BN_EPS = 1e-3  # BatchNorm2d(out_ch, 0.001, 0.03)


# ----------------------------------------------------------------------------
# Kernel
# ----------------------------------------------------------------------------

def _head_level_kernel(x_ref, masks_ref, anc_ref,
                       w1, b1, wb2, bb2, wb3, bb3,
                       wc2, bc2, wc3, bc3,
                       o_ref, *, H, W, c2, ch, nc, stride, approx_recip):
    """Fused towers + DFL + decode for one level.

    x_ref:     (1, Cin, H*W)        input feature map (spatial on lanes)
    masks_ref: (8, H*W)             precomputed 3x3 halo boundary masks (compute dtype)
    anc_ref:   (2, H*W)             anchor centers (x; y), f32
    w1:        (9, c2+c1, Cin)      stacked first-layer 3x3 weights (box ++ cls), BN folded
    wb2/wc2:   (9, c, c)            second-layer 3x3 weights, BN folded
    wb3/wc3:   (4*ch, c2)/(nc, c1)  1x1 head weights
    b*:        (Cout, 1) f32        biases
    o_ref:     (1, 4+nc, H*W)       decoded output: (cx,cy,w,h)*stride ++ sigmoid(cls)
    """
    n = H * W
    cd = w1.dtype                                   # compute dtype (matmul operands)
    masks = masks_ref[...]                          # (8, n)

    def silu(v):
        return v * jax.nn.sigmoid(v)

    def conv3x3(inp, w_ref, b_ref):
        # 9 per-tap MXU matmuls accumulated in f32; taps via XLU roll + boundary mask.
        acc = None
        t = mi = 0
        for dy in (-1, 0, 1):
            for dx in (-1, 0, 1):
                if dy == 0 and dx == 0:
                    tap = inp
                else:
                    off = dy * W + dx
                    tap = pltpu.roll(inp, (-off) % n, axis=1) * masks[mi:mi + 1, :]
                    mi += 1
                y = jnp.dot(w_ref[t], tap, preferred_element_type=jnp.float32)
                acc = y if acc is None else acc + y
                t += 1
        return acc + b_ref[...]

    def conv1x1(inp, w_ref, b_ref):
        return jnp.dot(w_ref[...], inp, preferred_element_type=jnp.float32) + b_ref[...]

    x = x_ref[0].astype(cd)                          # (Cin, n)

    # First 3x3: box and cls towers share the rolled/masked taps; one stacked matmul per tap.
    act1 = silu(conv3x3(x, w1, b1))                  # (c2+c1, n) f32
    hb = act1[:c2, :].astype(cd)
    hc = act1[c2:, :].astype(cd)

    # Box tower.
    hb = silu(conv3x3(hb, wb2, bb2)).astype(cd)
    box = conv1x1(hb, wb3, bb3)                      # (4*ch, n) f32 DFL logits
    # Cls tower.
    hc = silu(conv3x3(hc, wc2, bc2)).astype(cd)
    cls = conv1x1(hc, wc3, bc3)                      # (nc, n) f32 logits

    # DFL: softmax expectation per side, deferred normalization (one reciprocal per side).
    bins = lax.broadcasted_iota(jnp.int32, (ch, 1), 0).astype(jnp.float32)
    dists = []
    for k in range(4):
        logits = box[k * ch:(k + 1) * ch, :]         # (ch, n)
        m = jnp.max(logits, axis=0, keepdims=True)
        e = jnp.exp(logits - m)
        se = jnp.sum(e, axis=0, keepdims=True)
        seb = jnp.sum(e * bins, axis=0, keepdims=True)
        dists.append(seb * pl.reciprocal(se, approx=approx_recip))

    anc = anc_ref[...]
    ax, ay = anc[0:1, :], anc[1:2, :]
    dl, dt, dr, db = dists
    x1, y1 = ax - dl, ay - dt
    x2, y2 = ax + dr, ay + db
    box_out = jnp.concatenate(
        [(x1 + x2) * 0.5, (y1 + y2) * 0.5, x2 - x1, y2 - y1], axis=0) * stride
    # Row-slice stores (no full-output VMEM materialization / extra store pass).
    o_ref[0, 0:4, :] = box_out.astype(o_ref.dtype)
    o_ref[0, 4:4 + nc, :] = jax.nn.sigmoid(cls).astype(o_ref.dtype)


# ----------------------------------------------------------------------------
# Wrappers
# ----------------------------------------------------------------------------

def _const_spec(arr):
    nd = arr.ndim
    return pl.BlockSpec(arr.shape, lambda b, _nd=nd: (0,) * _nd)


def _halo_masks(H, W, dtype):
    """(8, H*W) boundary masks for the 8 non-center 3x3 taps (host-side, constant input)."""
    hh = jnp.arange(H, dtype=jnp.int32).reshape(H, 1)
    ww = jnp.arange(W, dtype=jnp.int32).reshape(1, W)
    rows = []
    for dy in (-1, 0, 1):
        for dx in (-1, 0, 1):
            if dy == 0 and dx == 0:
                continue
            ok = ((hh + dy >= 0) & (hh + dy < H) & (ww + dx >= 0) & (ww + dx < W))
            rows.append(ok.reshape(1, H * W))
    return jnp.concatenate(rows, axis=0).astype(dtype)


def _level_anchors(H, W, offset=0.5):
    """(2, H*W) anchor centers for one level (row 0 = x, row 1 = y)."""
    sx = jnp.arange(W, dtype=jnp.float32) + offset
    sy = jnp.arange(H, dtype=jnp.float32) + offset
    gy, gx = jnp.meshgrid(sy, sx, indexing="ij")
    return jnp.stack([gx.reshape(-1), gy.reshape(-1)], axis=0)


def head_level(x_nchw, level_params, stride, *, nc, ch=16):
    """One pyramid level, fully fused (towers + DFL + decode). Returns (B, 4+nc, H*W)."""
    B, C, H, W = x_nchw.shape
    cd = level_params[0].dtype                       # compute dtype = packed weight dtype
    c2 = level_params[4].shape[1]                    # wb3: (4*ch, c2)
    x2 = x_nchw.reshape(B, C, H * W)
    masks = _halo_masks(H, W, cd)
    anchors = _level_anchors(H, W)

    in_specs = [pl.BlockSpec((1, C, H * W), lambda b: (b, 0, 0)),
                _const_spec(masks), _const_spec(anchors)]
    in_specs += [_const_spec(p) for p in level_params]

    # TODO(synk): for real YOLO level-0 sizes (e.g. 256ch x 80x80) on v7x (64 MiB VMEM), add a
    # spatial-tile grid axis with a +/-1-row halo and mark it "parallel" so both TensorCores
    # are busy at B=1; the per-tap accumulation already avoids the 9x im2col VMEM blowup.
    return pl.pallas_call(
        functools.partial(_head_level_kernel, H=H, W=W, c2=c2, ch=ch, nc=nc,
                          stride=float(stride),
                          approx_recip=(cd == jnp.bfloat16)),
        out_shape=jax.ShapeDtypeStruct((B, 4 + nc, H * W), x_nchw.dtype),
        grid=(B,),
        in_specs=in_specs,
        out_specs=pl.BlockSpec((1, 4 + nc, H * W), lambda b: (b, 0, 0)),
        compiler_params=pltpu.CompilerParams(
            dimension_semantics=("parallel",),
            vmem_limit_bytes=48 * 1024 * 1024),
    )(x2, masks, anchors, *level_params)


def head_forward(xs, params, strides, *, nc, ch=16):
    """Inference forward of Head: list of NCHW feature maps -> (B, 4+nc, total_anchors)."""
    outs = [head_level(x, lvl, s, nc=nc, ch=ch)
            for x, lvl, s in zip(xs, params, strides)]
    return jnp.concatenate(outs, axis=2)


# ----------------------------------------------------------------------------
# Parameter construction (PyTorch-equivalent raw params), BN folding / packing, reference.
# ----------------------------------------------------------------------------

def _init_conv_bn(key, cin, cout):
    kw, kg, kb, km, kv = jax.random.split(key, 5)
    return {
        "w": jax.random.normal(kw, (cout, cin, 3, 3), jnp.float32) / math.sqrt(9 * cin),
        "gamma": 1.0 + 0.1 * jax.random.normal(kg, (cout,), jnp.float32),
        "beta": 0.1 * jax.random.normal(kb, (cout,), jnp.float32),
        "mean": 0.1 * jax.random.normal(km, (cout,), jnp.float32),
        "var": 0.5 + jax.random.uniform(kv, (cout,), jnp.float32),
    }


def _init_conv1x1(key, cin, cout):
    kw, kb = jax.random.split(key)
    return {"w": jax.random.normal(kw, (cout, cin, 1, 1), jnp.float32) / math.sqrt(cin),
            "b": 0.1 * jax.random.normal(kb, (cout,), jnp.float32)}


def init_head_params(key, filters, nc, ch=16):
    c1 = max(filters[0], nc)
    c2 = max(filters[0] // 4, ch * 4)
    raw = []
    for f in filters:
        key, k1, k2, k3, k4, k5, k6 = jax.random.split(key, 7)
        raw.append({
            "box": (_init_conv_bn(k1, f, c2), _init_conv_bn(k2, c2, c2),
                    _init_conv1x1(k3, c2, 4 * ch)),
            "cls": (_init_conv_bn(k4, f, c1), _init_conv_bn(k5, c1, c1),
                    _init_conv1x1(k6, c1, nc)),
        })
    return raw


def _fold_bn(layer):
    scale = layer["gamma"] / jnp.sqrt(layer["var"] + BN_EPS)
    return layer["w"] * scale[:, None, None, None], layer["beta"] - layer["mean"] * scale


def _pack3x3(w):   # OIHW -> (9, O, I); tap index t = ky*3 + kx
    o, i = w.shape[0], w.shape[1]
    return jnp.transpose(w, (2, 3, 0, 1)).reshape(9, o, i)


def pack_level_params(raw_level, dtype=jnp.float32):
    """Fold BN, pack 3x3 weights per-tap, stack the two first-layer convs, cast matmul
    operands to `dtype` (bf16 recommended on v6e/v7x).  Biases stay f32."""
    b1, b2, b3 = raw_level["box"]
    q1, q2, q3 = raw_level["cls"]
    wb1, bb1 = _fold_bn(b1)
    wc1, bc1 = _fold_bn(q1)
    wb2, bb2 = _fold_bn(b2)
    wc2, bc2 = _fold_bn(q2)
    w1 = jnp.concatenate([_pack3x3(wb1), _pack3x3(wc1)], axis=1).astype(dtype)  # (9, c2+c1, Cin)
    bias1 = jnp.concatenate([bb1, bc1], axis=0).reshape(-1, 1)
    return (
        w1, bias1,
        _pack3x3(wb2).astype(dtype), bb2.reshape(-1, 1),
        b3["w"].reshape(b3["w"].shape[0], -1).astype(dtype), b3["b"].reshape(-1, 1),
        _pack3x3(wc2).astype(dtype), bc2.reshape(-1, 1),
        q3["w"].reshape(q3["w"].shape[0], -1).astype(dtype), q3["b"].reshape(-1, 1),
    )


# ---------------------------- pure-JAX reference ----------------------------

def make_anchors(shapes, strides, offset=0.5):
    pts, sts = [], []
    for (H, W), s in zip(shapes, strides):
        sx = jnp.arange(W, dtype=jnp.float32) + offset
        sy = jnp.arange(H, dtype=jnp.float32) + offset
        gy, gx = jnp.meshgrid(sy, sx, indexing="ij")
        pts.append(jnp.stack([gx, gy], axis=-1).reshape(-1, 2))
        sts.append(jnp.full((H * W, 1), float(s), jnp.float32))
    return jnp.concatenate(pts, 0).T, jnp.concatenate(sts, 0).T   # (2, A), (1, A)


def _ref_conv_bn_silu(x, layer):
    y = lax.conv_general_dilated(x, layer["w"], (1, 1), ((1, 1), (1, 1)),
                                 dimension_numbers=("NCHW", "OIHW", "NCHW"))
    y = ((y - layer["mean"][None, :, None, None])
         / jnp.sqrt(layer["var"][None, :, None, None] + BN_EPS)
         * layer["gamma"][None, :, None, None] + layer["beta"][None, :, None, None])
    return y * jax.nn.sigmoid(y)


def _ref_conv1x1(x, layer):
    y = lax.conv_general_dilated(x, layer["w"], (1, 1), ((0, 0), (0, 0)),
                                 dimension_numbers=("NCHW", "OIHW", "NCHW"))
    return y + layer["b"][None, :, None, None]


def reference_head(xs, raw, strides, *, nc, ch=16):
    B = xs[0].shape[0]
    no = nc + 4 * ch
    lvl_out = []
    for x, p in zip(xs, raw):
        feats = []
        for branch in ("box", "cls"):
            l1, l2, l3 = p[branch]
            h = _ref_conv_bn_silu(x, l1)
            h = _ref_conv_bn_silu(h, l2)
            feats.append(_ref_conv1x1(h, l3))
        lvl_out.append(jnp.concatenate(feats, axis=1))
    anchors, stride_t = make_anchors([o.shape[2:] for o in lvl_out], strides)
    xcat = jnp.concatenate([o.reshape(B, no, -1) for o in lvl_out], axis=2)
    box, cls = xcat[:, :4 * ch, :], xcat[:, 4 * ch:, :]
    prob = jax.nn.softmax(
        jnp.transpose(box.reshape(B, 4, ch, -1), (0, 2, 1, 3)), axis=1)
    proj = jnp.arange(ch, dtype=jnp.float32)
    d = jnp.einsum("bcka,c->bka", prob, proj)                 # (B, 4, A)
    a = anchors[None] - d[:, :2]
    b = anchors[None] + d[:, 2:]
    box_out = jnp.concatenate([(a + b) / 2, b - a], axis=1)
    return jnp.concatenate([box_out * stride_t[None], jax.nn.sigmoid(cls)], axis=1)


if __name__ == "__main__":
    B = 2
    NC = 16                            # num classes (small test size)
    CH = 16                            # DFL bins (fixed by the module)
    FILTERS = (32, 64)                 # per-level input channels
    SPATIAL = ((16, 16), (8, 16))      # H*W kept a multiple of 128 (lane-dense)
    STRIDES = (8.0, 16.0)              # Head.stride is assigned externally in practice

    key = jax.random.PRNGKey(0)
    key, *xkeys = jax.random.split(key, 1 + len(FILTERS))
    xs = [jax.random.normal(k, (B, f, h, w), jnp.float32)
          for k, f, (h, w) in zip(xkeys, FILTERS, SPATIAL)]

    raw = init_head_params(key, FILTERS, NC, CH)
    ref = jax.block_until_ready(reference_head(xs, raw, STRIDES, nc=NC, ch=CH))
    A = sum(h * w for h, w in SPATIAL)
    assert ref.shape == (B, 4 + NC, A), ref.shape

    # f32 compute path: exact-semantics validation against the pure-JAX reference.
    packed_f32 = [pack_level_params(p, jnp.float32) for p in raw]
    out_f32 = jax.block_until_ready(head_forward(xs, packed_f32, STRIDES, nc=NC, ch=CH))
    assert out_f32.shape == (B, 4 + NC, A), out_f32.shape
    err_f32 = float(jnp.max(jnp.abs(out_f32 - ref)))
    assert jnp.allclose(out_f32, ref, atol=5e-3, rtol=5e-3), err_f32

    # bf16 matmul-operand path (native MXU on v6e/v7x, f32 accumulate): loose sanity bound
    # (box coordinates scale up to ~250 here, so bf16 logit error maps to O(1) abs error).
    packed_bf16 = [pack_level_params(p, jnp.bfloat16) for p in raw]
    out_bf16 = jax.block_until_ready(head_forward(xs, packed_bf16, STRIDES, nc=NC, ch=CH))
    assert out_bf16.shape == (B, 4 + NC, A), out_bf16.shape
    err_bf16 = float(jnp.max(jnp.abs(out_bf16 - ref)))
    assert bool(jnp.all(jnp.isfinite(out_bf16))) and err_bf16 < 5.0, err_bf16

    print("KERNEL_OK")
</pallas_src>

<mosaic_0001>
module attributes {stable_mosaic.version = 11 : i64} {
  func.func @_head_level_kernel(%arg0: i32, %arg1: memref<1x32x256xf32, #tpu.memory_space<vmem>>, %arg2: memref<8x256xf32, #tpu.memory_space<vmem>>, %arg3: memref<2x256xf32, #tpu.memory_space<vmem>>, %arg4: memref<9x96x32xf32, #tpu.memory_space<vmem>>, %arg5: memref<96x1xf32, #tpu.memory_space<vmem>>, %arg6: memref<9x64x64xf32, #tpu.memory_space<vmem>>, %arg7: memref<64x1xf32, #tpu.memory_space<vmem>>, %arg8: memref<64x64xf32, #tpu.memory_space<vmem>>, %arg9: memref<64x1xf32, #tpu.memory_space<vmem>>, %arg10: memref<9x32x32xf32, #tpu.memory_space<vmem>>, %arg11: memref<32x1xf32, #tpu.memory_space<vmem>>, %arg12: memref<16x32xf32, #tpu.memory_space<vmem>>, %arg13: memref<16x1xf32, #tpu.memory_space<vmem>>, %arg14: memref<1x20x256xf32, #tpu.memory_space<vmem>>) attributes {dimension_semantics = [#tpu.dimension_semantics<parallel>], iteration_bounds = array<i64: 2>, scalar_prefetch = 0 : i64, scratch_operands = 0 : i64, tpu.core_type = #tpu.core_type<tc>, window_params = [{transform_indices = @transform_0, window_bounds = array<i64: 1, 32, 256>}, {pipeline_mode = #tpu.pipeline_mode<synchronous>, transform_indices = @transform_1, window_bounds = array<i64: 8, 256>}, {pipeline_mode = #tpu.pipeline_mode<synchronous>, transform_indices = @transform_2, window_bounds = array<i64: 2, 256>}, {pipeline_mode = #tpu.pipeline_mode<synchronous>, transform_indices = @transform_3, window_bounds = array<i64: 9, 96, 32>}, {pipeline_mode = #tpu.pipeline_mode<synchronous>, transform_indices = @transform_4, window_bounds = array<i64: 96, 1>}, {pipeline_mode = #tpu.pipeline_mode<synchronous>, transform_indices = @transform_5, window_bounds = array<i64: 9, 64, 64>}, {pipeline_mode = #tpu.pipeline_mode<synchronous>, transform_indices = @transform_6, window_bounds = array<i64: 64, 1>}, {pipeline_mode = #tpu.pipeline_mode<synchronous>, transform_indices = @transform_7, window_bounds = array<i64: 64, 64>}, {pipeline_mode = #tpu.pipeline_mode<synchronous>, transform_indices = @transform_8, window_bounds = array<i64: 64, 1>}, {pipeline_mode = #tpu.pipeline_mode<synchronous>, transform_indices = @transform_9, window_bounds = array<i64: 9, 32, 32>}, {pipeline_mode = #tpu.pipeline_mode<synchronous>, transform_indices = @transform_10, window_bounds = array<i64: 32, 1>}, {pipeline_mode = #tpu.pipeline_mode<synchronous>, transform_indices = @transform_11, window_bounds = array<i64: 16, 32>}, {pipeline_mode = #tpu.pipeline_mode<synchronous>, transform_indices = @transform_12, window_bounds = array<i64: 16, 1>}, {transform_indices = @transform_13, window_bounds = array<i64: 1, 20, 256>}]} {
    %c0 = arith.constant 0 : index
    %c0_0 = arith.constant 0 : index
    %0 = vector.load %arg2[%c0, %c0_0] : memref<8x256xf32, #tpu.memory_space<vmem>>, vector<8x256xf32>
    %c0_1 = arith.constant 0 : index
    %c0_2 = arith.constant 0 : index
    %c0_3 = arith.constant 0 : index
    %1 = vector.load %arg1[%c0_1, %c0_2, %c0_3] : memref<1x32x256xf32, #tpu.memory_space<vmem>>, vector<1x32x256xf32>
    %2 = vector.shape_cast %1 : vector<1x32x256xf32> to vector<32x256xf32>
    %c17_i32 = arith.constant 17 : i32
    %3 = tpu.dynamic_rotate %2 by %c17_i32 dim 1 : vector<32x256xf32>, i32 -> vector<32x256xf32>
    %4 = vector.extract_strided_slice %0 {offsets = [0, 0], sizes = [1, 256], strides = [1, 1]} : vector<8x256xf32> to vector<1x256xf32>
    %5 = vector.broadcast %4 : vector<1x256xf32> to vector<32x256xf32>
    %6 = arith.mulf %3, %5 : vector<32x256xf32>
    %c0_4 = arith.constant 0 : index
    %c0_5 = arith.constant 0 : index
    %c0_6 = arith.constant 0 : index
    %7 = vector.load %arg4[%c0_4, %c0_5, %c0_6] : memref<9x96x32xf32, #tpu.memory_space<vmem>>, vector<1x96x32xf32>
    %8 = vector.shape_cast %7 : vector<1x96x32xf32> to vector<96x32xf32>
    %cst = arith.constant dense<0.000000e+00> : vector<96x256xf32>
    %9 = tpu.matmul %8, %6, %cst {dimension_numbers = #tpu.dot_dimension_numbers<[1], [0], [0], [1], [0, 0, 1, 1], [], []>} : vector<96x32xf32>, vector<32x256xf32>, vector<96x256xf32> -> vector<96x256xf32>
    %c16_i32 = arith.constant 16 : i32
    %10 = tpu.dynamic_rotate %2 by %c16_i32 dim 1 : vector<32x256xf32>, i32 -> vector<32x256xf32>
    %11 = vector.extract_strided_slice %0 {offsets = [1, 0], sizes = [1, 256], strides = [1, 1]} : vector<8x256xf32> to vector<1x256xf32>
    %12 = vector.broadcast %11 : vector<1x256xf32> to vector<32x256xf32>
    %13 = arith.mulf %10, %12 : vector<32x256xf32>
    %c1 = arith.constant 1 : index
    %c0_7 = arith.constant 0 : index
    %c0_8 = arith.constant 0 : index
    %14 = vector.load %arg4[%c1, %c0_7, %c0_8] : memref<9x96x32xf32, #tpu.memory_space<vmem>>, vector<1x96x32xf32>
    %15 = vector.shape_cast %14 : vector<1x96x32xf32> to vector<96x32xf32>
    %cst_9 = arith.constant dense<0.000000e+00> : vector<96x256xf32>
    %16 = tpu.matmul %15, %13, %cst_9 {dimension_numbers = #tpu.dot_dimension_numbers<[1], [0], [0], [1], [0, 0, 1, 1], [], []>} : vector<96x32xf32>, vector<32x256xf32>, vector<96x256xf32> -> vector<96x256xf32>
    %17 = arith.addf %9, %16 : vector<96x256xf32>
    %c15_i32 = arith.constant 15 : i32
    %18 = tpu.dynamic_rotate %2 by %c15_i32 dim 1 : vector<32x256xf32>, i32 -> vector<32x256xf32>
    %19 = vector.extract_strided_slice %0 {offsets = [2, 0], sizes = [1, 256], strides = [1, 1]} : vector<8x256xf32> to vector<1x256xf32>
    %20 = vector.broadcast %19 : vector<1x256xf32> to vector<32x256xf32>
    %21 = arith.mulf %18, %20 : vector<32x256xf32>
    %c2 = arith.constant 2 : index
    %c0_10 = arith.constant 0 : index
    %c0_11 = arith.constant 0 : index
    %22 = vector.load %arg4[%c2, %c0_10, %c0_11] : memref<9x96x32xf32, #tpu.memory_space<vmem>>, vector<1x96x32xf32>
    %23 = vector.shape_cast %22 : vector<1x96x32xf32> to vector<96x32xf32>
    %cst_12 = arith.constant dense<0.000000e+00> : vector<96x256xf32>
    %24 = tpu.matmul %23, %21, %cst_12 {dimension_numbers = #tpu.dot_dimension_numbers<[1], [0], [0], [1], [0, 0, 1, 1], [], []>} : vector<96x32xf32>, vector<32x256xf32>, vector<96x256xf32> -> vector<96x256xf32>
    %25 = arith.addf %17, %24 : vector<96x256xf32>
    %c1_i32 = arith.constant 1 : i32
    %26 = tpu.dynamic_rotate %2 by %c1_i32 dim 1 : vector<32x256xf32>, i32 -> vector<32x256xf32>
    %27 = vector.extract_strided_slice %0 {offsets = [3, 0], sizes = [1, 256], strides = [1, 1]} : vector<8x256xf32> to vector<1x256xf32>
    %28 = vector.broadcast %27 : vector<1x256xf32> to vector<32x256xf32>
    %29 = arith.mulf %26, %28 : vector<32x256xf32>
    %c3 = arith.constant 3 : index
    %c0_13 = arith.constant 0 : index
    %c0_14 = arith.constant 0 : index
    %30 = vector.load %arg4[%c3, %c0_13, %c0_14] : memref<9x96x32xf32, #tpu.memory_space<vmem>>, vector<1x96x32xf32>
    %31 = vector.shape_cast %30 : vector<1x96x32xf32> to vector<96x32xf32>
    %cst_15 = arith.constant dense<0.000000e+00> : vector<96x256xf32>
    %32 = tpu.matmul %31, %29, %cst_15 {dimension_numbers = #tpu.dot_dimension_numbers<[1], [0], [0], [1], [0, 0, 1, 1], [], []>} : vector<96x32xf32>, vector<32x256xf32>, vector<96x256xf32> -> vector<96x256xf32>
    %33 = arith.addf %25, %32 : vector<96x256xf32>
    %c4 = arith.constant 4 : index
    %c0_16 = arith.constant 0 : index
    %c0_17 = arith.constant 0 : index
    %34 = vector.load %arg4[%c4, %c0_16, %c0_17] : memref<9x96x32xf32, #tpu.memory_space<vmem>>, vector<1x96x32xf32>
    %35 = vector.shape_cast %34 : vector<1x96x32xf32> to vector<96x32xf32>
    %cst_18 = arith.constant dense<0.000000e+00> : vector<96x256xf32>
    %36 = tpu.matmul %35, %2, %cst_18 {dimension_numbers = #tpu.dot_dimension_numbers<[1], [0], [0], [1], [0, 0, 1, 1], [], []>} : vector<96x32xf32>, vector<32x256xf32>, vector<96x256xf32> -> vector<96x256xf32>
    %37 = arith.addf %33, %36 : vector<96x256xf32>
    %c255_i32 = arith.constant 255 : i32
    %38 = tpu.dynamic_rotate %2 by %c255_i32 dim 1 : vector<32x256xf32>, i32 -> vector<32x256xf32>
    %39 = vector.extract_strided_slice %0 {offsets = [4, 0], sizes = [1, 256], strides = [1, 1]} : vector<8x256xf32> to vector<1x256xf32>
    %40 = vector.broadcast %39 : vector<1x256xf32> to vector<32x256xf32>
    %41 = arith.mulf %38, %40 : vector<32x256xf32>
    %c5 = arith.constant 5 : index
    %c0_19 = arith.constant 0 : index
    %c0_20 = arith.constant 0 : index
    %42 = vector.load %arg4[%c5, %c0_19, %c0_20] : memref<9x96x32xf32, #tpu.memory_space<vmem>>, vector<1x96x32xf32>
    %43 = vector.shape_cast %42 : vector<1x96x32xf32> to vector<96x32xf32>
    %cst_21 = arith.constant dense<0.000000e+00> : vector<96x256xf32>
    %44 = tpu.matmul %43, %41, %cst_21 {dimension_numbers = #tpu.dot_dimension_numbers<[1], [0], [0], [1], [0, 0, 1, 1], [], []>} : vector<96x32xf32>, vector<32x256xf32>, vector<96x256xf32> -> vector<96x256xf32>
    %45 = arith.addf %37, %44 : vector<96x256xf32>
    %c241_i32 = arith.constant 241 : i32
    %46 = tpu.dynamic_rotate %2 by %c241_i32 dim 1 : vector<32x256xf32>, i32 -> vector<32x256xf32>
    %47 = vector.extract_strided_slice %0 {offsets = [5, 0], sizes = [1, 256], strides = [1, 1]} : vector<8x256xf32> to vector<1x256xf32>
    %48 = vector.broadcast %47 : vector<1x256xf32> to vector<32x256xf32>
    %49 = arith.mulf %46, %48 : vector<32x256xf32>
    %c6 = arith.constant 6 : index
    %c0_22 = arith.constant 0 : index
    %c0_23 = arith.constant 0 : index
    %50 = vector.load %arg4[%c6, %c0_22, %c0_23] : memref<9x96x32xf32, #tpu.memory_space<vmem>>, vector<1x96x32xf32>
    %51 = vector.shape_cast %50 : vector<1x96x32xf32> to vector<96x32xf32>
    %cst_24 = arith.constant dense<0.000000e+00> : vector<96x256xf32>
    %52 = tpu.matmul %51, %49, %cst_24 {dimension_numbers = #tpu.dot_dimension_numbers<[1], [0], [0], [1], [0, 0, 1, 1], [], []>} : vector<96x32xf32>, vector<32x256xf32>, vector<96x256xf32> -> vector<96x256xf32>
    %53 = arith.addf %45, %52 : vector<96x256xf32>
    %c240_i32 = arith.constant 240 : i32
    %54 = tpu.dynamic_rotate %2 by %c240_i32 dim 1 : vector<32x256xf32>, i32 -> vector<32x256xf32>
    %55 = vector.extract_strided_slice %0 {offsets = [6, 0], sizes = [1, 256], strides = [1, 1]} : vector<8x256xf32> to vector<1x256xf32>
    %56 = vector.broadcast %55 : vector<1x256xf32> to vector<32x256xf32>
    %57 = arith.mulf %54, %56 : vector<32x256xf32>
    %c7 = arith.constant 7 : index
    %c0_25 = arith.constant 0 : index
    %c0_26 = arith.constant 0 : index
    %58 = vector.load %arg4[%c7, %c0_25, %c0_26] : memref<9x96x32xf32, #tpu.memory_space<vmem>>, vector<1x96x32xf32>
    %59 = vector.shape_cast %58 : vector<1x96x32xf32> to vector<96x32xf32>
    %cst_27 = arith.constant dense<0.000000e+00> : vector<96x256xf32>
    %60 = tpu.matmul %59, %57, %cst_27 {dimension_numbers = #tpu.dot_dimension_numbers<[1], [0], [0], [1], [0, 0, 1, 1], [], []>} : vector<96x32xf32>, vector<32x256xf32>, vector<96x256xf32> -> vector<96x256xf32>
    %61 = arith.addf %53, %60 : vector<96x256xf32>
    %c239_i32 = arith.constant 239 : i32
    %62 = tpu.dynamic_rotate %2 by %c239_i32 dim 1 : vector<32x256xf32>, i32 -> vector<32x256xf32>
    %63 = vector.extract_strided_slice %0 {offsets = [7, 0], sizes = [1, 256], strides = [1, 1]} : vector<8x256xf32> to vector<1x256xf32>
    %64 = vector.broadcast %63 : vector<1x256xf32> to vector<32x256xf32>
    %65 = arith.mulf %62, %64 : vector<32x256xf32>
    %c8 = arith.constant 8 : index
    %c0_28 = arith.constant 0 : index
    %c0_29 = arith.constant 0 : index
    %66 = vector.load %arg4[%c8, %c0_28, %c0_29] : memref<9x96x32xf32, #tpu.memory_space<vmem>>, vector<1x96x32xf32>
    %67 = vector.shape_cast %66 : vector<1x96x32xf32> to vector<96x32xf32>
    %cst_30 = arith.constant dense<0.000000e+00> : vector<96x256xf32>
    %68 = tpu.matmul %67, %65, %cst_30 {dimension_numbers = #tpu.dot_dimension_numbers<[1], [0], [0], [1], [0, 0, 1, 1], [], []>} : vector<96x32xf32>, vector<32x256xf32>, vector<96x256xf32> -> vector<96x256xf32>
    %69 = arith.addf %61, %68 : vector<96x256xf32>
    %c0_31 = arith.constant 0 : index
    %c0_32 = arith.constant 0 : index
    %70 = vector.load %arg5[%c0_31, %c0_32] : memref<96x1xf32, #tpu.memory_space<vmem>>, vector<96x1xf32>
    %71 = vector.broadcast %70 : vector<96x1xf32> to vector<96x256xf32>
    %72 = arith.addf %69, %71 : vector<96x256xf32>
    %73 = arith.negf %72 : vector<96x256xf32>
    %74 = math.exp %73 : vector<96x256xf32>
    %cst_33 = arith.constant 1.000000e+00 : f32
    %75 = vector.broadcast %cst_33 : f32 to vector<96x256xf32>
    %76 = arith.addf %75, %74 : vector<96x256xf32>
    %77 = arith.divf %75, %76 : vector<96x256xf32>
    %78 = arith.mulf %72, %77 : vector<96x256xf32>
    %79 = vector.extract_strided_slice %78 {offsets = [0, 0], sizes = [64, 256], strides = [1, 1]} : vector<96x256xf32> to vector<64x256xf32>
    %80 = vector.extract_strided_slice %78 {offsets = [64, 0], sizes = [32, 256], strides = [1, 1]} : vector<96x256xf32> to vector<32x256xf32>
    %c17_i32_34 = arith.constant 17 : i32
    %81 = tpu.dynamic_rotate %79 by %c17_i32_34 dim 1 : vector<64x256xf32>, i32 -> vector<64x256xf32>
    %82 = vector.extract_strided_slice %0 {offsets = [0, 0], sizes = [1, 256], strides = [1, 1]} : vector<8x256xf32> to vector<1x256xf32>
    %83 = vector.broadcast %82 : vector<1x256xf32> to vector<64x256xf32>
    %84 = arith.mulf %81, %83 : vector<64x256xf32>
    %c0_35 = arith.constant 0 : index
    %c0_36 = arith.constant 0 : index
    %c0_37 = arith.constant 0 : index
    %85 = vector.load %arg6[%c0_35, %c0_36, %c0_37] : memref<9x64x64xf32, #tpu.memory_space<vmem>>, vector<1x64x64xf32>
    %86 = vector.shape_cast %85 : vector<1x64x64xf32> to vector<64x64xf32>
    %cst_38 = arith.constant dense<0.000000e+00> : vector<64x256xf32>
    %87 = tpu.matmul %86, %84, %cst_38 {dimension_numbers = #tpu.dot_dimension_numbers<[1], [0], [0], [1], [0, 0, 1, 1], [], []>} : vector<64x64xf32>, vector<64x256xf32>, vector<64x256xf32> -> vector<64x256xf32>
    %c16_i32_39 = arith.constant 16 : i32
    %88 = tpu.dynamic_rotate %79 by %c16_i32_39 dim 1 : vector<64x256xf32>, i32 -> vector<64x256xf32>
    %89 = vector.extract_strided_slice %0 {offsets = [1, 0], sizes = [1, 256], strides = [1, 1]} : vector<8x256xf32> to vector<1x256xf32>
    %90 = vector.broadcast %89 : vector<1x256xf32> to vector<64x256xf32>
    %91 = arith.mulf %88, %90 : vector<64x256xf32>
    %c1_40 = arith.constant 1 : index
    %c0_41 = arith.constant 0 : index
    %c0_42 = arith.constant 0 : index
    %92 = vector.load %arg6[%c1_40, %c0_41, %c0_42] : memref<9x64x64xf32, #tpu.memory_space<vmem>>, vector<1x64x64xf32>
    %93 = vector.shape_cast %92 : vector<1x64x64xf32> to vector<64x64xf32>
    %cst_43 = arith.constant dense<0.000000e+00> : vector<64x256xf32>
    %94 = tpu.matmul %93, %91, %cst_43 {dimension_numbers = #tpu.dot_dimension_numbers<[1], [0], [0], [1], [0, 0, 1, 1], [], []>} : vector<64x64xf32>, vector<64x256xf32>, vector<64x256xf32> -> vector<64x256xf32>
    %95 = arith.addf %87, %94 : vector<64x256xf32>
    %c15_i32_44 = arith.constant 15 : i32
    %96 = tpu.dynamic_rotate %79 by %c15_i32_44 dim 1 : vector<64x256xf32>, i32 -> vector<64x256xf32>
    %97 = vector.extract_strided_slice %0 {offsets = [2, 0], sizes = [1, 256], strides = [1, 1]} : vector<8x256xf32> to vector<1x256xf32>
    %98 = vector.broadcast %97 : vector<1x256xf32> to vector<64x256xf32>
    %99 = arith.mulf %96, %98 : vector<64x256xf32>
    %c2_45 = arith.constant 2 : index
    %c0_46 = arith.constant 0 : index
    %c0_47 = arith.constant 0 : index
    %100 = vector.load %arg6[%c2_45, %c0_46, %c0_47] : memref<9x64x64xf32, #tpu.memory_space<vmem>>, vector<1x64x64xf32>
    %101 = vector.shape_cast %100 : vector<1x64x64xf32> to vector<64x64xf32>
    %cst_48 = arith.constant dense<0.000000e+00> : vector<64x256xf32>
    %102 = tpu.matmul %101, %99, %cst_48 {dimension_numbers = #tpu.dot_dimension_numbers<[1], [0], [0], [1], [0, 0, 1, 1], [], []>} : vector<64x64xf32>, vector<64x256xf32>, vector<64x256xf32> -> vector<64x256xf32>
    %103 = arith.addf %95, %102 : vector<64x256xf32>
    %c1_i32_49 = arith.constant 1 : i32
    %104 = tpu.dynamic_rotate %79 by %c1_i32_49 dim 1 : vector<64x256xf32>, i32 -> vector<64x256xf32>
    %105 = vector.extract_strided_slice %0 {offsets = [3, 0], sizes = [1, 256], strides = [1, 1]} : vector<8x256xf32> to vector<1x256xf32>
    %106 = vector.broadcast %105 : vector<1x256xf32> to vector<64x256xf32>
    %107 = arith.mulf %104, %106 : vector<64x256xf32>
    %c3_50 = arith.constant 3 : index
    %c0_51 = arith.constant 0 : index
    %c0_52 = arith.constant 0 : index
    %108 = vector.load %arg6[%c3_50, %c0_51, %c0_52] : memref<9x64x64xf32, #tpu.memory_space<vmem>>, vector<1x64x64xf32>
    %109 = vector.shape_cast %108 : vector<1x64x64xf32> to vector<64x64xf32>
    %cst_53 = arith.constant dense<0.000000e+00> : vector<64x256xf32>
    %110 = tpu.matmul %109, %107, %cst_53 {dimension_numbers = #tpu.dot_dimension_numbers<[1], [0], [0], [1], [0, 0, 1, 1], [], []>} : vector<64x64xf32>, vector<64x256xf32>, vector<64x256xf32> -> vector<64x256xf32>
    %111 = arith.addf %103, %110 : vector<64x256xf32>
    %c4_54 = arith.constant 4 : index
    %c0_55 = arith.constant 0 : index
    %c0_56 = arith.constant 0 : index
    %112 = vector.load %arg6[%c4_54, %c0_55, %c0_56] : memref<9x64x64xf32, #tpu.memory_space<vmem>>, vector<1x64x64xf32>
    %113 = vector.shape_cast %112 : vector<1x64x64xf32> to vector<64x64xf32>
    %cst_57 = arith.constant dense<0.000000e+00> : vector<64x256xf32>
    %114 = tpu.matmul %113, %79, %cst_57 {dimension_numbers = #tpu.dot_dimension_numbers<[1], [0], [0], [1], [0, 0, 1, 1], [], []>} : vector<64x64xf32>, vector<64x256xf32>, vector<64x256xf32> -> vector<64x256xf32>
    %115 = arith.addf %111, %114 : vector<64x256xf32>
    %c255_i32_58 = arith.constant 255 : i32
    %116 = tpu.dynamic_rotate %79 by %c255_i32_58 dim 1 : vector<64x256xf32>, i32 -> vector<64x256xf32>
    %117 = vector.extract_strided_slice %0 {offsets = [4, 0], sizes = [1, 256], strides = [1, 1]} : vector<8x256xf32> to vector<1x256xf32>
    %118 = vector.broadcast %117 : vector<1x256xf32> to vector<64x256xf32>
    %119 = arith.mulf %116, %118 : vector<64x256xf32>
    %c5_59 = arith.constant 5 : index
    %c0_60 = arith.constant 0 : index
    %c0_61 = arith.constant 0 : index
    %120 = vector.load %arg6[%c5_59, %c0_60, %c0_61] : memref<9x64x64xf32, #tpu.memory_space<vmem>>, vector<1x64x64xf32>
    %121 = vector.shape_cast %120 : vector<1x64x64xf32> to vector<64x64xf32>
    %cst_62 = arith.constant dense<0.000000e+00> : vector<64x256xf32>
    %122 = tpu.matmul %121, %119, %cst_62 {dimension_numbers = #tpu.dot_dimension_numbers<[1], [0], [0], [1], [0, 0, 1, 1], [], []>} : vector<64x64xf32>, vector<64x256xf32>, vector<64x256xf32> -> vector<64x256xf32>
    %123 = arith.addf %115, %122 : vector<64x256xf32>
    %c241_i32_63 = arith.constant 241 : i32
    %124 = tpu.dynamic_rotate %79 by %c241_i32_63 dim 1 : vector<64x256xf32>, i32 -> vector<64x256xf32>
    %125 = vector.extract_strided_slice %0 {offsets = [5, 0], sizes = [1, 256], strides = [1, 1]} : vector<8x256xf32> to vector<1x256xf32>
    %126 = vector.broadcast %125 : vector<1x256xf32> to vector<64x256xf32>
    %127 = arith.mulf %124, %126 : vector<64x256xf32>
    %c6_64 = arith.constant 6 : index
    %c0_65 = arith.constant 0 : index
    %c0_66 = arith.constant 0 : index
    %128 = vector.load %arg6[%c6_64, %c0_65, %c0_66] : memref<9x64x64xf32, #tpu.memory_space<vmem>>, vector<1x64x64xf32>
    %129 = vector.shape_cast %128 : vector<1x64x64xf32> to vector<64x64xf32>
    %cst_67 = arith.constant dense<0.000000e+00> : vector<64x256xf32>
    %130 = tpu.matmul %129, %127, %cst_67 {dimension_numbers = #tpu.dot_dimension_numbers<[1], [0], [0], [1], [0, 0, 1, 1], [], []>} : vector<64x64xf32>, vector<64x256xf32>, vector<64x256xf32> -> vector<64x256xf32>
    %131 = arith.addf %123, %130 : vector<64x256xf32>
    %c240_i32_68 = arith.constant 240 : i32
    %132 = tpu.dynamic_rotate %79 by %c240_i32_68 dim 1 : vector<64x256xf32>, i32 -> vector<64x256xf32>
    %133 = vector.extract_strided_slice %0 {offsets = [6, 0], sizes = [1, 256], strides = [1, 1]} : vector<8x256xf32> to vector<1x256xf32>
    %134 = vector.broadcast %133 : vector<1x256xf32> to vector<64x256xf32>
    %135 = arith.mulf %132, %134 : vector<64x256xf32>
    %c7_69 = arith.constant 7 : index
    %c0_70 = arith.constant 0 : index
    %c0_71 = arith.constant 0 : index
    %136 = vector.load %arg6[%c7_69, %c0_70, %c0_71] : memref<9x64x64xf32, #tpu.memory_space<vmem>>, vector<1x64x64xf32>
    %137 = vector.shape_cast %136 : vector<1x64x64xf32> to vector<64x64xf32>
    %cst_72 = arith.constant dense<0.000000e+00> : vector<64x256xf32>
    %138 = tpu.matmul %137, %135, %cst_72 {dimension_numbers = #tpu.dot_dimension_numbers<[1], [0], [0], [1], [0, 0, 1, 1], [], []>} : vector<64x64xf32>, vector<64x256xf32>, vector<64x256xf32> -> vector<64x256xf32>
    %139 = arith.addf %131, %138 : vector<64x256xf32>
    %c239_i32_73 = arith.constant 239 : i32
    %140 = tpu.dynamic_rotate %79 by %c239_i32_73 dim 1 : vector<64x256xf32>, i32 -> vector<64x256xf32>
    %141 = vector.extract_strided_slice %0 {offsets = [7, 0], sizes = [1, 256], strides = [1, 1]} : vector<8x256xf32> to vector<1x256xf32>
    %142 = vector.broadcast %141 : vector<1x256xf32> to vector<64x256xf32>
    %143 = arith.mulf %140, %142 : vector<64x256xf32>
    %c8_74 = arith.constant 8 : index
    %c0_75 = arith.constant 0 : index
    %c0_76 = arith.constant 0 : index
    %144 = vector.load %arg6[%c8_74, %c0_75, %c0_76] : memref<9x64x64xf32, #tpu.memory_space<vmem>>, vector<1x64x64xf32>
    %145 = vector.shape_cast %144 : vector<1x64x64xf32> to vector<64x64xf32>
    %cst_77 = arith.constant dense<0.000000e+00> : vector<64x256xf32>
    %146 = tpu.matmul %145, %143, %cst_77 {dimension_numbers = #tpu.dot_dimension_numbers<[1], [0], [0], [1], [0, 0, 1, 1], [], []>} : vector<64x64xf32>, vector<64x256xf32>, vector<64x256xf32> -> vector<64x256xf32>
    %147 = arith.addf %139, %146 : vector<64x256xf32>
    %c0_78 = arith.constant 0 : index
    %c0_79 = arith.constant 0 : index
    %148 = vector.load %arg7[%c0_78, %c0_79] : memref<64x1xf32, #tpu.memory_space<vmem>>, vector<64x1xf32>
    %149 = vector.broadcast %148 : vector<64x1xf32> to vector<64x256xf32>
    %150 = arith.addf %147, %149 : vector<64x256xf32>
    %151 = arith.negf %150 : vector<64x256xf32>
    %152 = math.exp %151 : vector<64x256xf32>
    %cst_80 = arith.constant 1.000000e+00 : f32
    %153 = vector.broadcast %cst_80 : f32 to vector<64x256xf32>
    %154 = arith.addf %153, %152 : vector<64x256xf32>
    %155 = arith.divf %153, %154 : vector<64x256xf32>
    %156 = arith.mulf %150, %155 : vector<64x256xf32>
    %c0_81 = arith.constant 0 : index
    %c0_82 = arith.constant 0 : index
    %157 = vector.load %arg8[%c0_81, %c0_82] : memref<64x64xf32, #tpu.memory_space<vmem>>, vector<64x64xf32>
    %cst_83 = arith.constant dense<0.000000e+00> : vector<64x256xf32>
    %158 = tpu.matmul %157, %156, %cst_83 {dimension_numbers = #tpu.dot_dimension_numbers<[1], [0], [0], [1], [0, 0, 1, 1], [], []>} : vector<64x64xf32>, vector<64x256xf32>, vector<64x256xf32> -> vector<64x256xf32>
    %c0_84 = arith.constant 0 : index
    %c0_85 = arith.constant 0 : index
    %159 = vector.load %arg9[%c0_84, %c0_85] : memref<64x1xf32, #tpu.memory_space<vmem>>, vector<64x1xf32>
    %160 = vector.broadcast %159 : vector<64x1xf32> to vector<64x256xf32>
    %161 = arith.addf %158, %160 : vector<64x256xf32>
    %c17_i32_86 = arith.constant 17 : i32
    %162 = tpu.dynamic_rotate %80 by %c17_i32_86 dim 1 : vector<32x256xf32>, i32 -> vector<32x256xf32>
    %163 = vector.extract_strided_slice %0 {offsets = [0, 0], sizes = [1, 256], strides = [1, 1]} : vector<8x256xf32> to vector<1x256xf32>
    %164 = vector.broadcast %163 : vector<1x256xf32> to vector<32x256xf32>
    %165 = arith.mulf %162, %164 : vector<32x256xf32>
    %c0_87 = arith.constant 0 : index
    %c0_88 = arith.constant 0 : index
    %c0_89 = arith.constant 0 : index
    %166 = vector.load %arg10[%c0_87, %c0_88, %c0_89] : memref<9x32x32xf32, #tpu.memory_space<vmem>>, vector<1x32x32xf32>
    %167 = vector.shape_cast %166 : vector<1x32x32xf32> to vector<32x32xf32>
    %cst_90 = arith.constant dense<0.000000e+00> : vector<32x256xf32>
    %168 = tpu.matmul %167, %165, %cst_90 {dimension_numbers = #tpu.dot_dimension_numbers<[1], [0], [0], [1], [0, 0, 1, 1], [], []>} : vector<32x32xf32>, vector<32x256xf32>, vector<32x256xf32> -> vector<32x256xf32>
    %c16_i32_91 = arith.constant 16 : i32
    %169 = tpu.dynamic_rotate %80 by %c16_i32_91 dim 1 : vector<32x256xf32>, i32 -> vector<32x256xf32>
    %170 = vector.extract_strided_slice %0 {offsets = [1, 0], sizes = [1, 256], strides = [1, 1]} : vector<8x256xf32> to vector<1x256xf32>
    %171 = vector.broadcast %170 : vector<1x256xf32> to vector<32x256xf32>
    %172 = arith.mulf %169, %171 : vector<32x256xf32>
    %c1_92 = arith.constant 1 : index
    %c0_93 = arith.constant 0 : index
    %c0_94 = arith.constant 0 : index
    %173 = vector.load %arg10[%c1_92, %c0_93, %c0_94] : memref<9x32x32xf32, #tpu.memory_space<vmem>>, vector<1x32x32xf32>
    %174 = vector.shape_cast %173 : vector<1x32x32xf32> to vector<32x32xf32>
    %cst_95 = arith.constant dense<0.000000e+00> : vector<32x256xf32>
    %175 = tpu.matmul %174, %172, %cst_95 {dimension_numbers = #tpu.dot_dimension_numbers<[1], [0], [0], [1], [0, 0, 1, 1], [], []>} : vector<32x32xf32>, vector<32x256xf32>, vector<32x256xf32> -> vector<32x256xf32>
    %176 = arith.addf %168, %175 : vector<32x256xf32>
    %c15_i32_96 = arith.constant 15 : i32
    %177 = tpu.dynamic_rotate %80 by %c15_i32_96 dim 1 : vector<32x256xf32>, i32 -> vector<32x256xf32>
    %178 = vector.extract_strided_slice %0 {offsets = [2, 0], sizes = [1, 256], strides = [1, 1]} : vector<8x256xf32> to vector<1x256xf32>
    %179 = vector.broadcast %178 : vector<1x256xf32> to vector<32x256xf32>
    %180 = arith.mulf %177, %179 : vector<32x256xf32>
    %c2_97 = arith.constant 2 : index
    %c0_98 = arith.constant 0 : index
    %c0_99 = arith.constant 0 : index
    %181 = vector.load %arg10[%c2_97, %c0_98, %c0_99] : memref<9x32x32xf32, #tpu.memory_space<vmem>>, vector<1x32x32xf32>
    %182 = vector.shape_cast %181 : vector<1x32x32xf32> to vector<32x32xf32>
    %cst_100 = arith.constant dense<0.000000e+00> : vector<32x256xf32>
    %183 = tpu.matmul %182, %180, %cst_100 {dimension_numbers = #tpu.dot_dimension_numbers<[1], [0], [0], [1], [0, 0, 1, 1], [], []>} : vector<32x32xf32>, vector<32x256xf32>, vector<32x256xf32> -> vector<32x256xf32>
    %184 = arith.addf %176, %183 : vector<32x256xf32>
    %c1_i32_101 = arith.constant 1 : i32
    %185 = tpu.dynamic_rotate %80 by %c1_i32_101 dim 1 : vector<32x256xf32>, i32 -> vector<32x256xf32>
    %186 = vector.extract_strided_slice %0 {offsets = [3, 0], sizes = [1, 256], strides = [1, 1]} : vector<8x256xf32> to vector<1x256xf32>
    %187 = vector.broadcast %186 : vector<1x256xf32> to vector<32x256xf32>
    %188 = arith.mulf %185, %187 : vector<32x256xf32>
    %c3_102 = arith.constant 3 : index
    %c0_103 = arith.constant 0 : index
    %c0_104 = arith.constant 0 : index
    %189 = vector.load %arg10[%c3_102, %c0_103, %c0_104] : memref<9x32x32xf32, #tpu.memory_space<vmem>>, vector<1x32x32xf32>
    %190 = vector.shape_cast %189 : vector<1x32x32xf32> to vector<32x32xf32>
    %cst_105 = arith.constant dense<0.000000e+00> : vector<32x256xf32>
    %191 = tpu.matmul %190, %188, %cst_105 {dimension_numbers = #tpu.dot_dimension_numbers<[1], [0], [0], [1], [0, 0, 1, 1], [], []>} : vector<32x32xf32>, vector<32x256xf32>, vector<32x256xf32> -> vector<32x256xf32>
    %192 = arith.addf %184, %191 : vector<32x256xf32>
    %c4_106 = arith.constant 4 : index
    %c0_107 = arith.constant 0 : index
    %c0_108 = arith.constant 0 : index
    %193 = vector.load %arg10[%c4_106, %c0_107, %c0_108] : memref<9x32x32xf32, #tpu.memory_space<vmem>>, vector<1x32x32xf32>
    %194 = vector.shape_cast %193 : vector<1x32x32xf32> to vector<32x32xf32>
    %cst_109 = arith.constant dense<0.000000e+00> : vector<32x256xf32>
    %195 = tpu.matmul %194, %80, %cst_109 {dimension_numbers = #tpu.dot_dimension_numbers<[1], [0], [0], [1], [0, 0, 1, 1], [], []>} : vector<32x32xf32>, vector<32x256xf32>, vector<32x256xf32> -> vector<32x256xf32>
    %196 = arith.addf %192, %195 : vector<32x256xf32>
    %c255_i32_110 = arith.constant 255 : i32
    %197 = tpu.dynamic_rotate %80 by %c255_i32_110 dim 1 : vector<32x256xf32>, i32 -> vector<32x256xf32>
    %198 = vector.extract_strided_slice %0 {offsets = [4, 0], sizes = [1, 256], strides = [1, 1]} : vector<8x256xf32> to vector<1x256xf32>
    %199 = vector.broadcast %198 : vector<1x256xf32> to vector<32x256xf32>
    %200 = arith.mulf %197, %199 : vector<32x256xf32>
    %c5_111 = arith.constant 5 : index
    %c0_112 = arith.constant 0 : index
    %c0_113 = arith.constant 0 : index
    %201 = vector.load %arg10[%c5_111, %c0_112, %c0_113] : memref<9x32x32xf32, #tpu.memory_space<vmem>>, vector<1x32x32xf32>
    %202 = vector.shape_cast %201 : vector<1x32x32xf32> to vector<32x32xf32>
    %cst_114 = arith.constant dense<0.000000e+00> : vector<32x256xf32>
    %203 = tpu.matmul %202, %200, %cst_114 {dimension_numbers = #tpu.dot_dimension_numbers<[1], [0], [0], [1], [0, 0, 1, 1], [], []>} : vector<32x32xf32>, vector<32x256xf32>, vector<32x256xf32> -> vector<32x256xf32>
    %204 = arith.addf %196, %203 : vector<32x256xf32>
    %c241_i32_115 = arith.constant 241 : i32
    %205 = tpu.dynamic_rotate %80 by %c241_i32_115 dim 1 : vector<32x256xf32>, i32 -> vector<32x256xf32>
    %206 = vector.extract_strided_slice %0 {offsets = [5, 0], sizes = [1, 256], strides = [1, 1]} : vector<8x256xf32> to vector<1x256xf32>
    %207 = vector.broadcast %206 : vector<1x256xf32> to vector<32x256xf32>
    %208 = arith.mulf %205, %207 : vector<32x256xf32>
    %c6_116 = arith.constant 6 : index
    %c0_117 = arith.constant 0 : index
    %c0_118 = arith.constant 0 : index
    %209 = vector.load %arg10[%c6_116, %c0_117, %c0_118] : memref<9x32x32xf32, #tpu.memory_space<vmem>>, vector<1x32x32xf32>
    %210 = vector.shape_cast %209 : vector<1x32x32xf32> to vector<32x32xf32>
    %cst_119 = arith.constant dense<0.000000e+00> : vector<32x256xf32>
    %211 = tpu.matmul %210, %208, %cst_119 {dimension_numbers = #tpu.dot_dimension_numbers<[1], [0], [0], [1], [0, 0, 1, 1], [], []>} : vector<32x32xf32>, vector<32x256xf32>, vector<32x256xf32> -> vector<32x256xf32>
    %212 = arith.addf %204, %211 : vector<32x256xf32>
    %c240_i32_120 = arith.constant 240 : i32
    %213 = tpu.dynamic_rotate %80 by %c240_i32_120 dim 1 : vector<32x256xf32>, i32 -> vector<32x256xf32>
    %214 = vector.extract_strided_slice %0 {offsets = [6, 0], sizes = [1, 256], strides = [1, 1]} : vector<8x256xf32> to vector<1x256xf32>
    %215 = vector.broadcast %214 : vector<1x256xf32> to vector<32x256xf32>
    %216 = arith.mulf %213, %215 : vector<32x256xf32>
    %c7_121 = arith.constant 7 : index
    %c0_122 = arith.constant 0 : index
    %c0_123 = arith.constant 0 : index
    %217 = vector.load %arg10[%c7_121, %c0_122, %c0_123] : memref<9x32x32xf32, #tpu.memory_space<vmem>>, vector<1x32x32xf32>
    %218 = vector.shape_cast %217 : vector<1x32x32xf32> to vector<32x32xf32>
    %cst_124 = arith.constant dense<0.000000e+00> : vector<32x256xf32>
    %219 = tpu.matmul %218, %216, %cst_124 {dimension_numbers = #tpu.dot_dimension_numbers<[1], [0], [0], [1], [0, 0, 1, 1], [], []>} : vector<32x32xf32>, vector<32x256xf32>, vector<32x256xf32> -> vector<32x256xf32>
    %220 = arith.addf %212, %219 : vector<32x256xf32>
    %c239_i32_125 = arith.constant 239 : i32
    %221 = tpu.dynamic_rotate %80 by %c239_i32_125 dim 1 : vector<32x256xf32>, i32 -> vector<32x256xf32>
    %222 = vector.extract_strided_slice %0 {offsets = [7, 0], sizes = [1, 256], strides = [1, 1]} : vector<8x256xf32> to vector<1x256xf32>
    %223 = vector.broadcast %222 : vector<1x256xf32> to vector<32x256xf32>
    %224 = arith.mulf %221, %223 : vector<32x256xf32>
    %c8_126 = arith.constant 8 : index
    %c0_127 = arith.constant 0 : index
    %c0_128 = arith.constant 0 : index
    %225 = vector.load %arg10[%c8_126, %c0_127, %c0_128] : memref<9x32x32xf32, #tpu.memory_space<vmem>>, vector<1x32x32xf32>
    %226 = vector.shape_cast %225 : vector<1x32x32xf32> to vector<32x32xf32>
    %cst_129 = arith.constant dense<0.000000e+00> : vector<32x256xf32>
    %227 = tpu.matmul %226, %224, %cst_129 {dimension_numbers = #tpu.dot_dimension_numbers<[1], [0], [0], [1], [0, 0, 1, 1], [], []>} : vector<32x32xf32>, vector<32x256xf32>, vector<32x256xf32> -> vector<32x256xf32>
    %228 = arith.addf %220, %227 : vector<32x256xf32>
    %c0_130 = arith.constant 0 : index
    %c0_131 = arith.constant 0 : index
    %229 = vector.load %arg11[%c0_130, %c0_131] : memref<32x1xf32, #tpu.memory_space<vmem>>, vector<32x1xf32>
    %230 = vector.broadcast %229 : vector<32x1xf32> to vector<32x256xf32>
    %231 = arith.addf %228, %230 : vector<32x256xf32>
    %232 = arith.negf %231 : vector<32x256xf32>
    %233 = math.exp %232 : vector<32x256xf32>
    %cst_132 = arith.constant 1.000000e+00 : f32
    %234 = vector.broadcast %cst_132 : f32 to vector<32x256xf32>
    %235 = arith.addf %234, %233 : vector<32x256xf32>
    %236 = arith.divf %234, %235 : vector<32x256xf32>
    %237 = arith.mulf %231, %236 : vector<32x256xf32>
    %c0_133 = arith.constant 0 : index
    %c0_134 = arith.constant 0 : index
    %238 = vector.load %arg12[%c0_133, %c0_134] : memref<16x32xf32, #tpu.memory_space<vmem>>, vector<16x32xf32>
    %cst_135 = arith.constant dense<0.000000e+00> : vector<16x256xf32>
    %239 = tpu.matmul %238, %237, %cst_135 {dimension_numbers = #tpu.dot_dimension_numbers<[1], [0], [0], [1], [0, 0, 1, 1], [], []>} : vector<16x32xf32>, vector<32x256xf32>, vector<16x256xf32> -> vector<16x256xf32>
    %c0_136 = arith.constant 0 : index
    %c0_137 = arith.constant 0 : index
    %240 = vector.load %arg13[%c0_136, %c0_137] : memref<16x1xf32, #tpu.memory_space<vmem>>, vector<16x1xf32>
    %241 = vector.broadcast %240 : vector<16x1xf32> to vector<16x256xf32>
    %242 = arith.addf %239, %241 : vector<16x256xf32>
    %243 = tpu.iota {dimensions = array<i32: 0>} : vector<16x1xi32>
    %244 = arith.sitofp %243 : vector<16x1xi32> to vector<16x1xf32>
    %245 = vector.extract_strided_slice %161 {offsets = [0, 0], sizes = [16, 256], strides = [1, 1]} : vector<64x256xf32> to vector<16x256xf32>
    %cst_138 = arith.constant dense<0xFF800000> : vector<256xf32>
    %246 = vector.multi_reduction <maximumf>, %245, %cst_138 [0] : vector<16x256xf32> to vector<256xf32>
    %247 = vector.shape_cast %246 : vector<256xf32> to vector<1x256xf32>
    %248 = vector.broadcast %247 : vector<1x256xf32> to vector<16x256xf32>
    %249 = arith.subf %245, %248 : vector<16x256xf32>
    %250 = math.exp %249 : vector<16x256xf32>
    %cst_139 = arith.constant dense<0.000000e+00> : vector<256xf32>
    %251 = vector.multi_reduction <add>, %250, %cst_139 [0] : vector<16x256xf32> to vector<256xf32>
    %252 = vector.shape_cast %251 : vector<256xf32> to vector<1x256xf32>
    %253 = vector.broadcast %244 : vector<16x1xf32> to vector<16x256xf32>
    %254 = arith.mulf %250, %253 : vector<16x256xf32>
    %cst_140 = arith.constant dense<0.000000e+00> : vector<256xf32>
    %255 = vector.multi_reduction <add>, %254, %cst_140 [0] : vector<16x256xf32> to vector<256xf32>
    %256 = vector.shape_cast %255 : vector<256xf32> to vector<1x256xf32>
    %257 = tpu.reciprocal %252 : vector<1x256xf32> -> vector<1x256xf32>
    %258 = arith.mulf %256, %257 : vector<1x256xf32>
    %259 = vector.extract_strided_slice %161 {offsets = [16, 0], sizes = [16, 256], strides = [1, 1]} : vector<64x256xf32> to vector<16x256xf32>
    %cst_141 = arith.constant dense<0xFF800000> : vector<256xf32>
    %260 = vector.multi_reduction <maximumf>, %259, %cst_141 [0] : vector<16x256xf32> to vector<256xf32>
    %261 = vector.shape_cast %260 : vector<256xf32> to vector<1x256xf32>
    %262 = vector.broadcast %261 : vector<1x256xf32> to vector<16x256xf32>
    %263 = arith.subf %259, %262 : vector<16x256xf32>
    %264 = math.exp %263 : vector<16x256xf32>
    %cst_142 = arith.constant dense<0.000000e+00> : vector<256xf32>
    %265 = vector.multi_reduction <add>, %264, %cst_142 [0] : vector<16x256xf32> to vector<256xf32>
    %266 = vector.shape_cast %265 : vector<256xf32> to vector<1x256xf32>
    %267 = vector.broadcast %244 : vector<16x1xf32> to vector<16x256xf32>
    %268 = arith.mulf %264, %267 : vector<16x256xf32>
    %cst_143 = arith.constant dense<0.000000e+00> : vector<256xf32>
    %269 = vector.multi_reduction <add>, %268, %cst_143 [0] : vector<16x256xf32> to vector<256xf32>
    %270 = vector.shape_cast %269 : vector<256xf32> to vector<1x256xf32>
    %271 = tpu.reciprocal %266 : vector<1x256xf32> -> vector<1x256xf32>
    %272 = arith.mulf %270, %271 : vector<1x256xf32>
    %273 = vector.extract_strided_slice %161 {offsets = [32, 0], sizes = [16, 256], strides = [1, 1]} : vector<64x256xf32> to vector<16x256xf32>
    %cst_144 = arith.constant dense<0xFF800000> : vector<256xf32>
    %274 = vector.multi_reduction <maximumf>, %273, %cst_144 [0] : vector<16x256xf32> to vector<256xf32>
    %275 = vector.shape_cast %274 : vector<256xf32> to vector<1x256xf32>
    %276 = vector.broadcast %275 : vector<1x256xf32> to vector<16x256xf32>
    %277 = arith.subf %273, %276 : vector<16x256xf32>
    %278 = math.exp %277 : vector<16x256xf32>
    %cst_145 = arith.constant dense<0.000000e+00> : vector<256xf32>
    %279 = vector.multi_reduction <add>, %278, %cst_145 [0] : vector<16x256xf32> to vector<256xf32>
    %280 = vector.shape_cast %279 : vector<256xf32> to vector<1x256xf32>
    %281 = vector.broadcast %244 : vector<16x1xf32> to vector<16x256xf32>
    %282 = arith.mulf %278, %281 : vector<16x256xf32>
    %cst_146 = arith.constant dense<0.000000e+00> : vector<256xf32>
    %283 = vector.multi_reduction <add>, %282, %cst_146 [0] : vector<16x256xf32> to vector<256xf32>
    %284 = vector.shape_cast %283 : vector<256xf32> to vector<1x256xf32>
    %285 = tpu.reciprocal %280 : vector<1x256xf32> -> vector<1x256xf32>
    %286 = arith.mulf %284, %285 : vector<1x256xf32>
    %287 = vector.extract_strided_slice %161 {offsets = [48, 0], sizes = [16, 256], strides = [1, 1]} : vector<64x256xf32> to vector<16x256xf32>
    %cst_147 = arith.constant dense<0xFF800000> : vector<256xf32>
    %288 = vector.multi_reduction <maximumf>, %287, %cst_147 [0] : vector<16x256xf32> to vector<256xf32>
    %289 = vector.shape_cast %288 : vector<256xf32> to vector<1x256xf32>
    %290 = vector.broadcast %289 : vector<1x256xf32> to vector<16x256xf32>
    %291 = arith.subf %287, %290 : vector<16x256xf32>
    %292 = math.exp %291 : vector<16x256xf32>
    %cst_148 = arith.constant dense<0.000000e+00> : vector<256xf32>
    %293 = vector.multi_reduction <add>, %292, %cst_148 [0] : vector<16x256xf32> to vector<256xf32>
    %294 = vector.shape_cast %293 : vector<256xf32> to vector<1x256xf32>
    %295 = vector.broadcast %244 : vector<16x1xf32> to vector<16x256xf32>
    %296 = arith.mulf %292, %295 : vector<16x256xf32>
    %cst_149 = arith.constant dense<0.000000e+00> : vector<256xf32>
    %297 = vector.multi_reduction <add>, %296, %cst_149 [0] : vector<16x256xf32> to vector<256xf32>
    %298 = vector.shape_cast %297 : vector<256xf32> to vector<1x256xf32>
    %299 = tpu.reciprocal %294 : vector<1x256xf32> -> vector<1x256xf32>
    %300 = arith.mulf %298, %299 : vector<1x256xf32>
    %c0_150 = arith.constant 0 : index
    %c0_151 = arith.constant 0 : index
    %301 = vector.load %arg3[%c0_150, %c0_151] : memref<2x256xf32, #tpu.memory_space<vmem>>, vector<2x256xf32>
    %302 = vector.extract_strided_slice %301 {offsets = [0, 0], sizes = [1, 256], strides = [1, 1]} : vector<2x256xf32> to vector<1x256xf32>
    %303 = vector.extract_strided_slice %301 {offsets = [1, 0], sizes = [1, 256], strides = [1, 1]} : vector<2x256xf32> to vector<1x256xf32>
    %304 = arith.subf %302, %258 : vector<1x256xf32>
    %305 = arith.subf %303, %272 : vector<1x256xf32>
    %306 = arith.addf %302, %286 : vector<1x256xf32>
    %307 = arith.addf %303, %300 : vector<1x256xf32>
    %308 = arith.addf %304, %306 : vector<1x256xf32>
    %cst_152 = arith.constant 5.000000e-01 : f32
    %309 = vector.broadcast %cst_152 : f32 to vector<1x256xf32>
    %310 = arith.mulf %308, %309 : vector<1x256xf32>
    %311 = arith.addf %305, %307 : vector<1x256xf32>
    %cst_153 = arith.constant 5.000000e-01 : f32
    %312 = vector.broadcast %cst_153 : f32 to vector<1x256xf32>
    %313 = arith.mulf %311, %312 : vector<1x256xf32>
    %314 = arith.subf %306, %304 : vector<1x256xf32>
    %315 = arith.subf %307, %305 : vector<1x256xf32>
    %316 = tpu.concatenate %310, %313, %314, %315 in 0 : vector<1x256xf32>, vector<1x256xf32>, vector<1x256xf32>, vector<1x256xf32> -> vector<4x256xf32>
    %cst_154 = arith.constant 8.000000e+00 : f32
    %317 = vector.broadcast %cst_154 : f32 to vector<4x256xf32>
    %318 = arith.mulf %316, %317 : vector<4x256xf32>
    %c0_155 = arith.constant 0 : index
    %c0_156 = arith.constant 0 : index
    %c0_157 = arith.constant 0 : index
    %319 = vector.load %arg14[%c0_155, %c0_156, %c0_157] : memref<1x20x256xf32, #tpu.memory_space<vmem>>, vector<1x4x256xf32>
    %320 = vector.shape_cast %319 : vector<1x4x256xf32> to vector<4x256xf32>
    %321 = vector.shape_cast %318 : vector<4x256xf32> to vector<1x4x256xf32>
    tpu.vector_store %arg14[%c0_155, %c0_156, %c0_157], %321 {strides = array<i32>} : memref<1x20x256xf32, #tpu.memory_space<vmem>>, vector<1x4x256xf32>,
    %322 = arith.negf %242 : vector<16x256xf32>
    %323 = math.exp %322 : vector<16x256xf32>
    %cst_158 = arith.constant 1.000000e+00 : f32
    %324 = vector.broadcast %cst_158 : f32 to vector<16x256xf32>
    %325 = arith.addf %324, %323 : vector<16x256xf32>
    %326 = arith.divf %324, %325 : vector<16x256xf32>
    %c0_159 = arith.constant 0 : index
    %c4_160 = arith.constant 4 : index
    %c0_161 = arith.constant 0 : index
    %327 = vector.load %arg14[%c0_159, %c4_160, %c0_161] : memref<1x20x256xf32, #tpu.memory_space<vmem>>, vector<1x16x256xf32>
    %328 = vector.shape_cast %327 : vector<1x16x256xf32> to vector<16x256xf32>
    %329 = vector.shape_cast %326 : vector<16x256xf32> to vector<1x16x256xf32>
    tpu.vector_store %arg14[%c0_159, %c4_160, %c0_161], %329 {strides = array<i32>} : memref<1x20x256xf32, #tpu.memory_space<vmem>>, vector<1x16x256xf32>,
    return
  }
  func.func @transform_0(%arg0: i32) -> (i32, i32, i32) {
    %c0_i32 = arith.constant 0 : i32
    %c0_i32_0 = arith.constant 0 : i32
    %c0_i32_1 = arith.constant 0 : i32
    return %arg0, %c0_i32, %c0_i32_0 : i32, i32, i32
  }
  func.func @transform_1(%arg0: i32) -> (i32, i32) {
    %c0_i32 = arith.constant 0 : i32
    %c0_i32_0 = arith.constant 0 : i32
    %c0_i32_1 = arith.constant 0 : i32
    return %c0_i32, %c0_i32_0 : i32, i32
  }
  func.func @transform_2(%arg0: i32) -> (i32, i32) {
    %c0_i32 = arith.constant 0 : i32
    %c0_i32_0 = arith.constant 0 : i32
    %c0_i32_1 = arith.constant 0 : i32
    return %c0_i32, %c0_i32_0 : i32, i32
  }
  func.func @transform_3(%arg0: i32) -> (i32, i32, i32) {
    %c0_i32 = arith.constant 0 : i32
    %c0_i32_0 = arith.constant 0 : i32
    %c0_i32_1 = arith.constant 0 : i32
    %c0_i32_2 = arith.constant 0 : i32
    return %c0_i32, %c0_i32_0, %c0_i32_1 : i32, i32, i32
  }
  func.func @transform_4(%arg0: i32) -> (i32, i32) {
    %c0_i32 = arith.constant 0 : i32
    %c0_i32_0 = arith.constant 0 : i32
    %c0_i32_1 = arith.constant 0 : i32
    return %c0_i32, %c0_i32_0 : i32, i32
  }
  func.func @transform_5(%arg0: i32) -> (i32, i32, i32) {
    %c0_i32 = arith.constant 0 : i32
    %c0_i32_0 = arith.constant 0 : i32
    %c0_i32_1 = arith.constant 0 : i32
    %c0_i32_2 = arith.constant 0 : i32
    return %c0_i32, %c0_i32_0, %c0_i32_1 : i32, i32, i32
  }
  func.func @transform_6(%arg0: i32) -> (i32, i32) {
    %c0_i32 = arith.constant 0 : i32
    %c0_i32_0 = arith.constant 0 : i32
    %c0_i32_1 = arith.constant 0 : i32
    return %c0_i32, %c0_i32_0 : i32, i32
  }
  func.func @transform_7(%arg0: i32) -> (i32, i32) {
    %c0_i32 = arith.constant 0 : i32
    %c0_i32_0 = arith.constant 0 : i32
    %c0_i32_1 = arith.constant 0 : i32
    return %c0_i32, %c0_i32_0 : i32, i32
  }
  func.func @transform_8(%arg0: i32) -> (i32, i32) {
    %c0_i32 = arith.constant 0 : i32
    %c0_i32_0 = arith.constant 0 : i32
    %c0_i32_1 = arith.constant 0 : i32
    return %c0_i32, %c0_i32_0 : i32, i32
  }
  func.func @transform_9(%arg0: i32) -> (i32, i32, i32) {
    %c0_i32 = arith.constant 0 : i32
    %c0_i32_0 = arith.constant 0 : i32
    %c0_i32_1 = arith.constant 0 : i32
    %c0_i32_2 = arith.constant 0 : i32
    return %c0_i32, %c0_i32_0, %c0_i32_1 : i32, i32, i32
  }
  func.func @transform_10(%arg0: i32) -> (i32, i32) {
    %c0_i32 = arith.constant 0 : i32
    %c0_i32_0 = arith.constant 0 : i32
    %c0_i32_1 = arith.constant 0 : i32
    return %c0_i32, %c0_i32_0 : i32, i32
  }
  func.func @transform_11(%arg0: i32) -> (i32, i32) {
    %c0_i32 = arith.constant 0 : i32
    %c0_i32_0 = arith.constant 0 : i32
    %c0_i32_1 = arith.constant 0 : i32
    return %c0_i32, %c0_i32_0 : i32, i32
  }
  func.func @transform_12(%arg0: i32) -> (i32, i32) {
    %c0_i32 = arith.constant 0 : i32
    %c0_i32_0 = arith.constant 0 : i32
    %c0_i32_1 = arith.constant 0 : i32
    return %c0_i32, %c0_i32_0 : i32, i32
  }
  func.func @transform_13(%arg0: i32) -> (i32, i32, i32) {
    %c0_i32 = arith.constant 0 : i32
    %c0_i32_0 = arith.constant 0 : i32
    %c0_i32_1 = arith.constant 0 : i32
    return %arg0, %c0_i32, %c0_i32_0 : i32, i32, i32
  }
}

</mosaic_0001>

<llo_original>
// kernel: tpu_custom_call.1
$region0: #{tpu_custom_call.1}
  #allocation0 [shape = 'u32[]', space=smem, size = 0x4, offset = 0x4, fixed_abs, tag = 'smem constant byte address 0x4 - core index']
  #allocation1 [shape = 'u32[144,128]{1,0:T(1,128)}', space=vmem, size = 0x12000, scoped, tag = 'internal scratch']
  %s0 = inlined_call_operand.vmem [shape: f32[2,32,256], index: 0, kind: input, shape index: {}]
  %s1 = inlined_call_operand.vmem [shape: f32[8,256], index: 1, kind: input, shape index: {}]
  %s2 = inlined_call_operand.vmem [shape: f32[2,256], index: 2, kind: input, shape index: {}]
  %s3 = inlined_call_operand.vmem [shape: f32[9,96,32], index: 3, kind: input, shape index: {}]
  %s4 = inlined_call_operand.vmem [shape: f32[96,1], index: 4, kind: input, shape index: {}]
  %s5 = inlined_call_operand.vmem [shape: f32[9,64,64], index: 5, kind: input, shape index: {}]
  %s6 = inlined_call_operand.vmem [shape: f32[64,1], index: 6, kind: input, shape index: {}]
  %s7 = inlined_call_operand.vmem [shape: f32[64,64], index: 7, kind: input, shape index: {}]
  %s8 = inlined_call_operand.vmem [shape: f32[64,1], index: 8, kind: input, shape index: {}]
  %s9 = inlined_call_operand.vmem [shape: f32[9,32,32], index: 9, kind: input, shape index: {}]
  %s10 = inlined_call_operand.vmem [shape: f32[32,1], index: 10, kind: input, shape index: {}]
  %s11 = inlined_call_operand.vmem [shape: f32[16,32], index: 11, kind: input, shape index: {}]
  %s12 = inlined_call_operand.vmem [shape: f32[16,1], index: 12, kind: input, shape index: {}]
  %s13 = inlined_call_operand.vmem [shape: f32[2,20,256], index: 13, kind: output, shape index: {}]
  %s14 = sld [smem:[#allocation0]]
  $region85: #{tpu_custom_call.1} parent=0
    _
  %s16 = ssub.s32 1, %s14
  %s17 = scalar_select 0, %s16, %s14
  loop: start=0, step=1, limit=4
  $region2: #{tpu_custom_call.1} parent=0 // loop_pre_header
    _
  $region3: #{tpu_custom_call.1} parent=0 // loop_header
    %s19 = sphi 0, %s23
    %p20 = scmp.ge.s32.totalorder %s19, 4
    %s29 = sphi 0, %s31
    %s32 = sphi 0, %s29
    %s33 = sphi 0, %s32
    %s49 = sphi 0, %s33
    %s53 = sphi 0, %s53
    %s55 = sphi 0, %s53
    %s56 = sphi 0, %s55
    %s70 = sphi 0, %s56
    %s74 = sphi 0, %s74
    %s76 = sphi 0, %s74
    %s77 = sphi 0, %s76
    %s91 = sphi 0, %s77
    %s95 = sphi 0, %s95
    %s97 = sphi 0, %s95
    %s98 = sphi 0, %s97
    %s112 = sphi 0, %s98
    %s116 = sphi 0, %s116
    %s118 = sphi 0, %s116
    %s119 = sphi 0, %s118
    %s133 = sphi 0, %s119
    %s137 = sphi 0, %s137
    %s139 = sphi 0, %s137
    %s140 = sphi 0, %s139
    %s154 = sphi 0, %s140
    %s158 = sphi 0, %s158
    %s160 = sphi 0, %s158
    %s161 = sphi 0, %s160
    %s175 = sphi 0, %s161
    %s179 = sphi 0, %s179
    %s181 = sphi 0, %s179
    %s182 = sphi 0, %s181
    %s196 = sphi 0, %s182
    %s200 = sphi 0, %s200
    %s202 = sphi 0, %s200
    %s203 = sphi 0, %s202
    %s217 = sphi 0, %s203
    %s221 = sphi 0, %s221
    %s223 = sphi 0, %s221
    %s224 = sphi 0, %s223
    %s238 = sphi 0, %s224
    %s242 = sphi 0, %s242
    %s244 = sphi 0, %s242
    %s245 = sphi 0, %s244
    %s259 = sphi 0, %s245
    %s263 = sphi 0, %s263
    %s265 = sphi 0, %s263
    %s266 = sphi 0, %s265
    %s280 = sphi 0, %s266
    %s284 = sphi 0, %s284
    %s286 = sphi 0, %s284
    %s287 = sphi 0, %s286
    %s301 = sphi 0, %s287
    %s307 = sphi 0, %s309
    %s310 = sphi 0, %s307
    %s311 = sphi 0, %s310
    %s327 = sphi 0, %s311
  $region4: #{tpu_custom_call.1} parent=0 // loop_header_branch
    %22 = sbr.rel (%p20) target = $region8
  $region5: #{tpu_custom_call.1} parent=0 // loop_body
    %s24 = ssub.s32 %s19, 1
    %s25 = ssub.s32 %s19, 2
    %s26 = sadd.s32 %s19, 1
    %s27 = ssub.s32 %s19, %s26
    %p28 = scmp.eq.s32.totalorder %s27, 0
    %s30 = sadd.s32 %s29, 1
    %s31 = scalar_select %p28, %s29, %s30
    %p34 = pneg %p28
    %p35 = scmp.eq.s32.totalorder %s19, 1
    %p36 = por %p34, %p35
    %p37 = scmp.ne.s32.totalorder %s29, %s32
    %p38 = scmp.eq.s32.totalorder %s19, 0
    %p39 = por %p37, %p38
    %p40 = scmp.ne.s32.totalorder %s29, %s32
    %p41 = scmp.eq.s32.totalorder %s24, 1
    %p42 = por %p40, %p41
    %p43 = scmp.ne.s32.totalorder %s32, %s33
    %p44 = scmp.eq.s32.totalorder %s24, 0
    %p45 = por %p43, %p44
    %p46 = scmp.ne.s32.totalorder %s32, %s33
    %p47 = scmp.eq.s32.totalorder %s25, 1
    %p48 = por %p46, %p47
    %p50 = scmp.ne.s32.totalorder %s33, %s49
    %p51 = scmp.eq.s32.totalorder %s25, 0
    %p52 = por %p50, %p51
    %s54 = sadd.s32 %s53, 1
    %p57 = scmp.eq.s32.totalorder %s19, 1
    %p58 = scmp.ne.s32.totalorder %s53, %s55
    %p59 = scmp.eq.s32.totalorder %s19, 0
    %p60 = por %p58, %p59
    %p61 = scmp.ne.s32.totalorder %s53, %s55
    %p62 = scmp.eq.s32.totalorder %s24, 1
    %p63 = por %p61, %p62
    %p64 = scmp.ne.s32.totalorder %s55, %s56
    %p65 = scmp.eq.s32.totalorder %s24, 0
    %p66 = por %p64, %p65
    %p67 = scmp.ne.s32.totalorder %s55, %s56
    %p68 = scmp.eq.s32.totalorder %s25, 1
    %p69 = por %p67, %p68
    %p71 = scmp.ne.s32.totalorder %s56, %s70
    %p72 = scmp.eq.s32.totalorder %s25, 0
    %p73 = por %p71, %p72
    %s75 = sadd.s32 %s74, 1
    %p78 = scmp.eq.s32.totalorder %s19, 1
    %p79 = scmp.ne.s32.totalorder %s74, %s76
    %p80 = scmp.eq.s32.totalorder %s19, 0
    %p81 = por %p79, %p80
    %p82 = scmp.ne.s32.totalorder %s74, %s76
    %p83 = scmp.eq.s32.totalorder %s24, 1
    %p84 = por %p82, %p83
    %p85 = scmp.ne.s32.totalorder %s76, %s77
    %p86 = scmp.eq.s32.totalorder %s24, 0
    %p87 = por %p85, %p86
    %p88 = scmp.ne.s32.totalorder %s76, %s77
    %p89 = scmp.eq.s32.totalorder %s25, 1
    %p90 = por %p88, %p89
    %p92 = scmp.ne.s32.totalorder %s77, %s91
    %p93 = scmp.eq.s32.totalorder %s25, 0
    %p94 = por %p92, %p93
    %s96 = sadd.s32 %s95, 1
    %p99 = scmp.eq.s32.totalorder %s19, 1
    %p100 = scmp.ne.s32.totalorder %s95, %s97
    %p101 = scmp.eq.s32.totalorder %s19, 0
    %p102 = por %p100, %p101
    %p103 = scmp.ne.s32.totalorder %s95, %s97
    %p104 = scmp.eq.s32.totalorder %s24, 1
    %p105 = por %p103, %p104
    %p106 = scmp.ne.s32.totalorder %s97, %s98
    %p107 = scmp.eq.s32.totalorder %s24, 0
    %p108 = por %p106, %p107
    %p109 = scmp.ne.s32.totalorder %s97, %s98
    %p110 = scmp.eq.s32.totalorder %s25, 1
    %p111 = por %p109, %p110
    %p113 = scmp.ne.s32.totalorder %s98, %s112
    %p114 = scmp.eq.s32.totalorder %s25, 0
    %p115 = por %p113, %p114
    %s117 = sadd.s32 %s116, 1
    %p120 = scmp.eq.s32.totalorder %s19, 1
    %p121 = scmp.ne.s32.totalorder %s116, %s118
    %p122 = scmp.eq.s32.totalorder %s19, 0
    %p123 = por %p121, %p122
    %p124 = scmp.ne.s32.totalorder %s116, %s118
    %p125 = scmp.eq.s32.totalorder %s24, 1
    %p126 = por %p124, %p125
    %p127 = scmp.ne.s32.totalorder %s118, %s119
    %p128 = scmp.eq.s32.totalorder %s24, 0
    %p129 = por %p127, %p128
    %p130 = scmp.ne.s32.totalorder %s118, %s119
    %p131 = scmp.eq.s32.totalorder %s25, 1
    %p132 = por %p130, %p131
    %p134 = scmp.ne.s32.totalorder %s119, %s133
    %p135 = scmp.eq.s32.totalorder %s25, 0
    %p136 = por %p134, %p135
    %s138 = sadd.s32 %s137, 1
    %p141 = scmp.eq.s32.totalorder %s19, 1
    %p142 = scmp.ne.s32.totalorder %s137, %s139
    %p143 = scmp.eq.s32.totalorder %s19, 0
    %p144 = por %p142, %p143
    %p145 = scmp.ne.s32.totalorder %s137, %s139
    %p146 = scmp.eq.s32.totalorder %s24, 1
    %p147 = por %p145, %p146
    %p148 = scmp.ne.s32.totalorder %s139, %s140
    %p149 = scmp.eq.s32.totalorder %s24, 0
    %p150 = por %p148, %p149
    %p151 = scmp.ne.s32.totalorder %s139, %s140
    %p152 = scmp.eq.s32.totalorder %s25, 1
    %p153 = por %p151, %p152
    %p155 = scmp.ne.s32.totalorder %s140, %s154
    %p156 = scmp.eq.s32.totalorder %s25, 0
    %p157 = por %p155, %p156
    %s159 = sadd.s32 %s158, 1
    %p162 = scmp.eq.s32.totalorder %s19, 1
    %p163 = scmp.ne.s32.totalorder %s158, %s160
    %p164 = scmp.eq.s32.totalorder %s19, 0
    %p165 = por %p163, %p164
    %p166 = scmp.ne.s32.totalorder %s158, %s160
    %p167 = scmp.eq.s32.totalorder %s24, 1
    %p168 = por %p166, %p167
    %p169 = scmp.ne.s32.totalorder %s160, %s161
    %p170 = scmp.eq.s32.totalorder %s24, 0
    %p171 = por %p169, %p170
    %p172 = scmp.ne.s32.totalorder %s160, %s161
    %p173 = scmp.eq.s32.totalorder %s25, 1
    %p174 = por %p172, %p173
    %p176 = scmp.ne.s32.totalorder %s161, %s175
    %p177 = scmp.eq.s32.totalorder %s25, 0
    %p178 = por %p176, %p177
    %s180 = sadd.s32 %s179, 1
    %p183 = scmp.eq.s32.totalorder %s19, 1
    %p184 = scmp.ne.s32.totalorder %s179, %s181
    %p185 = scmp.eq.s32.totalorder %s19, 0
    %p186 = por %p184, %p185
    %p187 = scmp.ne.s32.totalorder %s179, %s181
    %p188 = scmp.eq.s32.totalorder %s24, 1
    %p189 = por %p187, %p188
    %p190 = scmp.ne.s32.totalorder %s181, %s182
    %p191 = scmp.eq.s32.totalorder %s24, 0
    %p192 = por %p190, %p191
    %p193 = scmp.ne.s32.totalorder %s181, %s182
    %p194 = scmp.eq.s32.totalorder %s25, 1
    %p195 = por %p193, %p194
    %p197 = scmp.ne.s32.totalorder %s182, %s196
    %p198 = scmp.eq.s32.totalorder %s25, 0
    %p199 = por %p197, %p198
    %s201 = sadd.s32 %s200, 1
    %p204 = scmp.eq.s32.totalorder %s19, 1
    %p205 = scmp.ne.s32.totalorder %s200, %s202
    %p206 = scmp.eq.s32.totalorder %s19, 0
    %p207 = por %p205, %p206
    %p208 = scmp.ne.s32.totalorder %s200, %s202
    %p209 = scmp.eq.s32.totalorder %s24, 1
    %p210 = por %p208, %p209
    %p211 = scmp.ne.s32.totalorder %s202, %s203
    %p212 = scmp.eq.s32.totalorder %s24, 0
    %p213 = por %p211, %p212
    %p214 = scmp.ne.s32.totalorder %s202, %s203
    %p215 = scmp.eq.s32.totalorder %s25, 1
    %p216 = por %p214, %p215
    %p218 = scmp.ne.s32.totalorder %s203, %s217
    %p219 = scmp.eq.s32.totalorder %s25, 0
    %p220 = por %p218, %p219
    %s222 = sadd.s32 %s221, 1
    %p225 = scmp.eq.s32.totalorder %s19, 1
    %p226 = scmp.ne.s32.totalorder %s221, %s223
    %p227 = scmp.eq.s32.totalorder %s19, 0
    %p228 = por %p226, %p227
    %p229 = scmp.ne.s32.totalorder %s221, %s223
    %p230 = scmp.eq.s32.totalorder %s24, 1
    %p231 = por %p229, %p230
    %p232 = scmp.ne.s32.totalorder %s223, %s224
    %p233 = scmp.eq.s32.totalorder %s24, 0
    %p234 = por %p232, %p233
    %p235 = scmp.ne.s32.totalorder %s223, %s224
    %p236 = scmp.eq.s32.totalorder %s25, 1
    %p237 = por %p235, %p236
    %p239 = scmp.ne.s32.totalorder %s224, %s238
    %p240 = scmp.eq.s32.totalorder %s25, 0
    %p241 = por %p239, %p240
    %s243 = sadd.s32 %s242, 1
    %p246 = scmp.eq.s32.totalorder %s19, 1
    %p247 = scmp.ne.s32.totalorder %s242, %s244
    %p248 = scmp.eq.s32.totalorder %s19, 0
    %p249 = por %p247, %p248
    %p250 = scmp.ne.s32.totalorder %s242, %s244
    %p251 = scmp.eq.s32.totalorder %s24, 1
    %p252 = por %p250, %p251
    %p253 = scmp.ne.s32.totalorder %s244, %s245
    %p254 = scmp.eq.s32.totalorder %s24, 0
    %p255 = por %p253, %p254
    %p256 = scmp.ne.s32.totalorder %s244, %s245
    %p257 = scmp.eq.s32.totalorder %s25, 1
    %p258 = por %p256, %p257
    %p260 = scmp.ne.s32.totalorder %s245, %s259
    %p261 = scmp.eq.s32.totalorder %s25, 0
    %p262 = por %p260, %p261
    %s264 = sadd.s32 %s263, 1
    %p267 = scmp.eq.s32.totalorder %s19, 1
    %p268 = scmp.ne.s32.totalorder %s263, %s265
    %p269 = scmp.eq.s32.totalorder %s19, 0
    %p270 = por %p268, %p269
    %p271 = scmp.ne.s32.totalorder %s263, %s265
    %p272 = scmp.eq.s32.totalorder %s24, 1
    %p273 = por %p271, %p272
    %p274 = scmp.ne.s32.totalorder %s265, %s266
    %p275 = scmp.eq.s32.totalorder %s24, 0
    %p276 = por %p274, %p275
    %p277 = scmp.ne.s32.totalorder %s265, %s266
    %p278 = scmp.eq.s32.totalorder %s25, 1
    %p279 = por %p277, %p278
    %p281 = scmp.ne.s32.totalorder %s266, %s280
    %p282 = scmp.eq.s32.totalorder %s25, 0
    %p283 = por %p281, %p282
    %s285 = sadd.s32 %s284, 1
    %p288 = scmp.eq.s32.totalorder %s19, 1
    %p289 = scmp.ne.s32.totalorder %s284, %s286
    %p290 = scmp.eq.s32.totalorder %s19, 0
    %p291 = por %p289, %p290
    %p292 = scmp.ne.s32.totalorder %s284, %s286
    %p293 = scmp.eq.s32.totalorder %s24, 1
    %p294 = por %p292, %p293
    %p295 = scmp.ne.s32.totalorder %s286, %s287
    %p296 = scmp.eq.s32.totalorder %s24, 0
    %p297 = por %p295, %p296
    %p298 = scmp.ne.s32.totalorder %s286, %s287
    %p299 = scmp.eq.s32.totalorder %s25, 1
    %p300 = por %p298, %p299
    %p302 = scmp.ne.s32.totalorder %s287, %s301
    %p303 = scmp.eq.s32.totalorder %s25, 0
    %p304 = por %p302, %p303
    %s305 = ssub.s32 %s19, %s26
    %p306 = scmp.eq.s32.totalorder %s305, 0
    %s308 = sadd.s32 %s307, 1
    %s309 = scalar_select %p306, %s307, %s308
    %p312 = pneg %p306
    %p313 = scmp.eq.s32.totalorder %s19, 1
    %p314 = por %p312, %p313
    %p315 = scmp.ne.s32.totalorder %s307, %s310
    %p316 = scmp.eq.s32.totalorder %s19, 0
    %p317 = por %p315, %p316
    %p318 = scmp.ne.s32.totalorder %s307, %s310
    %p319 = scmp.eq.s32.totalorder %s24, 1
    %p320 = por %p318, %p319
    %p321 = scmp.ne.s32.totalorder %s310, %s311
    %p322 = scmp.eq.s32.totalorder %s24, 0
    %p323 = por %p321, %p322
    %p324 = scmp.ne.s32.totalorder %s310, %s311
    %p325 = scmp.eq.s32.totalorder %s25, 1
    %p326 = por %p324, %p325
    %p328 = scmp.ne.s32.totalorder %s311, %s327
    %p329 = scmp.eq.s32.totalorder %s25, 0
    %p330 = por %p328, %p329
    %p331 = scmp.le.s32.totalorder 1, %s19
    %p332 = scmp.lt.s32.totalorder %s19, 3
    %p333 = pnand %p331, %p332
    %p334 = pneg %p333
    // Predicated region
    $region9: #{tpu_custom_call.1} parent=5 // pred_check
      _
    $region10: #{tpu_custom_call.1} parent=5 // pred_check_branch
      %336 = sbr.rel (%p333) target = $region12
    $region11: #{tpu_custom_call.1} parent=5 // pred_region
      %s337 = ssub.s32 %s19, 1
      // Predicated region
      $region13: #{tpu_custom_call.1} parent=11 // pred_check
        %p338 = pneg %p66
      $region14: #{tpu_custom_call.1} parent=11 // pred_check_branch
        %340 = sbr.rel (%p338) target = $region16
      $region15: #{tpu_custom_call.1} parent=11 // pred_region
        _
      $region16: #{tpu_custom_call.1} parent=11 // pred_fallthru
        _
      // Predicated region
      $region17: #{tpu_custom_call.1} parent=11 // pred_check
        %p341 = pneg %p87
      $region18: #{tpu_custom_call.1} parent=11 // pred_check_branch
        %343 = sbr.rel (%p341) target = $region20
      $region19: #{tpu_custom_call.1} parent=11 // pred_region
        _
      $region20: #{tpu_custom_call.1} parent=11 // pred_fallthru
        _
      // Predicated region
      $region21: #{tpu_custom_call.1} parent=11 // pred_check
        %p344 = pneg %p108
      $region22: #{tpu_custom_call.1} parent=11 // pred_check_branch
        %346 = sbr.rel (%p344) target = $region24
      $region23: #{tpu_custom_call.1} parent=11 // pred_region
        _
      $region24: #{tpu_custom_call.1} parent=11 // pred_fallthru
        _
      // Predicated region
      $region25: #{tpu_custom_call.1} parent=11 // pred_check
        %p347 = pneg %p129
      $region26: #{tpu_custom_call.1} parent=11 // pred_check_branch
        %349 = sbr.rel (%p347) target = $region28
      $region27: #{tpu_custom_call.1} parent=11 // pred_region
        _
      $region28: #{tpu_custom_call.1} parent=11 // pred_fallthru
        _
      // Predicated region
      $region29: #{tpu_custom_call.1} parent=11 // pred_check
        %p350 = pneg %p150
      $region30: #{tpu_custom_call.1} parent=11 // pred_check_branch
        %352 = sbr.rel (%p350) target = $region32
      $region31: #{tpu_custom_call.1} parent=11 // pred_region
        _
      $region32: #{tpu_custom_call.1} parent=11 // pred_fallthru
        _
      // Predicated region
      $region33: #{tpu_custom_call.1} parent=11 // pred_check
        %p353 = pneg %p171
      $region34: #{tpu_custom_call.1} parent=11 // pred_check_branch
        %355 = sbr.rel (%p353) target = $region36
      $region35: #{tpu_custom_call.1} parent=11 // pred_region
        _
      $region36: #{tpu_custom_call.1} parent=11 // pred_fallthru
        _
      // Predicated region
      $region37: #{tpu_custom_call.1} parent=11 // pred_check
        %p356 = pneg %p192
      $region38: #{tpu_custom_call.1} parent=11 // pred_check_branch
        %358 = sbr.rel (%p356) target = $region40
      $region39: #{tpu_custom_call.1} parent=11 // pred_region
        _
      $region40: #{tpu_custom_call.1} parent=11 // pred_fallthru
        _
      // Predicated region
      $region41: #{tpu_custom_call.1} parent=11 // pred_check
        %p359 = pneg %p213
      $region42: #{tpu_custom_call.1} parent=11 // pred_check_branch
        %361 = sbr.rel (%p359) target = $region44
      $region43: #{tpu_custom_call.1} parent=11 // pred_region
        _
      $region44: #{tpu_custom_call.1} parent=11 // pred_fallthru
        _
      // Predicated region
      $region45: #{tpu_custom_call.1} parent=11 // pred_check
        %p362 = pneg %p234
      $region46: #{tpu_custom_call.1} parent=11 // pred_check_branch
        %364 = sbr.rel (%p362) target = $region48
      $region47: #{tpu_custom_call.1} parent=11 // pred_region
        _
      $region48: #{tpu_custom_call.1} parent=11 // pred_fallthru
        _
      // Predicated region
      $region49: #{tpu_custom_call.1} parent=11 // pred_check
        %p365 = pneg %p255
      $region50: #{tpu_custom_call.1} parent=11 // pred_check_branch
        %367 = sbr.rel (%p365) target = $region52
      $region51: #{tpu_custom_call.1} parent=11 // pred_region
        _
      $region52: #{tpu_custom_call.1} parent=11 // pred_fallthru
        _
      // Predicated region
      $region53: #{tpu_custom_call.1} parent=11 // pred_check
        %p368 = pneg %p276
      $region54: #{tpu_custom_call.1} parent=11 // pred_check_branch
        %370 = sbr.rel (%p368) target = $region56
      $region55: #{tpu_custom_call.1} parent=11 // pred_region
        _
      $region56: #{tpu_custom_call.1} parent=11 // pred_fallthru
        _
      // Predicated region
      $region57: #{tpu_custom_call.1} parent=11 // pred_check
        %p371 = pneg %p297
      $region58: #{tpu_custom_call.1} parent=11 // pred_check_branch
        %373 = sbr.rel (%p371) target = $region60
      $region59: #{tpu_custom_call.1} parent=11 // pred_region
        _
      $region60: #{tpu_custom_call.1} parent=11 // pred_fallthru
        _
    $region12: #{tpu_custom_call.1} parent=5 // pred_fallthru
      _
    %p374 = scmp.lt.s32.totalorder %s19, 2
    // Predicated region
    $region61: #{tpu_custom_call.1} parent=5 // pred_check
      %p375 = pneg %p374
    $region62: #{tpu_custom_call.1} parent=5 // pred_check_branch
      %377 = sbr.rel (%p375) target = $region64
    $region63: #{tpu_custom_call.1} parent=5 // pred_region
      // Predicated region
      $region65: #{tpu_custom_call.1} parent=63 // pred_check
        %p378 = pneg %p39
      $region66: #{tpu_custom_call.1} parent=63 // pred_check_branch
        %380 = sbr.rel (%p378) target = $region68
      $region67: #{tpu_custom_call.1} parent=63 // pred_region
        %p381 = scmp.lt.s32.totalorder %s19, 1
        %s382 = scalar_select %p381, %s19, 1
        %s383 = smul.addr %s382, 8
        %s384 = smul.addr %s383, 8
        %s385 = scalar_lea.vmem %s0, %s384
      $region68: #{tpu_custom_call.1} parent=63 // pred_fallthru
        _
    $region64: #{tpu_custom_call.1} parent=5 // pred_fallthru
      _
    %p386 = scmp.le.s32.totalorder 1, %s19
    %p387 = scmp.lt.s32.totalorder %s19, 3
    %p388 = pnand %p386, %p387
    %p389 = pneg %p388
    // Predicated region
    $region69: #{tpu_custom_call.1} parent=5 // pred_check
      _
    $region70: #{tpu_custom_call.1} parent=5 // pred_check_branch
      %391 = sbr.rel (%p388) target = $region72
    $region71: #{tpu_custom_call.1} parent=5 // pred_region
      %s392 = ssub.s32 %s19, 1
      %p393 = scmp.lt.s32.totalorder %s24, 1
      %s394 = scalar_select %p393, %s24, 1
      %s395 = smul.addr %s394, 8
      %s396 = smul.addr %s395, 8
      %s397 = scalar_lea.vmem %s0, %s396
      %p398 = pneg %p45
      %p399 = pneg %p42
      %p400 = pneg %p66
      %p401 = pneg %p63
      %p402 = pneg %p87
      %p403 = pneg %p84
      %p404 = pneg %p108
      %p405 = pneg %p105
      %p406 = pneg %p129
      %p407 = pneg %p126
      %p408 = pneg %p150
      %p409 = pneg %p147
      %p410 = pneg %p171
      %p411 = pneg %p168
      %p412 = pneg %p192
      %p413 = pneg %p189
      %p414 = pneg %p213
      %p415 = pneg %p210
      %p416 = pneg %p234
      %p417 = pneg %p231
      %p418 = pneg %p255
      %p419 = pneg %p252
      %p420 = pneg %p276
      %p421 = pneg %p273
      %p422 = pneg %p297
      %p423 = pneg %p294
      %p424 = pneg %p323
      %p425 = pneg %p320
      %p426 = scmp.lt.s32.totalorder %s24, 1
      %s427 = scalar_select %p426, %s24, 1
      %s428 = smul.addr %s427, 6
      %s429 = smul.addr %s428, 8
      %s430 = scalar_lea.vmem %s13, %s429
      %p431 = scmp.lt.s32.totalorder %s24, 1
      %s432 = scalar_select %p431, %s24, 1
      %s433 = smul.addr %s432, 8
      %s434 = smul.addr %s433, 8
      %s435 = scalar_lea.vmem %s0, %s434
      %p436 = scmp.lt.s32.totalorder %s24, 1
      %s437 = scalar_select %p436, %s24, 1
      %s438 = smul.addr %s437, 6
      %s439 = smul.addr %s438, 8
      %s440 = scalar_lea.vmem %s13, %s439
      %v441 = vld [vmem:[%s1] sm:$0xff]
      %v442 = vld [vmem:[%s1 + $0x8] sm:$0xff]
      %v443 = vld [vmem:[%s435] sm:$0xff]
      %v444 = vld [vmem:[%s435 + $0x8] sm:$0xff]
      %v445 = vld [vmem:[%s435 + $0x10] sm:$0xff]
      %v446 = vld [vmem:[%s435 + $0x18] sm:$0xff]
      %v447 = vld [vmem:[%s435 + $0x20] sm:$0xff]
      %v448 = vld [vmem:[%s435 + $0x28] sm:$0xff]
      %v449 = vld [vmem:[%s435 + $0x30] sm:$0xff]
      %v450 = vld [vmem:[%s435 + $0x38] sm:$0xff]
      %451 = vrot.lane.b32.xlu0 %v443, 17
      %v452 = vpop.permute.xlu0 %451
      %453 = vrot.lane.b32.xlu0 %v445, 17
      %v454 = vpop.permute.xlu0 %453
      %455 = vrot.lane.b32.xlu0 %v447, 17
      %v456 = vpop.permute.xlu0 %455
      %457 = vrot.lane.b32.xlu0 %v449, 17
      %v458 = vpop.permute.xlu0 %457
      %459 = vrot.lane.b32.xlu0 %v444, 17
      %v460 = vpop.permute.xlu0 %459
      %461 = vrot.lane.b32.xlu0 %v446, 17
      %v462 = vpop.permute.xlu0 %461
      %463 = vrot.lane.b32.xlu0 %v448, 17
      %v464 = vpop.permute.xlu0 %463
      %465 = vrot.lane.b32.xlu0 %v450, 17
      %v466 = vpop.permute.xlu0 %465
      %v467 = vlaneseq
      %v468 = vand.u32 %v467, 127
      %vm469 = vcmp.lt.s32.totalorder %v468, 17
      %v470 = vsel %vm469, %v452, %v460
      %v471 = vsel %vm469, %v454, %v462
      %v472 = vsel %vm469, %v456, %v464
      %v473 = vsel %vm469, %v458, %v466
      %v474 = vsel %vm469, %v460, %v452
      %v475 = vsel %vm469, %v462, %v454
      %v476 = vsel %vm469, %v464, %v456
      %v477 = vsel %vm469, %v466, %v458
      %v478 = vlaneseq
      %v479 = vshrl.u32 %v478, 7
      %v480 = vsub.s32 0, %v479
      %v481 = vrot.slane %v441, %v480
      %v482 = vlaneseq
      %v483 = vshrl.u32 %v482, 7
      %v484 = vsub.s32 0, %v483
      %v485 = vrot.slane %v442, %v484
      %v486 = vmul.f32 %v474, %v481
      %v487 = vmul.f32 %v470, %v485
      %v488 = vmul.f32 %v475, %v481
      %v489 = vmul.f32 %v471, %v485
      %v490 = vmul.f32 %v476, %v481
      %v491 = vmul.f32 %v472, %v485
      %v492 = vmul.f32 %v477, %v481
      %v493 = vmul.f32 %v473, %v485
      %v494 = vld [vmem:[%s3] sm:$0xff]
      %v495 = vld [vmem:[%s3 + $0x8] sm:$0xff]
      %v496 = vld [vmem:[%s3 + $0x10] sm:$0xff]
      %v497 = vld [vmem:[%s3 + $0x18] sm:$0xff]
      %v498 = vld [vmem:[%s3 + $0x20] sm:$0xff]
      %v499 = vld [vmem:[%s3 + $0x28] sm:$0xff]
      %v500 = vld [vmem:[%s3 + $0x30] sm:$0xff]
      %v501 = vld [vmem:[%s3 + $0x38] sm:$0xff]
      %v502 = vld [vmem:[%s3 + $0x40] sm:$0xff]
      %v503 = vld [vmem:[%s3 + $0x48] sm:$0xff]
      %v504 = vld [vmem:[%s3 + $0x50] sm:$0xff]
      %v505 = vld [vmem:[%s3 + $0x58] sm:$0xff]
      %506 = vrot.lane.b32.xlu0 %v443, 16
      %v507 = vpop.permute.xlu0 %506
      %508 = vrot.lane.b32.xlu0 %v445, 16
      %v509 = vpop.permute.xlu0 %508
      %510 = vrot.lane.b32.xlu0 %v447, 16
      %v511 = vpop.permute.xlu0 %510
      %512 = vrot.lane.b32.xlu0 %v449, 16
      %v513 = vpop.permute.xlu0 %512
      %514 = vrot.lane.b32.xlu0 %v444, 16
      %v515 = vpop.permute.xlu0 %514
      %516 = vrot.lane.b32.xlu0 %v446, 16
      %v517 = vpop.permute.xlu0 %516
      %518 = vrot.lane.b32.xlu0 %v448, 16
      %v519 = vpop.permute.xlu0 %518
      %520 = vrot.lane.b32.xlu0 %v450, 16
      %v521 = vpop.permute.xlu0 %520
      %vm522 = vcmp.lt.s32.totalorder %v468, 16
      %v523 = vsel %vm522, %v507, %v515
      %v524 = vsel %vm522, %v509, %v517
      %v525 = vsel %vm522, %v511, %v519
      %v526 = vsel %vm522, %v513, %v521
      %v527 = vsel %vm522, %v515, %v507
      %v528 = vsel %vm522, %v517, %v509
      %v529 = vsel %vm522, %v519, %v511
      %v530 = vsel %vm522, %v521, %v513
      %v531 = vlaneseq
      %v532 = vshrl.u32 %v531, 7
      %v533 = vsub.s32 1, %v532
      %v534 = vrot.slane %v441, %v533
      %v535 = vlaneseq
      %v536 = vshrl.u32 %v535, 7
      %v537 = vsub.s32 1, %v536
      %v538 = vrot.slane %v442, %v537
      %v539 = vmul.f32 %v527, %v534
      %v540 = vmul.f32 %v523, %v538
      %v541 = vmul.f32 %v528, %v534
      %v542 = vmul.f32 %v524, %v538
      %v543 = vmul.f32 %v529, %v534
      %v544 = vmul.f32 %v525, %v538
      %v545 = vmul.f32 %v530, %v534
      %v546 = vmul.f32 %v526, %v538
      %s547 = scalar_lea.vmem %s3, 96
      %v548 = vld [vmem:[%s547] sm:$0xff]
      %v549 = vld [vmem:[%s547 + $0x8] sm:$0xff]
      %v550 = vld [vmem:[%s547 + $0x10] sm:$0xff]
      %v551 = vld [vmem:[%s547 + $0x18] sm:$0xff]
      %v552 = vld [vmem:[%s547 + $0x20] sm:$0xff]
      %v553 = vld [vmem:[%s547 + $0x28] sm:$0xff]
      %v554 = vld [vmem:[%s547 + $0x30] sm:$0xff]
      %v555 = vld [vmem:[%s547 + $0x38] sm:$0xff]
      %v556 = vld [vmem:[%s547 + $0x40] sm:$0xff]
      %v557 = vld [vmem:[%s547 + $0x48] sm:$0xff]
      %v558 = vld [vmem:[%s547 + $0x50] sm:$0xff]
      %v559 = vld [vmem:[%s547 + $0x58] sm:$0xff]
      %vm560 = vcmask 261120
      %v562 = vsel %vm560, %v548, 0
      %v565 = vsel %vm560, %v549, 0
      %v568 = vsel %vm560, %v550, 0
      %v571 = vsel %vm560, %v551, 0
      %v574 = vsel %vm560, %v552, 0
      %v577 = vsel %vm560, %v553, 0
      %v580 = vsel %vm560, %v554, 0
      %v583 = vsel %vm560, %v555, 0
      %v586 = vsel %vm560, %v556, 0
      %v589 = vsel %vm560, %v557, 0
      %v592 = vsel %vm560, %v558, 0
      %v595 = vsel %vm560, %v559, 0
      %597 = vmatprep.subr.mxu0 %v540
      %598 = vmatpush1.msra.mxu0 %v539
      %599 = vmatprep.subr.mxu0 %v542
      %600 = vmatpush1.msra.mxu0 %v541
      %601 = vmatprep.subr.mxu0 %v544
      %602 = vmatpush1.msra.mxu0 %v543
      %603 = vmatprep.subr.mxu0 %v546
      %604 = vmatpush1.msra.mxu0 %v545
      %605 = vmatprep.subr.mxu0 0.0
      %606 = vmatpush1.msra.mxu0 0.0
      %607 = vmatprep.subr.mxu0 0.0
      %608 = vmatpush1.msra.mxu0 0.0
      %609 = vmatprep.subr.mxu0 0.0
      %610 = vmatpush1.msra.mxu0 0.0
      %611 = vmatprep.subr.mxu0 0.0
      %612 = vmatpush1.msra.mxu0 0.0
      %613 = vmatprep.subr.mxu0 0.0
      %614 = vmatpush1.msra.mxu0 0.0
      %615 = vmatprep.subr.mxu0 0.0
      %616 = vmatpush1.msra.mxu0 0.0
      %617 = vmatprep.subr.mxu0 0.0
      %618 = vmatpush1.msra.mxu0 0.0
      %619 = vmatprep.subr.mxu0 0.0
      %620 = vmatpush1.msra.mxu0 0.0
      %621 = vmatprep.subr.mxu0 0.0
      %622 = vmatpush1.msra.mxu0 0.0
      %623 = vmatprep.subr.mxu0 0.0
      %624 = vmatpush1.msra.mxu0 0.0
      %625 = vmatprep.subr.mxu0 0.0
      %626 = vmatpush1.msra.mxu0 0.0
      %627 = vmatprep.subr.mxu0 0.0
      %628 = vmatpush1.msra.mxu0 0.0
      %629 = vmatprep.subr.mxu0 0.0
      %630 = vmatpush1.msra.mxu0 0.0
      %631 = vmatprep.subr.mxu0 0.0
      %632 = vmatpush1.msra.mxu0 0.0
      %633 = vmatprep.subr.mxu0 0.0
      %634 = vmatpush1.msra.mxu0 0.0
      %635 = vmatprep.subr.mxu0 0.0
      %636 = vmatpush1.msra.mxu0 0.0
      %637 = vmatprep.subr.mxu0 0.0
      %638 = vmatpush1.msra.mxu0 0.0
      %639 = vmatprep.subr.mxu0 0.0
      %640 = vmatpush1.msra.mxu0 0.0
      %641 = vmatprep.subr.mxu0 0.0
      %642 = vmatpush1.msra.mxu0 0.0
      %643 = vmatprep.subr.mxu0 0.0
      %644 = vmatpush1.msra.mxu0 0.0
      %645 = vmatprep.subr.mxu0 0.0
      %646 = vmatpush1.msra.mxu0 0.0
      %647 = vmatprep.subr.mxu0 0.0
      %648 = vmatpush1.msra.mxu0 0.0
      %649 = vmatprep.subr.mxu0 0.0
      %650 = vmatpush1.msra.mxu0 0.0
      %651 = vmatprep.subr.mxu0 0.0
      %652 = vmatpush1.msra.mxu0 0.0
      %653 = vmatprep.subr.mxu0 0.0
      %654 = vmatpush1.msra.mxu0 0.0
      %655 = vmatprep.subr.mxu0 0.0
      %656 = vmatpush1.msra.mxu0 0.0
      %657 = vmatprep.subr.mxu0 0.0
      %658 = vmatpush1.msra.mxu0 0.0
      %659 = vmatprep.subr.mxu0 0.0
      %660 = vmatpush1.msra.mxu0 0.0
      %661 = vmatprep.mubr.f32.mxu0 0.0
      %662 = vmatmul.mubr.f32.gmra.mrb[0].mxu0 %v562
      %v663 = vpop.f32.mrb[0].mxu0
      %v664 = vadd.f32 0.0, %v663
      %v665 = vpop.f32.mrb[0].mxu0
      %v666 = vadd.f32 0.0, %v665
      %667 = vmatprep.mubr.f32.mxu0 0.0
      %668 = vmatmul.mubr.f32.gmra.mrb[0].mxu0 %v565
      %v669 = vpop.f32.mrb[0].mxu0
      %v670 = vadd.f32 0.0, %v669
      %v671 = vpop.f32.mrb[0].mxu0
      %v672 = vadd.f32 0.0, %v671
      %673 = vmatprep.mubr.f32.mxu0 0.0
      %674 = vmatmul.mubr.f32.gmra.mrb[0].mxu0 %v568
      %v675 = vpop.f32.mrb[0].mxu0
      %v676 = vadd.f32 0.0, %v675
      %v677 = vpop.f32.mrb[0].mxu0
      %v678 = vadd.f32 0.0, %v677
      %679 = vmatprep.mubr.f32.mxu0 0.0
      %680 = vmatmul.mubr.f32.gmra.mrb[0].mxu0 %v571
      %v681 = vpop.f32.mrb[0].mxu0
      %v682 = vadd.f32 0.0, %v681
      %v683 = vpop.f32.mrb[0].mxu0
      %v684 = vadd.f32 0.0, %v683
      %685 = vmatprep.mubr.f32.mxu0 0.0
      %686 = vmatmul.mubr.f32.gmra.mrb[0].mxu0 %v574
      %v687 = vpop.f32.mrb[0].mxu0
      %v688 = vadd.f32 0.0, %v687
      %v689 = vpop.f32.mrb[0].mxu0
      %v690 = vadd.f32 0.0, %v689
      %691 = vmatprep.mubr.f32.mxu0 0.0
      %692 = vmatmul.mubr.f32.gmra.mrb[0].mxu0 %v577
      %v693 = vpop.f32.mrb[0].mxu0
      %v694 = vadd.f32 0.0, %v693
      %v695 = vpop.f32.mrb[0].mxu0
      %v696 = vadd.f32 0.0, %v695
      %697 = vmatprep.mubr.f32.mxu0 0.0
      %698 = vmatmul.mubr.f32.gmra.mrb[0].mxu0 %v580
      %v699 = vpop.f32.mrb[0].mxu0
      %v700 = vadd.f32 0.0, %v699
      %v701 = vpop.f32.mrb[0].mxu0
      %v702 = vadd.f32 0.0, %v701
      %703 = vmatprep.mubr.f32.mxu0 0.0
      %704 = vmatmul.mubr.f32.gmra.mrb[0].mxu0 %v583
      %v705 = vpop.f32.mrb[0].mxu0
      %v706 = vadd.f32 0.0, %v705
      %v707 = vpop.f32.mrb[0].mxu0
      %v708 = vadd.f32 0.0, %v707
      %709 = vmatprep.mubr.f32.mxu0 0.0
      %710 = vmatmul.mubr.f32.gmra.mrb[0].mxu0 %v586
      %v711 = vpop.f32.mrb[0].mxu0
      %v712 = vadd.f32 0.0, %v711
      %v713 = vpop.f32.mrb[0].mxu0
      %v714 = vadd.f32 0.0, %v713
      %715 = vmatprep.mubr.f32.mxu0 0.0
      %716 = vmatmul.mubr.f32.gmra.mrb[0].mxu0 %v589
      %v717 = vpop.f32.mrb[0].mxu0
      %v718 = vadd.f32 0.0, %v717
      %v719 = vpop.f32.mrb[0].mxu0
      %v720 = vadd.f32 0.0, %v719
      %721 = vmatprep.mubr.f32.mxu0 0.0
      %722 = vmatmul.mubr.f32.gmra.mrb[0].mxu0 %v592
      %v723 = vpop.f32.mrb[0].mxu0
      %v724 = vadd.f32 0.0, %v723
      %v725 = vpop.f32.mrb[0].mxu0
      %v726 = vadd.f32 0.0, %v725
      %727 = vmatprep.mubr.f32.mxu0 0.0
      %728 = vmatmul.mubr.f32.gmra.mrb[0].mxu0 %v595
      %v729 = vpop.f32.mrb[0].mxu0
      %v730 = vadd.f32 0.0, %v729
      %v731 = vpop.f32.mrb[0].mxu0
      %v732 = vadd.f32 0.0, %v731
      %733 = vdwg.mxu0
      %v735 = vsel %vm560, %v494, 0
      %v738 = vsel %vm560, %v495, 0
      %v741 = vsel %vm560, %v496, 0
      %v744 = vsel %vm560, %v497, 0
      %v747 = vsel %vm560, %v498, 0
      %v750 = vsel %vm560, %v499, 0
      %v753 = vsel %vm560, %v500, 0
      %v756 = vsel %vm560, %v501, 0
      %v759 = vsel %vm560, %v502, 0
      %v762 = vsel %vm560, %v503, 0
      %v765 = vsel %vm560, %v504, 0
      %v768 = vsel %vm560, %v505, 0
      %770 = vmatprep.subr.mxu0 %v487
      %771 = vmatpush1.msra.mxu0 %v486
      %772 = vmatprep.subr.mxu0 %v489
      %773 = vmatpush1.msra.mxu0 %v488
      %774 = vmatprep.subr.mxu0 %v491
      %775 = vmatpush1.msra.mxu0 %v490
      %776 = vmatprep.subr.mxu0 %v493
      %777 = vmatpush1.msra.mxu0 %v492
      %778 = vmatprep.subr.mxu0 0.0
      %779 = vmatpush1.msra.mxu0 0.0
      %780 = vmatprep.subr.mxu0 0.0
      %781 = vmatpush1.msra.mxu0 0.0
      %782 = vmatprep.subr.mxu0 0.0
      %783 = vmatpush1.msra.mxu0 0.0
      %784 = vmatprep.subr.mxu0 0.0
      %785 = vmatpush1.msra.mxu0 0.0
      %786 = vmatprep.subr.mxu0 0.0
      %787 = vmatpush1.msra.mxu0 0.0
      %788 = vmatprep.subr.mxu0 0.0
      %789 = vmatpush1.msra.mxu0 0.0
      %790 = vmatprep.subr.mxu0 0.0
      %791 = vmatpush1.msra.mxu0 0.0
      %792 = vmatprep.subr.mxu0 0.0
      %793 = vmatpush1.msra.mxu0 0.0
      %794 = vmatprep.subr.mxu0 0.0
      %795 = vmatpush1.msra.mxu0 0.0
      %796 = vmatprep.subr.mxu0 0.0
      %797 = vmatpush1.msra.mxu0 0.0
      %798 = vmatprep.subr.mxu0 0.0
      %799 = vmatpush1.msra.mxu0 0.0
      %800 = vmatprep.subr.mxu0 0.0
      %801 = vmatpush1.msra.mxu0 0.0
      %802 = vmatprep.subr.mxu0 0.0
      %803 = vmatpush1.msra.mxu0 0.0
      %804 = vmatprep.subr.mxu0 0.0
      %805 = vmatpush1.msra.mxu0 0.0
      %806 = vmatprep.subr.mxu0 0.0
      %807 = vmatpush1.msra.mxu0 0.0
      %808 = vmatprep.subr.mxu0 0.0
      %809 = vmatpush1.msra.mxu0 0.0
      %810 = vmatprep.subr.mxu0 0.0
      %811 = vmatpush1.msra.mxu0 0.0
      %812 = vmatprep.subr.mxu0 0.0
      %813 = vmatpush1.msra.mxu0 0.0
      %814 = vmatprep.subr.mxu0 0.0
      %815 = vmatpush1.msra.mxu0 0.0
      %816 = vmatprep.subr.mxu0 0.0
      %817 = vmatpush1.msra.mxu0 0.0
      %818 = vmatprep.subr.mxu0 0.0
      %819 = vmatpush1.msra.mxu0 0.0
      %820 = vmatprep.subr.mxu0 0.0
      %821 = vmatpush1.msra.mxu0 0.0
      %822 = vmatprep.subr.mxu0 0.0
      %823 = vmatpush1.msra.mxu0 0.0
      %824 = vmatprep.subr.mxu0 0.0
      %825 = vmatpush1.msra.mxu0 0.0
      %826 = vmatprep.subr.mxu0 0.0
      %827 = vmatpush1.msra.mxu0 0.0
      %828 = vmatprep.subr.mxu0 0.0
      %829 = vmatpush1.msra.mxu0 0.0
      %830 = vmatprep.subr.mxu0 0.0
      %831 = vmatpush1.msra.mxu0 0.0
      %832 = vmatprep.subr.mxu0 0.0
      %833 = vmatpush1.msra.mxu0 0.0
      %834 = vmatprep.mubr.f32.mxu0 0.0
      %835 = vmatmul.mubr.f32.gmra.mrb[0].mxu0 %v735
      %v836 = vpop.f32.mrb[0].mxu0
      %v837 = vadd.f32 %v664, %v836
      %v838 = vpop.f32.mrb[0].mxu0
      %v839 = vadd.f32 %v666, %v838
      %840 = vmatprep.mubr.f32.mxu0 0.0
      %841 = vmatmul.mubr.f32.gmra.mrb[0].mxu0 %v738
      %v842 = vpop.f32.mrb[0].mxu0
      %v843 = vadd.f32 %v670, %v842
      %v844 = vpop.f32.mrb[0].mxu0
      %v845 = vadd.f32 %v672, %v844
      %846 = vmatprep.mubr.f32.mxu0 0.0
      %847 = vmatmul.mubr.f32.gmra.mrb[0].mxu0 %v741
      %v848 = vpop.f32.mrb[0].mxu0
      %v849 = vadd.f32 %v676, %v848
      %v850 = vpop.f32.mrb[0].mxu0
      %v851 = vadd.f32 %v678, %v850
      %852 = vmatprep.mubr.f32.mxu0 0.0
      %853 = vmatmul.mubr.f32.gmra.mrb[0].mxu0 %v744
      %v854 = vpop.f32.mrb[0].mxu0
      %v855 = vadd.f32 %v682, %v854
      %v856 = vpop.f32.mrb[0].mxu0
      %v857 = vadd.f32 %v684, %v856
      %858 = vmatprep.mubr.f32.mxu0 0.0
      %859 = vmatmul.mubr.f32.gmra.mrb[0].mxu0 %v747
      %v860 = vpop.f32.mrb[0].mxu0
      %v861 = vadd.f32 %v688, %v860
      %v862 = vpop.f32.mrb[0].mxu0
      %v863 = vadd.f32 %v690, %v862
      %864 = vmatprep.mubr.f32.mxu0 0.0
      %865 = vmatmul.mubr.f32.gmra.mrb[0].mxu0 %v750
      %v866 = vpop.f32.mrb[0].mxu0
      %v867 = vadd.f32 %v694, %v866
      %v868 = vpop.f32.mrb[0].mxu0
      %v869 = vadd.f32 %v696, %v868
      %870 = vmatprep.mubr.f32.mxu0 0.0
      %871 = vmatmul.mubr.f32.gmra.mrb[0].mxu0 %v753
      %v872 = vpop.f32.mrb[0].mxu0
      %v873 = vadd.f32 %v700, %v872
      %v874 = vpop.f32.mrb[0].mxu0
      %v875 = vadd.f32 %v702, %v874
      %876 = vmatprep.mubr.f32.mxu0 0.0
      %877 = vmatmul.mubr.f32.gmra.mrb[0].mxu0 %v756
      %v878 = vpop.f32.mrb[0].mxu0
      %v879 = vadd.f32 %v706, %v878
      %v880 = vpop.f32.mrb[0].mxu0
      %v881 = vadd.f32 %v708, %v880
      %882 = vmatprep.mubr.f32.mxu0 0.0
      %883 = vmatmul.mubr.f32.gmra.mrb[0].mxu0 %v759
      %v884 = vpop.f32.mrb[0].mxu0
      %v885 = vadd.f32 %v712, %v884
      %v886 = vpop.f32.mrb[0].mxu0
      %v887 = vadd.f32 %v714, %v886
      %888 = vmatprep.mubr.f32.mxu0 0.0
      %889 = vmatmul.mubr.f32.gmra.mrb[0].mxu0 %v762
      %v890 = vpop.f32.mrb[0].mxu0
      %v891 = vadd.f32 %v718, %v890
      %v892 = vpop.f32.mrb[0].mxu0
      %v893 = vadd.f32 %v720, %v892
      %894 = vmatprep.mubr.f32.mxu0 0.0
      %895 = vmatmul.mubr.f32.gmra.mrb[0].mxu0 %v765
      %v896 = vpop.f32.mrb[0].mxu0
      %v897 = vadd.f32 %v724, %v896
      %v898 = vpop.f32.mrb[0].mxu0
      %v899 = vadd.f32 %v726, %v898
      %900 = vmatprep.mubr.f32.mxu0 0.0
      %901 = vmatmul.mubr.f32.gmra.mrb[0].mxu0 %v768
      %v902 = vpop.f32.mrb[0].mxu0
      %v903 = vadd.f32 %v730, %v902
      %v904 = vpop.f32.mrb[0].mxu0
      %v905 = vadd.f32 %v732, %v904
      %906 = vdwg.mxu0
      %907 = vrot.lane.b32.xlu0 %v443, 15
      %v908 = vpop.permute.xlu0 %907
      %909 = vrot.lane.b32.xlu0 %v445, 15
      %v910 = vpop.permute.xlu0 %909
      %911 = vrot.lane.b32.xlu0 %v447, 15
      %v912 = vpop.permute.xlu0 %911
      %913 = vrot.lane.b32.xlu0 %v449, 15
      %v914 = vpop.permute.xlu0 %913
      %915 = vrot.lane.b32.xlu0 %v444, 15
      %v916 = vpop.permute.xlu0 %915
      %917 = vrot.lane.b32.xlu0 %v446, 15
      %v918 = vpop.permute.xlu0 %917
      %919 = vrot.lane.b32.xlu0 %v448, 15
      %v920 = vpop.permute.xlu0 %919
      %921 = vrot.lane.b32.xlu0 %v450, 15
      %v922 = vpop.permute.xlu0 %921
      %vm923 = vcmp.lt.s32.totalorder %v468, 15
      %v924 = vsel %vm923, %v908, %v916
      %v925 = vsel %vm923, %v910, %v918
      %v926 = vsel %vm923, %v912, %v920
      %v927 = vsel %vm923, %v914, %v922
      %v928 = vsel %vm923, %v916, %v908
      %v929 = vsel %vm923, %v918, %v910
      %v930 = vsel %vm923, %v920, %v912
      %v931 = vsel %vm923, %v922, %v914
      %v932 = vlaneseq
      %v933 = vshrl.u32 %v932, 7
      %v934 = vsub.s32 2, %v933
      %v935 = vrot.slane %v441, %v934
      %v936 = vlaneseq
      %v937 = vshrl.u32 %v936, 7
      %v938 = vsub.s32 2, %v937
      %v939 = vrot.slane %v442, %v938
      %v940 = vmul.f32 %v928, %v935
      %v941 = vmul.f32 %v924, %v939
      %v942 = vmul.f32 %v929, %v935
      %v943 = vmul.f32 %v925, %v939
      %v944 = vmul.f32 %v930, %v935
      %v945 = vmul.f32 %v926, %v939
      %v946 = vmul.f32 %v931, %v935
      %v947 = vmul.f32 %v927, %v939
      %s948 = scalar_lea.vmem %s3, 192
      %v949 = vld [vmem:[%s948] sm:$0xff]
      %v950 = vld [vmem:[%s948 + $0x8] sm:$0xff]
      %v951 = vld [vmem:[%s948 + $0x10] sm:$0xff]
      %v952 = vld [vmem:[%s948 + $0x18] sm:$0xff]
      %v953 = vld [vmem:[%s948 + $0x20] sm:$0xff]
      %v954 = vld [vmem:[%s948 + $0x28] sm:$0xff]
      %v955 = vld [vmem:[%s948 + $0x30] sm:$0xff]
      %v956 = vld [vmem:[%s948 + $0x38] sm:$0xff]
      %v957 = vld [vmem:[%s948 + $0x40] sm:$0xff]
      %v958 = vld [vmem:[%s948 + $0x48] sm:$0xff]
      %v959 = vld [vmem:[%s948 + $0x50] sm:$0xff]
      %v960 = vld [vmem:[%s948 + $0x58] sm:$0xff]
      %v962 = vsel %vm560, %v949, 0
      %v965 = vsel %vm560, %v950, 0
      %v968 = vsel %vm560, %v951, 0
      %v971 = vsel %vm560, %v952, 0
      %v974 = vsel %vm560, %v953, 0
      %v977 = vsel %vm560, %v954, 0
      %v980 = vsel %vm560, %v955, 0
      %v983 = vsel %vm560, %v956, 0
      %v986 = vsel %vm560, %v957, 0
      %v989 = vsel %vm560, %v958, 0
      %v992 = vsel %vm560, %v959, 0
      %v995 = vsel %vm560, %v960, 0
      %997 = vmatprep.subr.mxu0 %v941
      %998 = vmatpush1.msra.mxu0 %v940
      %999 = vmatprep.subr.mxu0 %v943
      %1000 = vmatpush1.msra.mxu0 %v942
      %1001 = vmatprep.subr.mxu0 %v945
      %1002 = vmatpush1.msra.mxu0 %v944
      %1003 = vmatprep.subr.mxu0 %v947
      %1004 = vmatpush1.msra.mxu0 %v946
      %1005 = vmatprep.subr.mxu0 0.0
      %1006 = vmatpush1.msra.mxu0 0.0
      %1007 = vmatprep.subr.mxu0 0.0
      %1008 = vmatpush1.msra.mxu0 0.0
      %1009 = vmatprep.subr.mxu0 0.0
      %1010 = vmatpush1.msra.mxu0 0.0
      %1011 = vmatprep.subr.mxu0 0.0
      %1012 = vmatpush1.msra.mxu0 0.0
      %1013 = vmatprep.subr.mxu0 0.0
      %1014 = vmatpush1.msra.mxu0 0.0
      %1015 = vmatprep.subr.mxu0 0.0
      %1016 = vmatpush1.msra.mxu0 0.0
      %1017 = vmatprep.subr.mxu0 0.0
      %1018 = vmatpush1.msra.mxu0 0.0
      %1019 = vmatprep.subr.mxu0 0.0
      %1020 = vmatpush1.msra.mxu0 0.0
      %1021 = vmatprep.subr.mxu0 0.0
      %1022 = vmatpush1.msra.mxu0 0.0
      %1023 = vmatprep.subr.mxu0 0.0
      %1024 = vmatpush1.msra.mxu0 0.0
      %1025 = vmatprep.subr.mxu0 0.0
      %1026 = vmatpush1.msra.mxu0 0.0
      %1027 = vmatprep.subr.mxu0 0.0
      %1028 = vmatpush1.msra.mxu0 0.0
      %1029 = vmatprep.subr.mxu0 0.0
      %1030 = vmatpush1.msra.mxu0 0.0
      %1031 = vmatprep.subr.mxu0 0.0
      %1032 = vmatpush1.msra.mxu0 0.0
      %1033 = vmatprep.subr.mxu0 0.0
      %1034 = vmatpush1.msra.mxu0 0.0
      %1035 = vmatprep.subr.mxu0 0.0
      %1036 = vmatpush1.msra.mxu0 0.0
      %1037 = vmatprep.subr.mxu0 0.0
      %1038 = vmatpush1.msra.mxu0 0.0
      %1039 = vmatprep.subr.mxu0 0.0
      %1040 = vmatpush1.msra.mxu0 0.0
      %1041 = vmatprep.subr.mxu0 0.0
      %1042 = vmatpush1.msra.mxu0 0.0
      %1043 = vmatprep.subr.mxu0 0.0
      %1044 = vmatpush1.msra.mxu0 0.0
      %1045 = vmatprep.subr.mxu0 0.0
      %1046 = vmatpush1.msra.mxu0 0.0
      %1047 = vmatprep.subr.mxu0 0.0
      %1048 = vmatpush1.msra.mxu0 0.0
      %1049 = vmatprep.subr.mxu0 0.0
      %1050 = vmatpush1.msra.mxu0 0.0
      %1051 = vmatprep.subr.mxu0 0.0
      %1052 = vmatpush1.msra.mxu0 0.0
      %1053 = vmatprep.subr.mxu0 0.0
      %1054 = vmatpush1.msra.mxu0 0.0
      %1055 = vmatprep.subr.mxu0 0.0
      %1056 = vmatpush1.msra.mxu0 0.0
      %1057 = vmatprep.subr.mxu0 0.0
      %1058 = vmatpush1.msra.mxu0 0.0
      %1059 = vmatprep.subr.mxu0 0.0
      %1060 = vmatpush1.msra.mxu0 0.0
      %1061 = vmatprep.mubr.f32.mxu0 0.0
      %1062 = vmatmul.mubr.f32.gmra.mrb[0].mxu0 %v962
      %v1063 = vpop.f32.mrb[0].mxu0
      %v1064 = vadd.f32 0.0, %v1063
      %v1065 = vpop.f32.mrb[0].mxu0
      %v1066 = vadd.f32 0.0, %v1065
      %1067 = vmatprep.mubr.f32.mxu0 0.0
      %1068 = vmatmul.mubr.f32.gmra.mrb[0].mxu0 %v965
      %v1069 = vpop.f32.mrb[0].mxu0
      %v1070 = vadd.f32 0.0, %v1069
      %v1071 = vpop.f32.mrb[0].mxu0
      %v1072 = vadd.f32 0.0, %v1071
      %1073 = vmatprep.mubr.f32.mxu0 0.0
      %1074 = vmatmul.mubr.f32.gmra.mrb[0].mxu0 %v968
      %v1075 = vpop.f32.mrb[0].mxu0
      %v1076 = vadd.f32 0.0, %v1075
      %v1077 = vpop.f32.mrb[0].mxu0
      %v1078 = vadd.f32 0.0, %v1077
      %1079 = vmatprep.mubr.f32.mxu0 0.0
      %1080 = vmatmul.mubr.f32.gmra.mrb[0].mxu0 %v971
      %v1081 = vpop.f32.mrb[0].mxu0
      %v1082 = vadd.f32 0.0, %v1081
      %v1083 = vpop.f32.mrb[0].mxu0
      %v1084 = vadd.f32 0.0, %v1083
      %1085 = vmatprep.mubr.f32.mxu0 0.0
      %1086 = vmatmul.mubr.f32.gmra.mrb[0].mxu0 %v974
      %v1087 = vpop.f32.mrb[0].mxu0
      %v1088 = vadd.f32 0.0, %v1087
      %v1089 = vpop.f32.mrb[0].mxu0
      %v1090 = vadd.f32 0.0, %v1089
      %1091 = vmatprep.mubr.f32.mxu0 0.0
      %1092 = vmatmul.mubr.f32.gmra.mrb[0].mxu0 %v977
      %v1093 = vpop.f32.mrb[0].mxu0
      %v1094 = vadd.f32 0.0, %v1093
      %v1095 = vpop.f32.mrb[0].mxu0
      %v1096 = vadd.f32 0.0, %v1095
      %1097 = vmatprep.mubr.f32.mxu0 0.0
      %1098 = vmatmul.mubr.f32.gmra.mrb[0].mxu0 %v980
      %v1099 = vpop.f32.mrb[0].mxu0
      %v1100 = vadd.f32 0.0, %v1099
      %v1101 = vpop.f32.mrb[0].mxu0
      %v1102 = vadd.f32 0.0, %v1101
      %1103 = vmatprep.mubr.f32.mxu0 0.0
      %1104 = vmatmul.mubr.f32.gmra.mrb[0].mxu0 %v983
      %v1105 = vpop.f32.mrb[0].mxu0
      %v1106 = vadd.f32 0.0, %v1105
      %v1107 = vpop.f32.mrb[0].mxu0
      %v1108 = vadd.f32 0.0, %v1107
      %1109 = vmatprep.mubr.f32.mxu0 0.0
      %1110 = vmatmul.mubr.f32.gmra.mrb[0].mxu0 %v986
      %v1111 = vpop.f32.mrb[0].mxu0
      %v1112 = vadd.f32 0.0, %v1111
      %v1113 = vpop.f32.mrb[0].mxu0
      %v1114 = vadd.f32 0.0, %v1113
      %1115 = vmatprep.mubr.f32.mxu0 0.0
      %1116 = vmatmul.mubr.f32.gmra.mrb[0].mxu0 %v989
      %v1117 = vpop.f32.mrb[0].mxu0
      %v1118 = vadd.f32 0.0, %v1117
      %v1119 = vpop.f32.mrb[0].mxu0
      %v1120 = vadd.f32 0.0, %v1119
      %1121 = vmatprep.mubr.f32.mxu0 0.0
      %1122 = vmatmul.mubr.f32.gmra.mrb[0].mxu0 %v992
      %v1123 = vpop.f32.mrb[0].mxu0
      %v1124 = vadd.f32 0.0, %v1123
      %v1125 = vpop.f32.mrb[0].mxu0
      %v1126 = vadd.f32 0.0, %v1125
      %1127 = vmatprep.mubr.f32.mxu0 0.0
      %1128 = vmatmul.mubr.f32.gmra.mrb[0].mxu0 %v995
      %v1129 = vpop.f32.mrb[0].mxu0
      %v1130 = vadd.f32 0.0, %v1129
      %v1131 = vpop.f32.mrb[0].mxu0
      %v1132 = vadd.f32 0.0, %v1131
      %1133 = vdwg.mxu0
      %v1134 = vadd.f32 %v837, %v1064
      %v1135 = vadd.f32 %v839, %v1066
      %v1136 = vadd.f32 %v843, %v1070
      %v1137 = vadd.f32 %v845, %v1072
      %v1138 = vadd.f32 %v849, %v1076
      %v1139 = vadd.f32 %v851, %v1078
      %v1140 = vadd.f32 %v855, %v1082
      %v1141 = vadd.f32 %v857, %v1084
      %v1142 = vadd.f32 %v861, %v1088
      %v1143 = vadd.f32 %v863, %v1090
      %v1144 = vadd.f32 %v867, %v1094
      %v1145 = vadd.f32 %v869, %v1096
      %v1146 = vadd.f32 %v873, %v1100
      %v1147 = vadd.f32 %v875, %v1102
      %v1148 = vadd.f32 %v879, %v1106
      %v1149 = vadd.f32 %v881, %v1108
      %v1150 = vadd.f32 %v885, %v1112
      %v1151 = vadd.f32 %v887, %v1114
      %v1152 = vadd.f32 %v891, %v1118
      %v1153 = vadd.f32 %v893, %v1120
      %v1154 = vadd.f32 %v897, %v1124
      %v1155 = vadd.f32 %v899, %v1126
      %v1156 = vadd.f32 %v903, %v1130
      %v1157 = vadd.f32 %v905, %v1132
      %1158 = vrot.lane.b32.xlu0 %v443, 1
      %v1159 = vpop.permute.xlu0 %1158
      %1160 = vrot.lane.b32.xlu0 %v445, 1
      %v1161 = vpop.permute.xlu0 %1160
      %1162 = vrot.lane.b32.xlu0 %v447, 1
      %v1163 = vpop.permute.xlu0 %1162
      %1164 = vrot.lane.b32.xlu0 %v449, 1
      %v1165 = vpop.permute.xlu0 %1164
      %1166 = vrot.lane.b32.xlu0 %v444, 1
      %v1167 = vpop.permute.xlu0 %1166
      %1168 = vrot.lane.b32.xlu0 %v446, 1
      %v1169 = vpop.permute.xlu0 %1168
      %1170 = vrot.lane.b32.xlu0 %v448, 1
      %v1171 = vpop.permute.xlu0 %1170
      %1172 = vrot.lane.b32.xlu0 %v450, 1
      %v1173 = vpop.permute.xlu0 %1172
      %vm1174 = vcmp.lt.s32.totalorder %v468, 1
      %v1175 = vsel %vm1174, %v1159, %v1167
      %v1176 = vsel %vm1174, %v1161, %v1169
      %v1177 = vsel %vm1174, %v1163, %v1171
      %v1178 = vsel %vm1174, %v1165, %v1173
      %v1179 = vsel %vm1174, %v1167, %v1159
      %v1180 = vsel %vm1174, %v1169, %v1161
      %v1181 = vsel %vm1174, %v1171, %v1163
      %v1182 = vsel %vm1174, %v1173, %v1165
      %v1183 = vlaneseq
      %v1184 = vshrl.u32 %v1183, 7
      %v1185 = vsub.s32 3, %v1184
      %v1186 = vrot.slane %v441, %v1185
      %v1187 = vlaneseq
      %v1188 = vshrl.u32 %v1187, 7
      %v1189 = vsub.s32 3, %v1188
      %v1190 = vrot.slane %v442, %v1189
      %v1191 = vmul.f32 %v1179, %v1186
      %v1192 = vmul.f32 %v1175, %v1190
      %v1193 = vmul.f32 %v1180, %v1186
      %v1194 = vmul.f32 %v1176, %v1190
      %v1195 = vmul.f32 %v1181, %v1186
      %v1196 = vmul.f32 %v1177, %v1190
      %v1197 = vmul.f32 %v1182, %v1186
      %v1198 = vmul.f32 %v1178, %v1190
      %s1199 = scalar_lea.vmem %s3, 288
      %v1200 = vld [vmem:[%s1199] sm:$0xff]
      %v1201 = vld [vmem:[%s1199 + $0x8] sm:$0xff]
      %v1202 = vld [vmem:[%s1199 + $0x10] sm:$0xff]
      %v1203 = vld [vmem:[%s1199 + $0x18] sm:$0xff]
      %v1204 = vld [vmem:[%s1199 + $0x20] sm:$0xff]
      %v1205 = vld [vmem:[%s1199 + $0x28] sm:$0xff]
      %v1206 = vld [vmem:[%s1199 + $0x30] sm:$0xff]
      %v1207 = vld [vmem:[%s1199 + $0x38] sm:$0xff]
      %v1208 = vld [vmem:[%s1199 + $0x40] sm:$0xff]
      %v1209 = vld [vmem:[%s1199 + $0x48] sm:$0xff]
      %v1210 = vld [vmem:[%s1199 + $0x50] sm:$0xff]
      %v1211 = vld [vmem:[%s1199 + $0x58] sm:$0xff]
      %v1213 = vsel %vm560, %v1200, 0
      %v1216 = vsel %vm560, %v1201, 0
      %v1219 = vsel %vm560, %v1202, 0
      %v1222 = vsel %vm560, %v1203, 0
      %v1225 = vsel %vm560, %v1204, 0
      %v1228 = vsel %vm560, %v1205, 0
      %v1231 = vsel %vm560, %v1206, 0
      %v1234 = vsel %vm560, %v1207, 0
      %v1237 = vsel %vm560, %v1208, 0
      %v1240 = vsel %vm560, %v1209, 0
      %v1243 = vsel %vm560, %v1210, 0
      %v1246 = vsel %vm560, %v1211, 0
      %1248 = vmatprep.subr.mxu0 %v1192
      %1249 = vmatpush1.msra.mxu0 %v1191
      %1250 = vmatprep.subr.mxu0 %v1194
      %1251 = vmatpush1.msra.mxu0 %v1193
      %1252 = vmatprep.subr.mxu0 %v1196
      %1253 = vmatpush1.msra.mxu0 %v1195
      %1254 = vmatprep.subr.mxu0 %v1198
      %1255 = vmatpush1.msra.mxu0 %v1197
      %1256 = vmatprep.subr.mxu0 0.0
      %1257 = vmatpush1.msra.mxu0 0.0
      %1258 = vmatprep.subr.mxu0 0.0
      %1259 = vmatpush1.msra.mxu0 0.0
      %1260 = vmatprep.subr.mxu0 0.0
      %1261 = vmatpush1.msra.mxu0 0.0
      %1262 = vmatprep.subr.mxu0 0.0
      %1263 = vmatpush1.msra.mxu0 0.0
      %1264 = vmatprep.subr.mxu0 0.0
      %1265 = vmatpush1.msra.mxu0 0.0
      %1266 = vmatprep.subr.mxu0 0.0
      %1267 = vmatpush1.msra.mxu0 0.0
      %1268 = vmatprep.subr.mxu0 0.0
      %1269 = vmatpush1.msra.mxu0 0.0
      %1270 = vmatprep.subr.mxu0 0.0
      %1271 = vmatpush1.msra.mxu0 0.0
      %1272 = vmatprep.subr.mxu0 0.0
      %1273 = vmatpush1.msra.mxu0 0.0
      %1274 = vmatprep.subr.mxu0 0.0
      %1275 = vmatpush1.msra.mxu0 0.0
      %1276 = vmatprep.subr.mxu0 0.0
      %1277 = vmatpush1.msra.mxu0 0.0
      %1278 = vmatprep.subr.mxu0 0.0
      %1279 = vmatpush1.msra.mxu0 0.0
      %1280 = vmatprep.subr.mxu0 0.0
      %1281 = vmatpush1.msra.mxu0 0.0
      %1282 = vmatprep.subr.mxu0 0.0
      %1283 = vmatpush1.msra.mxu0 0.0
      %1284 = vmatprep.subr.mxu0 0.0
      %1285 = vmatpush1.msra.mxu0 0.0
      %1286 = vmatprep.subr.mxu0 0.0
      %1287 = vmatpush1.msra.mxu0 0.0
      %1288 = vmatprep.subr.mxu0 0.0
      %1289 = vmatpush1.msra.mxu0 0.0
      %1290 = vmatprep.subr.mxu0 0.0
      %1291 = vmatpush1.msra.mxu0 0.0
      %1292 = vmatprep.subr.mxu0 0.0
      %1293 = vmatpush1.msra.mxu0 0.0
      %1294 = vmatprep.subr.mxu0 0.0
      %1295 = vmatpush1.msra.mxu0 0.0
      %1296 = vmatprep.subr.mxu0 0.0
      %1297 = vmatpush1.msra.mxu0 0.0
      %1298 = vmatprep.subr.mxu0 0.0
      %1299 = vmatpush1.msra.mxu0 0.0
      %1300 = vmatprep.subr.mxu0 0.0
      %1301 = vmatpush1.msra.mxu0 0.0
      %1302 = vmatprep.subr.mxu0 0.0
      %1303 = vmatpush1.msra.mxu0 0.0
      %1304 = vmatprep.subr.mxu0 0.0
      %1305 = vmatpush1.msra.mxu0 0.0
      %1306 = vmatprep.subr.mxu0 0.0
      %1307 = vmatpush1.msra.mxu0 0.0
      %1308 = vmatprep.subr.mxu0 0.0
      %1309 = vmatpush1.msra.mxu0 0.0
      %1310 = vmatprep.subr.mxu0 0.0
      %1311 = vmatpush1.msra.mxu0 0.0
      %1312 = vmatprep.mubr.f32.mxu0 0.0
      %1313 = vmatmul.mubr.f32.gmra.mrb[0].mxu0 %v1213
      %v1314 = vpop.f32.mrb[0].mxu0
      %v1315 = vadd.f32 0.0, %v1314
      %v1316 = vpop.f32.mrb[0].mxu0
      %v1317 = vadd.f32 0.0, %v1316
      %1318 = vmatprep.mubr.f32.mxu0 0.0
      %1319 = vmatmul.mubr.f32.gmra.mrb[0].mxu0 %v1216
      %v1320 = vpop.f32.mrb[0].mxu0
      %v1321 = vadd.f32 0.0, %v1320
      %v1322 = vpop.f32.mrb[0].mxu0
      %v1323 = vadd.f32 0.0, %v1322
      %1324 = vmatprep.mubr.f32.mxu0 0.0
      %1325 = vmatmul.mubr.f32.gmra.mrb[0].mxu0 %v1219
      %v1326 = vpop.f32.mrb[0].mxu0
      %v1327 = vadd.f32 0.0, %v1326
      %v1328 = vpop.f32.mrb[0].mxu0
      %v1329 = vadd.f32 0.0, %v1328
      %1330 = vmatprep.mubr.f32.mxu0 0.0
      %1331 = vmatmul.mubr.f32.gmra.mrb[0].mxu0 %v1222
      %v1332 = vpop.f32.mrb[0].mxu0
      %v1333 = vadd.f32 0.0, %v1332
      %v1334 = vpop.f32.mrb[0].mxu0
      %v1335 = vadd.f32 0.0, %v1334
      %1336 = vmatprep.mubr.f32.mxu0 0.0
      %1337 = vmatmul.mubr.f32.gmra.mrb[0].mxu0 %v1225
      %v1338 = vpop.f32.mrb[0].mxu0
      %v1339 = vadd.f32 0.0, %v1338
      %v1340 = vpop.f32.mrb[0].mxu0
      %v1341 = vadd.f32 0.0, %v1340
      %1342 = vmatprep.mubr.f32.mxu0 0.0
      %1343 = vmatmul.mubr.f32.gmra.mrb[0].mxu0 %v1228
      %v1344 = vpop.f32.mrb[0].mxu0
      %v1345 = vadd.f32 0.0, %v1344
      %v1346 = vpop.f32.mrb[0].mxu0
      %v1347 = vadd.f32 0.0, %v1346
      %1348 = vmatprep.mubr.f32.mxu0 0.0
      %1349 = vmatmul.mubr.f32.gmra.mrb[0].mxu0 %v1231
      %v1350 = vpop.f32.mrb[0].mxu0
      %v1351 = vadd.f32 0.0, %v1350
      %v1352 = vpop.f32.mrb[0].mxu0
      %v1353 = vadd.f32 0.0, %v1352
      %1354 = vmatprep.mubr.f32.mxu0 0.0
      %1355 = vmatmul.mubr.f32.gmra.mrb[0].mxu0 %v1234
      %v1356 = vpop.f32.mrb[0].mxu0
      %v1357 = vadd.f32 0.0, %v1356
      %v1358 = vpop.f32.mrb[0].mxu0
      %v1359 = vadd.f32 0.0, %v1358
      %1360 = vmatprep.mubr.f32.mxu0 0.0
      %1361 = vmatmul.mubr.f32.gmra.mrb[0].mxu0 %v1237
      %v1362 = vpop.f32.mrb[0].mxu0
      %v1363 = vadd.f32 0.0, %v1362
      %v1364 = vpop.f32.mrb[0].mxu0
      %v1365 = vadd.f32 0.0, %v1364
      %1366 = vmatprep.mubr.f32.mxu0 0.0
      %1367 = vmatmul.mubr.f32.gmra.mrb[0].mxu0 %v1240
      %v1368 = vpop.f32.mrb[0].mxu0
      %v1369 = vadd.f32 0.0, %v1368
      %v1370 = vpop.f32.mrb[0].mxu0
      %v1371 = vadd.f32 0.0, %v1370
      %1372 = vmatprep.mubr.f32.mxu0 0.0
      %1373 = vmatmul.mubr.f32.gmra.mrb[0].mxu0 %v1243
      %v1374 = vpop.f32.mrb[0].mxu0
      %v1375 = vadd.f32 0.0, %v1374
      %v1376 = vpop.f32.mrb[0].mxu0
      %v1377 = vadd.f32 0.0, %v1376
      %1378 = vmatprep.mubr.f32.mxu0 0.0
      %1379 = vmatmul.mubr.f32.gmra.mrb[0].mxu0 %v1246
      %v1380 = vpop.f32.mrb[0].mxu0
      %v1381 = vadd.f32 0.0, %v1380
      %v1382 = vpop.f32.mrb[0].mxu0
      %v1383 = vadd.f32 0.0, %v1382
      %1384 = vdwg.mxu0
      %v1385 = vadd.f32 %v1134, %v1315
      %v1386 = vadd.f32 %v1135, %v1317
      %v1387 = vadd.f32 %v1136, %v1321
      %v1388 = vadd.f32 %v1137, %v1323
      %v1389 = vadd.f32 %v1138, %v1327
      %v1390 = vadd.f32 %v1139, %v1329
      %v1391 = vadd.f32 %v1140, %v1333
      %v1392 = vadd.f32 %v1141, %v1335
      %v1393 = vadd.f32 %v1142, %v1339
      %v1394 = vadd.f32 %v1143, %v1341
      %v1395 = vadd.f32 %v1144, %v1345
      %v1396 = vadd.f32 %v1145, %v1347
      %v1397 = vadd.f32 %v1146, %v1351
      %v1398 = vadd.f32 %v1147, %v1353
      %v1399 = vadd.f32 %v1148, %v1357
      %v1400 = vadd.f32 %v1149, %v1359
      %v1401 = vadd.f32 %v1150, %v1363
      %v1402 = vadd.f32 %v1151, %v1365
      %v1403 = vadd.f32 %v1152, %v1369
      %v1404 = vadd.f32 %v1153, %v1371
      %v1405 = vadd.f32 %v1154, %v1375
      %v1406 = vadd.f32 %v1155, %v1377
      %v1407 = vadd.f32 %v1156, %v1381
      %v1408 = vadd.f32 %v1157, %v1383
      %s1409 = scalar_lea.vmem %s3, 384
      %v1410 = vld [vmem:[%s1409] sm:$0xff]
      %v1411 = vld [vmem:[%s1409 + $0x8] sm:$0xff]
      %v1412 = vld [vmem:[%s1409 + $0x10] sm:$0xff]
      %v1413 = vld [vmem:[%s1409 + $0x18] sm:$0xff]
      %v1414 = vld [vmem:[%s1409 + $0x20] sm:$0xff]
      %v1415 = vld [vmem:[%s1409 + $0x28] sm:$0xff]
      %v1416 = vld [vmem:[%s1409 + $0x30] sm:$0xff]
      %v1417 = vld [vmem:[%s1409 + $0x38] sm:$0xff]
      %v1418 = vld [vmem:[%s1409 + $0x40] sm:$0xff]
      %v1419 = vld [vmem:[%s1409 + $0x48] sm:$0xff]
      %v1420 = vld [vmem:[%s1409 + $0x50] sm:$0xff]
      %v1421 = vld [vmem:[%s1409 + $0x58] sm:$0xff]
      %v1423 = vsel %vm560, %v1410, 0
      %v1426 = vsel %vm560, %v1411, 0
      %v1429 = vsel %vm560, %v1412, 0
      %v1432 = vsel %vm560, %v1413, 0
      %v1435 = vsel %vm560, %v1414, 0
      %v1438 = vsel %vm560, %v1415, 0
      %v1441 = vsel %vm560, %v1416, 0
      %v1444 = vsel %vm560, %v1417, 0
      %v1447 = vsel %vm560, %v1418, 0
      %v1450 = vsel %vm560, %v1419, 0
      %v1453 = vsel %vm560, %v1420, 0
      %v1456 = vsel %vm560, %v1421, 0
      %1458 = vmatprep.subr.mxu0 %v444
      %1459 = vmatpush1.msra.mxu0 %v443
      %1460 = vmatprep.subr.mxu0 %v446
      %1461 = vmatpush1.msra.mxu0 %v445
      %1462 = vmatprep.subr.mxu0 %v448
      %1463 = vmatpush1.msra.mxu0 %v447
      %1464 = vmatprep.subr.mxu0 %v450
      %1465 = vmatpush1.msra.mxu0 %v449
      %1466 = vmatprep.subr.mxu0 0.0
      %1467 = vmatpush1.msra.mxu0 0.0
      %1468 = vmatprep.subr.mxu0 0.0
      %1469 = vmatpush1.msra.mxu0 0.0
      %1470 = vmatprep.subr.mxu0 0.0
      %1471 = vmatpush1.msra.mxu0 0.0
      %1472 = vmatprep.subr.mxu0 0.0
      %1473 = vmatpush1.msra.mxu0 0.0
      %1474 = vmatprep.subr.mxu0 0.0
      %1475 = vmatpush1.msra.mxu0 0.0
      %1476 = vmatprep.subr.mxu0 0.0
      %1477 = vmatpush1.msra.mxu0 0.0
      %1478 = vmatprep.subr.mxu0 0.0
      %1479 = vmatpush1.msra.mxu0 0.0
      %1480 = vmatprep.subr.mxu0 0.0
      %1481 = vmatpush1.msra.mxu0 0.0
      %1482 = vmatprep.subr.mxu0 0.0
      %1483 = vmatpush1.msra.mxu0 0.0
      %1484 = vmatprep.subr.mxu0 0.0
      %1485 = vmatpush1.msra.mxu0 0.0
      %1486 = vmatprep.subr.mxu0 0.0
      %1487 = vmatpush1.msra.mxu0 0.0
      %1488 = vmatprep.subr.mxu0 0.0
      %1489 = vmatpush1.msra.mxu0 0.0
      %1490 = vmatprep.subr.mxu0 0.0
      %1491 = vmatpush1.msra.mxu0 0.0
      %1492 = vmatprep.subr.mxu0 0.0
      %1493 = vmatpush1.msra.mxu0 0.0
      %1494 = vmatprep.subr.mxu0 0.0
      %1495 = vmatpush1.msra.mxu0 0.0
      %1496 = vmatprep.subr.mxu0 0.0
      %1497 = vmatpush1.msra.mxu0 0.0
      %1498 = vmatprep.subr.mxu0 0.0
      %1499 = vmatpush1.msra.mxu0 0.0
      %1500 = vmatprep.subr.mxu0 0.0
      %1501 = vmatpush1.msra.mxu0 0.0
      %1502 = vmatprep.subr.mxu0 0.0
      %1503 = vmatpush1.msra.mxu0 0.0
      %1504 = vmatprep.subr.mxu0 0.0
      %1505 = vmatpush1.msra.mxu0 0.0
      %1506 = vmatprep.subr.mxu0 0.0
      %1507 = vmatpush1.msra.mxu0 0.0
      %1508 = vmatprep.subr.mxu0 0.0
      %1509 = vmatpush1.msra.mxu0 0.0
      %1510 = vmatprep.subr.mxu0 0.0
      %1511 = vmatpush1.msra.mxu0 0.0
      %1512 = vmatprep.subr.mxu0 0.0
      %1513 = vmatpush1.msra.mxu0 0.0
      %1514 = vmatprep.subr.mxu0 0.0
      %1515 = vmatpush1.msra.mxu0 0.0
      %1516 = vmatprep.subr.mxu0 0.0
      %1517 = vmatpush1.msra.mxu0 0.0
      %1518 = vmatprep.subr.mxu0 0.0
      %1519 = vmatpush1.msra.mxu0 0.0
      %1520 = vmatprep.subr.mxu0 0.0
      %1521 = vmatpush1.msra.mxu0 0.0
      %1522 = vmatprep.mubr.f32.mxu0 0.0
      %1523 = vmatmul.mubr.f32.gmra.mrb[0].mxu0 %v1423
      %v1524 = vpop.f32.mrb[0].mxu0
      %v1525 = vadd.f32 0.0, %v1524
      %v1526 = vpop.f32.mrb[0].mxu0
      %v1527 = vadd.f32 0.0, %v1526
      %1528 = vmatprep.mubr.f32.mxu0 0.0
      %1529 = vmatmul.mubr.f32.gmra.mrb[0].mxu0 %v1426
      %v1530 = vpop.f32.mrb[0].mxu0
      %v1531 = vadd.f32 0.0, %v1530
      %v1532 = vpop.f32.mrb[0].mxu0
      %v1533 = vadd.f32 0.0, %v1532
      %1534 = vmatprep.mubr.f32.mxu0 0.0
      %1535 = vmatmul.mubr.f32.gmra.mrb[0].mxu0 %v1429
      %v1536 = vpop.f32.mrb[0].mxu0
      %v1537 = vadd.f32 0.0, %v1536
      %v1538 = vpop.f32.mrb[0].mxu0
      %v1539 = vadd.f32 0.0, %v1538
      %1540 = vmatprep.mubr.f32.mxu0 0.0
      %1541 = vmatmul.mubr.f32.gmra.mrb[0].mxu0 %v1432
      %v1542 = vpop.f32.mrb[0].mxu0
      %v1543 = vadd.f32 0.0, %v1542
      %v1544 = vpop.f32.mrb[0].mxu0
      %v1545 = vadd.f32 0.0, %v1544
      %1546 = vmatprep.mubr.f32.mxu0 0.0
      %1547 = vmatmul.mubr.f32.gmra.mrb[0].mxu0 %v1435
      %v1548 = vpop.f32.mrb[0].mxu0
      %v1549 = vadd.f32 0.0, %v1548
      %v1550 = vpop.f32.mrb[0].mxu0
      %v1551 = vadd.f32 0.0, %v1550
      %1552 = vmatprep.mubr.f32.mxu0 0.0
      %1553 = vmatmul.mubr.f32.gmra.mrb[0].mxu0 %v1438
      %v1554 = vpop.f32.mrb[0].mxu0
      %v1555 = vadd.f32 0.0, %v1554
      %v1556 = vpop.f32.mrb[0].mxu0
      %v1557 = vadd.f32 0.0, %v1556
      %1558 = vmatprep.mubr.f32.mxu0 0.0
      %1559 = vmatmul.mubr.f32.gmra.mrb[0].mxu0 %v1441
      %v1560 = vpop.f32.mrb[0].mxu0
      %v1561 = vadd.f32 0.0, %v1560
      %v1562 = vpop.f32.mrb[0].mxu0
      %v1563 = vadd.f32 0.0, %v1562
      %1564 = vmatprep.mubr.f32.mxu0 0.0
      %1565 = vmatmul.mubr.f32.gmra.mrb[0].mxu0 %v1444
      %v1566 = vpop.f32.mrb[0].mxu0
      %v1567 = vadd.f32 0.0, %v1566
      %v1568 = vpop.f32.mrb[0].mxu0
      %v1569 = vadd.f32 0.0, %v1568
      %1570 = vmatprep.mubr.f32.mxu0 0.0
      %1571 = vmatmul.mubr.f32.gmra.mrb[0].mxu0 %v1447
      %v1572 = vpop.f32.mrb[0].mxu0
      %v1573 = vadd.f32 0.0, %v1572
      %v1574 = vpop.f32.mrb[0].mxu0
      %v1575 = vadd.f32 0.0, %v1574
      %1576 = vmatprep.mubr.f32.mxu0 0.0
      %1577 = vmatmul.mubr.f32.gmra.mrb[0].mxu0 %v1450
      %v1578 = vpop.f32.mrb[0].mxu0
      %v1579 = vadd.f32 0.0, %v1578
      %v1580 = vpop.f32.mrb[0].mxu0
      %v1581 = vadd.f32 0.0, %v1580
      %1582 = vmatprep.mubr.f32.mxu0 0.0
      %1583 = vmatmul.mubr.f32.gmra.mrb[0].mxu0 %v1453
      %v1584 = vpop.f32.mrb[0].mxu0
      %v1585 = vadd.f32 0.0, %v1584
      %v1586 = vpop.f32.mrb[0].mxu0
      %v1587 = vadd.f32 0.0, %v1586
      %1588 = vmatprep.mubr.f32.mxu0 0.0
      %1589 = vmatmul.mubr.f32.gmra.mrb[0].mxu0 %v1456
      %v1590 = vpop.f32.mrb[0].mxu0
      %v1591 = vadd.f32 0.0, %v1590
      %v1592 = vpop.f32.mrb[0].mxu0
      %v1593 = vadd.f32 0.0, %v1592
      %1594 = vdwg.mxu0
      %v1595 = vadd.f32 %v1385, %v1525
      %v1596 = vadd.f32 %v1386, %v1527
      %v1597 = vadd.f32 %v1387, %v1531
      %v1598 = vadd.f32 %v1388, %v1533
      %v1599 = vadd.f32 %v1389, %v1537
      %v1600 = vadd.f32 %v1390, %v1539
      %v1601 = vadd.f32 %v1391, %v1543
      %v1602 = vadd.f32 %v1392, %v1545
      %v1603 = vadd.f32 %v1393, %v1549
      %v1604 = vadd.f32 %v1394, %v1551
      %v1605 = vadd.f32 %v1395, %v1555
      %v1606 = vadd.f32 %v1396, %v1557
      %v1607 = vadd.f32 %v1397, %v1561
      %v1608 = vadd.f32 %v1398, %v1563
      %v1609 = vadd.f32 %v1399, %v1567
      %v1610 = vadd.f32 %v1400, %v1569
      %v1611 = vadd.f32 %v1401, %v1573
      %v1612 = vadd.f32 %v1402, %v1575
      %v1613 = vadd.f32 %v1403, %v1579
      %v1614 = vadd.f32 %v1404, %v1581
      %v1615 = vadd.f32 %v1405, %v1585
      %v1616 = vadd.f32 %v1406, %v1587
      %v1617 = vadd.f32 %v1407, %v1591
      %v1618 = vadd.f32 %v1408, %v1593
      %1619 = vrot.lane.b32.xlu0 %v443, 127
      %v1620 = vpop.permute.xlu0 %1619
      %1621 = vrot.lane.b32.xlu0 %v445, 127
      %v1622 = vpop.permute.xlu0 %1621
      %1623 = vrot.lane.b32.xlu0 %v447, 127
      %v1624 = vpop.permute.xlu0 %1623
      %1625 = vrot.lane.b32.xlu0 %v449, 127
      %v1626 = vpop.permute.xlu0 %1625
      %1627 = vrot.lane.b32.xlu0 %v444, 127
      %v1628 = vpop.permute.xlu0 %1627
      %1629 = vrot.lane.b32.xlu0 %v446, 127
      %v1630 = vpop.permute.xlu0 %1629
      %1631 = vrot.lane.b32.xlu0 %v448, 127
      %v1632 = vpop.permute.xlu0 %1631
      %1633 = vrot.lane.b32.xlu0 %v450, 127
      %v1634 = vpop.permute.xlu0 %1633
      %vm1635 = vcmp.lt.s32.totalorder %v468, 127
      %v1636 = vsel %vm1635, %v1620, %v1628
      %v1637 = vsel %vm1635, %v1622, %v1630
      %v1638 = vsel %vm1635, %v1624, %v1632
      %v1639 = vsel %vm1635, %v1626, %v1634
      %v1640 = vsel %vm1635, %v1628, %v1620
      %v1641 = vsel %vm1635, %v1630, %v1622
      %v1642 = vsel %vm1635, %v1632, %v1624
      %v1643 = vsel %vm1635, %v1634, %v1626
      %v1644 = vlaneseq
      %v1645 = vshrl.u32 %v1644, 7
      %v1646 = vsub.s32 4, %v1645
      %v1647 = vrot.slane %v441, %v1646
      %v1648 = vlaneseq
      %v1649 = vshrl.u32 %v1648, 7
      %v1650 = vsub.s32 4, %v1649
      %v1651 = vrot.slane %v442, %v1650
      %v1652 = vmul.f32 %v1636, %v1647
      %v1653 = vmul.f32 %v1640, %v1651
      %v1654 = vmul.f32 %v1637, %v1647
      %v1655 = vmul.f32 %v1641, %v1651
      %v1656 = vmul.f32 %v1638, %v1647
      %v1657 = vmul.f32 %v1642, %v1651
      %v1658 = vmul.f32 %v1639, %v1647
      %v1659 = vmul.f32 %v1643, %v1651
      %s1660 = scalar_lea.vmem %s3, 480
      %v1661 = vld [vmem:[%s1660] sm:$0xff]
      %v1662 = vld [vmem:[%s1660 + $0x8] sm:$0xff]
      %v1663 = vld [vmem:[%s1660 + $0x10] sm:$0xff]
      %v1664 = vld [vmem:[%s1660 + $0x18] sm:$0xff]
      %v1665 = vld [vmem:[%s1660 + $0x20] sm:$0xff]
      %v1666 = vld [vmem:[%s1660 + $0x28] sm:$0xff]
      %v1667 = vld [vmem:[%s1660 + $0x30] sm:$0xff]
      %v1668 = vld [vmem:[%s1660 + $0x38] sm:$0xff]
      %v1669 = vld [vmem:[%s1660 + $0x40] sm:$0xff]
      %v1670 = vld [vmem:[%s1660 + $0x48] sm:$0xff]
      %v1671 = vld [vmem:[%s1660 + $0x50] sm:$0xff]
      %v1672 = vld [vmem:[%s1660 + $0x58] sm:$0xff]
      %v1674 = vsel %vm560, %v1661, 0
      %v1677 = vsel %vm560, %v1662, 0
      %v1680 = vsel %vm560, %v1663, 0
      %v1683 = vsel %vm560, %v1664, 0
      %v1686 = vsel %vm560, %v1665, 0
      %v1689 = vsel %vm560, %v1666, 0
      %v1692 = vsel %vm560, %v1667, 0
      %v1695 = vsel %vm560, %v1668, 0
      %v1698 = vsel %vm560, %v1669, 0
      %v1701 = vsel %vm560, %v1670, 0
      %v1704 = vsel %vm560, %v1671, 0
      %v1707 = vsel %vm560, %v1672, 0
      %1709 = vmatprep.subr.mxu0 %v1653
      %1710 = vmatpush1.msra.mxu0 %v1652
      %1711 = vmatprep.subr.mxu0 %v1655
      %1712 = vmatpush1.msra.mxu0 %v1654
      %1713 = vmatprep.subr.mxu0 %v1657
      %1714 = vmatpush1.msra.mxu0 %v1656
      %1715 = vmatprep.subr.mxu0 %v1659
      %1716 = vmatpush1.msra.mxu0 %v1658
      %1717 = vmatprep.subr.mxu0 0.0
      %1718 = vmatpush1.msra.mxu0 0.0
      %1719 = vmatprep.subr.mxu0 0.0
      %1720 = vmatpush1.msra.mxu0 0.0
      %1721 = vmatprep.subr.mxu0 0.0
      %1722 = vmatpush1.msra.mxu0 0.0
      %1723 = vmatprep.subr.mxu0 0.0
      %1724 = vmatpush1.msra.mxu0 0.0
      %1725 = vmatprep.subr.mxu0 0.0
      %1726 = vmatpush1.msra.mxu0 0.0
      %1727 = vmatprep.subr.mxu0 0.0
      %1728 = vmatpush1.msra.mxu0 0.0
      %1729 = vmatprep.subr.mxu0 0.0
      %1730 = vmatpush1.msra.mxu0 0.0
      %1731 = vmatprep.subr.mxu0 0.0
      %1732 = vmatpush1.msra.mxu0 0.0
      %1733 = vmatprep.subr.mxu0 0.0
      %1734 = vmatpush1.msra.mxu0 0.0
      %1735 = vmatprep.subr.mxu0 0.0
      %1736 = vmatpush1.msra.mxu0 0.0
      %1737 = vmatprep.subr.mxu0 0.0
      %1738 = vmatpush1.msra.mxu0 0.0
      %1739 = vmatprep.subr.mxu0 0.0
      %1740 = vmatpush1.msra.mxu0 0.0
      %1741 = vmatprep.subr.mxu0 0.0
      %1742 = vmatpush1.msra.mxu0 0.0
      %1743 = vmatprep.subr.mxu0 0.0
      %1744 = vmatpush1.msra.mxu0 0.0
      %1745 = vmatprep.subr.mxu0 0.0
      %1746 = vmatpush1.msra.mxu0 0.0
      %1747 = vmatprep.subr.mxu0 0.0
      %1748 = vmatpush1.msra.mxu0 0.0
      %1749 = vmatprep.subr.mxu0 0.0
      %1750 = vmatpush1.msra.mxu0 0.0
      %1751 = vmatprep.subr.mxu0 0.0
      %1752 = vmatpush1.msra.mxu0 0.0
      %1753 = vmatprep.subr.mxu0 0.0
      %1754 = vmatpush1.msra.mxu0 0.0
      %1755 = vmatprep.subr.mxu0 0.0
      %1756 = vmatpush1.msra.mxu0 0.0
      %1757 = vmatprep.subr.mxu0 0.0
      %1758 = vmatpush1.msra.mxu0 0.0
      %1759 = vmatprep.subr.mxu0 0.0
      %1760 = vmatpush1.msra.mxu0 0.0
      %1761 = vmatprep.subr.mxu0 0.0
      %1762 = vmatpush1.msra.mxu0 0.0
      %1763 = vmatprep.subr.mxu0 0.0
      %1764 = vmatpush1.msra.mxu0 0.0
      %1765 = vmatprep.subr.mxu0 0.0
      %1766 = vmatpush1.msra.mxu0 0.0
      %1767 = vmatprep.subr.mxu0 0.0
      %1768 = vmatpush1.msra.mxu0 0.0
      %1769 = vmatprep.subr.mxu0 0.0
      %1770 = vmatpush1.msra.mxu0 0.0
      %1771 = vmatprep.subr.mxu0 0.0
      %1772 = vmatpush1.msra.mxu0 0.0
      %1773 = vmatprep.mubr.f32.mxu0 0.0
      %1774 = vmatmul.mubr.f32.gmra.mrb[0].mxu0 %v1674
      %v1775 = vpop.f32.mrb[0].mxu0
      %v1776 = vadd.f32 0.0, %v1775
      %v1777 = vpop.f32.mrb[0].mxu0
      %v1778 = vadd.f32 0.0, %v1777
      %1779 = vmatprep.mubr.f32.mxu0 0.0
      %1780 = vmatmul.mubr.f32.gmra.mrb[0].mxu0 %v1677
      %v1781 = vpop.f32.mrb[0].mxu0
      %v1782 = vadd.f32 0.0, %v1781
      %v1783 = vpop.f32.mrb[0].mxu0
      %v1784 = vadd.f32 0.0, %v1783
      %1785 = vmatprep.mubr.f32.mxu0 0.0
      %1786 = vmatmul.mubr.f32.gmra.mrb[0].mxu0 %v1680
      %v1787 = vpop.f32.mrb[0].mxu0
      %v1788 = vadd.f32 0.0, %v1787
      %v1789 = vpop.f32.mrb[0].mxu0
      %v1790 = vadd.f32 0.0, %v1789
      %1791 = vmatprep.mubr.f32.mxu0 0.0
      %1792 = vmatmul.mubr.f32.gmra.mrb[0].mxu0 %v1683
      %v1793 = vpop.f32.mrb[0].mxu0
      %v1794 = vadd.f32 0.0, %v1793
      %v1795 = vpop.f32.mrb[0].mxu0
      %v1796 = vadd.f32 0.0, %v1795
      %1797 = vmatprep.mubr.f32.mxu0 0.0
      %1798 = vmatmul.mubr.f32.gmra.mrb[0].mxu0 %v1686
      %v1799 = vpop.f32.mrb[0].mxu0
      %v1800 = vadd.f32 0.0, %v1799
      %v1801 = vpop.f32.mrb[0].mxu0
      %v1802 = vadd.f32 0.0, %v1801
      %1803 = vmatprep.mubr.f32.mxu0 0.0
      %1804 = vmatmul.mubr.f32.gmra.mrb[0].mxu0 %v1689
      %v1805 = vpop.f32.mrb[0].mxu0
      %v1806 = vadd.f32 0.0, %v1805
      %v1807 = vpop.f32.mrb[0].mxu0
      %v1808 = vadd.f32 0.0, %v1807
      %1809 = vmatprep.mubr.f32.mxu0 0.0
      %1810 = vmatmul.mubr.f32.gmra.mrb[0].mxu0 %v1692
      %v1811 = vpop.f32.mrb[0].mxu0
      %v1812 = vadd.f32 0.0, %v1811
      %v1813 = vpop.f32.mrb[0].mxu0
      %v1814 = vadd.f32 0.0, %v1813
      %1815 = vmatprep.mubr.f32.mxu0 0.0
      %1816 = vmatmul.mubr.f32.gmra.mrb[0].mxu0 %v1695
      %v1817 = vpop.f32.mrb[0].mxu0
      %v1818 = vadd.f32 0.0, %v1817
      %v1819 = vpop.f32.mrb[0].mxu0
      %v1820 = vadd.f32 0.0, %v1819
      %1821 = vmatprep.mubr.f32.mxu0 0.0
      %1822 = vmatmul.mubr.f32.gmra.mrb[0].mxu0 %v1698
      %v1823 = vpop.f32.mrb[0].mxu0
      %v1824 = vadd.f32 0.0, %v1823
      %v1825 = vpop.f32.mrb[0].mxu0
      %v1826 = vadd.f32 0.0, %v1825
      %1827 = vmatprep.mubr.f32.mxu0 0.0
      %1828 = vmatmul.mubr.f32.gmra.mrb[0].mxu0 %v1701
      %v1829 = vpop.f32.mrb[0].mxu0
      %v1830 = vadd.f32 0.0, %v1829
      %v1831 = vpop.f32.mrb[0].mxu0
      %v1832 = vadd.f32 0.0, %v1831
      %1833 = vmatprep.mubr.f32.mxu0 0.0
      %1834 = vmatmul.mubr.f32.gmra.mrb[0].mxu0 %v1704
      %v1835 = vpop.f32.mrb[0].mxu0
      %v1836 = vadd.f32 0.0, %v1835
      %v1837 = vpop.f32.mrb[0].mxu0
      %v1838 = vadd.f32 0.0, %v1837
      %1839 = vmatprep.mubr.f32.mxu0 0.0
      %1840 = vmatmul.mubr.f32.gmra.mrb[0].mxu0 %v1707
      %v1841 = vpop.f32.mrb[0].mxu0
      %v1842 = vadd.f32 0.0, %v1841
      %v1843 = vpop.f32.mrb[0].mxu0
      %v1844 = vadd.f32 0.0, %v1843
      %1845 = vdwg.mxu0
      %v1846 = vadd.f32 %v1595, %v1776
      %v1847 = vadd.f32 %v1596, %v1778
      %v1848 = vadd.f32 %v1597, %v1782
      %v1849 = vadd.f32 %v1598, %v1784
      %v1850 = vadd.f32 %v1599, %v1788
      %v1851 = vadd.f32 %v1600, %v1790
      %v1852 = vadd.f32 %v1601, %v1794
      %v1853 = vadd.f32 %v1602, %v1796
      %v1854 = vadd.f32 %v1603, %v1800
      %v1855 = vadd.f32 %v1604, %v1802
      %v1856 = vadd.f32 %v1605, %v1806
      %v1857 = vadd.f32 %v1606, %v1808
      %v1858 = vadd.f32 %v1607, %v1812
      %v1859 = vadd.f32 %v1608, %v1814
      %v1860 = vadd.f32 %v1609, %v1818
      %v1861 = vadd.f32 %v1610, %v1820
      %v1862 = vadd.f32 %v1611, %v1824
      %v1863 = vadd.f32 %v1612, %v1826
      %v1864 = vadd.f32 %v1613, %v1830
      %v1865 = vadd.f32 %v1614, %v1832
      %v1866 = vadd.f32 %v1615, %v1836
      %v1867 = vadd.f32 %v1616, %v1838
      %v1868 = vadd.f32 %v1617, %v1842
      %v1869 = vadd.f32 %v1618, %v1844
      %1870 = vrot.lane.b32.xlu0 %v443, 113
      %v1871 = vpop.permute.xlu0 %1870
      %1872 = vrot.lane.b32.xlu0 %v445, 113
      %v1873 = vpop.permute.xlu0 %1872
      %1874 = vrot.lane.b32.xlu0 %v447, 113
      %v1875 = vpop.permute.xlu0 %1874
      %1876 = vrot.lane.b32.xlu0 %v449, 113
      %v1877 = vpop.permute.xlu0 %1876
      %1878 = vrot.lane.b32.xlu0 %v444, 113
      %v1879 = vpop.permute.xlu0 %1878
      %1880 = vrot.lane.b32.xlu0 %v446, 113
      %v1881 = vpop.permute.xlu0 %1880
      %1882 = vrot.lane.b32.xlu0 %v448, 113
      %v1883 = vpop.permute.xlu0 %1882
      %1884 = vrot.lane.b32.xlu0 %v450, 113
      %v1885 = vpop.permute.xlu0 %1884
      %vm1886 = vcmp.lt.s32.totalorder %v468, 113
      %v1887 = vsel %vm1886, %v1871, %v1879
      %v1888 = vsel %vm1886, %v1873, %v1881
      %v1889 = vsel %vm1886, %v1875, %v1883
      %v1890 = vsel %vm1886, %v1877, %v1885
      %v1891 = vsel %vm1886, %v1879, %v1871
      %v1892 = vsel %vm1886, %v1881, %v1873
      %v1893 = vsel %vm1886, %v1883, %v1875
      %v1894 = vsel %vm1886, %v1885, %v1877
      %v1895 = vlaneseq
      %v1896 = vshrl.u32 %v1895, 7
      %v1897 = vsub.s32 5, %v1896
      %v1898 = vrot.slane %v441, %v1897
      %v1899 = vlaneseq
      %v1900 = vshrl.u32 %v1899, 7
      %v1901 = vsub.s32 5, %v1900
      %v1902 = vrot.slane %v442, %v1901
      %v1903 = vmul.f32 %v1887, %v1898
      %v1904 = vmul.f32 %v1891, %v1902
      %v1905 = vmul.f32 %v1888, %v1898
      %v1906 = vmul.f32 %v1892, %v1902
      %v1907 = vmul.f32 %v1889, %v1898
      %v1908 = vmul.f32 %v1893, %v1902
      %v1909 = vmul.f32 %v1890, %v1898
      %v1910 = vmul.f32 %v1894, %v1902
      %s1911 = scalar_lea.vmem %s3, 576
      %v1912 = vld [vmem:[%s1911] sm:$0xff]
      %v1913 = vld [vmem:[%s1911 + $0x8] sm:$0xff]
      %v1914 = vld [vmem:[%s1911 + $0x10] sm:$0xff]
      %v1915 = vld [vmem:[%s1911 + $0x18] sm:$0xff]
      %v1916 = vld [vmem:[%s1911 + $0x20] sm:$0xff]
      %v1917 = vld [vmem:[%s1911 + $0x28] sm:$0xff]
      %v1918 = vld [vmem:[%s1911 + $0x30] sm:$0xff]
      %v1919 = vld [vmem:[%s1911 + $0x38] sm:$0xff]
      %v1920 = vld [vmem:[%s1911 + $0x40] sm:$0xff]
      %v1921 = vld [vmem:[%s1911 + $0x48] sm:$0xff]
      %v1922 = vld [vmem:[%s1911 + $0x50] sm:$0xff]
      %v1923 = vld [vmem:[%s1911 + $0x58] sm:$0xff]
      %v1925 = vsel %vm560, %v1912, 0
      %v1928 = vsel %vm560, %v1913, 0
      %v1931 = vsel %vm560, %v1914, 0
      %v1934 = vsel %vm560, %v1915, 0
      %v1937 = vsel %vm560, %v1916, 0
      %v1940 = vsel %vm560, %v1917, 0
      %v1943 = vsel %vm560, %v1918, 0
      %v1946 = vsel %vm560, %v1919, 0
      %v1949 = vsel %vm560, %v1920, 0
      %v1952 = vsel %vm560, %v1921, 0
      %v1955 = vsel %vm560, %v1922, 0
      %v1958 = vsel %vm560, %v1923, 0
      %1960 = vmatprep.subr.mxu0 %v1904
      %1961 = vmatpush1.msra.mxu0 %v1903
      %1962 = vmatprep.subr.mxu0 %v1906
      %1963 = vmatpush1.msra.mxu0 %v1905
      %1964 = vmatprep.subr.mxu0 %v1908
      %1965 = vmatpush1.msra.mxu0 %v1907
      %1966 = vmatprep.subr.mxu0 %v1910
      %1967 = vmatpush1.msra.mxu0 %v1909
      %1968 = vmatprep.subr.mxu0 0.0
      %1969 = vmatpush1.msra.mxu0 0.0
      %1970 = vmatprep.subr.mxu0 0.0
      %1971 = vmatpush1.msra.mxu0 0.0
      %1972 = vmatprep.subr.mxu0 0.0
      %1973 = vmatpush1.msra.mxu0 0.0
      %1974 = vmatprep.subr.mxu0 0.0
      %1975 = vmatpush1.msra.mxu0 0.0
      %1976 = vmatprep.subr.mxu0 0.0
      %1977 = vmatpush1.msra.mxu0 0.0
      %1978 = vmatprep.subr.mxu0 0.0
      %1979 = vmatpush1.msra.mxu0 0.0
      %1980 = vmatprep.subr.mxu0 0.0
      %1981 = vmatpush1.msra.mxu0 0.0
      %1982 = vmatprep.subr.mxu0 0.0
      %1983 = vmatpush1.msra.mxu0 0.0
      %1984 = vmatprep.subr.mxu0 0.0
      %1985 = vmatpush1.msra.mxu0 0.0
      %1986 = vmatprep.subr.mxu0 0.0
      %1987 = vmatpush1.msra.mxu0 0.0
      %1988 = vmatprep.subr.mxu0 0.0
      %1989 = vmatpush1.msra.mxu0 0.0
      %1990 = vmatprep.subr.mxu0 0.0
      %1991 = vmatpush1.msra.mxu0 0.0
      %1992 = vmatprep.subr.mxu0 0.0
      %1993 = vmatpush1.msra.mxu0 0.0
      %1994 = vmatprep.subr.mxu0 0.0
      %1995 = vmatpush1.msra.mxu0 0.0
      %1996 = vmatprep.subr.mxu0 0.0
      %1997 = vmatpush1.msra.mxu0 0.0
      %1998 = vmatprep.subr.mxu0 0.0
      %1999 = vmatpush1.msra.mxu0 0.0
      %2000 = vmatprep.subr.mxu0 0.0
      %2001 = vmatpush1.msra.mxu0 0.0
      %2002 = vmatprep.subr.mxu0 0.0
      %2003 = vmatpush1.msra.mxu0 0.0
      %2004 = vmatprep.subr.mxu0 0.0
      %2005 = vmatpush1.msra.mxu0 0.0
      %2006 = vmatprep.subr.mxu0 0.0
      %2007 = vmatpush1.msra.mxu0 0.0
      %2008 = vmatprep.subr.mxu0 0.0
      %2009 = vmatpush1.msra.mxu0 0.0
      %2010 = vmatprep.subr.mxu0 0.0
      %2011 = vmatpush1.msra.mxu0 0.0
      %2012 = vmatprep.subr.mxu0 0.0
      %2013 = vmatpush1.msra.mxu0 0.0
      %2014 = vmatprep.subr.mxu0 0.0
      %2015 = vmatpush1.msra.mxu0 0.0
      %2016 = vmatprep.subr.mxu0 0.0
      %2017 = vmatpush1.msra.mxu0 0.0
      %2018 = vmatprep.subr.mxu0 0.0
      %2019 = vmatpush1.msra.mxu0 0.0
      %2020 = vmatprep.subr.mxu0 0.0
      %2021 = vmatpush1.msra.mxu0 0.0
      %2022 = vmatprep.subr.mxu0 0.0
      %2023 = vmatpush1.msra.mxu0 0.0
      %2024 = vmatprep.mubr.f32.mxu0 0.0
      %2025 = vmatmul.mubr.f32.gmra.mrb[0].mxu0 %v1925
      %v2026 = vpop.f32.mrb[0].mxu0
      %v2027 = vadd.f32 0.0, %v2026
      %v2028 = vpop.f32.mrb[0].mxu0
      %v2029 = vadd.f32 0.0, %v2028
      %2030 = vmatprep.mubr.f32.mxu0 0.0
      %2031 = vmatmul.mubr.f32.gmra.mrb[0].mxu0 %v1928
      %v2032 = vpop.f32.mrb[0].mxu0
      %v2033 = vadd.f32 0.0, %v2032
      %v2034 = vpop.f32.mrb[0].mxu0
      %v2035 = vadd.f32 0.0, %v2034
      %2036 = vmatprep.mubr.f32.mxu0 0.0
      %2037 = vmatmul.mubr.f32.gmra.mrb[0].mxu0 %v1931
      %v2038 = vpop.f32.mrb[0].mxu0
      %v2039 = vadd.f32 0.0, %v2038
      %v2040 = vpop.f32.mrb[0].mxu0
      %v2041 = vadd.f32 0.0, %v2040
      %2042 = vmatprep.mubr.f32.mxu0 0.0
      %2043 = vmatmul.mubr.f32.gmra.mrb[0].mxu0 %v1934
      %v2044 = vpop.f32.mrb[0].mxu0
      %v2045 = vadd.f32 0.0, %v2044
      %v2046 = vpop.f32.mrb[0].mxu0
      %v2047 = vadd.f32 0.0, %v2046
      %2048 = vmatprep.mubr.f32.mxu0 0.0
      %2049 = vmatmul.mubr.f32.gmra.mrb[0].mxu0 %v1937
      %v2050 = vpop.f32.mrb[0].mxu0
      %v2051 = vadd.f32 0.0, %v2050
      %v2052 = vpop.f32.mrb[0].mxu0
      %v2053 = vadd.f32 0.0, %v2052
      %2054 = vmatprep.mubr.f32.mxu0 0.0
      %2055 = vmatmul.mubr.f32.gmra.mrb[0].mxu0 %v1940
      %v2056 = vpop.f32.mrb[0].mxu0
      %v2057 = vadd.f32 0.0, %v2056
      %v2058 = vpop.f32.mrb[0].mxu0
      %v2059 = vadd.f32 0.0, %v2058
      %2060 = vmatprep.mubr.f32.mxu0 0.0
      %2061 = vmatmul.mubr.f32.gmra.mrb[0].mxu0 %v1943
      %v2062 = vpop.f32.mrb[0].mxu0
      %v2063 = vadd.f32 0.0, %v2062
      %v2064 = vpop.f32.mrb[0].mxu0
      %v2065 = vadd.f32 0.0, %v2064
      %2066 = vmatprep.mubr.f32.mxu0 0.0
      %2067 = vmatmul.mubr.f32.gmra.mrb[0].mxu0 %v1946
      %v2068 = vpop.f32.mrb[0].mxu0
      %v2069 = vadd.f32 0.0, %v2068
      %v2070 = vpop.f32.mrb[0].mxu0
      %v2071 = vadd.f32 0.0, %v2070
      %2072 = vmatprep.mubr.f32.mxu0 0.0
      %2073 = vmatmul.mubr.f32.gmra.mrb[0].mxu0 %v1949
      %v2074 = vpop.f32.mrb[0].mxu0
      %v2075 = vadd.f32 0.0, %v2074
      %v2076 = vpop.f32.mrb[0].mxu0
      %v2077 = vadd.f32 0.0, %v2076
      %2078 = vmatprep.mubr.f32.mxu0 0.0
      %2079 = vmatmul.mubr.f32.gmra.mrb[0].mxu0 %v1952
      %v2080 = vpop.f32.mrb[0].mxu0
      %v2081 = vadd.f32 0.0, %v2080
      %v2082 = vpop.f32.mrb[0].mxu0
      %v2083 = vadd.f32 0.0, %v2082
      %2084 = vmatprep.mubr.f32.mxu0 0.0
      %2085 = vmatmul.mubr.f32.gmra.mrb[0].mxu0 %v1955
      %v2086 = vpop.f32.mrb[0].mxu0
      %v2087 = vadd.f32 0.0, %v2086
      %v2088 = vpop.f32.mrb[0].mxu0
      %v2089 = vadd.f32 0.0, %v2088
      %2090 = vmatprep.mubr.f32.mxu0 0.0
      %2091 = vmatmul.mubr.f32.gmra.mrb[0].mxu0 %v1958
      %v2092 = vpop.f32.mrb[0].mxu0
      %v2093 = vadd.f32 0.0, %v2092
      %v2094 = vpop.f32.mrb[0].mxu0
      %v2095 = vadd.f32 0.0, %v2094
      %2096 = vdwg.mxu0
      %v2097 = vadd.f32 %v1846, %v2027
      %v2098 = vadd.f32 %v1847, %v2029
      %v2099 = vadd.f32 %v1848, %v2033
      %v2100 = vadd.f32 %v1849, %v2035
      %v2101 = vadd.f32 %v1850, %v2039
      %v2102 = vadd.f32 %v1851, %v2041
      %v2103 = vadd.f32 %v1852, %v2045
      %v2104 = vadd.f32 %v1853, %v2047
      %v2105 = vadd.f32 %v1854, %v2051
      %v2106 = vadd.f32 %v1855, %v2053
      %v2107 = vadd.f32 %v1856, %v2057
      %v2108 = vadd.f32 %v1857, %v2059
      %v2109 = vadd.f32 %v1858, %v2063
      %v2110 = vadd.f32 %v1859, %v2065
      %v2111 = vadd.f32 %v1860, %v2069
      %v2112 = vadd.f32 %v1861, %v2071
      %v2113 = vadd.f32 %v1862, %v2075
      %v2114 = vadd.f32 %v1863, %v2077
      %v2115 = vadd.f32 %v1864, %v2081
      %v2116 = vadd.f32 %v1865, %v2083
      %v2117 = vadd.f32 %v1866, %v2087
      %v2118 = vadd.f32 %v1867, %v2089
      %v2119 = vadd.f32 %v1868, %v2093
      %v2120 = vadd.f32 %v1869, %v2095
      %2121 = vrot.lane.b32.xlu0 %v443, 112
      %v2122 = vpop.permute.xlu0 %2121
      %2123 = vrot.lane.b32.xlu0 %v445, 112
      %v2124 = vpop.permute.xlu0 %2123
      %2125 = vrot.lane.b32.xlu0 %v447, 112
      %v2126 = vpop.permute.xlu0 %2125
      %2127 = vrot.lane.b32.xlu0 %v449, 112
      %v2128 = vpop.permute.xlu0 %2127
      %2129 = vrot.lane.b32.xlu0 %v444, 112
      %v2130 = vpop.permute.xlu0 %2129
      %2131 = vrot.lane.b32.xlu0 %v446, 112
      %v2132 = vpop.permute.xlu0 %2131
      %2133 = vrot.lane.b32.xlu0 %v448, 112
      %v2134 = vpop.permute.xlu0 %2133
      %2135 = vrot.lane.b32.xlu0 %v450, 112
      %v2136 = vpop.permute.xlu0 %2135
      %vm2137 = vcmp.lt.s32.totalorder %v468, 112
      %v2138 = vsel %vm2137, %v2122, %v2130
      %v2139 = vsel %vm2137, %v2124, %v2132
      %v2140 = vsel %vm2137, %v2126, %v2134
      %v2141 = vsel %vm2137, %v2128, %v2136
      %v2142 = vsel %vm2137, %v2130, %v2122
      %v2143 = vsel %vm2137, %v2132, %v2124
      %v2144 = vsel %vm2137, %v2134, %v2126
      %v2145 = vsel %vm2137, %v2136, %v2128
      %v2146 = vlaneseq
      %v2147 = vshrl.u32 %v2146, 7
      %v2148 = vsub.s32 6, %v2147
      %v2149 = vrot.slane %v441, %v2148
      %v2150 = vlaneseq
      %v2151 = vshrl.u32 %v2150, 7
      %v2152 = vsub.s32 6, %v2151
      %v2153 = vrot.slane %v442, %v2152
      %v2154 = vmul.f32 %v2138, %v2149
      %v2155 = vmul.f32 %v2142, %v2153
      %v2156 = vmul.f32 %v2139, %v2149
      %v2157 = vmul.f32 %v2143, %v2153
      %v2158 = vmul.f32 %v2140, %v2149
      %v2159 = vmul.f32 %v2144, %v2153
      %v2160 = vmul.f32 %v2141, %v2149
      %v2161 = vmul.f32 %v2145, %v2153
      %s2162 = scalar_lea.vmem %s3, 672
      %v2163 = vld [vmem:[%s2162] sm:$0xff]
      %v2164 = vld [vmem:[%s2162 + $0x8] sm:$0xff]
      %v2165 = vld [vmem:[%s2162 + $0x10] sm:$0xff]
      %v2166 = vld [vmem:[%s2162 + $0x18] sm:$0xff]
      %v2167 = vld [vmem:[%s2162 + $0x20] sm:$0xff]
      %v2168 = vld [vmem:[%s2162 + $0x28] sm:$0xff]
      %v2169 = vld [vmem:[%s2162 + $0x30] sm:$0xff]
      %v2170 = vld [vmem:[%s2162 + $0x38] sm:$0xff]
      %v2171 = vld [vmem:[%s2162 + $0x40] sm:$0xff]
      %v2172 = vld [vmem:[%s2162 + $0x48] sm:$0xff]
      %v2173 = vld [vmem:[%s2162 + $0x50] sm:$0xff]
      %v2174 = vld [vmem:[%s2162 + $0x58] sm:$0xff]
      %v2176 = vsel %vm560, %v2163, 0
      %v2179 = vsel %vm560, %v2164, 0
      %v2182 = vsel %vm560, %v2165, 0
      %v2185 = vsel %vm560, %v2166, 0
      %v2188 = vsel %vm560, %v2167, 0
      %v2191 = vsel %vm560, %v2168, 0
      %v2194 = vsel %vm560, %v2169, 0
      %v2197 = vsel %vm560, %v2170, 0
      %v2200 = vsel %vm560, %v2171, 0
      %v2203 = vsel %vm560, %v2172, 0
      %v2206 = vsel %vm560, %v2173, 0
      %v2209 = vsel %vm560, %v2174, 0
      %2211 = vmatprep.subr.mxu0 %v2155
      %2212 = vmatpush1.msra.mxu0 %v2154
      %2213 = vmatprep.subr.mxu0 %v2157
      %2214 = vmatpush1.msra.mxu0 %v2156
      %2215 = vmatprep.subr.mxu0 %v2159
      %2216 = vmatpush1.msra.mxu0 %v2158
      %2217 = vmatprep.subr.mxu0 %v2161
      %2218 = vmatpush1.msra.mxu0 %v2160
      %2219 = vmatprep.subr.mxu0 0.0
      %2220 = vmatpush1.msra.mxu0 0.0
      %2221 = vmatprep.subr.mxu0 0.0
      %2222 = vmatpush1.msra.mxu0 0.0
      %2223 = vmatprep.subr.mxu0 0.0
      %2224 = vmatpush1.msra.mxu0 0.0
      %2225 = vmatprep.subr.mxu0 0.0
      %2226 = vmatpush1.msra.mxu0 0.0
      %2227 = vmatprep.subr.mxu0 0.0
      %2228 = vmatpush1.msra.mxu0 0.0
      %2229 = vmatprep.subr.mxu0 0.0
      %2230 = vmatpush1.msra.mxu0 0.0
      %2231 = vmatprep.subr.mxu0 0.0
      %2232 = vmatpush1.msra.mxu0 0.0
      %2233 = vmatprep.subr.mxu0 0.0
      %2234 = vmatpush1.msra.mxu0 0.0
      %2235 = vmatprep.subr.mxu0 0.0
      %2236 = vmatpush1.msra.mxu0 0.0
      %2237 = vmatprep.subr.mxu0 0.0
      %2238 = vmatpush1.msra.mxu0 0.0
      %2239 = vmatprep.subr.mxu0 0.0
      %2240 = vmatpush1.msra.mxu0 0.0
      %2241 = vmatprep.subr.mxu0 0.0
      %2242 = vmatpush1.msra.mxu0 0.0
      %2243 = vmatprep.subr.mxu0 0.0
      %2244 = vmatpush1.msra.mxu0 0.0
      %2245 = vmatprep.subr.mxu0 0.0
      %2246 = vmatpush1.msra.mxu0 0.0
      %2247 = vmatprep.subr.mxu0 0.0
      %2248 = vmatpush1.msra.mxu0 0.0
      %2249 = vmatprep.subr.mxu0 0.0
      %2250 = vmatpush1.msra.mxu0 0.0
      %2251 = vmatprep.subr.mxu0 0.0
      %2252 = vmatpush1.msra.mxu0 0.0
      %2253 = vmatprep.subr.mxu0 0.0
      %2254 = vmatpush1.msra.mxu0 0.0
      %2255 = vmatprep.subr.mxu0 0.0
      %2256 = vmatpush1.msra.mxu0 0.0
      %2257 = vmatprep.subr.mxu0 0.0
      %2258 = vmatpush1.msra.mxu0 0.0
      %2259 = vmatprep.subr.mxu0 0.0
      %2260 = vmatpush1.msra.mxu0 0.0
      %2261 = vmatprep.subr.mxu0 0.0
      %2262 = vmatpush1.msra.mxu0 0.0
      %2263 = vmatprep.subr.mxu0 0.0
      %2264 = vmatpush1.msra.mxu0 0.0
      %2265 = vmatprep.subr.mxu0 0.0
      %2266 = vmatpush1.msra.mxu0 0.0
      %2267 = vmatprep.subr.mxu0 0.0
      %2268 = vmatpush1.msra.mxu0 0.0
      %2269 = vmatprep.subr.mxu0 0.0
      %2270 = vmatpush1.msra.mxu0 0.0
      %2271 = vmatprep.subr.mxu0 0.0
      %2272 = vmatpush1.msra.mxu0 0.0
      %2273 = vmatprep.subr.mxu0 0.0
      %2274 = vmatpush1.msra.mxu0 0.0
      %2275 = vmatprep.mubr.f32.mxu0 0.0
      %2276 = vmatmul.mubr.f32.gmra.mrb[0].mxu0 %v2176
      %v2277 = vpop.f32.mrb[0].mxu0
      %v2278 = vadd.f32 0.0, %v2277
      %v2279 = vpop.f32.mrb[0].mxu0
      %v2280 = vadd.f32 0.0, %v2279
      %2281 = vmatprep.mubr.f32.mxu0 0.0
      %2282 = vmatmul.mubr.f32.gmra.mrb[0].mxu0 %v2179
      %v2283 = vpop.f32.mrb[0].mxu0
      %v2284 = vadd.f32 0.0, %v2283
      %v2285 = vpop.f32.mrb[0].mxu0
      %v2286 = vadd.f32 0.0, %v2285
      %2287 = vmatprep.mubr.f32.mxu0 0.0
      %2288 = vmatmul.mubr.f32.gmra.mrb[0].mxu0 %v2182
      %v2289 = vpop.f32.mrb[0].mxu0
      %v2290 = vadd.f32 0.0, %v2289
      %v2291 = vpop.f32.mrb[0].mxu0
      %v2292 = vadd.f32 0.0, %v2291
      %2293 = vmatprep.mubr.f32.mxu0 0.0
      %2294 = vmatmul.mubr.f32.gmra.mrb[0].mxu0 %v2185
      %v2295 = vpop.f32.mrb[0].mxu0
      %v2296 = vadd.f32 0.0, %v2295
      %v2297 = vpop.f32.mrb[0].mxu0
      %v2298 = vadd.f32 0.0, %v2297
      %2299 = vmatprep.mubr.f32.mxu0 0.0
      %2300 = vmatmul.mubr.f32.gmra.mrb[0].mxu0 %v2188
      %v2301 = vpop.f32.mrb[0].mxu0
      %v2302 = vadd.f32 0.0, %v2301
      %v2303 = vpop.f32.mrb[0].mxu0
      %v2304 = vadd.f32 0.0, %v2303
      %2305 = vmatprep.mubr.f32.mxu0 0.0
      %2306 = vmatmul.mubr.f32.gmra.mrb[0].mxu0 %v2191
      %v2307 = vpop.f32.mrb[0].mxu0
      %v2308 = vadd.f32 0.0, %v2307
      %v2309 = vpop.f32.mrb[0].mxu0
      %v2310 = vadd.f32 0.0, %v2309
      %2311 = vmatprep.mubr.f32.mxu0 0.0
      %2312 = vmatmul.mubr.f32.gmra.mrb[0].mxu0 %v2194
      %v2313 = vpop.f32.mrb[0].mxu0
      %v2314 = vadd.f32 0.0, %v2313
      %v2315 = vpop.f32.mrb[0].mxu0
      %v2316 = vadd.f32 0.0, %v2315
      %2317 = vmatprep.mubr.f32.mxu0 0.0
      %2318 = vmatmul.mubr.f32.gmra.mrb[0].mxu0 %v2197
      %v2319 = vpop.f32.mrb[0].mxu0
      %v2320 = vadd.f32 0.0, %v2319
      %v2321 = vpop.f32.mrb[0].mxu0
      %v2322 = vadd.f32 0.0, %v2321
      %2323 = vmatprep.mubr.f32.mxu0 0.0
      %2324 = vmatmul.mubr.f32.gmra.mrb[0].mxu0 %v2200
      %v2325 = vpop.f32.mrb[0].mxu0
      %v2326 = vadd.f32 0.0, %v2325
      %v2327 = vpop.f32.mrb[0].mxu0
      %v2328 = vadd.f32 0.0, %v2327
      %2329 = vmatprep.mubr.f32.mxu0 0.0
      %2330 = vmatmul.mubr.f32.gmra.mrb[0].mxu0 %v2203
      %v2331 = vpop.f32.mrb[0].mxu0
      %v2332 = vadd.f32 0.0, %v2331
      %v2333 = vpop.f32.mrb[0].mxu0
      %v2334 = vadd.f32 0.0, %v2333
      %2335 = vmatprep.mubr.f32.mxu0 0.0
      %2336 = vmatmul.mubr.f32.gmra.mrb[0].mxu0 %v2206
      %v2337 = vpop.f32.mrb[0].mxu0
      %v2338 = vadd.f32 0.0, %v2337
      %v2339 = vpop.f32.mrb[0].mxu0
      %v2340 = vadd.f32 0.0, %v2339
      %2341 = vmatprep.mubr.f32.mxu0 0.0
      %2342 = vmatmul.mubr.f32.gmra.mrb[0].mxu0 %v2209
      %v2343 = vpop.f32.mrb[0].mxu0
      %v2344 = vadd.f32 0.0, %v2343
      %v2345 = vpop.f32.mrb[0].mxu0
      %v2346 = vadd.f32 0.0, %v2345
      %2347 = vdwg.mxu0
      %v2348 = vadd.f32 %v2097, %v2278
      %v2349 = vadd.f32 %v2098, %v2280
      %v2350 = vadd.f32 %v2099, %v2284
      %v2351 = vadd.f32 %v2100, %v2286
      %v2352 = vadd.f32 %v2101, %v2290
      %v2353 = vadd.f32 %v2102, %v2292
      %v2354 = vadd.f32 %v2103, %v2296
      %v2355 = vadd.f32 %v2104, %v2298
      %v2356 = vadd.f32 %v2105, %v2302
      %v2357 = vadd.f32 %v2106, %v2304
      %v2358 = vadd.f32 %v2107, %v2308
      %v2359 = vadd.f32 %v2108, %v2310
      %v2360 = vadd.f32 %v2109, %v2314
      %v2361 = vadd.f32 %v2110, %v2316
      %v2362 = vadd.f32 %v2111, %v2320
      %v2363 = vadd.f32 %v2112, %v2322
      %v2364 = vadd.f32 %v2113, %v2326
      %v2365 = vadd.f32 %v2114, %v2328
      %v2366 = vadd.f32 %v2115, %v2332
      %v2367 = vadd.f32 %v2116, %v2334
      %v2368 = vadd.f32 %v2117, %v2338
      %v2369 = vadd.f32 %v2118, %v2340
      %v2370 = vadd.f32 %v2119, %v2344
      %v2371 = vadd.f32 %v2120, %v2346
      %2372 = vrot.lane.b32.xlu0 %v443, 111
      %v2373 = vpop.permute.xlu0 %2372
      %2374 = vrot.lane.b32.xlu0 %v445, 111
      %v2375 = vpop.permute.xlu0 %2374
      %2376 = vrot.lane.b32.xlu0 %v447, 111
      %v2377 = vpop.permute.xlu0 %2376
      %2378 = vrot.lane.b32.xlu0 %v449, 111
      %v2379 = vpop.permute.xlu0 %2378
      %2380 = vrot.lane.b32.xlu0 %v444, 111
      %v2381 = vpop.permute.xlu0 %2380
      %2382 = vrot.lane.b32.xlu0 %v446, 111
      %v2383 = vpop.permute.xlu0 %2382
      %2384 = vrot.lane.b32.xlu0 %v448, 111
      %v2385 = vpop.permute.xlu0 %2384
      %2386 = vrot.lane.b32.xlu0 %v450, 111
      %v2387 = vpop.permute.xlu0 %2386
      %vm2388 = vcmp.lt.s32.totalorder %v468, 111
      %v2389 = vsel %vm2388, %v2373, %v2381
      %v2390 = vsel %vm2388, %v2375, %v2383
      %v2391 = vsel %vm2388, %v2377, %v2385
      %v2392 = vsel %vm2388, %v2379, %v2387
      %v2393 = vsel %vm2388, %v2381, %v2373
      %v2394 = vsel %vm2388, %v2383, %v2375
      %v2395 = vsel %vm2388, %v2385, %v2377
      %v2396 = vsel %vm2388, %v2387, %v2379
      %v2397 = vlaneseq
      %v2398 = vshrl.u32 %v2397, 7
      %v2399 = vsub.s32 7, %v2398
      %v2400 = vrot.slane %v441, %v2399
      %v2401 = vlaneseq
      %v2402 = vshrl.u32 %v2401, 7
      %v2403 = vsub.s32 7, %v2402
      %v2404 = vrot.slane %v442, %v2403
      %v2405 = vmul.f32 %v2389, %v2400
      %v2406 = vmul.f32 %v2393, %v2404
      %v2407 = vmul.f32 %v2390, %v2400
      %v2408 = vmul.f32 %v2394, %v2404
      %v2409 = vmul.f32 %v2391, %v2400
      %v2410 = vmul.f32 %v2395, %v2404
      %v2411 = vmul.f32 %v2392, %v2400
      %v2412 = vmul.f32 %v2396, %v2404
      %s2413 = scalar_lea.vmem %s3, 768
      %v2414 = vld [vmem:[%s2413] sm:$0xff]
      %v2415 = vld [vmem:[%s2413 + $0x8] sm:$0xff]
      %v2416 = vld [vmem:[%s2413 + $0x10] sm:$0xff]
      %v2417 = vld [vmem:[%s2413 + $0x18] sm:$0xff]
      %v2418 = vld [vmem:[%s2413 + $0x20] sm:$0xff]
      %v2419 = vld [vmem:[%s2413 + $0x28] sm:$0xff]
      %v2420 = vld [vmem:[%s2413 + $0x30] sm:$0xff]
      %v2421 = vld [vmem:[%s2413 + $0x38] sm:$0xff]
      %v2422 = vld [vmem:[%s2413 + $0x40] sm:$0xff]
      %v2423 = vld [vmem:[%s2413 + $0x48] sm:$0xff]
      %v2424 = vld [vmem:[%s2413 + $0x50] sm:$0xff]
      %v2425 = vld [vmem:[%s2413 + $0x58] sm:$0xff]
      %v2427 = vsel %vm560, %v2414, 0
      %v2430 = vsel %vm560, %v2415, 0
      %v2433 = vsel %vm560, %v2416, 0
      %v2436 = vsel %vm560, %v2417, 0
      %v2439 = vsel %vm560, %v2418, 0
      %v2442 = vsel %vm560, %v2419, 0
      %v2445 = vsel %vm560, %v2420, 0
      %v2448 = vsel %vm560, %v2421, 0
      %v2451 = vsel %vm560, %v2422, 0
      %v2454 = vsel %vm560, %v2423, 0
      %v2457 = vsel %vm560, %v2424, 0
      %v2460 = vsel %vm560, %v2425, 0
      %2462 = vmatprep.subr.mxu0 %v2406
      %2463 = vmatpush1.msra.mxu0 %v2405
      %2464 = vmatprep.subr.mxu0 %v2408
      %2465 = vmatpush1.msra.mxu0 %v2407
      %2466 = vmatprep.subr.mxu0 %v2410
      %2467 = vmatpush1.msra.mxu0 %v2409
      %2468 = vmatprep.subr.mxu0 %v2412
      %2469 = vmatpush1.msra.mxu0 %v2411
      %2470 = vmatprep.subr.mxu0 0.0
      %2471 = vmatpush1.msra.mxu0 0.0
      %2472 = vmatprep.subr.mxu0 0.0
      %2473 = vmatpush1.msra.mxu0 0.0
      %2474 = vmatprep.subr.mxu0 0.0
      %2475 = vmatpush1.msra.mxu0 0.0
      %2476 = vmatprep.subr.mxu0 0.0
      %2477 = vmatpush1.msra.mxu0 0.0
      %2478 = vmatprep.subr.mxu0 0.0
      %2479 = vmatpush1.msra.mxu0 0.0
      %2480 = vmatprep.subr.mxu0 0.0
      %2481 = vmatpush1.msra.mxu0 0.0
      %2482 = vmatprep.subr.mxu0 0.0
      %2483 = vmatpush1.msra.mxu0 0.0
      %2484 = vmatprep.subr.mxu0 0.0
      %2485 = vmatpush1.msra.mxu0 0.0
      %2486 = vmatprep.subr.mxu0 0.0
      %2487 = vmatpush1.msra.mxu0 0.0
      %2488 = vmatprep.subr.mxu0 0.0
      %2489 = vmatpush1.msra.mxu0 0.0
      %2490 = vmatprep.subr.mxu0 0.0
      %2491 = vmatpush1.msra.mxu0 0.0
      %2492 = vmatprep.subr.mxu0 0.0
      %2493 = vmatpush1.msra.mxu0 0.0
      %2494 = vmatprep.subr.mxu0 0.0
      %2495 = vmatpush1.msra.mxu0 0.0
      %2496 = vmatprep.subr.mxu0 0.0
      %2497 = vmatpush1.msra.mxu0 0.0
      %2498 = vmatprep.subr.mxu0 0.0
      %2499 = vmatpush1.msra.mxu0 0.0
      %2500 = vmatprep.subr.mxu0 0.0
      %2501 = vmatpush1.msra.mxu0 0.0
      %2502 = vmatprep.subr.mxu0 0.0
      %2503 = vmatpush1.msra.mxu0 0.0
      %2504 = vmatprep.subr.mxu0 0.0
      %2505 = vmatpush1.msra.mxu0 0.0
      %2506 = vmatprep.subr.mxu0 0.0
      %2507 = vmatpush1.msra.mxu0 0.0
      %2508 = vmatprep.subr.mxu0 0.0
      %2509 = vmatpush1.msra.mxu0 0.0
      %2510 = vmatprep.subr.mxu0 0.0
      %2511 = vmatpush1.msra.mxu0 0.0
      %2512 = vmatprep.subr.mxu0 0.0
      %2513 = vmatpush1.msra.mxu0 0.0
      %2514 = vmatprep.subr.mxu0 0.0
      %2515 = vmatpush1.msra.mxu0 0.0
      %2516 = vmatprep.subr.mxu0 0.0
      %2517 = vmatpush1.msra.mxu0 0.0
      %2518 = vmatprep.subr.mxu0 0.0
      %2519 = vmatpush1.msra.mxu0 0.0
      %2520 = vmatprep.subr.mxu0 0.0
      %2521 = vmatpush1.msra.mxu0 0.0
      %2522 = vmatprep.subr.mxu0 0.0
      %2523 = vmatpush1.msra.mxu0 0.0
      %2524 = vmatprep.subr.mxu0 0.0
      %2525 = vmatpush1.msra.mxu0 0.0
      %2526 = vmatprep.mubr.f32.mxu0 0.0
      %2527 = vmatmul.mubr.f32.gmra.mrb[0].mxu0 %v2427
      %v2528 = vpop.f32.mrb[0].mxu0
      %v2529 = vadd.f32 0.0, %v2528
      %v2530 = vpop.f32.mrb[0].mxu0
      %v2531 = vadd.f32 0.0, %v2530
      %2532 = vmatprep.mubr.f32.mxu0 0.0
      %2533 = vmatmul.mubr.f32.gmra.mrb[0].mxu0 %v2430
      %v2534 = vpop.f32.mrb[0].mxu0
      %v2535 = vadd.f32 0.0, %v2534
      %v2536 = vpop.f32.mrb[0].mxu0
      %v2537 = vadd.f32 0.0, %v2536
      %2538 = vmatprep.mubr.f32.mxu0 0.0
      %2539 = vmatmul.mubr.f32.gmra.mrb[0].mxu0 %v2433
      %v2540 = vpop.f32.mrb[0].mxu0
      %v2541 = vadd.f32 0.0, %v2540
      %v2542 = vpop.f32.mrb[0].mxu0
      %v2543 = vadd.f32 0.0, %v2542
      %2544 = vmatprep.mubr.f32.mxu0 0.0
      %2545 = vmatmul.mubr.f32.gmra.mrb[0].mxu0 %v2436
      %v2546 = vpop.f32.mrb[0].mxu0
      %v2547 = vadd.f32 0.0, %v2546
      %v2548 = vpop.f32.mrb[0].mxu0
      %v2549 = vadd.f32 0.0, %v2548
      %2550 = vmatprep.mubr.f32.mxu0 0.0
      %2551 = vmatmul.mubr.f32.gmra.mrb[0].mxu0 %v2439
      %v2552 = vpop.f32.mrb[0].mxu0
      %v2553 = vadd.f32 0.0, %v2552
      %v2554 = vpop.f32.mrb[0].mxu0
      %v2555 = vadd.f32 0.0, %v2554
      %2556 = vmatprep.mubr.f32.mxu0 0.0
      %2557 = vmatmul.mubr.f32.gmra.mrb[0].mxu0 %v2442
      %v2558 = vpop.f32.mrb[0].mxu0
      %v2559 = vadd.f32 0.0, %v2558
      %v2560 = vpop.f32.mrb[0].mxu0
      %v2561 = vadd.f32 0.0, %v2560
      %2562 = vmatprep.mubr.f32.mxu0 0.0
      %2563 = vmatmul.mubr.f32.gmra.mrb[0].mxu0 %v2445
      %v2564 = vpop.f32.mrb[0].mxu0
      %v2565 = vadd.f32 0.0, %v2564
      %v2566 = vpop.f32.mrb[0].mxu0
      %v2567 = vadd.f32 0.0, %v2566
      %2568 = vmatprep.mubr.f32.mxu0 0.0
      %2569 = vmatmul.mubr.f32.gmra.mrb[0].mxu0 %v2448
      %v2570 = vpop.f32.mrb[0].mxu0
      %v2571 = vadd.f32 0.0, %v2570
      %v2572 = vpop.f32.mrb[0].mxu0
      %v2573 = vadd.f32 0.0, %v2572
      %2574 = vmatprep.mubr.f32.mxu0 0.0
      %2575 = vmatmul.mubr.f32.gmra.mrb[0].mxu0 %v2451
      %v2576 = vpop.f32.mrb[0].mxu0
      %v2577 = vadd.f32 0.0, %v2576
      %v2578 = vpop.f32.mrb[0].mxu0
      %v2579 = vadd.f32 0.0, %v2578
      %2580 = vmatprep.mubr.f32.mxu0 0.0
      %2581 = vmatmul.mubr.f32.gmra.mrb[0].mxu0 %v2454
      %v2582 = vpop.f32.mrb[0].mxu0
      %v2583 = vadd.f32 0.0, %v2582
      %v2584 = vpop.f32.mrb[0].mxu0
      %v2585 = vadd.f32 0.0, %v2584
      %2586 = vmatprep.mubr.f32.mxu0 0.0
      %2587 = vmatmul.mubr.f32.gmra.mrb[0].mxu0 %v2457
      %v2588 = vpop.f32.mrb[0].mxu0
      %v2589 = vadd.f32 0.0, %v2588
      %v2590 = vpop.f32.mrb[0].mxu0
      %v2591 = vadd.f32 0.0, %v2590
      %2592 = vmatprep.mubr.f32.mxu0 0.0
      %2593 = vmatmul.mubr.f32.gmra.mrb[0].mxu0 %v2460
      %v2594 = vpop.f32.mrb[0].mxu0
      %v2595 = vadd.f32 0.0, %v2594
      %v2596 = vpop.f32.mrb[0].mxu0
      %v2597 = vadd.f32 0.0, %v2596
      %2598 = vdwg.mxu0
      %v2599 = vadd.f32 %v2348, %v2529
      %v2600 = vadd.f32 %v2349, %v2531
      %v2601 = vadd.f32 %v2350, %v2535
      %v2602 = vadd.f32 %v2351, %v2537
      %v2603 = vadd.f32 %v2352, %v2541
      %v2604 = vadd.f32 %v2353, %v2543
      %v2605 = vadd.f32 %v2354, %v2547
      %v2606 = vadd.f32 %v2355, %v2549
      %v2607 = vadd.f32 %v2356, %v2553
      %v2608 = vadd.f32 %v2357, %v2555
      %v2609 = vadd.f32 %v2358, %v2559
      %v2610 = vadd.f32 %v2359, %v2561
      %v2611 = vadd.f32 %v2360, %v2565
      %v2612 = vadd.f32 %v2361, %v2567
      %v2613 = vadd.f32 %v2362, %v2571
      %v2614 = vadd.f32 %v2363, %v2573
      %v2615 = vadd.f32 %v2364, %v2577
      %v2616 = vadd.f32 %v2365, %v2579
      %v2617 = vadd.f32 %v2366, %v2583
      %v2618 = vadd.f32 %v2367, %v2585
      %v2619 = vadd.f32 %v2368, %v2589
      %v2620 = vadd.f32 %v2369, %v2591
      %v2621 = vadd.f32 %v2370, %v2595
      %v2622 = vadd.f32 %v2371, %v2597
      %v2623 = vld [vmem:[%s4] sm:$0xff]
      %v2624 = vld [vmem:[%s4 + $0x8] sm:$0xff]
      %v2625 = vld [vmem:[%s4 + $0x10] sm:$0xff]
      %v2626 = vld [vmem:[%s4 + $0x18] sm:$0xff]
      %v2627 = vld [vmem:[%s4 + $0x20] sm:$0xff]
      %v2628 = vld [vmem:[%s4 + $0x28] sm:$0xff]
      %v2629 = vld [vmem:[%s4 + $0x30] sm:$0xff]
      %v2630 = vld [vmem:[%s4 + $0x38] sm:$0xff]
      %v2631 = vld [vmem:[%s4 + $0x40] sm:$0xff]
      %v2632 = vld [vmem:[%s4 + $0x48] sm:$0xff]
      %v2633 = vld [vmem:[%s4 + $0x50] sm:$0xff]
      %v2634 = vld [vmem:[%s4 + $0x58] sm:$0xff]
      %2636 = vset.pattern.permute.xlu0 0
      %2637 = vperm.xlu0 %2636, %v2623
      %v2638 = vpop.permute.xlu0 %2637
      %2641 = vset.pattern.permute.xlu0 0
      %2642 = vperm.xlu0 %2641, %v2624
      %v2643 = vpop.permute.xlu0 %2642
      %2646 = vset.pattern.permute.xlu0 0
      %2647 = vperm.xlu0 %2646, %v2625
      %v2648 = vpop.permute.xlu0 %2647
      %2651 = vset.pattern.permute.xlu0 0
      %2652 = vperm.xlu0 %2651, %v2626
      %v2653 = vpop.permute.xlu0 %2652
      %2656 = vset.pattern.permute.xlu0 0
      %2657 = vperm.xlu0 %2656, %v2627
      %v2658 = vpop.permute.xlu0 %2657
      %2661 = vset.pattern.permute.xlu0 0
      %2662 = vperm.xlu0 %2661, %v2628
      %v2663 = vpop.permute.xlu0 %2662
      %2666 = vset.pattern.permute.xlu0 0
      %2667 = vperm.xlu0 %2666, %v2629
      %v2668 = vpop.permute.xlu0 %2667
      %2671 = vset.pattern.permute.xlu0 0
      %2672 = vperm.xlu0 %2671, %v2630
      %v2673 = vpop.permute.xlu0 %2672
      %2676 = vset.pattern.permute.xlu0 0
      %2677 = vperm.xlu0 %2676, %v2631
      %v2678 = vpop.permute.xlu0 %2677
      %2681 = vset.pattern.permute.xlu0 0
      %2682 = vperm.xlu0 %2681, %v2632
      %v2683 = vpop.permute.xlu0 %2682
      %2686 = vset.pattern.permute.xlu0 0
      %2687 = vperm.xlu0 %2686, %v2633
      %v2688 = vpop.permute.xlu0 %2687
      %2691 = vset.pattern.permute.xlu0 0
      %2692 = vperm.xlu0 %2691, %v2634
      %v2693 = vpop.permute.xlu0 %2692
      %v2695 = vadd.f32 %v2599, %v2638
      %v2696 = vadd.f32 %v2600, %v2638
      %v2697 = vadd.f32 %v2601, %v2643
      %v2698 = vadd.f32 %v2602, %v2643
      %v2699 = vadd.f32 %v2603, %v2648
      %v2700 = vadd.f32 %v2604, %v2648
      %v2701 = vadd.f32 %v2605, %v2653
      %v2702 = vadd.f32 %v2606, %v2653
      %v2703 = vadd.f32 %v2607, %v2658
      %v2704 = vadd.f32 %v2608, %v2658
      %v2705 = vadd.f32 %v2609, %v2663
      %v2706 = vadd.f32 %v2610, %v2663
      %v2707 = vadd.f32 %v2611, %v2668
      %v2708 = vadd.f32 %v2612, %v2668
      %v2709 = vadd.f32 %v2613, %v2673
      %v2710 = vadd.f32 %v2614, %v2673
      %v2711 = vadd.f32 %v2615, %v2678
      %v2712 = vadd.f32 %v2616, %v2678
      %v2713 = vadd.f32 %v2617, %v2683
      %v2714 = vadd.f32 %v2618, %v2683
      %v2715 = vadd.f32 %v2619, %v2688
      %v2716 = vadd.f32 %v2620, %v2688
      %v2717 = vadd.f32 %v2621, %v2693
      %v2718 = vadd.f32 %v2622, %v2693
      %v2719 = vxor.u32 %v2695, 2147483648
      %v2720 = vxor.u32 %v2696, 2147483648
      %v2721 = vxor.u32 %v2697, 2147483648
      %v2722 = vxor.u32 %v2698, 2147483648
      %v2723 = vxor.u32 %v2699, 2147483648
      %v2724 = vxor.u32 %v2700, 2147483648
      %v2725 = vxor.u32 %v2701, 2147483648
      %v2726 = vxor.u32 %v2702, 2147483648
      %v2727 = vxor.u32 %v2703, 2147483648
      %v2728 = vxor.u32 %v2704, 2147483648
      %v2729 = vxor.u32 %v2705, 2147483648
      %v2730 = vxor.u32 %v2706, 2147483648
      %v2731 = vxor.u32 %v2707, 2147483648
      %v2732 = vxor.u32 %v2708, 2147483648
      %v2733 = vxor.u32 %v2709, 2147483648
      %v2734 = vxor.u32 %v2710, 2147483648
      %v2735 = vxor.u32 %v2711, 2147483648
      %v2736 = vxor.u32 %v2712, 2147483648
      %v2737 = vxor.u32 %v2713, 2147483648
      %v2738 = vxor.u32 %v2714, 2147483648
      %v2739 = vxor.u32 %v2715, 2147483648
      %v2740 = vxor.u32 %v2716, 2147483648
      %v2741 = vxor.u32 %v2717, 2147483648
      %v2742 = vxor.u32 %v2718, 2147483648
      %v2743 = vmul.f32 %v2719, 1.442695
      %v2744 = vpow.pop %v2743
      %v2745 = vmul.f32 %v2720, 1.442695
      %v2746 = vpow.pop %v2745
      %v2747 = vmul.f32 %v2721, 1.442695
      %v2748 = vpow.pop %v2747
      %v2749 = vmul.f32 %v2722, 1.442695
      %v2750 = vpow.pop %v2749
      %v2751 = vmul.f32 %v2723, 1.442695
      %v2752 = vpow.pop %v2751
      %v2753 = vmul.f32 %v2724, 1.442695
      %v2754 = vpow.pop %v2753
      %v2755 = vmul.f32 %v2725, 1.442695
      %v2756 = vpow.pop %v2755
      %v2757 = vmul.f32 %v2726, 1.442695
      %v2758 = vpow.pop %v2757
      %v2759 = vmul.f32 %v2727, 1.442695
      %v2760 = vpow.pop %v2759
      %v2761 = vmul.f32 %v2728, 1.442695
      %v2762 = vpow.pop %v2761
      %v2763 = vmul.f32 %v2729, 1.442695
      %v2764 = vpow.pop %v2763
      %v2765 = vmul.f32 %v2730, 1.442695
      %v2766 = vpow.pop %v2765
      %v2767 = vmul.f32 %v2731, 1.442695
      %v2768 = vpow.pop %v2767
      %v2769 = vmul.f32 %v2732, 1.442695
      %v2770 = vpow.pop %v2769
      %v2771 = vmul.f32 %v2733, 1.442695
      %v2772 = vpow.pop %v2771
      %v2773 = vmul.f32 %v2734, 1.442695
      %v2774 = vpow.pop %v2773
      %v2775 = vmul.f32 %v2735, 1.442695
      %v2776 = vpow.pop %v2775
      %v2777 = vmul.f32 %v2736, 1.442695
      %v2778 = vpow.pop %v2777
      %v2779 = vmul.f32 %v2737, 1.442695
      %v2780 = vpow.pop %v2779
      %v2781 = vmul.f32 %v2738, 1.442695
      %v2782 = vpow.pop %v2781
      %v2783 = vmul.f32 %v2739, 1.442695
      %v2784 = vpow.pop %v2783
      %v2785 = vmul.f32 %v2740, 1.442695
      %v2786 = vpow.pop %v2785
      %v2787 = vmul.f32 %v2741, 1.442695
      %v2788 = vpow.pop %v2787
      %v2789 = vmul.f32 %v2742, 1.442695
      %v2790 = vpow.pop %v2789
      %v2791 = vadd.f32 %v2744, 1.0
      %v2792 = vadd.f32 %v2746, 1.0
      %v2793 = vadd.f32 %v2748, 1.0
      %v2794 = vadd.f32 %v2750, 1.0
      %v2795 = vadd.f32 %v2752, 1.0
      %v2796 = vadd.f32 %v2754, 1.0
      %v2797 = vadd.f32 %v2756, 1.0
      %v2798 = vadd.f32 %v2758, 1.0
      %v2799 = vadd.f32 %v2760, 1.0
      %v2800 = vadd.f32 %v2762, 1.0
      %v2801 = vadd.f32 %v2764, 1.0
      %v2802 = vadd.f32 %v2766, 1.0
      %v2803 = vadd.f32 %v2768, 1.0
      %v2804 = vadd.f32 %v2770, 1.0
      %v2805 = vadd.f32 %v2772, 1.0
      %v2806 = vadd.f32 %v2774, 1.0
      %v2807 = vadd.f32 %v2776, 1.0
      %v2808 = vadd.f32 %v2778, 1.0
      %v2809 = vadd.f32 %v2780, 1.0
      %v2810 = vadd.f32 %v2782, 1.0
      %v2811 = vadd.f32 %v2784, 1.0
      %v2812 = vadd.f32 %v2786, 1.0
      %v2813 = vadd.f32 %v2788, 1.0
      %v2814 = vadd.f32 %v2790, 1.0
      %v2815 = vrcp.pop %v2791
      %v2816 = vmul.f32 1.0, %v2815
      %v2817 = vrcp.pop %v2792
      %v2818 = vmul.f32 1.0, %v2817
      %v2819 = vrcp.pop %v2793
      %v2820 = vmul.f32 1.0, %v2819
      %v2821 = vrcp.pop %v2794
      %v2822 = vmul.f32 1.0, %v2821
      %v2823 = vrcp.pop %v2795
      %v2824 = vmul.f32 1.0, %v2823
      %v2825 = vrcp.pop %v2796
      %v2826 = vmul.f32 1.0, %v2825
      %v2827 = vrcp.pop %v2797
      %v2828 = vmul.f32 1.0, %v2827
      %v2829 = vrcp.pop %v2798
      %v2830 = vmul.f32 1.0, %v2829
      %v2831 = vrcp.pop %v2799
      %v2832 = vmul.f32 1.0, %v2831
      %v2833 = vrcp.pop %v2800
      %v2834 = vmul.f32 1.0, %v2833
      %v2835 = vrcp.pop %v2801
      %v2836 = vmul.f32 1.0, %v2835
      %v2837 = vrcp.pop %v2802
      %v2838 = vmul.f32 1.0, %v2837
      %v2839 = vrcp.pop %v2803
      %v2840 = vmul.f32 1.0, %v2839
      %v2841 = vrcp.pop %v2804
      %v2842 = vmul.f32 1.0, %v2841
      %v2843 = vrcp.pop %v2805
      %v2844 = vmul.f32 1.0, %v2843
      %v2845 = vrcp.pop %v2806
      %v2846 = vmul.f32 1.0, %v2845
      %v2847 = vrcp.pop %v2807
      %v2848 = vmul.f32 1.0, %v2847
      %v2849 = vrcp.pop %v2808
      %v2850 = vmul.f32 1.0, %v2849
      %v2851 = vrcp.pop %v2809
      %v2852 = vmul.f32 1.0, %v2851
      %v2853 = vrcp.pop %v2810
      %v2854 = vmul.f32 1.0, %v2853
      %v2855 = vrcp.pop %v2811
      %v2856 = vmul.f32 1.0, %v2855
      %v2857 = vrcp.pop %v2812
      %v2858 = vmul.f32 1.0, %v2857
      %v2859 = vrcp.pop %v2813
      %v2860 = vmul.f32 1.0, %v2859
      %v2861 = vrcp.pop %v2814
      %v2862 = vmul.f32 1.0, %v2861
      %v2863 = vmul.f32 %v2695, %v2816
      %v2864 = vmul.f32 %v2696, %v2818
      %v2865 = vmul.f32 %v2697, %v2820
      %v2866 = vmul.f32 %v2698, %v2822
      %v2867 = vmul.f32 %v2699, %v2824
      %v2868 = vmul.f32 %v2700, %v2826
      %v2869 = vmul.f32 %v2701, %v2828
      %v2870 = vmul.f32 %v2702, %v2830
      %v2871 = vmul.f32 %v2703, %v2832
      %v2872 = vmul.f32 %v2704, %v2834
      %v2873 = vmul.f32 %v2705, %v2836
      %v2874 = vmul.f32 %v2706, %v2838
      %v2875 = vmul.f32 %v2707, %v2840
      %v2876 = vmul.f32 %v2708, %v2842
      %v2877 = vmul.f32 %v2709, %v2844
      %v2878 = vmul.f32 %v2710, %v2846
      %v2879 = vmul.f32 %v2711, %v2848
      %v2880 = vmul.f32 %v2712, %v2850
      %v2881 = vmul.f32 %v2713, %v2852
      %v2882 = vmul.f32 %v2714, %v2854
      %v2883 = vmul.f32 %v2715, %v2856
      %v2884 = vmul.f32 %v2716, %v2858
      %v2885 = vmul.f32 %v2717, %v2860
      %v2886 = vmul.f32 %v2718, %v2862
      %2887 = vrot.lane.b32.xlu0 %v2863, 17
      %v2888 = vpop.permute.xlu0 %2887
      %2889 = vrot.lane.b32.xlu0 %v2865, 17
      %v2890 = vpop.permute.xlu0 %2889
      %2891 = vrot.lane.b32.xlu0 %v2867, 17
      %v2892 = vpop.permute.xlu0 %2891
      %2893 = vrot.lane.b32.xlu0 %v2869, 17
      %v2894 = vpop.permute.xlu0 %2893
      %2895 = vrot.lane.b32.xlu0 %v2871, 17
      %v2896 = vpop.permute.xlu0 %2895
      %2897 = vrot.lane.b32.xlu0 %v2873, 17
      %v2898 = vpop.permute.xlu0 %2897
      %2899 = vrot.lane.b32.xlu0 %v2875, 17
      %v2900 = vpop.permute.xlu0 %2899
      %2901 = vrot.lane.b32.xlu0 %v2877, 17
      %v2902 = vpop.permute.xlu0 %2901
      %2903 = vrot.lane.b32.xlu0 %v2864, 17
      %v2904 = vpop.permute.xlu0 %2903
      %2905 = vrot.lane.b32.xlu0 %v2866, 17
      %v2906 = vpop.permute.xlu0 %2905
      %2907 = vrot.lane.b32.xlu0 %v2868, 17
      %v2908 = vpop.permute.xlu0 %2907
      %2909 = vrot.lane.b32.xlu0 %v2870, 17
      %v2910 = vpop.permute.xlu0 %2909
      %2911 = vrot.lane.b32.xlu0 %v2872, 17
      %v2912 = vpop.permute.xlu0 %2911
      %2913 = vrot.lane.b32.xlu0 %v2874, 17
      %v2914 = vpop.permute.xlu0 %2913
      %2915 = vrot.lane.b32.xlu0 %v2876, 17
      %v2916 = vpop.permute.xlu0 %2915
      %2917 = vrot.lane.b32.xlu0 %v2878, 17
      %v2918 = vpop.permute.xlu0 %2917
      %v2919 = vsel %vm469, %v2888, %v2904
      %v2920 = vsel %vm469, %v2890, %v2906
      %v2921 = vsel %vm469, %v2892, %v2908
      %v2922 = vsel %vm469, %v2894, %v2910
      %v2923 = vsel %vm469, %v2896, %v2912
      %v2924 = vsel %vm469, %v2898, %v2914
      %v2925 = vsel %vm469, %v2900, %v2916
      %v2926 = vsel %vm469, %v2902, %v2918
      %v2927 = vsel %vm469, %v2904, %v2888
      %v2928 = vsel %vm469, %v2906, %v2890
      %v2929 = vsel %vm469, %v2908, %v2892
      %v2930 = vsel %vm469, %v2910, %v2894
      %v2931 = vsel %vm469, %v2912, %v2896
      %v2932 = vsel %vm469, %v2914, %v2898
      %v2933 = vsel %vm469, %v2916, %v2900
      %v2934 = vsel %vm469, %v2918, %v2902
      %v2935 = vmul.f32 %v2927, %v481
      %v2936 = vmul.f32 %v2919, %v485
      %v2937 = vmul.f32 %v2928, %v481
      %v2938 = vmul.f32 %v2920, %v485
      %v2939 = vmul.f32 %v2929, %v481
      %v2940 = vmul.f32 %v2921, %v485
      %v2941 = vmul.f32 %v2930, %v481
      %v2942 = vmul.f32 %v2922, %v485
      %v2943 = vmul.f32 %v2931, %v481
      %v2944 = vmul.f32 %v2923, %v485
      %v2945 = vmul.f32 %v2932, %v481
      %v2946 = vmul.f32 %v2924, %v485
      %v2947 = vmul.f32 %v2933, %v481
      %v2948 = vmul.f32 %v2925, %v485
      %v2949 = vmul.f32 %v2934, %v481
      %v2950 = vmul.f32 %v2926, %v485
      %v2951 = vld [vmem:[%s5] sm:$0xff]
      %v2952 = vld [vmem:[%s5 + $0x8] sm:$0xff]
      %v2953 = vld [vmem:[%s5 + $0x10] sm:$0xff]
      %v2954 = vld [vmem:[%s5 + $0x18] sm:$0xff]
      %v2955 = vld [vmem:[%s5 + $0x20] sm:$0xff]
      %v2956 = vld [vmem:[%s5 + $0x28] sm:$0xff]
      %v2957 = vld [vmem:[%s5 + $0x30] sm:$0xff]
      %v2958 = vld [vmem:[%s5 + $0x38] sm:$0xff]
      %2959 = vrot.lane.b32.xlu0 %v2863, 16
      %v2960 = vpop.permute.xlu0 %2959
      %2961 = vrot.lane.b32.xlu0 %v2865, 16
      %v2962 = vpop.permute.xlu0 %2961
      %2963 = vrot.lane.b32.xlu0 %v2867, 16
      %v2964 = vpop.permute.xlu0 %2963
      %2965 = vrot.lane.b32.xlu0 %v2869, 16
      %v2966 = vpop.permute.xlu0 %2965
      %2967 = vrot.lane.b32.xlu0 %v2871, 16
      %v2968 = vpop.permute.xlu0 %2967
      %2969 = vrot.lane.b32.xlu0 %v2873, 16
      %v2970 = vpop.permute.xlu0 %2969
      %2971 = vrot.lane.b32.xlu0 %v2875, 16
      %v2972 = vpop.permute.xlu0 %2971
      %2973 = vrot.lane.b32.xlu0 %v2877, 16
      %v2974 = vpop.permute.xlu0 %2973
      %2975 = vrot.lane.b32.xlu0 %v2864, 16
      %v2976 = vpop.permute.xlu0 %2975
      %2977 = vrot.lane.b32.xlu0 %v2866, 16
      %v2978 = vpop.permute.xlu0 %2977
      %2979 = vrot.lane.b32.xlu0 %v2868, 16
      %v2980 = vpop.permute.xlu0 %2979
      %2981 = vrot.lane.b32.xlu0 %v2870, 16
      %v2982 = vpop.permute.xlu0 %2981
      %2983 = vrot.lane.b32.xlu0 %v2872, 16
      %v2984 = vpop.permute.xlu0 %2983
      %2985 = vrot.lane.b32.xlu0 %v2874, 16
      %v2986 = vpop.permute.xlu0 %2985
      %2987 = vrot.lane.b32.xlu0 %v2876, 16
      %v2988 = vpop.permute.xlu0 %2987
      %2989 = vrot.lane.b32.xlu0 %v2878, 16
      %v2990 = vpop.permute.xlu0 %2989
      %v2991 = vsel %vm522, %v2960, %v2976
      %v2992 = vsel %vm522, %v2962, %v2978
      %v2993 = vsel %vm522, %v2964, %v2980
      %v2994 = vsel %vm522, %v2966, %v2982
      %v2995 = vsel %vm522, %v2968, %v2984
      %v2996 = vsel %vm522, %v2970, %v2986
      %v2997 = vsel %vm522, %v2972, %v2988
      %v2998 = vsel %vm522, %v2974, %v2990
      %v2999 = vsel %vm522, %v2976, %v2960
      %v3000 = vsel %vm522, %v2978, %v2962
      %v3001 = vsel %vm522, %v2980, %v2964
      %v3002 = vsel %vm522, %v2982, %v2966
      %v3003 = vsel %vm522, %v2984, %v2968
      %v3004 = vsel %vm522, %v2986, %v2970
      %v3005 = vsel %vm522, %v2988, %v2972
      %v3006 = vsel %vm522, %v2990, %v2974
      %v3007 = vmul.f32 %v2999, %v534
      %v3008 = vmul.f32 %v2991, %v538
      %v3009 = vmul.f32 %v3000, %v534
      %v3010 = vmul.f32 %v2992, %v538
      %v3011 = vmul.f32 %v3001, %v534
      %v3012 = vmul.f32 %v2993, %v538
      %v3013 = vmul.f32 %v3002, %v534
      %v3014 = vmul.f32 %v2994, %v538
      %v3015 = vmul.f32 %v3003, %v534
      %v3016 = vmul.f32 %v2995, %v538
      %v3017 = vmul.f32 %v3004, %v534
      %v3018 = vmul.f32 %v2996, %v538
      %v3019 = vmul.f32 %v3005, %v534
      %v3020 = vmul.f32 %v2997, %v538
      %v3021 = vmul.f32 %v3006, %v534
      %v3022 = vmul.f32 %v2998, %v538
      %s3023 = scalar_lea.vmem %s5, 64
      %v3024 = vld [vmem:[%s3023] sm:$0xff]
      %v3025 = vld [vmem:[%s3023 + $0x8] sm:$0xff]
      %v3026 = vld [vmem:[%s3023 + $0x10] sm:$0xff]
      %v3027 = vld [vmem:[%s3023 + $0x18] sm:$0xff]
      %v3028 = vld [vmem:[%s3023 + $0x20] sm:$0xff]
      %v3029 = vld [vmem:[%s3023 + $0x28] sm:$0xff]
      %v3030 = vld [vmem:[%s3023 + $0x30] sm:$0xff]
      %v3031 = vld [vmem:[%s3023 + $0x38] sm:$0xff]
      %vm3032 = vcmask 523264
      %v3034 = vsel %vm3032, %v3024, 0
      %v3037 = vsel %vm3032, %v3025, 0
      %v3040 = vsel %vm3032, %v3026, 0
      %v3043 = vsel %vm3032, %v3027, 0
      %v3046 = vsel %vm3032, %v3028, 0
      %v3049 = vsel %vm3032, %v3029, 0
      %v3052 = vsel %vm3032, %v3030, 0
      %v3055 = vsel %vm3032, %v3031, 0
      %3057 = vmatprep.subr.mxu0 %v3008
      %3058 = vmatpush1.msra.mxu0 %v3007
      %3059 = vmatprep.subr.mxu0 %v3010
      %3060 = vmatpush1.msra.mxu0 %v3009
      %3061 = vmatprep.subr.mxu0 %v3012
      %3062 = vmatpush1.msra.mxu0 %v3011
      %3063 = vmatprep.subr.mxu0 %v3014
      %3064 = vmatpush1.msra.mxu0 %v3013
      %3065 = vmatprep.subr.mxu0 %v3016
      %3066 = vmatpush1.msra.mxu0 %v3015
      %3067 = vmatprep.subr.mxu0 %v3018
      %3068 = vmatpush1.msra.mxu0 %v3017
      %3069 = vmatprep.subr.mxu0 %v3020
      %3070 = vmatpush1.msra.mxu0 %v3019
      %3071 = vmatprep.subr.mxu0 %v3022
      %3072 = vmatpush1.msra.mxu0 %v3021
      %3073 = vmatprep.subr.mxu0 0.0
      %3074 = vmatpush1.msra.mxu0 0.0
      %3075 = vmatprep.subr.mxu0 0.0
      %3076 = vmatpush1.msra.mxu0 0.0
      %3077 = vmatprep.subr.mxu0 0.0
      %3078 = vmatpush1.msra.mxu0 0.0
      %3079 = vmatprep.subr.mxu0 0.0
      %3080 = vmatpush1.msra.mxu0 0.0
      %3081 = vmatprep.subr.mxu0 0.0
      %3082 = vmatpush1.msra.mxu0 0.0
      %3083 = vmatprep.subr.mxu0 0.0
      %3084 = vmatpush1.msra.mxu0 0.0
      %3085 = vmatprep.subr.mxu0 0.0
      %3086 = vmatpush1.msra.mxu0 0.0
      %3087 = vmatprep.subr.mxu0 0.0
      %3088 = vmatpush1.msra.mxu0 0.0
      %3089 = vmatprep.subr.mxu0 0.0
      %3090 = vmatpush1.msra.mxu0 0.0
      %3091 = vmatprep.subr.mxu0 0.0
      %3092 = vmatpush1.msra.mxu0 0.0
      %3093 = vmatprep.subr.mxu0 0.0
      %3094 = vmatpush1.msra.mxu0 0.0
      %3095 = vmatprep.subr.mxu0 0.0
      %3096 = vmatpush1.msra.mxu0 0.0
      %3097 = vmatprep.subr.mxu0 0.0
      %3098 = vmatpush1.msra.mxu0 0.0
      %3099 = vmatprep.subr.mxu0 0.0
      %3100 = vmatpush1.msra.mxu0 0.0
      %3101 = vmatprep.subr.mxu0 0.0
      %3102 = vmatpush1.msra.mxu0 0.0
      %3103 = vmatprep.subr.mxu0 0.0
      %3104 = vmatpush1.msra.mxu0 0.0
      %3105 = vmatprep.subr.mxu0 0.0
      %3106 = vmatpush1.msra.mxu0 0.0
      %3107 = vmatprep.subr.mxu0 0.0
      %3108 = vmatpush1.msra.mxu0 0.0
      %3109 = vmatprep.subr.mxu0 0.0
      %3110 = vmatpush1.msra.mxu0 0.0
      %3111 = vmatprep.subr.mxu0 0.0
      %3112 = vmatpush1.msra.mxu0 0.0
      %3113 = vmatprep.subr.mxu0 0.0
      %3114 = vmatpush1.msra.mxu0 0.0
      %3115 = vmatprep.subr.mxu0 0.0
      %3116 = vmatpush1.msra.mxu0 0.0
      %3117 = vmatprep.subr.mxu0 0.0
      %3118 = vmatpush1.msra.mxu0 0.0
      %3119 = vmatprep.subr.mxu0 0.0
      %3120 = vmatpush1.msra.mxu0 0.0
      %3121 = vmatprep.mubr.f32.mxu0 0.0
      %3122 = vmatmul.mubr.f32.gmra.mrb[0].mxu0 %v3034
      %v3123 = vpop.f32.mrb[0].mxu0
      %v3124 = vadd.f32 0.0, %v3123
      %v3125 = vpop.f32.mrb[0].mxu0
      %v3126 = vadd.f32 0.0, %v3125
      %3127 = vmatprep.mubr.f32.mxu0 0.0
      %3128 = vmatmul.mubr.f32.gmra.mrb[0].mxu0 %v3037
      %v3129 = vpop.f32.mrb[0].mxu0
      %v3130 = vadd.f32 0.0, %v3129
      %v3131 = vpop.f32.mrb[0].mxu0
      %v3132 = vadd.f32 0.0, %v3131
      %3133 = vmatprep.mubr.f32.mxu0 0.0
      %3134 = vmatmul.mubr.f32.gmra.mrb[0].mxu0 %v3040
      %v3135 = vpop.f32.mrb[0].mxu0
      %v3136 = vadd.f32 0.0, %v3135
      %v3137 = vpop.f32.mrb[0].mxu0
      %v3138 = vadd.f32 0.0, %v3137
      %3139 = vmatprep.mubr.f32.mxu0 0.0
      %3140 = vmatmul.mubr.f32.gmra.mrb[0].mxu0 %v3043
      %v3141 = vpop.f32.mrb[0].mxu0
      %v3142 = vadd.f32 0.0, %v3141
      %v3143 = vpop.f32.mrb[0].mxu0
      %v3144 = vadd.f32 0.0, %v3143
      %3145 = vmatprep.mubr.f32.mxu0 0.0
      %3146 = vmatmul.mubr.f32.gmra.mrb[0].mxu0 %v3046
      %v3147 = vpop.f32.mrb[0].mxu0
      %v3148 = vadd.f32 0.0, %v3147
      %v3149 = vpop.f32.mrb[0].mxu0
      %v3150 = vadd.f32 0.0, %v3149
      %3151 = vmatprep.mubr.f32.mxu0 0.0
      %3152 = vmatmul.mubr.f32.gmra.mrb[0].mxu0 %v3049
      %v3153 = vpop.f32.mrb[0].mxu0
      %v3154 = vadd.f32 0.0, %v3153
      %v3155 = vpop.f32.mrb[0].mxu0
      %v3156 = vadd.f32 0.0, %v3155
      %3157 = vmatprep.mubr.f32.mxu0 0.0
      %3158 = vmatmul.mubr.f32.gmra.mrb[0].mxu0 %v3052
      %v3159 = vpop.f32.mrb[0].mxu0
      %v3160 = vadd.f32 0.0, %v3159
      %v3161 = vpop.f32.mrb[0].mxu0
      %v3162 = vadd.f32 0.0, %v3161
      %3163 = vmatprep.mubr.f32.mxu0 0.0
      %3164 = vmatmul.mubr.f32.gmra.mrb[0].mxu0 %v3055
      %v3165 = vpop.f32.mrb[0].mxu0
      %v3166 = vadd.f32 0.0, %v3165
      %v3167 = vpop.f32.mrb[0].mxu0
      %v3168 = vadd.f32 0.0, %v3167
      %3169 = vdwg.mxu0
      %v3171 = vsel %vm3032, %v2951, 0
      %v3174 = vsel %vm3032, %v2952, 0
      %v3177 = vsel %vm3032, %v2953, 0
      %v3180 = vsel %vm3032, %v2954, 0
      %v3183 = vsel %vm3032, %v2955, 0
      %v3186 = vsel %vm3032, %v2956, 0
      %v3189 = vsel %vm3032, %v2957, 0
      %v3192 = vsel %vm3032, %v2958, 0
      %3194 = vmatprep.subr.mxu0 %v2936
      %3195 = vmatpush1.msra.mxu0 %v2935
      %3196 = vmatprep.subr.mxu0 %v2938
      %3197 = vmatpush1.msra.mxu0 %v2937
      %3198 = vmatprep.subr.mxu0 %v2940
      %3199 = vmatpush1.msra.mxu0 %v2939
      %3200 = vmatprep.subr.mxu0 %v2942
      %3201 = vmatpush1.msra.mxu0 %v2941
      %3202 = vmatprep.subr.mxu0 %v2944
      %3203 = vmatpush1.msra.mxu0 %v2943
      %3204 = vmatprep.subr.mxu0 %v2946
      %3205 = vmatpush1.msra.mxu0 %v2945
      %3206 = vmatprep.subr.mxu0 %v2948
      %3207 = vmatpush1.msra.mxu0 %v2947
      %3208 = vmatprep.subr.mxu0 %v2950
      %3209 = vmatpush1.msra.mxu0 %v2949
      %3210 = vmatprep.subr.mxu0 0.0
      %3211 = vmatpush1.msra.mxu0 0.0
      %3212 = vmatprep.subr.mxu0 0.0
      %3213 = vmatpush1.msra.mxu0 0.0
      %3214 = vmatprep.subr.mxu0 0.0
      %3215 = vmatpush1.msra.mxu0 0.0
      %3216 = vmatprep.subr.mxu0 0.0
      %3217 = vmatpush1.msra.mxu0 0.0
      %3218 = vmatprep.subr.mxu0 0.0
      %3219 = vmatpush1.msra.mxu0 0.0
      %3220 = vmatprep.subr.mxu0 0.0
      %3221 = vmatpush1.msra.mxu0 0.0
      %3222 = vmatprep.subr.mxu0 0.0
      %3223 = vmatpush1.msra.mxu0 0.0
      %3224 = vmatprep.subr.mxu0 0.0
      %3225 = vmatpush1.msra.mxu0 0.0
      %3226 = vmatprep.subr.mxu0 0.0
      %3227 = vmatpush1.msra.mxu0 0.0
      %3228 = vmatprep.subr.mxu0 0.0
      %3229 = vmatpush1.msra.mxu0 0.0
      %3230 = vmatprep.subr.mxu0 0.0
      %3231 = vmatpush1.msra.mxu0 0.0
      %3232 = vmatprep.subr.mxu0 0.0
      %3233 = vmatpush1.msra.mxu0 0.0
      %3234 = vmatprep.subr.mxu0 0.0
      %3235 = vmatpush1.msra.mxu0 0.0
      %3236 = vmatprep.subr.mxu0 0.0
      %3237 = vmatpush1.msra.mxu0 0.0
      %3238 = vmatprep.subr.mxu0 0.0
      %3239 = vmatpush1.msra.mxu0 0.0
      %3240 = vmatprep.subr.mxu0 0.0
      %3241 = vmatpush1.msra.mxu0 0.0
      %3242 = vmatprep.subr.mxu0 0.0
      %3243 = vmatpush1.msra.mxu0 0.0
      %3244 = vmatprep.subr.mxu0 0.0
      %3245 = vmatpush1.msra.mxu0 0.0
      %3246 = vmatprep.subr.mxu0 0.0
      %3247 = vmatpush1.msra.mxu0 0.0
      %3248 = vmatprep.subr.mxu0 0.0
      %3249 = vmatpush1.msra.mxu0 0.0
      %3250 = vmatprep.subr.mxu0 0.0
      %3251 = vmatpush1.msra.mxu0 0.0
      %3252 = vmatprep.subr.mxu0 0.0
      %3253 = vmatpush1.msra.mxu0 0.0
      %3254 = vmatprep.subr.mxu0 0.0
      %3255 = vmatpush1.msra.mxu0 0.0
      %3256 = vmatprep.subr.mxu0 0.0
      %3257 = vmatpush1.msra.mxu0 0.0
      %3258 = vmatprep.mubr.f32.mxu0 0.0
      %3259 = vmatmul.mubr.f32.gmra.mrb[0].mxu0 %v3171
      %v3260 = vpop.f32.mrb[0].mxu0
      %v3261 = vadd.f32 %v3124, %v3260
      %v3262 = vpop.f32.mrb[0].mxu0
      %v3263 = vadd.f32 %v3126, %v3262
      %3264 = vmatprep.mubr.f32.mxu0 0.0
      %3265 = vmatmul.mubr.f32.gmra.mrb[0].mxu0 %v3174
      %v3266 = vpop.f32.mrb[0].mxu0
      %v3267 = vadd.f32 %v3130, %v3266
      %v3268 = vpop.f32.mrb[0].mxu0
      %v3269 = vadd.f32 %v3132, %v3268
      %3270 = vmatprep.mubr.f32.mxu0 0.0
      %3271 = vmatmul.mubr.f32.gmra.mrb[0].mxu0 %v3177
      %v3272 = vpop.f32.mrb[0].mxu0
      %v3273 = vadd.f32 %v3136, %v3272
      %v3274 = vpop.f32.mrb[0].mxu0
      %v3275 = vadd.f32 %v3138, %v3274
      %3276 = vmatprep.mubr.f32.mxu0 0.0
      %3277 = vmatmul.mubr.f32.gmra.mrb[0].mxu0 %v3180
      %v3278 = vpop.f32.mrb[0].mxu0
      %v3279 = vadd.f32 %v3142, %v3278
      %v3280 = vpop.f32.mrb[0].mxu0
      %v3281 = vadd.f32 %v3144, %v3280
      %3282 = vmatprep.mubr.f32.mxu0 0.0
      %3283 = vmatmul.mubr.f32.gmra.mrb[0].mxu0 %v3183
      %v3284 = vpop.f32.mrb[0].mxu0
      %v3285 = vadd.f32 %v3148, %v3284
      %v3286 = vpop.f32.mrb[0].mxu0
      %v3287 = vadd.f32 %v3150, %v3286
      %3288 = vmatprep.mubr.f32.mxu0 0.0
      %3289 = vmatmul.mubr.f32.gmra.mrb[0].mxu0 %v3186
      %v3290 = vpop.f32.mrb[0].mxu0
      %v3291 = vadd.f32 %v3154, %v3290
      %v3292 = vpop.f32.mrb[0].mxu0
      %v3293 = vadd.f32 %v3156, %v3292
      %3294 = vmatprep.mubr.f32.mxu0 0.0
      %3295 = vmatmul.mubr.f32.gmra.mrb[0].mxu0 %v3189
      %v3296 = vpop.f32.mrb[0].mxu0
      %v3297 = vadd.f32 %v3160, %v3296
      %v3298 = vpop.f32.mrb[0].mxu0
      %v3299 = vadd.f32 %v3162, %v3298
      %3300 = vmatprep.mubr.f32.mxu0 0.0
      %3301 = vmatmul.mubr.f32.gmra.mrb[0].mxu0 %v3192
      %v3302 = vpop.f32.mrb[0].mxu0
      %v3303 = vadd.f32 %v3166, %v3302
      %v3304 = vpop.f32.mrb[0].mxu0
      %v3305 = vadd.f32 %v3168, %v3304
      %3306 = vdwg.mxu0
      %3307 = vrot.lane.b32.xlu0 %v2863, 15
      %v3308 = vpop.permute.xlu0 %3307
      %3309 = vrot.lane.b32.xlu0 %v2865, 15
      %v3310 = vpop.permute.xlu0 %3309
      %3311 = vrot.lane.b32.xlu0 %v2867, 15
      %v3312 = vpop.permute.xlu0 %3311
      %3313 = vrot.lane.b32.xlu0 %v2869, 15
      %v3314 = vpop.permute.xlu0 %3313
      %3315 = vrot.lane.b32.xlu0 %v2871, 15
      %v3316 = vpop.permute.xlu0 %3315
      %3317 = vrot.lane.b32.xlu0 %v2873, 15
      %v3318 = vpop.permute.xlu0 %3317
      %3319 = vrot.lane.b32.xlu0 %v2875, 15
      %v3320 = vpop.permute.xlu0 %3319
      %3321 = vrot.lane.b32.xlu0 %v2877, 15
      %v3322 = vpop.permute.xlu0 %3321
      %3323 = vrot.lane.b32.xlu0 %v2864, 15
      %v3324 = vpop.permute.xlu0 %3323
      %3325 = vrot.lane.b32.xlu0 %v2866, 15
      %v3326 = vpop.permute.xlu0 %3325
      %3327 = vrot.lane.b32.xlu0 %v2868, 15
      %v3328 = vpop.permute.xlu0 %3327
      %3329 = vrot.lane.b32.xlu0 %v2870, 15
      %v3330 = vpop.permute.xlu0 %3329
      %3331 = vrot.lane.b32.xlu0 %v2872, 15
      %v3332 = vpop.permute.xlu0 %3331
      %3333 = vrot.lane.b32.xlu0 %v2874, 15
      %v3334 = vpop.permute.xlu0 %3333
      %3335 = vrot.lane.b32.xlu0 %v2876, 15
      %v3336 = vpop.permute.xlu0 %3335
      %3337 = vrot.lane.b32.xlu0 %v2878, 15
      %v3338 = vpop.permute.xlu0 %3337
      %v3339 = vsel %vm923, %v3308, %v3324
      %v3340 = vsel %vm923, %v3310, %v3326
      %v3341 = vsel %vm923, %v3312, %v3328
      %v3342 = vsel %vm923, %v3314, %v3330
      %v3343 = vsel %vm923, %v3316, %v3332
      %v3344 = vsel %vm923, %v3318, %v3334
      %v3345 = vsel %vm923, %v3320, %v3336
      %v3346 = vsel %vm923, %v3322, %v3338
      %v3347 = vsel %vm923, %v3324, %v3308
      %v3348 = vsel %vm923, %v3326, %v3310
      %v3349 = vsel %vm923, %v3328, %v3312
      %v3350 = vsel %vm923, %v3330, %v3314
      %v3351 = vsel %vm923, %v3332, %v3316
      %v3352 = vsel %vm923, %v3334, %v3318
      %v3353 = vsel %vm923, %v3336, %v3320
      %v3354 = vsel %vm923, %v3338, %v3322
      %v3355 = vmul.f32 %v3347, %v935
      %v3356 = vmul.f32 %v3339, %v939
      %v3357 = vmul.f32 %v3348, %v935
      %v3358 = vmul.f32 %v3340, %v939
      %v3359 = vmul.f32 %v3349, %v935
      %v3360 = vmul.f32 %v3341, %v939
      %v3361 = vmul.f32 %v3350, %v935
      %v3362 = vmul.f32 %v3342, %v939
      %v3363 = vmul.f32 %v3351, %v935
      %v3364 = vmul.f32 %v3343, %v939
      %v3365 = vmul.f32 %v3352, %v935
      %v3366 = vmul.f32 %v3344, %v939
      %v3367 = vmul.f32 %v3353, %v935
      %v3368 = vmul.f32 %v3345, %v939
      %v3369 = vmul.f32 %v3354, %v935
      %v3370 = vmul.f32 %v3346, %v939
      %s3371 = scalar_lea.vmem %s5, 128
      %v3372 = vld [vmem:[%s3371] sm:$0xff]
      %v3373 = vld [vmem:[%s3371 + $0x8] sm:$0xff]
      %v3374 = vld [vmem:[%s3371 + $0x10] sm:$0xff]
      %v3375 = vld [vmem:[%s3371 + $0x18] sm:$0xff]
      %v3376 = vld [vmem:[%s3371 + $0x20] sm:$0xff]
      %v3377 = vld [vmem:[%s3371 + $0x28] sm:$0xff]
      %v3378 = vld [vmem:[%s3371 + $0x30] sm:$0xff]
      %v3379 = vld [vmem:[%s3371 + $0x38] sm:$0xff]
      %v3381 = vsel %vm3032, %v3372, 0
      %v3384 = vsel %vm3032, %v3373, 0
      %v3387 = vsel %vm3032, %v3374, 0
      %v3390 = vsel %vm3032, %v3375, 0
      %v3393 = vsel %vm3032, %v3376, 0
      %v3396 = vsel %vm3032, %v3377, 0
      %v3399 = vsel %vm3032, %v3378, 0
      %v3402 = vsel %vm3032, %v3379, 0
      %3404 = vmatprep.subr.mxu0 %v3356
      %3405 = vmatpush1.msra.mxu0 %v3355
      %3406 = vmatprep.subr.mxu0 %v3358
      %3407 = vmatpush1.msra.mxu0 %v3357
      %3408 = vmatprep.subr.mxu0 %v3360
      %3409 = vmatpush1.msra.mxu0 %v3359
      %3410 = vmatprep.subr.mxu0 %v3362
      %3411 = vmatpush1.msra.mxu0 %v3361
      %3412 = vmatprep.subr.mxu0 %v3364
      %3413 = vmatpush1.msra.mxu0 %v3363
      %3414 = vmatprep.subr.mxu0 %v3366
      %3415 = vmatpush1.msra.mxu0 %v3365
      %3416 = vmatprep.subr.mxu0 %v3368
      %3417 = vmatpush1.msra.mxu0 %v3367
      %3418 = vmatprep.subr.mxu0 %v3370
      %3419 = vmatpush1.msra.mxu0 %v3369
      %3420 = vmatprep.subr.mxu0 0.0
      %3421 = vmatpush1.msra.mxu0 0.0
      %3422 = vmatprep.subr.mxu0 0.0
      %3423 = vmatpush1.msra.mxu0 0.0
      %3424 = vmatprep.subr.mxu0 0.0
      %3425 = vmatpush1.msra.mxu0 0.0
      %3426 = vmatprep.subr.mxu0 0.0
      %3427 = vmatpush1.msra.mxu0 0.0
      %3428 = vmatprep.subr.mxu0 0.0
      %3429 = vmatpush1.msra.mxu0 0.0
      %3430 = vmatprep.subr.mxu0 0.0
      %3431 = vmatpush1.msra.mxu0 0.0
      %3432 = vmatprep.subr.mxu0 0.0
      %3433 = vmatpush1.msra.mxu0 0.0
      %3434 = vmatprep.subr.mxu0 0.0
      %3435 = vmatpush1.msra.mxu0 0.0
      %3436 = vmatprep.subr.mxu0 0.0
      %3437 = vmatpush1.msra.mxu0 0.0
      %3438 = vmatprep.subr.mxu0 0.0
      %3439 = vmatpush1.msra.mxu0 0.0
      %3440 = vmatprep.subr.mxu0 0.0
      %3441 = vmatpush1.msra.mxu0 0.0
      %3442 = vmatprep.subr.mxu0 0.0
      %3443 = vmatpush1.msra.mxu0 0.0
      %3444 = vmatprep.subr.mxu0 0.0
      %3445 = vmatpush1.msra.mxu0 0.0
      %3446 = vmatprep.subr.mxu0 0.0
      %3447 = vmatpush1.msra.mxu0 0.0
      %3448 = vmatprep.subr.mxu0 0.0
      %3449 = vmatpush1.msra.mxu0 0.0
      %3450 = vmatprep.subr.mxu0 0.0
      %3451 = vmatpush1.msra.mxu0 0.0
      %3452 = vmatprep.subr.mxu0 0.0
      %3453 = vmatpush1.msra.mxu0 0.0
      %3454 = vmatprep.subr.mxu0 0.0
      %3455 = vmatpush1.msra.mxu0 0.0
      %3456 = vmatprep.subr.mxu0 0.0
      %3457 = vmatpush1.msra.mxu0 0.0
      %3458 = vmatprep.subr.mxu0 0.0
      %3459 = vmatpush1.msra.mxu0 0.0
      %3460 = vmatprep.subr.mxu0 0.0
      %3461 = vmatpush1.msra.mxu0 0.0
      %3462 = vmatprep.subr.mxu0 0.0
      %3463 = vmatpush1.msra.mxu0 0.0
      %3464 = vmatprep.subr.mxu0 0.0
      %3465 = vmatpush1.msra.mxu0 0.0
      %3466 = vmatprep.subr.mxu0 0.0
      %3467 = vmatpush1.msra.mxu0 0.0
      %3468 = vmatprep.mubr.f32.mxu0 0.0
      %3469 = vmatmul.mubr.f32.gmra.mrb[0].mxu0 %v3381
      %v3470 = vpop.f32.mrb[0].mxu0
      %v3471 = vadd.f32 0.0, %v3470
      %v3472 = vpop.f32.mrb[0].mxu0
      %v3473 = vadd.f32 0.0, %v3472
      %3474 = vmatprep.mubr.f32.mxu0 0.0
      %3475 = vmatmul.mubr.f32.gmra.mrb[0].mxu0 %v3384
      %v3476 = vpop.f32.mrb[0].mxu0
      %v3477 = vadd.f32 0.0, %v3476
      %v3478 = vpop.f32.mrb[0].mxu0
      %v3479 = vadd.f32 0.0, %v3478
      %3480 = vmatprep.mubr.f32.mxu0 0.0
      %3481 = vmatmul.mubr.f32.gmra.mrb[0].mxu0 %v3387
      %v3482 = vpop.f32.mrb[0].mxu0
      %v3483 = vadd.f32 0.0, %v3482
      %v3484 = vpop.f32.mrb[0].mxu0
      %v3485 = vadd.f32 0.0, %v3484
      %3486 = vmatprep.mubr.f32.mxu0 0.0
      %3487 = vmatmul.mubr.f32.gmra.mrb[0].mxu0 %v3390
      %v3488 = vpop.f32.mrb[0].mxu0
      %v3489 = vadd.f32 0.0, %v3488
      %v3490 = vpop.f32.mrb[0].mxu0
      %v3491 = vadd.f32 0.0, %v3490
      %3492 = vmatprep.mubr.f32.mxu0 0.0
      %3493 = vmatmul.mubr.f32.gmra.mrb[0].mxu0 %v3393
      %v3494 = vpop.f32.mrb[0].mxu0
      %v3495 = vadd.f32 0.0, %v3494
      %v3496 = vpop.f32.mrb[0].mxu0
      %v3497 = vadd.f32 0.0, %v3496
      %3498 = vmatprep.mubr.f32.mxu0 0.0
      %3499 = vmatmul.mubr.f32.gmra.mrb[0].mxu0 %v3396
      %v3500 = vpop.f32.mrb[0].mxu0
      %v3501 = vadd.f32 0.0, %v3500
      %v3502 = vpop.f32.mrb[0].mxu0
      %v3503 = vadd.f32 0.0, %v3502
      %3504 = vmatprep.mubr.f32.mxu0 0.0
      %3505 = vmatmul.mubr.f32.gmra.mrb[0].mxu0 %v3399
      %v3506 = vpop.f32.mrb[0].mxu0
      %v3507 = vadd.f32 0.0, %v3506
      %v3508 = vpop.f32.mrb[0].mxu0
      %v3509 = vadd.f32 0.0, %v3508
      %3510 = vmatprep.mubr.f32.mxu0 0.0
      %3511 = vmatmul.mubr.f32.gmra.mrb[0].mxu0 %v3402
      %v3512 = vpop.f32.mrb[0].mxu0
      %v3513 = vadd.f32 0.0, %v3512
      %v3514 = vpop.f32.mrb[0].mxu0
      %v3515 = vadd.f32 0.0, %v3514
      %3516 = vdwg.mxu0
      %v3517 = vadd.f32 %v3261, %v3471
      %v3518 = vadd.f32 %v3263, %v3473
      %v3519 = vadd.f32 %v3267, %v3477
      %v3520 = vadd.f32 %v3269, %v3479
      %v3521 = vadd.f32 %v3273, %v3483
      %v3522 = vadd.f32 %v3275, %v3485
      %v3523 = vadd.f32 %v3279, %v3489
      %v3524 = vadd.f32 %v3281, %v3491
      %v3525 = vadd.f32 %v3285, %v3495
      %v3526 = vadd.f32 %v3287, %v3497
      %v3527 = vadd.f32 %v3291, %v3501
      %v3528 = vadd.f32 %v3293, %v3503
      %v3529 = vadd.f32 %v3297, %v3507
      %v3530 = vadd.f32 %v3299, %v3509
      %v3531 = vadd.f32 %v3303, %v3513
      %v3532 = vadd.f32 %v3305, %v3515
      %3533 = vrot.lane.b32.xlu0 %v2863, 1
      %v3534 = vpop.permute.xlu0 %3533
      %3535 = vrot.lane.b32.xlu0 %v2865, 1
      %v3536 = vpop.permute.xlu0 %3535
      %3537 = vrot.lane.b32.xlu0 %v2867, 1
      %v3538 = vpop.permute.xlu0 %3537
      %3539 = vrot.lane.b32.xlu0 %v2869, 1
      %v3540 = vpop.permute.xlu0 %3539
      %3541 = vrot.lane.b32.xlu0 %v2871, 1
      %v3542 = vpop.permute.xlu0 %3541
      %3543 = vrot.lane.b32.xlu0 %v2873, 1
      %v3544 = vpop.permute.xlu0 %3543
      %3545 = vrot.lane.b32.xlu0 %v2875, 1
      %v3546 = vpop.permute.xlu0 %3545
      %3547 = vrot.lane.b32.xlu0 %v2877, 1
      %v3548 = vpop.permute.xlu0 %3547
      %3549 = vrot.lane.b32.xlu0 %v2864, 1
      %v3550 = vpop.permute.xlu0 %3549
      %3551 = vrot.lane.b32.xlu0 %v2866, 1
      %v3552 = vpop.permute.xlu0 %3551
      %3553 = vrot.lane.b32.xlu0 %v2868, 1
      %v3554 = vpop.permute.xlu0 %3553
      %3555 = vrot.lane.b32.xlu0 %v2870, 1
      %v3556 = vpop.permute.xlu0 %3555
      %3557 = vrot.lane.b32.xlu0 %v2872, 1
      %v3558 = vpop.permute.xlu0 %3557
      %3559 = vrot.lane.b32.xlu0 %v2874, 1
      %v3560 = vpop.permute.xlu0 %3559
      %3561 = vrot.lane.b32.xlu0 %v2876, 1
      %v3562 = vpop.permute.xlu0 %3561
      %3563 = vrot.lane.b32.xlu0 %v2878, 1
      %v3564 = vpop.permute.xlu0 %3563
      %v3565 = vsel %vm1174, %v3534, %v3550
      %v3566 = vsel %vm1174, %v3536, %v3552
      %v3567 = vsel %vm1174, %v3538, %v3554
      %v3568 = vsel %vm1174, %v3540, %v3556
      %v3569 = vsel %vm1174, %v3542, %v3558
      %v3570 = vsel %vm1174, %v3544, %v3560
      %v3571 = vsel %vm1174, %v3546, %v3562
      %v3572 = vsel %vm1174, %v3548, %v3564
      %v3573 = vsel %vm1174, %v3550, %v3534
      %v3574 = vsel %vm1174, %v3552, %v3536
      %v3575 = vsel %vm1174, %v3554, %v3538
      %v3576 = vsel %vm1174, %v3556, %v3540
      %v3577 = vsel %vm1174, %v3558, %v3542
      %v3578 = vsel %vm1174, %v3560, %v3544
      %v3579 = vsel %vm1174, %v3562, %v3546
      %v3580 = vsel %vm1174, %v3564, %v3548
      %v3581 = vmul.f32 %v3573, %v1186
      %v3582 = vmul.f32 %v3565, %v1190
      %v3583 = vmul.f32 %v3574, %v1186
      %v3584 = vmul.f32 %v3566, %v1190
      %v3585 = vmul.f32 %v3575, %v1186
      %v3586 = vmul.f32 %v3567, %v1190
      %v3587 = vmul.f32 %v3576, %v1186
      %v3588 = vmul.f32 %v3568, %v1190
      %v3589 = vmul.f32 %v3577, %v1186
      %v3590 = vmul.f32 %v3569, %v1190
      %v3591 = vmul.f32 %v3578, %v1186
      %v3592 = vmul.f32 %v3570, %v1190
      %v3593 = vmul.f32 %v3579, %v1186
      %v3594 = vmul.f32 %v3571, %v1190
      %v3595 = vmul.f32 %v3580, %v1186
      %v3596 = vmul.f32 %v3572, %v1190
      %s3597 = scalar_lea.vmem %s5, 192
      %v3598 = vld [vmem:[%s3597] sm:$0xff]
      %v3599 = vld [vmem:[%s3597 + $0x8] sm:$0xff]
      %v3600 = vld [vmem:[%s3597 + $0x10] sm:$0xff]
      %v3601 = vld [vmem:[%s3597 + $0x18] sm:$0xff]
      %v3602 = vld [vmem:[%s3597 + $0x20] sm:$0xff]
      %v3603 = vld [vmem:[%s3597 + $0x28] sm:$0xff]
      %v3604 = vld [vmem:[%s3597 + $0x30] sm:$0xff]
      %v3605 = vld [vmem:[%s3597 + $0x38] sm:$0xff]
      %v3607 = vsel %vm3032, %v3598, 0
      %v3610 = vsel %vm3032, %v3599, 0
      %v3613 = vsel %vm3032, %v3600, 0
      %v3616 = vsel %vm3032, %v3601, 0
      %v3619 = vsel %vm3032, %v3602, 0
      %v3622 = vsel %vm3032, %v3603, 0
      %v3625 = vsel %vm3032, %v3604, 0
      %v3628 = vsel %vm3032, %v3605, 0
      %3630 = vmatprep.subr.mxu0 %v3582
      %3631 = vmatpush1.msra.mxu0 %v3581
      %3632 = vmatprep.subr.mxu0 %v3584
      %3633 = vmatpush1.msra.mxu0 %v3583
      %3634 = vmatprep.subr.mxu0 %v3586
      %3635 = vmatpush1.msra.mxu0 %v3585
      %3636 = vmatprep.subr.mxu0 %v3588
      %3637 = vmatpush1.msra.mxu0 %v3587
      %3638 = vmatprep.subr.mxu0 %v3590
      %3639 = vmatpush1.msra.mxu0 %v3589
      %3640 = vmatprep.subr.mxu0 %v3592
      %3641 = vmatpush1.msra.mxu0 %v3591
      %3642 = vmatprep.subr.mxu0 %v3594
      %3643 = vmatpush1.msra.mxu0 %v3593
      %3644 = vmatprep.subr.mxu0 %v3596
      %3645 = vmatpush1.msra.mxu0 %v3595
      %3646 = vmatprep.subr.mxu0 0.0
      %3647 = vmatpush1.msra.mxu0 0.0
      %3648 = vmatprep.subr.mxu0 0.0
      %3649 = vmatpush1.msra.mxu0 0.0
      %3650 = vmatprep.subr.mxu0 0.0
      %3651 = vmatpush1.msra.mxu0 0.0
      %3652 = vmatprep.subr.mxu0 0.0
      %3653 = vmatpush1.msra.mxu0 0.0
      %3654 = vmatprep.subr.mxu0 0.0
      %3655 = vmatpush1.msra.mxu0 0.0
      %3656 = vmatprep.subr.mxu0 0.0
      %3657 = vmatpush1.msra.mxu0 0.0
      %3658 = vmatprep.subr.mxu0 0.0
      %3659 = vmatpush1.msra.mxu0 0.0
      %3660 = vmatprep.subr.mxu0 0.0
      %3661 = vmatpush1.msra.mxu0 0.0
      %3662 = vmatprep.subr.mxu0 0.0
      %3663 = vmatpush1.msra.mxu0 0.0
      %3664 = vmatprep.subr.mxu0 0.0
      %3665 = vmatpush1.msra.mxu0 0.0
      %3666 = vmatprep.subr.mxu0 0.0
      %3667 = vmatpush1.msra.mxu0 0.0
      %3668 = vmatprep.subr.mxu0 0.0
      %3669 = vmatpush1.msra.mxu0 0.0
      %3670 = vmatprep.subr.mxu0 0.0
      %3671 = vmatpush1.msra.mxu0 0.0
      %3672 = vmatprep.subr.mxu0 0.0
      %3673 = vmatpush1.msra.mxu0 0.0
      %3674 = vmatprep.subr.mxu0 0.0
      %3675 = vmatpush1.msra.mxu0 0.0
      %3676 = vmatprep.subr.mxu0 0.0
      %3677 = vmatpush1.msra.mxu0 0.0
      %3678 = vmatprep.subr.mxu0 0.0
      %3679 = vmatpush1.msra.mxu0 0.0
      %3680 = vmatprep.subr.mxu0 0.0
      %3681 = vmatpush1.msra.mxu0 0.0
      %3682 = vmatprep.subr.mxu0 0.0
      %3683 = vmatpush1.msra.mxu0 0.0
      %3684 = vmatprep.subr.mxu0 0.0
      %3685 = vmatpush1.msra.mxu0 0.0
      %3686 = vmatprep.subr.mxu0 0.0
      %3687 = vmatpush1.msra.mxu0 0.0
      %3688 = vmatprep.subr.mxu0 0.0
      %3689 = vmatpush1.msra.mxu0 0.0
      %3690 = vmatprep.subr.mxu0 0.0
      %3691 = vmatpush1.msra.mxu0 0.0
      %3692 = vmatprep.subr.mxu0 0.0
      %3693 = vmatpush1.msra.mxu0 0.0
      %3694 = vmatprep.mubr.f32.mxu0 0.0
      %3695 = vmatmul.mubr.f32.gmra.mrb[0].mxu0 %v3607
      %v3696 = vpop.f32.mrb[0].mxu0
      %v3697 = vadd.f32 0.0, %v3696
      %v3698 = vpop.f32.mrb[0].mxu0
      %v3699 = vadd.f32 0.0, %v3698
      %3700 = vmatprep.mubr.f32.mxu0 0.0
      %3701 = vmatmul.mubr.f32.gmra.mrb[0].mxu0 %v3610
      %v3702 = vpop.f32.mrb[0].mxu0
      %v3703 = vadd.f32 0.0, %v3702
      %v3704 = vpop.f32.mrb[0].mxu0
      %v3705 = vadd.f32 0.0, %v3704
      %3706 = vmatprep.mubr.f32.mxu0 0.0
      %3707 = vmatmul.mubr.f32.gmra.mrb[0].mxu0 %v3613
      %v3708 = vpop.f32.mrb[0].mxu0
      %v3709 = vadd.f32 0.0, %v3708
      %v3710 = vpop.f32.mrb[0].mxu0
      %v3711 = vadd.f32 0.0, %v3710
      %3712 = vmatprep.mubr.f32.mxu0 0.0
      %3713 = vmatmul.mubr.f32.gmra.mrb[0].mxu0 %v3616
      %v3714 = vpop.f32.mrb[0].mxu0
      %v3715 = vadd.f32 0.0, %v3714
      %v3716 = vpop.f32.mrb[0].mxu0
      %v3717 = vadd.f32 0.0, %v3716
      %3718 = vmatprep.mubr.f32.mxu0 0.0
      %3719 = vmatmul.mubr.f32.gmra.mrb[0].mxu0 %v3619
      %v3720 = vpop.f32.mrb[0].mxu0
      %v3721 = vadd.f32 0.0, %v3720
      %v3722 = vpop.f32.mrb[0].mxu0
      %v3723 = vadd.f32 0.0, %v3722
      %3724 = vmatprep.mubr.f32.mxu0 0.0
      %3725 = vmatmul.mubr.f32.gmra.mrb[0].mxu0 %v3622
      %v3726 = vpop.f32.mrb[0].mxu0
      %v3727 = vadd.f32 0.0, %v3726
      %v3728 = vpop.f32.mrb[0].mxu0
      %v3729 = vadd.f32 0.0, %v3728
      %3730 = vmatprep.mubr.f32.mxu0 0.0
      %3731 = vmatmul.mubr.f32.gmra.mrb[0].mxu0 %v3625
      %v3732 = vpop.f32.mrb[0].mxu0
      %v3733 = vadd.f32 0.0, %v3732
      %v3734 = vpop.f32.mrb[0].mxu0
      %v3735 = vadd.f32 0.0, %v3734
      %3736 = vmatprep.mubr.f32.mxu0 0.0
      %3737 = vmatmul.mubr.f32.gmra.mrb[0].mxu0 %v3628
      %v3738 = vpop.f32.mrb[0].mxu0
      %v3739 = vadd.f32 0.0, %v3738
      %v3740 = vpop.f32.mrb[0].mxu0
      %v3741 = vadd.f32 0.0, %v3740
      %3742 = vdwg.mxu0
      %v3743 = vadd.f32 %v3517, %v3697
      %v3744 = vadd.f32 %v3518, %v3699
      %v3745 = vadd.f32 %v3519, %v3703
      %v3746 = vadd.f32 %v3520, %v3705
      %v3747 = vadd.f32 %v3521, %v3709
      %v3748 = vadd.f32 %v3522, %v3711
      %v3749 = vadd.f32 %v3523, %v3715
      %v3750 = vadd.f32 %v3524, %v3717
      %v3751 = vadd.f32 %v3525, %v3721
      %v3752 = vadd.f32 %v3526, %v3723
      %v3753 = vadd.f32 %v3527, %v3727
      %v3754 = vadd.f32 %v3528, %v3729
      %v3755 = vadd.f32 %v3529, %v3733
      %v3756 = vadd.f32 %v3530, %v3735
      %v3757 = vadd.f32 %v3531, %v3739
      %v3758 = vadd.f32 %v3532, %v3741
      %s3759 = scalar_lea.vmem %s5, 256
      %v3760 = vld [vmem:[%s3759] sm:$0xff]
      %v3761 = vld [vmem:[%s3759 + $0x8] sm:$0xff]
      %v3762 = vld [vmem:[%s3759 + $0x10] sm:$0xff]
      %v3763 = vld [vmem:[%s3759 + $0x18] sm:$0xff]
      %v3764 = vld [vmem:[%s3759 + $0x20] sm:$0xff]
      %v3765 = vld [vmem:[%s3759 + $0x28] sm:$0xff]
      %v3766 = vld [vmem:[%s3759 + $0x30] sm:$0xff]
      %v3767 = vld [vmem:[%s3759 + $0x38] sm:$0xff]
      %v3769 = vsel %vm3032, %v3760, 0
      %v3772 = vsel %vm3032, %v3761, 0
      %v3775 = vsel %vm3032, %v3762, 0
      %v3778 = vsel %vm3032, %v3763, 0
      %v3781 = vsel %vm3032, %v3764, 0
      %v3784 = vsel %vm3032, %v3765, 0
      %v3787 = vsel %vm3032, %v3766, 0
      %v3790 = vsel %vm3032, %v3767, 0
      %3792 = vmatprep.subr.mxu0 %v2864
      %3793 = vmatpush1.msra.mxu0 %v2863
      %3794 = vmatprep.subr.mxu0 %v2866
      %3795 = vmatpush1.msra.mxu0 %v2865
      %3796 = vmatprep.subr.mxu0 %v2868
      %3797 = vmatpush1.msra.mxu0 %v2867
      %3798 = vmatprep.subr.mxu0 %v2870
      %3799 = vmatpush1.msra.mxu0 %v2869
      %3800 = vmatprep.subr.mxu0 %v2872
      %3801 = vmatpush1.msra.mxu0 %v2871
      %3802 = vmatprep.subr.mxu0 %v2874
      %3803 = vmatpush1.msra.mxu0 %v2873
      %3804 = vmatprep.subr.mxu0 %v2876
      %3805 = vmatpush1.msra.mxu0 %v2875
      %3806 = vmatprep.subr.mxu0 %v2878
      %3807 = vmatpush1.msra.mxu0 %v2877
      %3808 = vmatprep.subr.mxu0 0.0
      %3809 = vmatpush1.msra.mxu0 0.0
      %3810 = vmatprep.subr.mxu0 0.0
      %3811 = vmatpush1.msra.mxu0 0.0
      %3812 = vmatprep.subr.mxu0 0.0
      %3813 = vmatpush1.msra.mxu0 0.0
      %3814 = vmatprep.subr.mxu0 0.0
      %3815 = vmatpush1.msra.mxu0 0.0
      %3816 = vmatprep.subr.mxu0 0.0
      %3817 = vmatpush1.msra.mxu0 0.0
      %3818 = vmatprep.subr.mxu0 0.0
      %3819 = vmatpush1.msra.mxu0 0.0
      %3820 = vmatprep.subr.mxu0 0.0
      %3821 = vmatpush1.msra.mxu0 0.0
      %3822 = vmatprep.subr.mxu0 0.0
      %3823 = vmatpush1.msra.mxu0 0.0
      %3824 = vmatprep.subr.mxu0 0.0
      %3825 = vmatpush1.msra.mxu0 0.0
      %3826 = vmatprep.subr.mxu0 0.0
      %3827 = vmatpush1.msra.mxu0 0.0
      %3828 = vmatprep.subr.mxu0 0.0
      %3829 = vmatpush1.msra.mxu0 0.0
      %3830 = vmatprep.subr.mxu0 0.0
      %3831 = vmatpush1.msra.mxu0 0.0
      %3832 = vmatprep.subr.mxu0 0.0
      %3833 = vmatpush1.msra.mxu0 0.0
      %3834 = vmatprep.subr.mxu0 0.0
      %3835 = vmatpush1.msra.mxu0 0.0
      %3836 = vmatprep.subr.mxu0 0.0
      %3837 = vmatpush1.msra.mxu0 0.0
      %3838 = vmatprep.subr.mxu0 0.0
      %3839 = vmatpush1.msra.mxu0 0.0
      %3840 = vmatprep.subr.mxu0 0.0
      %3841 = vmatpush1.msra.mxu0 0.0
      %3842 = vmatprep.subr.mxu0 0.0
      %3843 = vmatpush1.msra.mxu0 0.0
      %3844 = vmatprep.subr.mxu0 0.0
      %3845 = vmatpush1.msra.mxu0 0.0
      %3846 = vmatprep.subr.mxu0 0.0
      %3847 = vmatpush1.msra.mxu0 0.0
      %3848 = vmatprep.subr.mxu0 0.0
      %3849 = vmatpush1.msra.mxu0 0.0
      %3850 = vmatprep.subr.mxu0 0.0
      %3851 = vmatpush1.msra.mxu0 0.0
      %3852 = vmatprep.subr.mxu0 0.0
      %3853 = vmatpush1.msra.mxu0 0.0
      %3854 = vmatprep.subr.mxu0 0.0
      %3855 = vmatpush1.msra.mxu0 0.0
      %3856 = vmatprep.mubr.f32.mxu0 0.0
      %3857 = vmatmul.mubr.f32.gmra.mrb[0].mxu0 %v3769
      %v3858 = vpop.f32.mrb[0].mxu0
      %v3859 = vadd.f32 0.0, %v3858
      %v3860 = vpop.f32.mrb[0].mxu0
      %v3861 = vadd.f32 0.0, %v3860
      %3862 = vmatprep.mubr.f32.mxu0 0.0
      %3863 = vmatmul.mubr.f32.gmra.mrb[0].mxu0 %v3772
      %v3864 = vpop.f32.mrb[0].mxu0
      %v3865 = vadd.f32 0.0, %v3864
      %v3866 = vpop.f32.mrb[0].mxu0
      %v3867 = vadd.f32 0.0, %v3866
      %3868 = vmatprep.mubr.f32.mxu0 0.0
      %3869 = vmatmul.mubr.f32.gmra.mrb[0].mxu0 %v3775
      %v3870 = vpop.f32.mrb[0].mxu0
      %v3871 = vadd.f32 0.0, %v3870
      %v3872 = vpop.f32.mrb[0].mxu0
      %v3873 = vadd.f32 0.0, %v3872
      %3874 = vmatprep.mubr.f32.mxu0 0.0
      %3875 = vmatmul.mubr.f32.gmra.mrb[0].mxu0 %v3778
      %v3876 = vpop.f32.mrb[0].mxu0
      %v3877 = vadd.f32 0.0, %v3876
      %v3878 = vpop.f32.mrb[0].mxu0
      %v3879 = vadd.f32 0.0, %v3878
      %3880 = vmatprep.mubr.f32.mxu0 0.0
      %3881 = vmatmul.mubr.f32.gmra.mrb[0].mxu0 %v3781
      %v3882 = vpop.f32.mrb[0].mxu0
      %v3883 = vadd.f32 0.0, %v3882
      %v3884 = vpop.f32.mrb[0].mxu0
      %v3885 = vadd.f32 0.0, %v3884
      %3886 = vmatprep.mubr.f32.mxu0 0.0
      %3887 = vmatmul.mubr.f32.gmra.mrb[0].mxu0 %v3784
      %v3888 = vpop.f32.mrb[0].mxu0
      %v3889 = vadd.f32 0.0, %v3888
      %v3890 = vpop.f32.mrb[0].mxu0
      %v3891 = vadd.f32 0.0, %v3890
      %3892 = vmatprep.mubr.f32.mxu0 0.0
      %3893 = vmatmul.mubr.f32.gmra.mrb[0].mxu0 %v3787
      %v3894 = vpop.f32.mrb[0].mxu0
      %v3895 = vadd.f32 0.0, %v3894
      %v3896 = vpop.f32.mrb[0].mxu0
      %v3897 = vadd.f32 0.0, %v3896
      %3898 = vmatprep.mubr.f32.mxu0 0.0
      %3899 = vmatmul.mubr.f32.gmra.mrb[0].mxu0 %v3790
      %v3900 = vpop.f32.mrb[0].mxu0
      %v3901 = vadd.f32 0.0, %v3900
      %v3902 = vpop.f32.mrb[0].mxu0
      %v3903 = vadd.f32 0.0, %v3902
      %3904 = vdwg.mxu0
      %v3905 = vadd.f32 %v3743, %v3859
      %v3906 = vadd.f32 %v3744, %v3861
      %v3907 = vadd.f32 %v3745, %v3865
      %v3908 = vadd.f32 %v3746, %v3867
      %v3909 = vadd.f32 %v3747, %v3871
      %v3910 = vadd.f32 %v3748, %v3873
      %v3911 = vadd.f32 %v3749, %v3877
      %v3912 = vadd.f32 %v3750, %v3879
      %v3913 = vadd.f32 %v3751, %v3883
      %v3914 = vadd.f32 %v3752, %v3885
      %v3915 = vadd.f32 %v3753, %v3889
      %v3916 = vadd.f32 %v3754, %v3891
      %v3917 = vadd.f32 %v3755, %v3895
      %v3918 = vadd.f32 %v3756, %v3897
      %v3919 = vadd.f32 %v3757, %v3901
      %v3920 = vadd.f32 %v3758, %v3903
      %3921 = vrot.lane.b32.xlu0 %v2863, 127
      %v3922 = vpop.permute.xlu0 %3921
      %3923 = vrot.lane.b32.xlu0 %v2865, 127
      %v3924 = vpop.permute.xlu0 %3923
      %3925 = vrot.lane.b32.xlu0 %v2867, 127
      %v3926 = vpop.permute.xlu0 %3925
      %3927 = vrot.lane.b32.xlu0 %v2869, 127
      %v3928 = vpop.permute.xlu0 %3927
      %3929 = vrot.lane.b32.xlu0 %v2871, 127
      %v3930 = vpop.permute.xlu0 %3929
      %3931 = vrot.lane.b32.xlu0 %v2873, 127
      %v3932 = vpop.permute.xlu0 %3931
      %3933 = vrot.lane.b32.xlu0 %v2875, 127
      %v3934 = vpop.permute.xlu0 %3933
      %3935 = vrot.lane.b32.xlu0 %v2877, 127
      %v3936 = vpop.permute.xlu0 %3935
      %3937 = vrot.lane.b32.xlu0 %v2864, 127
      %v3938 = vpop.permute.xlu0 %3937
      %3939 = vrot.lane.b32.xlu0 %v2866, 127
      %v3940 = vpop.permute.xlu0 %3939
      %3941 = vrot.lane.b32.xlu0 %v2868, 127
      %v3942 = vpop.permute.xlu0 %3941
      %3943 = vrot.lane.b32.xlu0 %v2870, 127
      %v3944 = vpop.permute.xlu0 %3943
      %3945 = vrot.lane.b32.xlu0 %v2872, 127
      %v3946 = vpop.permute.xlu0 %3945
      %3947 = vrot.lane.b32.xlu0 %v2874, 127
      %v3948 = vpop.permute.xlu0 %3947
      %3949 = vrot.lane.b32.xlu0 %v2876, 127
      %v3950 = vpop.permute.xlu0 %3949
      %3951 = vrot.lane.b32.xlu0 %v2878, 127
      %v3952 = vpop.permute.xlu0 %3951
      %v3953 = vsel %vm1635, %v3922, %v3938
      %v3954 = vsel %vm1635, %v3924, %v3940
      %v3955 = vsel %vm1635, %v3926, %v3942
      %v3956 = vsel %vm1635, %v3928, %v3944
      %v3957 = vsel %vm1635, %v3930, %v3946
      %v3958 = vsel %vm1635, %v3932, %v3948
      %v3959 = vsel %vm1635, %v3934, %v3950
      %v3960 = vsel %vm1635, %v3936, %v3952
      %v3961 = vsel %vm1635, %v3938, %v3922
      %v3962 = vsel %vm1635, %v3940, %v3924
      %v3963 = vsel %vm1635, %v3942, %v3926
      %v3964 = vsel %vm1635, %v3944, %v3928
      %v3965 = vsel %vm1635, %v3946, %v3930
      %v3966 = vsel %vm1635, %v3948, %v3932
      %v3967 = vsel %vm1635, %v3950, %v3934
      %v3968 = vsel %vm1635, %v3952, %v3936
      %v3969 = vmul.f32 %v3953, %v1647
      %v3970 = vmul.f32 %v3961, %v1651
      %v3971 = vmul.f32 %v3954, %v1647
      %v3972 = vmul.f32 %v3962, %v1651
      %v3973 = vmul.f32 %v3955, %v1647
      %v3974 = vmul.f32 %v3963, %v1651
      %v3975 = vmul.f32 %v3956, %v1647
      %v3976 = vmul.f32 %v3964, %v1651
      %v3977 = vmul.f32 %v3957, %v1647
      %v3978 = vmul.f32 %v3965, %v1651
      %v3979 = vmul.f32 %v3958, %v1647
      %v3980 = vmul.f32 %v3966, %v1651
      %v3981 = vmul.f32 %v3959, %v1647
      %v3982 = vmul.f32 %v3967, %v1651
      %v3983 = vmul.f32 %v3960, %v1647
      %v3984 = vmul.f32 %v3968, %v1651
      %s3985 = scalar_lea.vmem %s5, 320
      %v3986 = vld [vmem:[%s3985] sm:$0xff]
      %v3987 = vld [vmem:[%s3985 + $0x8] sm:$0xff]
      %v3988 = vld [vmem:[%s3985 + $0x10] sm:$0xff]
      %v3989 = vld [vmem:[%s3985 + $0x18] sm:$0xff]
      %v3990 = vld [vmem:[%s3985 + $0x20] sm:$0xff]
      %v3991 = vld [vmem:[%s3985 + $0x28] sm:$0xff]
      %v3992 = vld [vmem:[%s3985 + $0x30] sm:$0xff]
      %v3993 = vld [vmem:[%s3985 + $0x38] sm:$0xff]
      %v3995 = vsel %vm3032, %v3986, 0
      %v3998 = vsel %vm3032, %v3987, 0
      %v4001 = vsel %vm3032, %v3988, 0
      %v4004 = vsel %vm3032, %v3989, 0
      %v4007 = vsel %vm3032, %v3990, 0
      %v4010 = vsel %vm3032, %v3991, 0
      %v4013 = vsel %vm3032, %v3992, 0
      %v4016 = vsel %vm3032, %v3993, 0
      %4018 = vmatprep.subr.mxu0 %v3970
      %4019 = vmatpush1.msra.mxu0 %v3969
      %4020 = vmatprep.subr.mxu0 %v3972
      %4021 = vmatpush1.msra.mxu0 %v3971
      %4022 = vmatprep.subr.mxu0 %v3974
      %4023 = vmatpush1.msra.mxu0 %v3973
      %4024 = vmatprep.subr.mxu0 %v3976
      %4025 = vmatpush1.msra.mxu0 %v3975
      %4026 = vmatprep.subr.mxu0 %v3978
      %4027 = vmatpush1.msra.mxu0 %v3977
      %4028 = vmatprep.subr.mxu0 %v3980
      %4029 = vmatpush1.msra.mxu0 %v3979
      %4030 = vmatprep.subr.mxu0 %v3982
      %4031 = vmatpush1.msra.mxu0 %v3981
      %4032 = vmatprep.subr.mxu0 %v3984
      %4033 = vmatpush1.msra.mxu0 %v3983
      %4034 = vmatprep.subr.mxu0 0.0
      %4035 = vmatpush1.msra.mxu0 0.0
      %4036 = vmatprep.subr.mxu0 0.0
      %4037 = vmatpush1.msra.mxu0 0.0
      %4038 = vmatprep.subr.mxu0 0.0
      %4039 = vmatpush1.msra.mxu0 0.0
      %4040 = vmatprep.subr.mxu0 0.0
      %4041 = vmatpush1.msra.mxu0 0.0
      %4042 = vmatprep.subr.mxu0 0.0
      %4043 = vmatpush1.msra.mxu0 0.0
      %4044 = vmatprep.subr.mxu0 0.0
      %4045 = vmatpush1.msra.mxu0 0.0
      %4046 = vmatprep.subr.mxu0 0.0
      %4047 = vmatpush1.msra.mxu0 0.0
      %4048 = vmatprep.subr.mxu0 0.0
      %4049 = vmatpush1.msra.mxu0 0.0
      %4050 = vmatprep.subr.mxu0 0.0
      %4051 = vmatpush1.msra.mxu0 0.0
      %4052 = vmatprep.subr.mxu0 0.0
      %4053 = vmatpush1.msra.mxu0 0.0
      %4054 = vmatprep.subr.mxu0 0.0
      %4055 = vmatpush1.msra.mxu0 0.0
      %4056 = vmatprep.subr.mxu0 0.0
      %4057 = vmatpush1.msra.mxu0 0.0
      %4058 = vmatprep.subr.mxu0 0.0
      %4059 = vmatpush1.msra.mxu0 0.0
      %4060 = vmatprep.subr.mxu0 0.0
      %4061 = vmatpush1.msra.mxu0 0.0
      %4062 = vmatprep.subr.mxu0 0.0
      %4063 = vmatpush1.msra.mxu0 0.0
      %4064 = vmatprep.subr.mxu0 0.0
      %4065 = vmatpush1.msra.mxu0 0.0
      %4066 = vmatprep.subr.mxu0 0.0
      %4067 = vmatpush1.msra.mxu0 0.0
      %4068 = vmatprep.subr.mxu0 0.0
      %4069 = vmatpush1.msra.mxu0 0.0
      %4070 = vmatprep.subr.mxu0 0.0
      %4071 = vmatpush1.msra.mxu0 0.0
      %4072 = vmatprep.subr.mxu0 0.0
      %4073 = vmatpush1.msra.mxu0 0.0
      %4074 = vmatprep.subr.mxu0 0.0
      %4075 = vmatpush1.msra.mxu0 0.0
      %4076 = vmatprep.subr.mxu0 0.0
      %4077 = vmatpush1.msra.mxu0 0.0
      %4078 = vmatprep.subr.mxu0 0.0
      %4079 = vmatpush1.msra.mxu0 0.0
      %4080 = vmatprep.subr.mxu0 0.0
      %4081 = vmatpush1.msra.mxu0 0.0
      %4082 = vmatprep.mubr.f32.mxu0 0.0
      %4083 = vmatmul.mubr.f32.gmra.mrb[0].mxu0 %v3995
      %v4084 = vpop.f32.mrb[0].mxu0
      %v4085 = vadd.f32 0.0, %v4084
      %v4086 = vpop.f32.mrb[0].mxu0
      %v4087 = vadd.f32 0.0, %v4086
      %4088 = vmatprep.mubr.f32.mxu0 0.0
      %4089 = vmatmul.mubr.f32.gmra.mrb[0].mxu0 %v3998
      %v4090 = vpop.f32.mrb[0].mxu0
      %v4091 = vadd.f32 0.0, %v4090
      %v4092 = vpop.f32.mrb[0].mxu0
      %v4093 = vadd.f32 0.0, %v4092
      %4094 = vmatprep.mubr.f32.mxu0 0.0
      %4095 = vmatmul.mubr.f32.gmra.mrb[0].mxu0 %v4001
      %v4096 = vpop.f32.mrb[0].mxu0
      %v4097 = vadd.f32 0.0, %v4096
      %v4098 = vpop.f32.mrb[0].mxu0
      %v4099 = vadd.f32 0.0, %v4098
      %4100 = vmatprep.mubr.f32.mxu0 0.0
      %4101 = vmatmul.mubr.f32.gmra.mrb[0].mxu0 %v4004
      %v4102 = vpop.f32.mrb[0].mxu0
      %v4103 = vadd.f32 0.0, %v4102
      %v4104 = vpop.f32.mrb[0].mxu0
      %v4105 = vadd.f32 0.0, %v4104
      %4106 = vmatprep.mubr.f32.mxu0 0.0
      %4107 = vmatmul.mubr.f32.gmra.mrb[0].mxu0 %v4007
      %v4108 = vpop.f32.mrb[0].mxu0
      %v4109 = vadd.f32 0.0, %v4108
      %v4110 = vpop.f32.mrb[0].mxu0
      %v4111 = vadd.f32 0.0, %v4110
      %4112 = vmatprep.mubr.f32.mxu0 0.0
      %4113 = vmatmul.mubr.f32.gmra.mrb[0].mxu0 %v4010
      %v4114 = vpop.f32.mrb[0].mxu0
      %v4115 = vadd.f32 0.0, %v4114
      %v4116 = vpop.f32.mrb[0].mxu0
      %v4117 = vadd.f32 0.0, %v4116
      %4118 = vmatprep.mubr.f32.mxu0 0.0
      %4119 = vmatmul.mubr.f32.gmra.mrb[0].mxu0 %v4013
      %v4120 = vpop.f32.mrb[0].mxu0
      %v4121 = vadd.f32 0.0, %v4120
      %v4122 = vpop.f32.mrb[0].mxu0
      %v4123 = vadd.f32 0.0, %v4122
      %4124 = vmatprep.mubr.f32.mxu0 0.0
      %4125 = vmatmul.mubr.f32.gmra.mrb[0].mxu0 %v4016
      %v4126 = vpop.f32.mrb[0].mxu0
      %v4127 = vadd.f32 0.0, %v4126
      %v4128 = vpop.f32.mrb[0].mxu0
      %v4129 = vadd.f32 0.0, %v4128
      %4130 = vdwg.mxu0
      %v4131 = vadd.f32 %v3905, %v4085
      %v4132 = vadd.f32 %v3906, %v4087
      %v4133 = vadd.f32 %v3907, %v4091
      %v4134 = vadd.f32 %v3908, %v4093
      %v4135 = vadd.f32 %v3909, %v4097
      %v4136 = vadd.f32 %v3910, %v4099
      %v4137 = vadd.f32 %v3911, %v4103
      %v4138 = vadd.f32 %v3912, %v4105
      %v4139 = vadd.f32 %v3913, %v4109
      %v4140 = vadd.f32 %v3914, %v4111
      %v4141 = vadd.f32 %v3915, %v4115
      %v4142 = vadd.f32 %v3916, %v4117
      %v4143 = vadd.f32 %v3917, %v4121
      %v4144 = vadd.f32 %v3918, %v4123
      %v4145 = vadd.f32 %v3919, %v4127
      %v4146 = vadd.f32 %v3920, %v4129
      %4147 = vrot.lane.b32.xlu0 %v2863, 113
      %v4148 = vpop.permute.xlu0 %4147
      %4149 = vrot.lane.b32.xlu0 %v2865, 113
      %v4150 = vpop.permute.xlu0 %4149
      %4151 = vrot.lane.b32.xlu0 %v2867, 113
      %v4152 = vpop.permute.xlu0 %4151
      %4153 = vrot.lane.b32.xlu0 %v2869, 113
      %v4154 = vpop.permute.xlu0 %4153
      %4155 = vrot.lane.b32.xlu0 %v2871, 113
      %v4156 = vpop.permute.xlu0 %4155
      %4157 = vrot.lane.b32.xlu0 %v2873, 113
      %v4158 = vpop.permute.xlu0 %4157
      %4159 = vrot.lane.b32.xlu0 %v2875, 113
      %v4160 = vpop.permute.xlu0 %4159
      %4161 = vrot.lane.b32.xlu0 %v2877, 113
      %v4162 = vpop.permute.xlu0 %4161
      %4163 = vrot.lane.b32.xlu0 %v2864, 113
      %v4164 = vpop.permute.xlu0 %4163
      %4165 = vrot.lane.b32.xlu0 %v2866, 113
      %v4166 = vpop.permute.xlu0 %4165
      %4167 = vrot.lane.b32.xlu0 %v2868, 113
      %v4168 = vpop.permute.xlu0 %4167
      %4169 = vrot.lane.b32.xlu0 %v2870, 113
      %v4170 = vpop.permute.xlu0 %4169
      %4171 = vrot.lane.b32.xlu0 %v2872, 113
      %v4172 = vpop.permute.xlu0 %4171
      %4173 = vrot.lane.b32.xlu0 %v2874, 113
      %v4174 = vpop.permute.xlu0 %4173
      %4175 = vrot.lane.b32.xlu0 %v2876, 113
      %v4176 = vpop.permute.xlu0 %4175
      %4177 = vrot.lane.b32.xlu0 %v2878, 113
      %v4178 = vpop.permute.xlu0 %4177
      %v4179 = vsel %vm1886, %v4148, %v4164
      %v4180 = vsel %vm1886, %v4150, %v4166
      %v4181 = vsel %vm1886, %v4152, %v4168
      %v4182 = vsel %vm1886, %v4154, %v4170
      %v4183 = vsel %vm1886, %v4156, %v4172
      %v4184 = vsel %vm1886, %v4158, %v4174
      %v4185 = vsel %vm1886, %v4160, %v4176
      %v4186 = vsel %vm1886, %v4162, %v4178
      %v4187 = vsel %vm1886, %v4164, %v4148
      %v4188 = vsel %vm1886, %v4166, %v4150
      %v4189 = vsel %vm1886, %v4168, %v4152
      %v4190 = vsel %vm1886, %v4170, %v4154
      %v4191 = vsel %vm1886, %v4172, %v4156
      %v4192 = vsel %vm1886, %v4174, %v4158
      %v4193 = vsel %vm1886, %v4176, %v4160
      %v4194 = vsel %vm1886, %v4178, %v4162
      %v4195 = vmul.f32 %v4179, %v1898
      %v4196 = vmul.f32 %v4187, %v1902
      %v4197 = vmul.f32 %v4180, %v1898
      %v4198 = vmul.f32 %v4188, %v1902
      %v4199 = vmul.f32 %v4181, %v1898
      %v4200 = vmul.f32 %v4189, %v1902
      %v4201 = vmul.f32 %v4182, %v1898
      %v4202 = vmul.f32 %v4190, %v1902
      %v4203 = vmul.f32 %v4183, %v1898
      %v4204 = vmul.f32 %v4191, %v1902
      %v4205 = vmul.f32 %v4184, %v1898
      %v4206 = vmul.f32 %v4192, %v1902
      %v4207 = vmul.f32 %v4185, %v1898
      %v4208 = vmul.f32 %v4193, %v1902
      %v4209 = vmul.f32 %v4186, %v1898
      %v4210 = vmul.f32 %v4194, %v1902
      %s4211 = scalar_lea.vmem %s5, 384
      %v4212 = vld [vmem:[%s4211] sm:$0xff]
      %v4213 = vld [vmem:[%s4211 + $0x8] sm:$0xff]
      %v4214 = vld [vmem:[%s4211 + $0x10] sm:$0xff]
      %v4215 = vld [vmem:[%s4211 + $0x18] sm:$0xff]
      %v4216 = vld [vmem:[%s4211 + $0x20] sm:$0xff]
      %v4217 = vld [vmem:[%s4211 + $0x28] sm:$0xff]
      %v4218 = vld [vmem:[%s4211 + $0x30] sm:$0xff]
      %v4219 = vld [vmem:[%s4211 + $0x38] sm:$0xff]
      %v4221 = vsel %vm3032, %v4212, 0
      %v4224 = vsel %vm3032, %v4213, 0
      %v4227 = vsel %vm3032, %v4214, 0
      %v4230 = vsel %vm3032, %v4215, 0
      %v4233 = vsel %vm3032, %v4216, 0
      %v4236 = vsel %vm3032, %v4217, 0
      %v4239 = vsel %vm3032, %v4218, 0
      %v4242 = vsel %vm3032, %v4219, 0
      %4244 = vmatprep.subr.mxu0 %v4196
      %4245 = vmatpush1.msra.mxu0 %v4195
      %4246 = vmatprep.subr.mxu0 %v4198
      %4247 = vmatpush1.msra.mxu0 %v4197
      %4248 = vmatprep.subr.mxu0 %v4200
      %4249 = vmatpush1.msra.mxu0 %v4199
      %4250 = vmatprep.subr.mxu0 %v4202
      %4251 = vmatpush1.msra.mxu0 %v4201
      %4252 = vmatprep.subr.mxu0 %v4204
      %4253 = vmatpush1.msra.mxu0 %v4203
      %4254 = vmatprep.subr.mxu0 %v4206
      %4255 = vmatpush1.msra.mxu0 %v4205
      %4256 = vmatprep.subr.mxu0 %v4208
      %4257 = vmatpush1.msra.mxu0 %v4207
      %4258 = vmatprep.subr.mxu0 %v4210
      %4259 = vmatpush1.msra.mxu0 %v4209
      %4260 = vmatprep.subr.mxu0 0.0
      %4261 = vmatpush1.msra.mxu0 0.0
      %4262 = vmatprep.subr.mxu0 0.0
      %4263 = vmatpush1.msra.mxu0 0.0
      %4264 = vmatprep.subr.mxu0 0.0
      %4265 = vmatpush1.msra.mxu0 0.0
      %4266 = vmatprep.subr.mxu0 0.0
      %4267 = vmatpush1.msra.mxu0 0.0
      %4268 = vmatprep.subr.mxu0 0.0
      %4269 = vmatpush1.msra.mxu0 0.0
      %4270 = vmatprep.subr.mxu0 0.0
      %4271 = vmatpush1.msra.mxu0 0.0
      %4272 = vmatprep.subr.mxu0 0.0
      %4273 = vmatpush1.msra.mxu0 0.0
      %4274 = vmatprep.subr.mxu0 0.0
      %4275 = vmatpush1.msra.mxu0 0.0
      %4276 = vmatprep.subr.mxu0 0.0
      %4277 = vmatpush1.msra.mxu0 0.0
      %4278 = vmatprep.subr.mxu0 0.0
      %4279 = vmatpush1.msra.mxu0 0.0
      %4280 = vmatprep.subr.mxu0 0.0
      %4281 = vmatpush1.msra.mxu0 0.0
      %4282 = vmatprep.subr.mxu0 0.0
      %4283 = vmatpush1.msra.mxu0 0.0
      %4284 = vmatprep.subr.mxu0 0.0
      %4285 = vmatpush1.msra.mxu0 0.0
      %4286 = vmatprep.subr.mxu0 0.0
      %4287 = vmatpush1.msra.mxu0 0.0
      %4288 = vmatprep.subr.mxu0 0.0
      %4289 = vmatpush1.msra.mxu0 0.0
      %4290 = vmatprep.subr.mxu0 0.0
      %4291 = vmatpush1.msra.mxu0 0.0
      %4292 = vmatprep.subr.mxu0 0.0
      %4293 = vmatpush1.msra.mxu0 0.0
      %4294 = vmatprep.subr.mxu0 0.0
      %4295 = vmatpush1.msra.mxu0 0.0
      %4296 = vmatprep.subr.mxu0 0.0
      %4297 = vmatpush1.msra.mxu0 0.0
      %4298 = vmatprep.subr.mxu0 0.0
      %4299 = vmatpush1.msra.mxu0 0.0
      %4300 = vmatprep.subr.mxu0 0.0
      %4301 = vmatpush1.msra.mxu0 0.0
      %4302 = vmatprep.subr.mxu0 0.0
      %4303 = vmatpush1.msra.mxu0 0.0
      %4304 = vmatprep.subr.mxu0 0.0
      %4305 = vmatpush1.msra.mxu0 0.0
      %4306 = vmatprep.subr.mxu0 0.0
      %4307 = vmatpush1.msra.mxu0 0.0
      %4308 = vmatprep.mubr.f32.mxu0 0.0
      %4309 = vmatmul.mubr.f32.gmra.mrb[0].mxu0 %v4221
      %v4310 = vpop.f32.mrb[0].mxu0
      %v4311 = vadd.f32 0.0, %v4310
      %v4312 = vpop.f32.mrb[0].mxu0
      %v4313 = vadd.f32 0.0, %v4312
      %4314 = vmatprep.mubr.f32.mxu0 0.0
      %4315 = vmatmul.mubr.f32.gmra.mrb[0].mxu0 %v4224
      %v4316 = vpop.f32.mrb[0].mxu0
      %v4317 = vadd.f32 0.0, %v4316
      %v4318 = vpop.f32.mrb[0].mxu0
      %v4319 = vadd.f32 0.0, %v4318
      %4320 = vmatprep.mubr.f32.mxu0 0.0
      %4321 = vmatmul.mubr.f32.gmra.mrb[0].mxu0 %v4227
      %v4322 = vpop.f32.mrb[0].mxu0
      %v4323 = vadd.f32 0.0, %v4322
      %v4324 = vpop.f32.mrb[0].mxu0
      %v4325 = vadd.f32 0.0, %v4324
      %4326 = vmatprep.mubr.f32.mxu0 0.0
      %4327 = vmatmul.mubr.f32.gmra.mrb[0].mxu0 %v4230
      %v4328 = vpop.f32.mrb[0].mxu0
      %v4329 = vadd.f32 0.0, %v4328
      %v4330 = vpop.f32.mrb[0].mxu0
      %v4331 = vadd.f32 0.0, %v4330
      %4332 = vmatprep.mubr.f32.mxu0 0.0
      %4333 = vmatmul.mubr.f32.gmra.mrb[0].mxu0 %v4233
      %v4334 = vpop.f32.mrb[0].mxu0
      %v4335 = vadd.f32 0.0, %v4334
      %v4336 = vpop.f32.mrb[0].mxu0
      %v4337 = vadd.f32 0.0, %v4336
      %4338 = vmatprep.mubr.f32.mxu0 0.0
      %4339 = vmatmul.mubr.f32.gmra.mrb[0].mxu0 %v4236
      %v4340 = vpop.f32.mrb[0].mxu0
      %v4341 = vadd.f32 0.0, %v4340
      %v4342 = vpop.f32.mrb[0].mxu0
      %v4343 = vadd.f32 0.0, %v4342
      %4344 = vmatprep.mubr.f32.mxu0 0.0
      %4345 = vmatmul.mubr.f32.gmra.mrb[0].mxu0 %v4239
      %v4346 = vpop.f32.mrb[0].mxu0
      %v4347 = vadd.f32 0.0, %v4346
      %v4348 = vpop.f32.mrb[0].mxu0
      %v4349 = vadd.f32 0.0, %v4348
      %4350 = vmatprep.mubr.f32.mxu0 0.0
      %4351 = vmatmul.mubr.f32.gmra.mrb[0].mxu0 %v4242
      %v4352 = vpop.f32.mrb[0].mxu0
      %v4353 = vadd.f32 0.0, %v4352
      %v4354 = vpop.f32.mrb[0].mxu0
      %v4355 = vadd.f32 0.0, %v4354
      %4356 = vdwg.mxu0
      %v4357 = vadd.f32 %v4131, %v4311
      %v4358 = vadd.f32 %v4132, %v4313
      %v4359 = vadd.f32 %v4133, %v4317
      %v4360 = vadd.f32 %v4134, %v4319
      %v4361 = vadd.f32 %v4135, %v4323
      %v4362 = vadd.f32 %v4136, %v4325
      %v4363 = vadd.f32 %v4137, %v4329
      %v4364 = vadd.f32 %v4138, %v4331
      %v4365 = vadd.f32 %v4139, %v4335
      %v4366 = vadd.f32 %v4140, %v4337
      %v4367 = vadd.f32 %v4141, %v4341
      %v4368 = vadd.f32 %v4142, %v4343
      %v4369 = vadd.f32 %v4143, %v4347
      %v4370 = vadd.f32 %v4144, %v4349
      %v4371 = vadd.f32 %v4145, %v4353
      %v4372 = vadd.f32 %v4146, %v4355
      %4373 = vrot.lane.b32.xlu0 %v2863, 112
      %v4374 = vpop.permute.xlu0 %4373
      %4375 = vrot.lane.b32.xlu0 %v2865, 112
      %v4376 = vpop.permute.xlu0 %4375
      %4377 = vrot.lane.b32.xlu0 %v2867, 112
      %v4378 = vpop.permute.xlu0 %4377
      %4379 = vrot.lane.b32.xlu0 %v2869, 112
      %v4380 = vpop.permute.xlu0 %4379
      %4381 = vrot.lane.b32.xlu0 %v2871, 112
      %v4382 = vpop.permute.xlu0 %4381
      %4383 = vrot.lane.b32.xlu0 %v2873, 112
      %v4384 = vpop.permute.xlu0 %4383
      %4385 = vrot.lane.b32.xlu0 %v2875, 112
      %v4386 = vpop.permute.xlu0 %4385
      %4387 = vrot.lane.b32.xlu0 %v2877, 112
      %v4388 = vpop.permute.xlu0 %4387
      %4389 = vrot.lane.b32.xlu0 %v2864, 112
      %v4390 = vpop.permute.xlu0 %4389
      %4391 = vrot.lane.b32.xlu0 %v2866, 112
      %v4392 = vpop.permute.xlu0 %4391
      %4393 = vrot.lane.b32.xlu0 %v2868, 112
      %v4394 = vpop.permute.xlu0 %4393
      %4395 = vrot.lane.b32.xlu0 %v2870, 112
      %v4396 = vpop.permute.xlu0 %4395
      %4397 = vrot.lane.b32.xlu0 %v2872, 112
      %v4398 = vpop.permute.xlu0 %4397
      %4399 = vrot.lane.b32.xlu0 %v2874, 112
      %v4400 = vpop.permute.xlu0 %4399
      %4401 = vrot.lane.b32.xlu0 %v2876, 112
      %v4402 = vpop.permute.xlu0 %4401
      %4403 = vrot.lane.b32.xlu0 %v2878, 112
      %v4404 = vpop.permute.xlu0 %4403
      %v4405 = vsel %vm2137, %v4374, %v4390
      %v4406 = vsel %vm2137, %v4376, %v4392
      %v4407 = vsel %vm2137, %v4378, %v4394
      %v4408 = vsel %vm2137, %v4380, %v4396
      %v4409 = vsel %vm2137, %v4382, %v4398
      %v4410 = vsel %vm2137, %v4384, %v4400
      %v4411 = vsel %vm2137, %v4386, %v4402
      %v4412 = vsel %vm2137, %v4388, %v4404
      %v4413 = vsel %vm2137, %v4390, %v4374
      %v4414 = vsel %vm2137, %v4392, %v4376
      %v4415 = vsel %vm2137, %v4394, %v4378
      %v4416 = vsel %vm2137, %v4396, %v4380
      %v4417 = vsel %vm2137, %v4398, %v4382
      %v4418 = vsel %vm2137, %v4400, %v4384
      %v4419 = vsel %vm2137, %v4402, %v4386
      %v4420 = vsel %vm2137, %v4404, %v4388
      %v4421 = vmul.f32 %v4405, %v2149
      %v4422 = vmul.f32 %v4413, %v2153
      %v4423 = vmul.f32 %v4406, %v2149
      %v4424 = vmul.f32 %v4414, %v2153
      %v4425 = vmul.f32 %v4407, %v2149
      %v4426 = vmul.f32 %v4415, %v2153
      %v4427 = vmul.f32 %v4408, %v2149
      %v4428 = vmul.f32 %v4416, %v2153
      %v4429 = vmul.f32 %v4409, %v2149
      %v4430 = vmul.f32 %v4417, %v2153
      %v4431 = vmul.f32 %v4410, %v2149
      %v4432 = vmul.f32 %v4418, %v2153
      %v4433 = vmul.f32 %v4411, %v2149
      %v4434 = vmul.f32 %v4419, %v2153
      %v4435 = vmul.f32 %v4412, %v2149
      %v4436 = vmul.f32 %v4420, %v2153
      %s4437 = scalar_lea.vmem %s5, 448
      %v4438 = vld [vmem:[%s4437] sm:$0xff]
      %v4439 = vld [vmem:[%s4437 + $0x8] sm:$0xff]
      %v4440 = vld [vmem:[%s4437 + $0x10] sm:$0xff]
      %v4441 = vld [vmem:[%s4437 + $0x18] sm:$0xff]
      %v4442 = vld [vmem:[%s4437 + $0x20] sm:$0xff]
      %v4443 = vld [vmem:[%s4437 + $0x28] sm:$0xff]
      %v4444 = vld [vmem:[%s4437 + $0x30] sm:$0xff]
      %v4445 = vld [vmem:[%s4437 + $0x38] sm:$0xff]
      %v4447 = vsel %vm3032, %v4438, 0
      %v4450 = vsel %vm3032, %v4439, 0
      %v4453 = vsel %vm3032, %v4440, 0
      %v4456 = vsel %vm3032, %v4441, 0
      %v4459 = vsel %vm3032, %v4442, 0
      %v4462 = vsel %vm3032, %v4443, 0
      %v4465 = vsel %vm3032, %v4444, 0
      %v4468 = vsel %vm3032, %v4445, 0
      %4470 = vmatprep.subr.mxu0 %v4422
      %4471 = vmatpush1.msra.mxu0 %v4421
      %4472 = vmatprep.subr.mxu0 %v4424
      %4473 = vmatpush1.msra.mxu0 %v4423
      %4474 = vmatprep.subr.mxu0 %v4426
      %4475 = vmatpush1.msra.mxu0 %v4425
      %4476 = vmatprep.subr.mxu0 %v4428
      %4477 = vmatpush1.msra.mxu0 %v4427
      %4478 = vmatprep.subr.mxu0 %v4430
      %4479 = vmatpush1.msra.mxu0 %v4429
      %4480 = vmatprep.subr.mxu0 %v4432
      %4481 = vmatpush1.msra.mxu0 %v4431
      %4482 = vmatprep.subr.mxu0 %v4434
      %4483 = vmatpush1.msra.mxu0 %v4433
      %4484 = vmatprep.subr.mxu0 %v4436
      %4485 = vmatpush1.msra.mxu0 %v4435
      %4486 = vmatprep.subr.mxu0 0.0
      %4487 = vmatpush1.msra.mxu0 0.0
      %4488 = vmatprep.subr.mxu0 0.0
      %4489 = vmatpush1.msra.mxu0 0.0
      %4490 = vmatprep.subr.mxu0 0.0
      %4491 = vmatpush1.msra.mxu0 0.0
      %4492 = vmatprep.subr.mxu0 0.0
      %4493 = vmatpush1.msra.mxu0 0.0
      %4494 = vmatprep.subr.mxu0 0.0
      %4495 = vmatpush1.msra.mxu0 0.0
      %4496 = vmatprep.subr.mxu0 0.0
      %4497 = vmatpush1.msra.mxu0 0.0
      %4498 = vmatprep.subr.mxu0 0.0
      %4499 = vmatpush1.msra.mxu0 0.0
      %4500 = vmatprep.subr.mxu0 0.0
      %4501 = vmatpush1.msra.mxu0 0.0
      %4502 = vmatprep.subr.mxu0 0.0
      %4503 = vmatpush1.msra.mxu0 0.0
      %4504 = vmatprep.subr.mxu0 0.0
      %4505 = vmatpush1.msra.mxu0 0.0
      %4506 = vmatprep.subr.mxu0 0.0
      %4507 = vmatpush1.msra.mxu0 0.0
      %4508 = vmatprep.subr.mxu0 0.0
      %4509 = vmatpush1.msra.mxu0 0.0
      %4510 = vmatprep.subr.mxu0 0.0
      %4511 = vmatpush1.msra.mxu0 0.0
      %4512 = vmatprep.subr.mxu0 0.0
      %4513 = vmatpush1.msra.mxu0 0.0
      %4514 = vmatprep.subr.mxu0 0.0
      %4515 = vmatpush1.msra.mxu0 0.0
      %4516 = vmatprep.subr.mxu0 0.0
      %4517 = vmatpush1.msra.mxu0 0.0
      %4518 = vmatprep.subr.mxu0 0.0
      %4519 = vmatpush1.msra.mxu0 0.0
      %4520 = vmatprep.subr.mxu0 0.0
      %4521 = vmatpush1.msra.mxu0 0.0
      %4522 = vmatprep.subr.mxu0 0.0
      %4523 = vmatpush1.msra.mxu0 0.0
      %4524 = vmatprep.subr.mxu0 0.0
      %4525 = vmatpush1.msra.mxu0 0.0
      %4526 = vmatprep.subr.mxu0 0.0
      %4527 = vmatpush1.msra.mxu0 0.0
      %4528 = vmatprep.subr.mxu0 0.0
      %4529 = vmatpush1.msra.mxu0 0.0
      %4530 = vmatprep.subr.mxu0 0.0
      %4531 = vmatpush1.msra.mxu0 0.0
      %4532 = vmatprep.subr.mxu0 0.0
      %4533 = vmatpush1.msra.mxu0 0.0
      %4534 = vmatprep.mubr.f32.mxu0 0.0
      %4535 = vmatmul.mubr.f32.gmra.mrb[0].mxu0 %v4447
      %v4536 = vpop.f32.mrb[0].mxu0
      %v4537 = vadd.f32 0.0, %v4536
      %v4538 = vpop.f32.mrb[0].mxu0
      %v4539 = vadd.f32 0.0, %v4538
      %4540 = vmatprep.mubr.f32.mxu0 0.0
      %4541 = vmatmul.mubr.f32.gmra.mrb[0].mxu0 %v4450
      %v4542 = vpop.f32.mrb[0].mxu0
      %v4543 = vadd.f32 0.0, %v4542
      %v4544 = vpop.f32.mrb[0].mxu0
      %v4545 = vadd.f32 0.0, %v4544
      %4546 = vmatprep.mubr.f32.mxu0 0.0
      %4547 = vmatmul.mubr.f32.gmra.mrb[0].mxu0 %v4453
      %v4548 = vpop.f32.mrb[0].mxu0
      %v4549 = vadd.f32 0.0, %v4548
      %v4550 = vpop.f32.mrb[0].mxu0
      %v4551 = vadd.f32 0.0, %v4550
      %4552 = vmatprep.mubr.f32.mxu0 0.0
      %4553 = vmatmul.mubr.f32.gmra.mrb[0].mxu0 %v4456
      %v4554 = vpop.f32.mrb[0].mxu0
      %v4555 = vadd.f32 0.0, %v4554
      %v4556 = vpop.f32.mrb[0].mxu0
      %v4557 = vadd.f32 0.0, %v4556
      %4558 = vmatprep.mubr.f32.mxu0 0.0
      %4559 = vmatmul.mubr.f32.gmra.mrb[0].mxu0 %v4459
      %v4560 = vpop.f32.mrb[0].mxu0
      %v4561 = vadd.f32 0.0, %v4560
      %v4562 = vpop.f32.mrb[0].mxu0
      %v4563 = vadd.f32 0.0, %v4562
      %4564 = vmatprep.mubr.f32.mxu0 0.0
      %4565 = vmatmul.mubr.f32.gmra.mrb[0].mxu0 %v4462
      %v4566 = vpop.f32.mrb[0].mxu0
      %v4567 = vadd.f32 0.0, %v4566
      %v4568 = vpop.f32.mrb[0].mxu0
      %v4569 = vadd.f32 0.0, %v4568
      %4570 = vmatprep.mubr.f32.mxu0 0.0
      %4571 = vmatmul.mubr.f32.gmra.mrb[0].mxu0 %v4465
      %v4572 = vpop.f32.mrb[0].mxu0
      %v4573 = vadd.f32 0.0, %v4572
      %v4574 = vpop.f32.mrb[0].mxu0
      %v4575 = vadd.f32 0.0, %v4574
      %4576 = vmatprep.mubr.f32.mxu0 0.0
      %4577 = vmatmul.mubr.f32.gmra.mrb[0].mxu0 %v4468
      %v4578 = vpop.f32.mrb[0].mxu0
      %v4579 = vadd.f32 0.0, %v4578
      %v4580 = vpop.f32.mrb[0].mxu0
      %v4581 = vadd.f32 0.0, %v4580
      %4582 = vdwg.mxu0
      %v4583 = vadd.f32 %v4357, %v4537
      %v4584 = vadd.f32 %v4358, %v4539
      %v4585 = vadd.f32 %v4359, %v4543
      %v4586 = vadd.f32 %v4360, %v4545
      %v4587 = vadd.f32 %v4361, %v4549
      %v4588 = vadd.f32 %v4362, %v4551
      %v4589 = vadd.f32 %v4363, %v4555
      %v4590 = vadd.f32 %v4364, %v4557
      %v4591 = vadd.f32 %v4365, %v4561
      %v4592 = vadd.f32 %v4366, %v4563
      %v4593 = vadd.f32 %v4367, %v4567
      %v4594 = vadd.f32 %v4368, %v4569
      %v4595 = vadd.f32 %v4369, %v4573
      %v4596 = vadd.f32 %v4370, %v4575
      %v4597 = vadd.f32 %v4371, %v4579
      %v4598 = vadd.f32 %v4372, %v4581
      %4599 = vrot.lane.b32.xlu0 %v2863, 111
      %v4600 = vpop.permute.xlu0 %4599
      %4601 = vrot.lane.b32.xlu0 %v2865, 111
      %v4602 = vpop.permute.xlu0 %4601
      %4603 = vrot.lane.b32.xlu0 %v2867, 111
      %v4604 = vpop.permute.xlu0 %4603
      %4605 = vrot.lane.b32.xlu0 %v2869, 111
      %v4606 = vpop.permute.xlu0 %4605
      %4607 = vrot.lane.b32.xlu0 %v2871, 111
      %v4608 = vpop.permute.xlu0 %4607
      %4609 = vrot.lane.b32.xlu0 %v2873, 111
      %v4610 = vpop.permute.xlu0 %4609
      %4611 = vrot.lane.b32.xlu0 %v2875, 111
      %v4612 = vpop.permute.xlu0 %4611
      %4613 = vrot.lane.b32.xlu0 %v2877, 111
      %v4614 = vpop.permute.xlu0 %4613
      %4615 = vrot.lane.b32.xlu0 %v2864, 111
      %v4616 = vpop.permute.xlu0 %4615
      %4617 = vrot.lane.b32.xlu0 %v2866, 111
      %v4618 = vpop.permute.xlu0 %4617
      %4619 = vrot.lane.b32.xlu0 %v2868, 111
      %v4620 = vpop.permute.xlu0 %4619
      %4621 = vrot.lane.b32.xlu0 %v2870, 111
      %v4622 = vpop.permute.xlu0 %4621
      %4623 = vrot.lane.b32.xlu0 %v2872, 111
      %v4624 = vpop.permute.xlu0 %4623
      %4625 = vrot.lane.b32.xlu0 %v2874, 111
      %v4626 = vpop.permute.xlu0 %4625
      %4627 = vrot.lane.b32.xlu0 %v2876, 111
      %v4628 = vpop.permute.xlu0 %4627
      %4629 = vrot.lane.b32.xlu0 %v2878, 111
      %v4630 = vpop.permute.xlu0 %4629
      %v4631 = vsel %vm2388, %v4600, %v4616
      %v4632 = vsel %vm2388, %v4602, %v4618
      %v4633 = vsel %vm2388, %v4604, %v4620
      %v4634 = vsel %vm2388, %v4606, %v4622
      %v4635 = vsel %vm2388, %v4608, %v4624
      %v4636 = vsel %vm2388, %v4610, %v4626
      %v4637 = vsel %vm2388, %v4612, %v4628
      %v4638 = vsel %vm2388, %v4614, %v4630
      %v4639 = vsel %vm2388, %v4616, %v4600
      %v4640 = vsel %vm2388, %v4618, %v4602
      %v4641 = vsel %vm2388, %v4620, %v4604
      %v4642 = vsel %vm2388, %v4622, %v4606
      %v4643 = vsel %vm2388, %v4624, %v4608
      %v4644 = vsel %vm2388, %v4626, %v4610
      %v4645 = vsel %vm2388, %v4628, %v4612
      %v4646 = vsel %vm2388, %v4630, %v4614
      %v4647 = vmul.f32 %v4631, %v2400
      %v4648 = vmul.f32 %v4639, %v2404
      %v4649 = vmul.f32 %v4632, %v2400
      %v4650 = vmul.f32 %v4640, %v2404
      %v4651 = vmul.f32 %v4633, %v2400
      %v4652 = vmul.f32 %v4641, %v2404
      %v4653 = vmul.f32 %v4634, %v2400
      %v4654 = vmul.f32 %v4642, %v2404
      %v4655 = vmul.f32 %v4635, %v2400
      %v4656 = vmul.f32 %v4643, %v2404
      %v4657 = vmul.f32 %v4636, %v2400
      %v4658 = vmul.f32 %v4644, %v2404
      %v4659 = vmul.f32 %v4637, %v2400
      %v4660 = vmul.f32 %v4645, %v2404
      %v4661 = vmul.f32 %v4638, %v2400
      %v4662 = vmul.f32 %v4646, %v2404
      %s4663 = scalar_lea.vmem %s5, 512
      %v4664 = vld [vmem:[%s4663] sm:$0xff]
      %v4665 = vld [vmem:[%s4663 + $0x8] sm:$0xff]
      %v4666 = vld [vmem:[%s4663 + $0x10] sm:$0xff]
      %v4667 = vld [vmem:[%s4663 + $0x18] sm:$0xff]
      %v4668 = vld [vmem:[%s4663 + $0x20] sm:$0xff]
      %v4669 = vld [vmem:[%s4663 + $0x28] sm:$0xff]
      %v4670 = vld [vmem:[%s4663 + $0x30] sm:$0xff]
      %v4671 = vld [vmem:[%s4663 + $0x38] sm:$0xff]
      %v4673 = vsel %vm3032, %v4664, 0
      %v4676 = vsel %vm3032, %v4665, 0
      %v4679 = vsel %vm3032, %v4666, 0
      %v4682 = vsel %vm3032, %v4667, 0
      %v4685 = vsel %vm3032, %v4668, 0
      %v4688 = vsel %vm3032, %v4669, 0
      %v4691 = vsel %vm3032, %v4670, 0
      %v4694 = vsel %vm3032, %v4671, 0
      %4696 = vmatprep.subr.mxu0 %v4648
      %4697 = vmatpush1.msra.mxu0 %v4647
      %4698 = vmatprep.subr.mxu0 %v4650
      %4699 = vmatpush1.msra.mxu0 %v4649
      %4700 = vmatprep.subr.mxu0 %v4652
      %4701 = vmatpush1.msra.mxu0 %v4651
      %4702 = vmatprep.subr.mxu0 %v4654
      %4703 = vmatpush1.msra.mxu0 %v4653
      %4704 = vmatprep.subr.mxu0 %v4656
      %4705 = vmatpush1.msra.mxu0 %v4655
      %4706 = vmatprep.subr.mxu0 %v4658
      %4707 = vmatpush1.msra.mxu0 %v4657
      %4708 = vmatprep.subr.mxu0 %v4660
      %4709 = vmatpush1.msra.mxu0 %v4659
      %4710 = vmatprep.subr.mxu0 %v4662
      %4711 = vmatpush1.msra.mxu0 %v4661
      %4712 = vmatprep.subr.mxu0 0.0
      %4713 = vmatpush1.msra.mxu0 0.0
      %4714 = vmatprep.subr.mxu0 0.0
      %4715 = vmatpush1.msra.mxu0 0.0
      %4716 = vmatprep.subr.mxu0 0.0
      %4717 = vmatpush1.msra.mxu0 0.0
      %4718 = vmatprep.subr.mxu0 0.0
      %4719 = vmatpush1.msra.mxu0 0.0
      %4720 = vmatprep.subr.mxu0 0.0
      %4721 = vmatpush1.msra.mxu0 0.0
      %4722 = vmatprep.subr.mxu0 0.0
      %4723 = vmatpush1.msra.mxu0 0.0
      %4724 = vmatprep.subr.mxu0 0.0
      %4725 = vmatpush1.msra.mxu0 0.0
      %4726 = vmatprep.subr.mxu0 0.0
      %4727 = vmatpush1.msra.mxu0 0.0
      %4728 = vmatprep.subr.mxu0 0.0
      %4729 = vmatpush1.msra.mxu0 0.0
      %4730 = vmatprep.subr.mxu0 0.0
      %4731 = vmatpush1.msra.mxu0 0.0
      %4732 = vmatprep.subr.mxu0 0.0
      %4733 = vmatpush1.msra.mxu0 0.0
      %4734 = vmatprep.subr.mxu0 0.0
      %4735 = vmatpush1.msra.mxu0 0.0
      %4736 = vmatprep.subr.mxu0 0.0
      %4737 = vmatpush1.msra.mxu0 0.0
      %4738 = vmatprep.subr.mxu0 0.0
      %4739 = vmatpush1.msra.mxu0 0.0
      %4740 = vmatprep.subr.mxu0 0.0
      %4741 = vmatpush1.msra.mxu0 0.0
      %4742 = vmatprep.subr.mxu0 0.0
      %4743 = vmatpush1.msra.mxu0 0.0
      %4744 = vmatprep.subr.mxu0 0.0
      %4745 = vmatpush1.msra.mxu0 0.0
      %4746 = vmatprep.subr.mxu0 0.0
      %4747 = vmatpush1.msra.mxu0 0.0
      %4748 = vmatprep.subr.mxu0 0.0
      %4749 = vmatpush1.msra.mxu0 0.0
      %4750 = vmatprep.subr.mxu0 0.0
      %4751 = vmatpush1.msra.mxu0 0.0
      %4752 = vmatprep.subr.mxu0 0.0
      %4753 = vmatpush1.msra.mxu0 0.0
      %4754 = vmatprep.subr.mxu0 0.0
      %4755 = vmatpush1.msra.mxu0 0.0
      %4756 = vmatprep.subr.mxu0 0.0
      %4757 = vmatpush1.msra.mxu0 0.0
      %4758 = vmatprep.subr.mxu0 0.0
      %4759 = vmatpush1.msra.mxu0 0.0
      %4760 = vmatprep.mubr.f32.mxu0 0.0
      %4761 = vmatmul.mubr.f32.gmra.mrb[0].mxu0 %v4673
      %v4762 = vpop.f32.mrb[0].mxu0
      %v4763 = vadd.f32 0.0, %v4762
      %v4764 = vpop.f32.mrb[0].mxu0
      %v4765 = vadd.f32 0.0, %v4764
      %4766 = vmatprep.mubr.f32.mxu0 0.0
      %4767 = vmatmul.mubr.f32.gmra.mrb[0].mxu0 %v4676
      %v4768 = vpop.f32.mrb[0].mxu0
      %v4769 = vadd.f32 0.0, %v4768
      %v4770 = vpop.f32.mrb[0].mxu0
      %v4771 = vadd.f32 0.0, %v4770
      %4772 = vmatprep.mubr.f32.mxu0 0.0
      %4773 = vmatmul.mubr.f32.gmra.mrb[0].mxu0 %v4679
      %v4774 = vpop.f32.mrb[0].mxu0
      %v4775 = vadd.f32 0.0, %v4774
      %v4776 = vpop.f32.mrb[0].mxu0
      %v4777 = vadd.f32 0.0, %v4776
      %4778 = vmatprep.mubr.f32.mxu0 0.0
      %4779 = vmatmul.mubr.f32.gmra.mrb[0].mxu0 %v4682
      %v4780 = vpop.f32.mrb[0].mxu0
      %v4781 = vadd.f32 0.0, %v4780
      %v4782 = vpop.f32.mrb[0].mxu0
      %v4783 = vadd.f32 0.0, %v4782
      %4784 = vmatprep.mubr.f32.mxu0 0.0
      %4785 = vmatmul.mubr.f32.gmra.mrb[0].mxu0 %v4685
      %v4786 = vpop.f32.mrb[0].mxu0
      %v4787 = vadd.f32 0.0, %v4786
      %v4788 = vpop.f32.mrb[0].mxu0
      %v4789 = vadd.f32 0.0, %v4788
      %4790 = vmatprep.mubr.f32.mxu0 0.0
      %4791 = vmatmul.mubr.f32.gmra.mrb[0].mxu0 %v4688
      %v4792 = vpop.f32.mrb[0].mxu0
      %v4793 = vadd.f32 0.0, %v4792
      %v4794 = vpop.f32.mrb[0].mxu0
      %v4795 = vadd.f32 0.0, %v4794
      %4796 = vmatprep.mubr.f32.mxu0 0.0
      %4797 = vmatmul.mubr.f32.gmra.mrb[0].mxu0 %v4691
      %v4798 = vpop.f32.mrb[0].mxu0
      %v4799 = vadd.f32 0.0, %v4798
      %v4800 = vpop.f32.mrb[0].mxu0
      %v4801 = vadd.f32 0.0, %v4800
      %4802 = vmatprep.mubr.f32.mxu0 0.0
      %4803 = vmatmul.mubr.f32.gmra.mrb[0].mxu0 %v4694
      %v4804 = vpop.f32.mrb[0].mxu0
      %v4805 = vadd.f32 0.0, %v4804
      %v4806 = vpop.f32.mrb[0].mxu0
      %v4807 = vadd.f32 0.0, %v4806
      %4808 = vdwg.mxu0
      %v4809 = vadd.f32 %v4583, %v4763
      %v4810 = vadd.f32 %v4584, %v4765
      %v4811 = vadd.f32 %v4585, %v4769
      %v4812 = vadd.f32 %v4586, %v4771
      %v4813 = vadd.f32 %v4587, %v4775
      %v4814 = vadd.f32 %v4588, %v4777
      %v4815 = vadd.f32 %v4589, %v4781
      %v4816 = vadd.f32 %v4590, %v4783
      %v4817 = vadd.f32 %v4591, %v4787
      %v4818 = vadd.f32 %v4592, %v4789
      %v4819 = vadd.f32 %v4593, %v4793
      %v4820 = vadd.f32 %v4594, %v4795
      %v4821 = vadd.f32 %v4595, %v4799
      %v4822 = vadd.f32 %v4596, %v4801
      %v4823 = vadd.f32 %v4597, %v4805
      %v4824 = vadd.f32 %v4598, %v4807
      %v4825 = vld [vmem:[%s6] sm:$0xff]
      %v4826 = vld [vmem:[%s6 + $0x8] sm:$0xff]
      %v4827 = vld [vmem:[%s6 + $0x10] sm:$0xff]
      %v4828 = vld [vmem:[%s6 + $0x18] sm:$0xff]
      %v4829 = vld [vmem:[%s6 + $0x20] sm:$0xff]
      %v4830 = vld [vmem:[%s6 + $0x28] sm:$0xff]
      %v4831 = vld [vmem:[%s6 + $0x30] sm:$0xff]
      %v4832 = vld [vmem:[%s6 + $0x38] sm:$0xff]
      %4834 = vset.pattern.permute.xlu0 0
      %4835 = vperm.xlu0 %4834, %v4825
      %v4836 = vpop.permute.xlu0 %4835
      %4839 = vset.pattern.permute.xlu0 0
      %4840 = vperm.xlu0 %4839, %v4826
      %v4841 = vpop.permute.xlu0 %4840
      %4844 = vset.pattern.permute.xlu0 0
      %4845 = vperm.xlu0 %4844, %v4827
      %v4846 = vpop.permute.xlu0 %4845
      %4849 = vset.pattern.permute.xlu0 0
      %4850 = vperm.xlu0 %4849, %v4828
      %v4851 = vpop.permute.xlu0 %4850
      %4854 = vset.pattern.permute.xlu0 0
      %4855 = vperm.xlu0 %4854, %v4829
      %v4856 = vpop.permute.xlu0 %4855
      %4859 = vset.pattern.permute.xlu0 0
      %4860 = vperm.xlu0 %4859, %v4830
      %v4861 = vpop.permute.xlu0 %4860
      %4864 = vset.pattern.permute.xlu0 0
      %4865 = vperm.xlu0 %4864, %v4831
      %v4866 = vpop.permute.xlu0 %4865
      %4869 = vset.pattern.permute.xlu0 0
      %4870 = vperm.xlu0 %4869, %v4832
      %v4871 = vpop.permute.xlu0 %4870
      %v4873 = vadd.f32 %v4809, %v4836
      %v4874 = vadd.f32 %v4810, %v4836
      %v4875 = vadd.f32 %v4811, %v4841
      %v4876 = vadd.f32 %v4812, %v4841
      %v4877 = vadd.f32 %v4813, %v4846
      %v4878 = vadd.f32 %v4814, %v4846
      %v4879 = vadd.f32 %v4815, %v4851
      %v4880 = vadd.f32 %v4816, %v4851
      %v4881 = vadd.f32 %v4817, %v4856
      %v4882 = vadd.f32 %v4818, %v4856
      %v4883 = vadd.f32 %v4819, %v4861
      %v4884 = vadd.f32 %v4820, %v4861
      %v4885 = vadd.f32 %v4821, %v4866
      %v4886 = vadd.f32 %v4822, %v4866
      %v4887 = vadd.f32 %v4823, %v4871
      %v4888 = vadd.f32 %v4824, %v4871
      %v4889 = vxor.u32 %v4873, 2147483648
      %v4890 = vxor.u32 %v4874, 2147483648
      %v4891 = vxor.u32 %v4875, 2147483648
      %v4892 = vxor.u32 %v4876, 2147483648
      %v4893 = vxor.u32 %v4877, 2147483648
      %v4894 = vxor.u32 %v4878, 2147483648
      %v4895 = vxor.u32 %v4879, 2147483648
      %v4896 = vxor.u32 %v4880, 2147483648
      %v4897 = vxor.u32 %v4881, 2147483648
      %v4898 = vxor.u32 %v4882, 2147483648
      %v4899 = vxor.u32 %v4883, 2147483648
      %v4900 = vxor.u32 %v4884, 2147483648
      %v4901 = vxor.u32 %v4885, 2147483648
      %v4902 = vxor.u32 %v4886, 2147483648
      %v4903 = vxor.u32 %v4887, 2147483648
      %v4904 = vxor.u32 %v4888, 2147483648
      %v4905 = vmul.f32 %v4889, 1.442695
      %v4906 = vpow.pop %v4905
      %v4907 = vmul.f32 %v4890, 1.442695
      %v4908 = vpow.pop %v4907
      %v4909 = vmul.f32 %v4891, 1.442695
      %v4910 = vpow.pop %v4909
      %v4911 = vmul.f32 %v4892, 1.442695
      %v4912 = vpow.pop %v4911
      %v4913 = vmul.f32 %v4893, 1.442695
      %v4914 = vpow.pop %v4913
      %v4915 = vmul.f32 %v4894, 1.442695
      %v4916 = vpow.pop %v4915
      %v4917 = vmul.f32 %v4895, 1.442695
      %v4918 = vpow.pop %v4917
      %v4919 = vmul.f32 %v4896, 1.442695
      %v4920 = vpow.pop %v4919
      %v4921 = vmul.f32 %v4897, 1.442695
      %v4922 = vpow.pop %v4921
      %v4923 = vmul.f32 %v4898, 1.442695
      %v4924 = vpow.pop %v4923
      %v4925 = vmul.f32 %v4899, 1.442695
      %v4926 = vpow.pop %v4925
      %v4927 = vmul.f32 %v4900, 1.442695
      %v4928 = vpow.pop %v4927
      %v4929 = vmul.f32 %v4901, 1.442695
      %v4930 = vpow.pop %v4929
      %v4931 = vmul.f32 %v4902, 1.442695
      %v4932 = vpow.pop %v4931
      %v4933 = vmul.f32 %v4903, 1.442695
      %v4934 = vpow.pop %v4933
      %v4935 = vmul.f32 %v4904, 1.442695
      %v4936 = vpow.pop %v4935
      %v4937 = vadd.f32 %v4906, 1.0
      %v4938 = vadd.f32 %v4908, 1.0
      %v4939 = vadd.f32 %v4910, 1.0
      %v4940 = vadd.f32 %v4912, 1.0
      %v4941 = vadd.f32 %v4914, 1.0
      %v4942 = vadd.f32 %v4916, 1.0
      %v4943 = vadd.f32 %v4918, 1.0
      %v4944 = vadd.f32 %v4920, 1.0
      %v4945 = vadd.f32 %v4922, 1.0
      %v4946 = vadd.f32 %v4924, 1.0
      %v4947 = vadd.f32 %v4926, 1.0
      %v4948 = vadd.f32 %v4928, 1.0
      %v4949 = vadd.f32 %v4930, 1.0
      %v4950 = vadd.f32 %v4932, 1.0
      %v4951 = vadd.f32 %v4934, 1.0
      %v4952 = vadd.f32 %v4936, 1.0
      %v4953 = vrcp.pop %v4937
      %v4954 = vmul.f32 1.0, %v4953
      %v4955 = vrcp.pop %v4938
      %v4956 = vmul.f32 1.0, %v4955
      %v4957 = vrcp.pop %v4939
      %v4958 = vmul.f32 1.0, %v4957
      %v4959 = vrcp.pop %v4940
      %v4960 = vmul.f32 1.0, %v4959
      %v4961 = vrcp.pop %v4941
      %v4962 = vmul.f32 1.0, %v4961
      %v4963 = vrcp.pop %v4942
      %v4964 = vmul.f32 1.0, %v4963
      %v4965 = vrcp.pop %v4943
      %v4966 = vmul.f32 1.0, %v4965
      %v4967 = vrcp.pop %v4944
      %v4968 = vmul.f32 1.0, %v4967
      %v4969 = vrcp.pop %v4945
      %v4970 = vmul.f32 1.0, %v4969
      %v4971 = vrcp.pop %v4946
      %v4972 = vmul.f32 1.0, %v4971
      %v4973 = vrcp.pop %v4947
      %v4974 = vmul.f32 1.0, %v4973
      %v4975 = vrcp.pop %v4948
      %v4976 = vmul.f32 1.0, %v4975
      %v4977 = vrcp.pop %v4949
      %v4978 = vmul.f32 1.0, %v4977
      %v4979 = vrcp.pop %v4950
      %v4980 = vmul.f32 1.0, %v4979
      %v4981 = vrcp.pop %v4951
      %v4982 = vmul.f32 1.0, %v4981
      %v4983 = vrcp.pop %v4952
      %v4984 = vmul.f32 1.0, %v4983
      %v4985 = vmul.f32 %v4873, %v4954
      %v4986 = vmul.f32 %v4874, %v4956
      %v4987 = vmul.f32 %v4875, %v4958
      %v4988 = vmul.f32 %v4876, %v4960
      %v4989 = vmul.f32 %v4877, %v4962
      %v4990 = vmul.f32 %v4878, %v4964
      %v4991 = vmul.f32 %v4879, %v4966
      %v4992 = vmul.f32 %v4880, %v4968
      %v4993 = vmul.f32 %v4881, %v4970
      %v4994 = vmul.f32 %v4882, %v4972
      %v4995 = vmul.f32 %v4883, %v4974
      %v4996 = vmul.f32 %v4884, %v4976
      %v4997 = vmul.f32 %v4885, %v4978
      %v4998 = vmul.f32 %v4886, %v4980
      %v4999 = vmul.f32 %v4887, %v4982
      %v5000 = vmul.f32 %v4888, %v4984
      %v5001 = vld [vmem:[%s7] sm:$0xff]
      %v5002 = vld [vmem:[%s7 + $0x8] sm:$0xff]
      %v5003 = vld [vmem:[%s7 + $0x10] sm:$0xff]
      %v5004 = vld [vmem:[%s7 + $0x18] sm:$0xff]
      %v5005 = vld [vmem:[%s7 + $0x20] sm:$0xff]
      %v5006 = vld [vmem:[%s7 + $0x28] sm:$0xff]
      %v5007 = vld [vmem:[%s7 + $0x30] sm:$0xff]
      %v5008 = vld [vmem:[%s7 + $0x38] sm:$0xff]
      %v5009 = vld [vmem:[%s8] sm:$0xff]
      %v5010 = vld [vmem:[%s8 + $0x8] sm:$0xff]
      %v5011 = vld [vmem:[%s8 + $0x10] sm:$0xff]
      %v5012 = vld [vmem:[%s8 + $0x18] sm:$0xff]
      %v5013 = vld [vmem:[%s8 + $0x20] sm:$0xff]
      %v5014 = vld [vmem:[%s8 + $0x28] sm:$0xff]
      %v5015 = vld [vmem:[%s8 + $0x30] sm:$0xff]
      %v5016 = vld [vmem:[%s8 + $0x38] sm:$0xff]
      %5018 = vset.pattern.permute.xlu0 0
      %5019 = vperm.xlu0 %5018, %v5009
      %v5020 = vpop.permute.xlu0 %5019
      %5023 = vset.pattern.permute.xlu0 0
      %5024 = vperm.xlu0 %5023, %v5010
      %v5025 = vpop.permute.xlu0 %5024
      %5028 = vset.pattern.permute.xlu0 0
      %5029 = vperm.xlu0 %5028, %v5011
      %v5030 = vpop.permute.xlu0 %5029
      %5033 = vset.pattern.permute.xlu0 0
      %5034 = vperm.xlu0 %5033, %v5012
      %v5035 = vpop.permute.xlu0 %5034
      %5038 = vset.pattern.permute.xlu0 0
      %5039 = vperm.xlu0 %5038, %v5013
      %v5040 = vpop.permute.xlu0 %5039
      %5043 = vset.pattern.permute.xlu0 0
      %5044 = vperm.xlu0 %5043, %v5014
      %v5045 = vpop.permute.xlu0 %5044
      %5048 = vset.pattern.permute.xlu0 0
      %5049 = vperm.xlu0 %5048, %v5015
      %v5050 = vpop.permute.xlu0 %5049
      %5053 = vset.pattern.permute.xlu0 0
      %5054 = vperm.xlu0 %5053, %v5016
      %v5055 = vpop.permute.xlu0 %5054
      %v5058 = vsel %vm3032, %v5001, 0
      %v5061 = vsel %vm3032, %v5002, 0
      %v5064 = vsel %vm3032, %v5003, 0
      %v5067 = vsel %vm3032, %v5004, 0
      %v5070 = vsel %vm3032, %v5005, 0
      %v5073 = vsel %vm3032, %v5006, 0
      %v5076 = vsel %vm3032, %v5007, 0
      %v5079 = vsel %vm3032, %v5008, 0
      %5081 = vmatprep.subr.mxu0 %v4986
      %5082 = vmatpush1.msra.mxu0 %v4985
      %5083 = vmatprep.subr.mxu0 %v4988
      %5084 = vmatpush1.msra.mxu0 %v4987
      %5085 = vmatprep.subr.mxu0 %v4990
      %5086 = vmatpush1.msra.mxu0 %v4989
      %5087 = vmatprep.subr.mxu0 %v4992
      %5088 = vmatpush1.msra.mxu0 %v4991
      %5089 = vmatprep.subr.mxu0 %v4994
      %5090 = vmatpush1.msra.mxu0 %v4993
      %5091 = vmatprep.subr.mxu0 %v4996
      %5092 = vmatpush1.msra.mxu0 %v4995
      %5093 = vmatprep.subr.mxu0 %v4998
      %5094 = vmatpush1.msra.mxu0 %v4997
      %5095 = vmatprep.subr.mxu0 %v5000
      %5096 = vmatpush1.msra.mxu0 %v4999
      %5097 = vmatprep.subr.mxu0 0.0
      %5098 = vmatpush1.msra.mxu0 0.0
      %5099 = vmatprep.subr.mxu0 0.0
      %5100 = vmatpush1.msra.mxu0 0.0
      %5101 = vmatprep.subr.mxu0 0.0
      %5102 = vmatpush1.msra.mxu0 0.0
      %5103 = vmatprep.subr.mxu0 0.0
      %5104 = vmatpush1.msra.mxu0 0.0
      %5105 = vmatprep.subr.mxu0 0.0
      %5106 = vmatpush1.msra.mxu0 0.0
      %5107 = vmatprep.subr.mxu0 0.0
      %5108 = vmatpush1.msra.mxu0 0.0
      %5109 = vmatprep.subr.mxu0 0.0
      %5110 = vmatpush1.msra.mxu0 0.0
      %5111 = vmatprep.subr.mxu0 0.0
      %5112 = vmatpush1.msra.mxu0 0.0
      %5113 = vmatprep.subr.mxu0 0.0
      %5114 = vmatpush1.msra.mxu0 0.0
      %5115 = vmatprep.subr.mxu0 0.0
      %5116 = vmatpush1.msra.mxu0 0.0
      %5117 = vmatprep.subr.mxu0 0.0
      %5118 = vmatpush1.msra.mxu0 0.0
      %5119 = vmatprep.subr.mxu0 0.0
      %5120 = vmatpush1.msra.mxu0 0.0
      %5121 = vmatprep.subr.mxu0 0.0
      %5122 = vmatpush1.msra.mxu0 0.0
      %5123 = vmatprep.subr.mxu0 0.0
      %5124 = vmatpush1.msra.mxu0 0.0
      %5125 = vmatprep.subr.mxu0 0.0
      %5126 = vmatpush1.msra.mxu0 0.0
      %5127 = vmatprep.subr.mxu0 0.0
      %5128 = vmatpush1.msra.mxu0 0.0
      %5129 = vmatprep.subr.mxu0 0.0
      %5130 = vmatpush1.msra.mxu0 0.0
      %5131 = vmatprep.subr.mxu0 0.0
      %5132 = vmatpush1.msra.mxu0 0.0
      %5133 = vmatprep.subr.mxu0 0.0
      %5134 = vmatpush1.msra.mxu0 0.0
      %5135 = vmatprep.subr.mxu0 0.0
      %5136 = vmatpush1.msra.mxu0 0.0
      %5137 = vmatprep.subr.mxu0 0.0
      %5138 = vmatpush1.msra.mxu0 0.0
      %5139 = vmatprep.subr.mxu0 0.0
      %5140 = vmatpush1.msra.mxu0 0.0
      %5141 = vmatprep.subr.mxu0 0.0
      %5142 = vmatpush1.msra.mxu0 0.0
      %5143 = vmatprep.subr.mxu0 0.0
      %5144 = vmatpush1.msra.mxu0 0.0
      %5145 = vmatprep.mubr.f32.mxu0 0.0
      %5146 = vmatmul.mubr.f32.gmra.mrb[0].mxu0 %v5058
      %v5147 = vpop.f32.mrb[0].mxu0
      %v5148 = vadd.f32 %v5020, %v5147
      %v5149 = vpop.f32.mrb[0].mxu0
      %v5150 = vadd.f32 %v5020, %v5149
      %5151 = vmatprep.mubr.f32.mxu0 0.0
      %5152 = vmatmul.mubr.f32.gmra.mrb[0].mxu0 %v5061
      %v5153 = vpop.f32.mrb[0].mxu0
      %v5154 = vadd.f32 %v5025, %v5153
      %v5155 = vpop.f32.mrb[0].mxu0
      %v5156 = vadd.f32 %v5025, %v5155
      %5157 = vmatprep.mubr.f32.mxu0 0.0
      %5158 = vmatmul.mubr.f32.gmra.mrb[0].mxu0 %v5064
      %v5159 = vpop.f32.mrb[0].mxu0
      %v5160 = vadd.f32 %v5030, %v5159
      %v5161 = vpop.f32.mrb[0].mxu0
      %v5162 = vadd.f32 %v5030, %v5161
      %5163 = vmatprep.mubr.f32.mxu0 0.0
      %5164 = vmatmul.mubr.f32.gmra.mrb[0].mxu0 %v5067
      %v5165 = vpop.f32.mrb[0].mxu0
      %v5166 = vadd.f32 %v5035, %v5165
      %v5167 = vpop.f32.mrb[0].mxu0
      %v5168 = vadd.f32 %v5035, %v5167
      %5169 = vmatprep.mubr.f32.mxu0 0.0
      %5170 = vmatmul.mubr.f32.gmra.mrb[0].mxu0 %v5070
      %v5171 = vpop.f32.mrb[0].mxu0
      %v5172 = vadd.f32 %v5040, %v5171
      %v5173 = vpop.f32.mrb[0].mxu0
      %v5174 = vadd.f32 %v5040, %v5173
      %5175 = vmatprep.mubr.f32.mxu0 0.0
      %5176 = vmatmul.mubr.f32.gmra.mrb[0].mxu0 %v5073
      %v5177 = vpop.f32.mrb[0].mxu0
      %v5178 = vadd.f32 %v5045, %v5177
      %v5179 = vpop.f32.mrb[0].mxu0
      %v5180 = vadd.f32 %v5045, %v5179
      %5181 = vmatprep.mubr.f32.mxu0 0.0
      %5182 = vmatmul.mubr.f32.gmra.mrb[0].mxu0 %v5076
      %v5183 = vpop.f32.mrb[0].mxu0
      %v5184 = vadd.f32 %v5050, %v5183
      %v5185 = vpop.f32.mrb[0].mxu0
      %v5186 = vadd.f32 %v5050, %v5185
      %5187 = vmatprep.mubr.f32.mxu0 0.0
      %5188 = vmatmul.mubr.f32.gmra.mrb[0].mxu0 %v5079
      %v5189 = vpop.f32.mrb[0].mxu0
      %v5190 = vadd.f32 %v5055, %v5189
      %v5191 = vpop.f32.mrb[0].mxu0
      %v5192 = vadd.f32 %v5055, %v5191
      %5193 = vdwg.mxu0
      %5194 = vrot.lane.b32.xlu0 %v2879, 17
      %v5195 = vpop.permute.xlu0 %5194
      %5196 = vrot.lane.b32.xlu0 %v2881, 17
      %v5197 = vpop.permute.xlu0 %5196
      %5198 = vrot.lane.b32.xlu0 %v2883, 17
      %v5199 = vpop.permute.xlu0 %5198
      %5200 = vrot.lane.b32.xlu0 %v2885, 17
      %v5201 = vpop.permute.xlu0 %5200
      %5202 = vrot.lane.b32.xlu0 %v2880, 17
      %v5203 = vpop.permute.xlu0 %5202
      %5204 = vrot.lane.b32.xlu0 %v2882, 17
      %v5205 = vpop.permute.xlu0 %5204
      %5206 = vrot.lane.b32.xlu0 %v2884, 17
      %v5207 = vpop.permute.xlu0 %5206
      %5208 = vrot.lane.b32.xlu0 %v2886, 17
      %v5209 = vpop.permute.xlu0 %5208
      %v5210 = vsel %vm469, %v5195, %v5203
      %v5211 = vsel %vm469, %v5197, %v5205
      %v5212 = vsel %vm469, %v5199, %v5207
      %v5213 = vsel %vm469, %v5201, %v5209
      %v5214 = vsel %vm469, %v5203, %v5195
      %v5215 = vsel %vm469, %v5205, %v5197
      %v5216 = vsel %vm469, %v5207, %v5199
      %v5217 = vsel %vm469, %v5209, %v5201
      %v5218 = vmul.f32 %v5214, %v481
      %v5219 = vmul.f32 %v5210, %v485
      %v5220 = vmul.f32 %v5215, %v481
      %v5221 = vmul.f32 %v5211, %v485
      %v5222 = vmul.f32 %v5216, %v481
      %v5223 = vmul.f32 %v5212, %v485
      %v5224 = vmul.f32 %v5217, %v481
      %v5225 = vmul.f32 %v5213, %v485
      %v5226 = vld [vmem:[%s9] sm:$0xff]
      %v5227 = vld [vmem:[%s9 + $0x8] sm:$0xff]
      %v5228 = vld [vmem:[%s9 + $0x10] sm:$0xff]
      %v5229 = vld [vmem:[%s9 + $0x18] sm:$0xff]
      %5230 = vrot.lane.b32.xlu0 %v2879, 16
      %v5231 = vpop.permute.xlu0 %5230
      %5232 = vrot.lane.b32.xlu0 %v2881, 16
      %v5233 = vpop.permute.xlu0 %5232
      %5234 = vrot.lane.b32.xlu0 %v2883, 16
      %v5235 = vpop.permute.xlu0 %5234
      %5236 = vrot.lane.b32.xlu0 %v2885, 16
      %v5237 = vpop.permute.xlu0 %5236
      %5238 = vrot.lane.b32.xlu0 %v2880, 16
      %v5239 = vpop.permute.xlu0 %5238
      %5240 = vrot.lane.b32.xlu0 %v2882, 16
      %v5241 = vpop.permute.xlu0 %5240
      %5242 = vrot.lane.b32.xlu0 %v2884, 16
      %v5243 = vpop.permute.xlu0 %5242
      %5244 = vrot.lane.b32.xlu0 %v2886, 16
      %v5245 = vpop.permute.xlu0 %5244
      %v5246 = vsel %vm522, %v5231, %v5239
      %v5247 = vsel %vm522, %v5233, %v5241
      %v5248 = vsel %vm522, %v5235, %v5243
      %v5249 = vsel %vm522, %v5237, %v5245
      %v5250 = vsel %vm522, %v5239, %v5231
      %v5251 = vsel %vm522, %v5241, %v5233
      %v5252 = vsel %vm522, %v5243, %v5235
      %v5253 = vsel %vm522, %v5245, %v5237
      %v5254 = vmul.f32 %v5250, %v534
      %v5255 = vmul.f32 %v5246, %v538
      %v5256 = vmul.f32 %v5251, %v534
      %v5257 = vmul.f32 %v5247, %v538
      %v5258 = vmul.f32 %v5252, %v534
      %v5259 = vmul.f32 %v5248, %v538
      %v5260 = vmul.f32 %v5253, %v534
      %v5261 = vmul.f32 %v5249, %v538
      %s5262 = scalar_lea.vmem %s9, 32
      %v5263 = vld [vmem:[%s5262] sm:$0xff]
      %v5264 = vld [vmem:[%s5262 + $0x8] sm:$0xff]
      %v5265 = vld [vmem:[%s5262 + $0x10] sm:$0xff]
      %v5266 = vld [vmem:[%s5262 + $0x18] sm:$0xff]
      %v5268 = vsel %vm560, %v5263, 0
      %v5271 = vsel %vm560, %v5264, 0
      %v5274 = vsel %vm560, %v5265, 0
      %v5277 = vsel %vm560, %v5266, 0
      %5279 = vmatprep.subr.mxu0 %v5255
      %5280 = vmatpush1.msra.mxu0 %v5254
      %5281 = vmatprep.subr.mxu0 %v5257
      %5282 = vmatpush1.msra.mxu0 %v5256
      %5283 = vmatprep.subr.mxu0 %v5259
      %5284 = vmatpush1.msra.mxu0 %v5258
      %5285 = vmatprep.subr.mxu0 %v5261
      %5286 = vmatpush1.msra.mxu0 %v5260
      %5287 = vmatprep.subr.mxu0 0.0
      %5288 = vmatpush1.msra.mxu0 0.0
      %5289 = vmatprep.subr.mxu0 0.0
      %5290 = vmatpush1.msra.mxu0 0.0
      %5291 = vmatprep.subr.mxu0 0.0
      %5292 = vmatpush1.msra.mxu0 0.0
      %5293 = vmatprep.subr.mxu0 0.0
      %5294 = vmatpush1.msra.mxu0 0.0
      %5295 = vmatprep.subr.mxu0 0.0
      %5296 = vmatpush1.msra.mxu0 0.0
      %5297 = vmatprep.subr.mxu0 0.0
      %5298 = vmatpush1.msra.mxu0 0.0
      %5299 = vmatprep.subr.mxu0 0.0
      %5300 = vmatpush1.msra.mxu0 0.0
      %5301 = vmatprep.subr.mxu0 0.0
      %5302 = vmatpush1.msra.mxu0 0.0
      %5303 = vmatprep.subr.mxu0 0.0
      %5304 = vmatpush1.msra.mxu0 0.0
      %5305 = vmatprep.subr.mxu0 0.0
      %5306 = vmatpush1.msra.mxu0 0.0
      %5307 = vmatprep.subr.mxu0 0.0
      %5308 = vmatpush1.msra.mxu0 0.0
      %5309 = vmatprep.subr.mxu0 0.0
      %5310 = vmatpush1.msra.mxu0 0.0
      %5311 = vmatprep.subr.mxu0 0.0
      %5312 = vmatpush1.msra.mxu0 0.0
      %5313 = vmatprep.subr.mxu0 0.0
      %5314 = vmatpush1.msra.mxu0 0.0
      %5315 = vmatprep.subr.mxu0 0.0
      %5316 = vmatpush1.msra.mxu0 0.0
      %5317 = vmatprep.subr.mxu0 0.0
      %5318 = vmatpush1.msra.mxu0 0.0
      %5319 = vmatprep.subr.mxu0 0.0
      %5320 = vmatpush1.msra.mxu0 0.0
      %5321 = vmatprep.subr.mxu0 0.0
      %5322 = vmatpush1.msra.mxu0 0.0
      %5323 = vmatprep.subr.mxu0 0.0
      %5324 = vmatpush1.msra.mxu0 0.0
      %5325 = vmatprep.subr.mxu0 0.0
      %5326 = vmatpush1.msra.mxu0 0.0
      %5327 = vmatprep.subr.mxu0 0.0
      %5328 = vmatpush1.msra.mxu0 0.0
      %5329 = vmatprep.subr.mxu0 0.0
      %5330 = vmatpush1.msra.mxu0 0.0
      %5331 = vmatprep.subr.mxu0 0.0
      %5332 = vmatpush1.msra.mxu0 0.0
      %5333 = vmatprep.subr.mxu0 0.0
      %5334 = vmatpush1.msra.mxu0 0.0
      %5335 = vmatprep.subr.mxu0 0.0
      %5336 = vmatpush1.msra.mxu0 0.0
      %5337 = vmatprep.subr.mxu0 0.0
      %5338 = vmatpush1.msra.mxu0 0.0
      %5339 = vmatprep.subr.mxu0 0.0
      %5340 = vmatpush1.msra.mxu0 0.0
      %5341 = vmatprep.subr.mxu0 0.0
      %5342 = vmatpush1.msra.mxu0 0.0
      %5343 = vmatprep.mubr.f32.mxu0 0.0
      %5344 = vmatmul.mubr.f32.gmra.mrb[0].mxu0 %v5268
      %v5345 = vpop.f32.mrb[0].mxu0
      %v5346 = vadd.f32 0.0, %v5345
      %v5347 = vpop.f32.mrb[0].mxu0
      %v5348 = vadd.f32 0.0, %v5347
      %5349 = vmatprep.mubr.f32.mxu0 0.0
      %5350 = vmatmul.mubr.f32.gmra.mrb[0].mxu0 %v5271
      %v5351 = vpop.f32.mrb[0].mxu0
      %v5352 = vadd.f32 0.0, %v5351
      %v5353 = vpop.f32.mrb[0].mxu0
      %v5354 = vadd.f32 0.0, %v5353
      %5355 = vmatprep.mubr.f32.mxu0 0.0
      %5356 = vmatmul.mubr.f32.gmra.mrb[0].mxu0 %v5274
      %v5357 = vpop.f32.mrb[0].mxu0
      %v5358 = vadd.f32 0.0, %v5357
      %v5359 = vpop.f32.mrb[0].mxu0
      %v5360 = vadd.f32 0.0, %v5359
      %5361 = vmatprep.mubr.f32.mxu0 0.0
      %5362 = vmatmul.mubr.f32.gmra.mrb[0].mxu0 %v5277
      %v5363 = vpop.f32.mrb[0].mxu0
      %v5364 = vadd.f32 0.0, %v5363
      %v5365 = vpop.f32.mrb[0].mxu0
      %v5366 = vadd.f32 0.0, %v5365
      %5367 = vdwg.mxu0
      %v5369 = vsel %vm560, %v5226, 0
      %v5372 = vsel %vm560, %v5227, 0
      %v5375 = vsel %vm560, %v5228, 0
      %v5378 = vsel %vm560, %v5229, 0
      %5380 = vmatprep.subr.mxu0 %v5219
      %5381 = vmatpush1.msra.mxu0 %v5218
      %5382 = vmatprep.subr.mxu0 %v5221
      %5383 = vmatpush1.msra.mxu0 %v5220
      %5384 = vmatprep.subr.mxu0 %v5223
      %5385 = vmatpush1.msra.mxu0 %v5222
      %5386 = vmatprep.subr.mxu0 %v5225
      %5387 = vmatpush1.msra.mxu0 %v5224
      %5388 = vmatprep.subr.mxu0 0.0
      %5389 = vmatpush1.msra.mxu0 0.0
      %5390 = vmatprep.subr.mxu0 0.0
      %5391 = vmatpush1.msra.mxu0 0.0
      %5392 = vmatprep.subr.mxu0 0.0
      %5393 = vmatpush1.msra.mxu0 0.0
      %5394 = vmatprep.subr.mxu0 0.0
      %5395 = vmatpush1.msra.mxu0 0.0
      %5396 = vmatprep.subr.mxu0 0.0
      %5397 = vmatpush1.msra.mxu0 0.0
      %5398 = vmatprep.subr.mxu0 0.0
      %5399 = vmatpush1.msra.mxu0 0.0
      %5400 = vmatprep.subr.mxu0 0.0
      %5401 = vmatpush1.msra.mxu0 0.0
      %5402 = vmatprep.subr.mxu0 0.0
      %5403 = vmatpush1.msra.mxu0 0.0
      %5404 = vmatprep.subr.mxu0 0.0
      %5405 = vmatpush1.msra.mxu0 0.0
      %5406 = vmatprep.subr.mxu0 0.0
      %5407 = vmatpush1.msra.mxu0 0.0
      %5408 = vmatprep.subr.mxu0 0.0
      %5409 = vmatpush1.msra.mxu0 0.0
      %5410 = vmatprep.subr.mxu0 0.0
      %5411 = vmatpush1.msra.mxu0 0.0
      %5412 = vmatprep.subr.mxu0 0.0
      %5413 = vmatpush1.msra.mxu0 0.0
      %5414 = vmatprep.subr.mxu0 0.0
      %5415 = vmatpush1.msra.mxu0 0.0
      %5416 = vmatprep.subr.mxu0 0.0
      %5417 = vmatpush1.msra.mxu0 0.0
      %5418 = vmatprep.subr.mxu0 0.0
      %5419 = vmatpush1.msra.mxu0 0.0
      %5420 = vmatprep.subr.mxu0 0.0
      %5421 = vmatpush1.msra.mxu0 0.0
      %5422 = vmatprep.subr.mxu0 0.0
      %5423 = vmatpush1.msra.mxu0 0.0
      %5424 = vmatprep.subr.mxu0 0.0
      %5425 = vmatpush1.msra.mxu0 0.0
      %5426 = vmatprep.subr.mxu0 0.0
      %5427 = vmatpush1.msra.mxu0 0.0
      %5428 = vmatprep.subr.mxu0 0.0
      %5429 = vmatpush1.msra.mxu0 0.0
      %5430 = vmatprep.subr.mxu0 0.0
      %5431 = vmatpush1.msra.mxu0 0.0
      %5432 = vmatprep.subr.mxu0 0.0
      %5433 = vmatpush1.msra.mxu0 0.0
      %5434 = vmatprep.subr.mxu0 0.0
      %5435 = vmatpush1.msra.mxu0 0.0
      %5436 = vmatprep.subr.mxu0 0.0
      %5437 = vmatpush1.msra.mxu0 0.0
      %5438 = vmatprep.subr.mxu0 0.0
      %5439 = vmatpush1.msra.mxu0 0.0
      %5440 = vmatprep.subr.mxu0 0.0
      %5441 = vmatpush1.msra.mxu0 0.0
      %5442 = vmatprep.subr.mxu0 0.0
      %5443 = vmatpush1.msra.mxu0 0.0
      %5444 = vmatprep.mubr.f32.mxu0 0.0
      %5445 = vmatmul.mubr.f32.gmra.mrb[0].mxu0 %v5369
      %v5446 = vpop.f32.mrb[0].mxu0
      %v5447 = vadd.f32 %v5346, %v5446
      %v5448 = vpop.f32.mrb[0].mxu0
      %v5449 = vadd.f32 %v5348, %v5448
      %5450 = vmatprep.mubr.f32.mxu0 0.0
      %5451 = vmatmul.mubr.f32.gmra.mrb[0].mxu0 %v5372
      %v5452 = vpop.f32.mrb[0].mxu0
      %v5453 = vadd.f32 %v5352, %v5452
      %v5454 = vpop.f32.mrb[0].mxu0
      %v5455 = vadd.f32 %v5354, %v5454
      %5456 = vmatprep.mubr.f32.mxu0 0.0
      %5457 = vmatmul.mubr.f32.gmra.mrb[0].mxu0 %v5375
      %v5458 = vpop.f32.mrb[0].mxu0
      %v5459 = vadd.f32 %v5358, %v5458
      %v5460 = vpop.f32.mrb[0].mxu0
      %v5461 = vadd.f32 %v5360, %v5460
      %5462 = vmatprep.mubr.f32.mxu0 0.0
      %5463 = vmatmul.mubr.f32.gmra.mrb[0].mxu0 %v5378
      %v5464 = vpop.f32.mrb[0].mxu0
      %v5465 = vadd.f32 %v5364, %v5464
      %v5466 = vpop.f32.mrb[0].mxu0
      %v5467 = vadd.f32 %v5366, %v5466
      %5468 = vdwg.mxu0
      %5469 = vrot.lane.b32.xlu0 %v2879, 15
      %v5470 = vpop.permute.xlu0 %5469
      %5471 = vrot.lane.b32.xlu0 %v2881, 15
      %v5472 = vpop.permute.xlu0 %5471
      %5473 = vrot.lane.b32.xlu0 %v2883, 15
      %v5474 = vpop.permute.xlu0 %5473
      %5475 = vrot.lane.b32.xlu0 %v2885, 15
      %v5476 = vpop.permute.xlu0 %5475
      %5477 = vrot.lane.b32.xlu0 %v2880, 15
      %v5478 = vpop.permute.xlu0 %5477
      %5479 = vrot.lane.b32.xlu0 %v2882, 15
      %v5480 = vpop.permute.xlu0 %5479
      %5481 = vrot.lane.b32.xlu0 %v2884, 15
      %v5482 = vpop.permute.xlu0 %5481
      %5483 = vrot.lane.b32.xlu0 %v2886, 15
      %v5484 = vpop.permute.xlu0 %5483
      %v5485 = vsel %vm923, %v5470, %v5478
      %v5486 = vsel %vm923, %v5472, %v5480
      %v5487 = vsel %vm923, %v5474, %v5482
      %v5488 = vsel %vm923, %v5476, %v5484
      %v5489 = vsel %vm923, %v5478, %v5470
      %v5490 = vsel %vm923, %v5480, %v5472
      %v5491 = vsel %vm923, %v5482, %v5474
      %v5492 = vsel %vm923, %v5484, %v5476
      %v5493 = vmul.f32 %v5489, %v935
      %v5494 = vmul.f32 %v5485, %v939
      %v5495 = vmul.f32 %v5490, %v935
      %v5496 = vmul.f32 %v5486, %v939
      %v5497 = vmul.f32 %v5491, %v935
      %v5498 = vmul.f32 %v5487, %v939
      %v5499 = vmul.f32 %v5492, %v935
      %v5500 = vmul.f32 %v5488, %v939
      %s5501 = scalar_lea.vmem %s9, 64
      %v5502 = vld [vmem:[%s5501] sm:$0xff]
      %v5503 = vld [vmem:[%s5501 + $0x8] sm:$0xff]
      %v5504 = vld [vmem:[%s5501 + $0x10] sm:$0xff]
      %v5505 = vld [vmem:[%s5501 + $0x18] sm:$0xff]
      %v5507 = vsel %vm560, %v5502, 0
      %v5510 = vsel %vm560, %v5503, 0
      %v5513 = vsel %vm560, %v5504, 0
      %v5516 = vsel %vm560, %v5505, 0
      %5518 = vmatprep.subr.mxu0 %v5494
      %5519 = vmatpush1.msra.mxu0 %v5493
      %5520 = vmatprep.subr.mxu0 %v5496
      %5521 = vmatpush1.msra.mxu0 %v5495
      %5522 = vmatprep.subr.mxu0 %v5498
      %5523 = vmatpush1.msra.mxu0 %v5497
      %5524 = vmatprep.subr.mxu0 %v5500
      %5525 = vmatpush1.msra.mxu0 %v5499
      %5526 = vmatprep.subr.mxu0 0.0
      %5527 = vmatpush1.msra.mxu0 0.0
      %5528 = vmatprep.subr.mxu0 0.0
      %5529 = vmatpush1.msra.mxu0 0.0
      %5530 = vmatprep.subr.mxu0 0.0
      %5531 = vmatpush1.msra.mxu0 0.0
      %5532 = vmatprep.subr.mxu0 0.0
      %5533 = vmatpush1.msra.mxu0 0.0
      %5534 = vmatprep.subr.mxu0 0.0
      %5535 = vmatpush1.msra.mxu0 0.0
      %5536 = vmatprep.subr.mxu0 0.0
      %5537 = vmatpush1.msra.mxu0 0.0
      %5538 = vmatprep.subr.mxu0 0.0
      %5539 = vmatpush1.msra.mxu0 0.0
      %5540 = vmatprep.subr.mxu0 0.0
      %5541 = vmatpush1.msra.mxu0 0.0
      %5542 = vmatprep.subr.mxu0 0.0
      %5543 = vmatpush1.msra.mxu0 0.0
      %5544 = vmatprep.subr.mxu0 0.0
      %5545 = vmatpush1.msra.mxu0 0.0
      %5546 = vmatprep.subr.mxu0 0.0
      %5547 = vmatpush1.msra.mxu0 0.0
      %5548 = vmatprep.subr.mxu0 0.0
      %5549 = vmatpush1.msra.mxu0 0.0
      %5550 = vmatprep.subr.mxu0 0.0
      %5551 = vmatpush1.msra.mxu0 0.0
      %5552 = vmatprep.subr.mxu0 0.0
      %5553 = vmatpush1.msra.mxu0 0.0
      %5554 = vmatprep.subr.mxu0 0.0
      %5555 = vmatpush1.msra.mxu0 0.0
      %5556 = vmatprep.subr.mxu0 0.0
      %5557 = vmatpush1.msra.mxu0 0.0
      %5558 = vmatprep.subr.mxu0 0.0
      %5559 = vmatpush1.msra.mxu0 0.0
      %5560 = vmatprep.subr.mxu0 0.0
      %5561 = vmatpush1.msra.mxu0 0.0
      %5562 = vmatprep.subr.mxu0 0.0
      %5563 = vmatpush1.msra.mxu0 0.0
      %5564 = vmatprep.subr.mxu0 0.0
      %5565 = vmatpush1.msra.mxu0 0.0
      %5566 = vmatprep.subr.mxu0 0.0
      %5567 = vmatpush1.msra.mxu0 0.0
      %5568 = vmatprep.subr.mxu0 0.0
      %5569 = vmatpush1.msra.mxu0 0.0
      %5570 = vmatprep.subr.mxu0 0.0
      %5571 = vmatpush1.msra.mxu0 0.0
      %5572 = vmatprep.subr.mxu0 0.0
      %5573 = vmatpush1.msra.mxu0 0.0
      %5574 = vmatprep.subr.mxu0 0.0
      %5575 = vmatpush1.msra.mxu0 0.0
      %5576 = vmatprep.subr.mxu0 0.0
      %5577 = vmatpush1.msra.mxu0 0.0
      %5578 = vmatprep.subr.mxu0 0.0
      %5579 = vmatpush1.msra.mxu0 0.0
      %5580 = vmatprep.subr.mxu0 0.0
      %5581 = vmatpush1.msra.mxu0 0.0
      %5582 = vmatprep.mubr.f32.mxu0 0.0
      %5583 = vmatmul.mubr.f32.gmra.mrb[0].mxu0 %v5507
      %v5584 = vpop.f32.mrb[0].mxu0
      %v5585 = vadd.f32 0.0, %v5584
      %v5586 = vpop.f32.mrb[0].mxu0
      %v5587 = vadd.f32 0.0, %v5586
      %5588 = vmatprep.mubr.f32.mxu0 0.0
      %5589 = vmatmul.mubr.f32.gmra.mrb[0].mxu0 %v5510
      %v5590 = vpop.f32.mrb[0].mxu0
      %v5591 = vadd.f32 0.0, %v5590
      %v5592 = vpop.f32.mrb[0].mxu0
      %v5593 = vadd.f32 0.0, %v5592
      %5594 = vmatprep.mubr.f32.mxu0 0.0
      %5595 = vmatmul.mubr.f32.gmra.mrb[0].mxu0 %v5513
      %v5596 = vpop.f32.mrb[0].mxu0
      %v5597 = vadd.f32 0.0, %v5596
      %v5598 = vpop.f32.mrb[0].mxu0
      %v5599 = vadd.f32 0.0, %v5598
      %5600 = vmatprep.mubr.f32.mxu0 0.0
      %5601 = vmatmul.mubr.f32.gmra.mrb[0].mxu0 %v5516
      %v5602 = vpop.f32.mrb[0].mxu0
      %v5603 = vadd.f32 0.0, %v5602
      %v5604 = vpop.f32.mrb[0].mxu0
      %v5605 = vadd.f32 0.0, %v5604
      %5606 = vdwg.mxu0
      %v5607 = vadd.f32 %v5447, %v5585
      %v5608 = vadd.f32 %v5449, %v5587
      %v5609 = vadd.f32 %v5453, %v5591
      %v5610 = vadd.f32 %v5455, %v5593
      %v5611 = vadd.f32 %v5459, %v5597
      %v5612 = vadd.f32 %v5461, %v5599
      %v5613 = vadd.f32 %v5465, %v5603
      %v5614 = vadd.f32 %v5467, %v5605
      %5615 = vrot.lane.b32.xlu0 %v2879, 1
      %v5616 = vpop.permute.xlu0 %5615
      %5617 = vrot.lane.b32.xlu0 %v2881, 1
      %v5618 = vpop.permute.xlu0 %5617
      %5619 = vrot.lane.b32.xlu0 %v2883, 1
      %v5620 = vpop.permute.xlu0 %5619
      %5621 = vrot.lane.b32.xlu0 %v2885, 1
      %v5622 = vpop.permute.xlu0 %5621
      %5623 = vrot.lane.b32.xlu0 %v2880, 1
      %v5624 = vpop.permute.xlu0 %5623
      %5625 = vrot.lane.b32.xlu0 %v2882, 1
      %v5626 = vpop.permute.xlu0 %5625
      %5627 = vrot.lane.b32.xlu0 %v2884, 1
      %v5628 = vpop.permute.xlu0 %5627
      %5629 = vrot.lane.b32.xlu0 %v2886, 1
      %v5630 = vpop.permute.xlu0 %5629
      %v5631 = vsel %vm1174, %v5616, %v5624
      %v5632 = vsel %vm1174, %v5618, %v5626
      %v5633 = vsel %vm1174, %v5620, %v5628
      %v5634 = vsel %vm1174, %v5622, %v5630
      %v5635 = vsel %vm1174, %v5624, %v5616
      %v5636 = vsel %vm1174, %v5626, %v5618
      %v5637 = vsel %vm1174, %v5628, %v5620
      %v5638 = vsel %vm1174, %v5630, %v5622
      %v5639 = vmul.f32 %v5635, %v1186
      %v5640 = vmul.f32 %v5631, %v1190
      %v5641 = vmul.f32 %v5636, %v1186
      %v5642 = vmul.f32 %v5632, %v1190
      %v5643 = vmul.f32 %v5637, %v1186
      %v5644 = vmul.f32 %v5633, %v1190
      %v5645 = vmul.f32 %v5638, %v1186
      %v5646 = vmul.f32 %v5634, %v1190
      %s5647 = scalar_lea.vmem %s9, 96
      %v5648 = vld [vmem:[%s5647] sm:$0xff]
      %v5649 = vld [vmem:[%s5647 + $0x8] sm:$0xff]
      %v5650 = vld [vmem:[%s5647 + $0x10] sm:$0xff]
      %v5651 = vld [vmem:[%s5647 + $0x18] sm:$0xff]
      %v5653 = vsel %vm560, %v5648, 0
      %v5656 = vsel %vm560, %v5649, 0
      %v5659 = vsel %vm560, %v5650, 0
      %v5662 = vsel %vm560, %v5651, 0
      %5664 = vmatprep.subr.mxu0 %v5640
      %5665 = vmatpush1.msra.mxu0 %v5639
      %5666 = vmatprep.subr.mxu0 %v5642
      %5667 = vmatpush1.msra.mxu0 %v5641
      %5668 = vmatprep.subr.mxu0 %v5644
      %5669 = vmatpush1.msra.mxu0 %v5643
      %5670 = vmatprep.subr.mxu0 %v5646
      %5671 = vmatpush1.msra.mxu0 %v5645
      %5672 = vmatprep.subr.mxu0 0.0
      %5673 = vmatpush1.msra.mxu0 0.0
      %5674 = vmatprep.subr.mxu0 0.0
      %5675 = vmatpush1.msra.mxu0 0.0
      %5676 = vmatprep.subr.mxu0 0.0
      %5677 = vmatpush1.msra.mxu0 0.0
      %5678 = vmatprep.subr.mxu0 0.0
      %5679 = vmatpush1.msra.mxu0 0.0
      %5680 = vmatprep.subr.mxu0 0.0
      %5681 = vmatpush1.msra.mxu0 0.0
      %5682 = vmatprep.subr.mxu0 0.0
      %5683 = vmatpush1.msra.mxu0 0.0
      %5684 = vmatprep.subr.mxu0 0.0
      %5685 = vmatpush1.msra.mxu0 0.0
      %5686 = vmatprep.subr.mxu0 0.0
      %5687 = vmatpush1.msra.mxu0 0.0
      %5688 = vmatprep.subr.mxu0 0.0
      %5689 = vmatpush1.msra.mxu0 0.0
      %5690 = vmatprep.subr.mxu0 0.0
      %5691 = vmatpush1.msra.mxu0 0.0
      %5692 = vmatprep.subr.mxu0 0.0
      %5693 = vmatpush1.msra.mxu0 0.0
      %5694 = vmatprep.subr.mxu0 0.0
      %5695 = vmatpush1.msra.mxu0 0.0
      %5696 = vmatprep.subr.mxu0 0.0
      %5697 = vmatpush1.msra.mxu0 0.0
      %5698 = vmatprep.subr.mxu0 0.0
      %5699 = vmatpush1.msra.mxu0 0.0
      %5700 = vmatprep.subr.mxu0 0.0
      %5701 = vmatpush1.msra.mxu0 0.0
      %5702 = vmatprep.subr.mxu0 0.0
      %5703 = vmatpush1.msra.mxu0 0.0
      %5704 = vmatprep.subr.mxu0 0.0
      %5705 = vmatpush1.msra.mxu0 0.0
      %5706 = vmatprep.subr.mxu0 0.0
      %5707 = vmatpush1.msra.mxu0 0.0
      %5708 = vmatprep.subr.mxu0 0.0
      %5709 = vmatpush1.msra.mxu0 0.0
      %5710 = vmatprep.subr.mxu0 0.0
      %5711 = vmatpush1.msra.mxu0 0.0
      %5712 = vmatprep.subr.mxu0 0.0
      %5713 = vmatpush1.msra.mxu0 0.0
      %5714 = vmatprep.subr.mxu0 0.0
      %5715 = vmatpush1.msra.mxu0 0.0
      %5716 = vmatprep.subr.mxu0 0.0
      %5717 = vmatpush1.msra.mxu0 0.0
      %5718 = vmatprep.subr.mxu0 0.0
      %5719 = vmatpush1.msra.mxu0 0.0
      %5720 = vmatprep.subr.mxu0 0.0
      %5721 = vmatpush1.msra.mxu0 0.0
      %5722 = vmatprep.subr.mxu0 0.0
      %5723 = vmatpush1.msra.mxu0 0.0
      %5724 = vmatprep.subr.mxu0 0.0
      %5725 = vmatpush1.msra.mxu0 0.0
      %5726 = vmatprep.subr.mxu0 0.0
      %5727 = vmatpush1.msra.mxu0 0.0
      %5728 = vmatprep.mubr.f32.mxu0 0.0
      %5729 = vmatmul.mubr.f32.gmra.mrb[0].mxu0 %v5653
      %v5730 = vpop.f32.mrb[0].mxu0
      %v5731 = vadd.f32 0.0, %v5730
      %v5732 = vpop.f32.mrb[0].mxu0
      %v5733 = vadd.f32 0.0, %v5732
      %5734 = vmatprep.mubr.f32.mxu0 0.0
      %5735 = vmatmul.mubr.f32.gmra.mrb[0].mxu0 %v5656
      %v5736 = vpop.f32.mrb[0].mxu0
      %v5737 = vadd.f32 0.0, %v5736
      %v5738 = vpop.f32.mrb[0].mxu0
      %v5739 = vadd.f32 0.0, %v5738
      %5740 = vmatprep.mubr.f32.mxu0 0.0
      %5741 = vmatmul.mubr.f32.gmra.mrb[0].mxu0 %v5659
      %v5742 = vpop.f32.mrb[0].mxu0
      %v5743 = vadd.f32 0.0, %v5742
      %v5744 = vpop.f32.mrb[0].mxu0
      %v5745 = vadd.f32 0.0, %v5744
      %5746 = vmatprep.mubr.f32.mxu0 0.0
      %5747 = vmatmul.mubr.f32.gmra.mrb[0].mxu0 %v5662
      %v5748 = vpop.f32.mrb[0].mxu0
      %v5749 = vadd.f32 0.0, %v5748
      %v5750 = vpop.f32.mrb[0].mxu0
      %v5751 = vadd.f32 0.0, %v5750
      %5752 = vdwg.mxu0
      %v5753 = vadd.f32 %v5607, %v5731
      %v5754 = vadd.f32 %v5608, %v5733
      %v5755 = vadd.f32 %v5609, %v5737
      %v5756 = vadd.f32 %v5610, %v5739
      %v5757 = vadd.f32 %v5611, %v5743
      %v5758 = vadd.f32 %v5612, %v5745
      %v5759 = vadd.f32 %v5613, %v5749
      %v5760 = vadd.f32 %v5614, %v5751
      %s5761 = scalar_lea.vmem %s9, 128
      %v5762 = vld [vmem:[%s5761] sm:$0xff]
      %v5763 = vld [vmem:[%s5761 + $0x8] sm:$0xff]
      %v5764 = vld [vmem:[%s5761 + $0x10] sm:$0xff]
      %v5765 = vld [vmem:[%s5761 + $0x18] sm:$0xff]
      %v5767 = vsel %vm560, %v5762, 0
      %v5770 = vsel %vm560, %v5763, 0
      %v5773 = vsel %vm560, %v5764, 0
      %v5776 = vsel %vm560, %v5765, 0
      %5778 = vmatprep.subr.mxu0 %v2880
      %5779 = vmatpush1.msra.mxu0 %v2879
      %5780 = vmatprep.subr.mxu0 %v2882
      %5781 = vmatpush1.msra.mxu0 %v2881
      %5782 = vmatprep.subr.mxu0 %v2884
      %5783 = vmatpush1.msra.mxu0 %v2883
      %5784 = vmatprep.subr.mxu0 %v2886
      %5785 = vmatpush1.msra.mxu0 %v2885
      %5786 = vmatprep.subr.mxu0 0.0
      %5787 = vmatpush1.msra.mxu0 0.0
      %5788 = vmatprep.subr.mxu0 0.0
      %5789 = vmatpush1.msra.mxu0 0.0
      %5790 = vmatprep.subr.mxu0 0.0
      %5791 = vmatpush1.msra.mxu0 0.0
      %5792 = vmatprep.subr.mxu0 0.0
      %5793 = vmatpush1.msra.mxu0 0.0
      %5794 = vmatprep.subr.mxu0 0.0
      %5795 = vmatpush1.msra.mxu0 0.0
      %5796 = vmatprep.subr.mxu0 0.0
      %5797 = vmatpush1.msra.mxu0 0.0
      %5798 = vmatprep.subr.mxu0 0.0
      %5799 = vmatpush1.msra.mxu0 0.0
      %5800 = vmatprep.subr.mxu0 0.0
      %5801 = vmatpush1.msra.mxu0 0.0
      %5802 = vmatprep.subr.mxu0 0.0
      %5803 = vmatpush1.msra.mxu0 0.0
      %5804 = vmatprep.subr.mxu0 0.0
      %5805 = vmatpush1.msra.mxu0 0.0
      %5806 = vmatprep.subr.mxu0 0.0
      %5807 = vmatpush1.msra.mxu0 0.0
      %5808 = vmatprep.subr.mxu0 0.0
      %5809 = vmatpush1.msra.mxu0 0.0
      %5810 = vmatprep.subr.mxu0 0.0
      %5811 = vmatpush1.msra.mxu0 0.0
      %5812 = vmatprep.subr.mxu0 0.0
      %5813 = vmatpush1.msra.mxu0 0.0
      %5814 = vmatprep.subr.mxu0 0.0
      %5815 = vmatpush1.msra.mxu0 0.0
      %5816 = vmatprep.subr.mxu0 0.0
      %5817 = vmatpush1.msra.mxu0 0.0
      %5818 = vmatprep.subr.mxu0 0.0
      %5819 = vmatpush1.msra.mxu0 0.0
      %5820 = vmatprep.subr.mxu0 0.0
      %5821 = vmatpush1.msra.mxu0 0.0
      %5822 = vmatprep.subr.mxu0 0.0
      %5823 = vmatpush1.msra.mxu0 0.0
      %5824 = vmatprep.subr.mxu0 0.0
      %5825 = vmatpush1.msra.mxu0 0.0
      %5826 = vmatprep.subr.mxu0 0.0
      %5827 = vmatpush1.msra.mxu0 0.0
      %5828 = vmatprep.subr.mxu0 0.0
      %5829 = vmatpush1.msra.mxu0 0.0
      %5830 = vmatprep.subr.mxu0 0.0
      %5831 = vmatpush1.msra.mxu0 0.0
      %5832 = vmatprep.subr.mxu0 0.0
      %5833 = vmatpush1.msra.mxu0 0.0
      %5834 = vmatprep.subr.mxu0 0.0
      %5835 = vmatpush1.msra.mxu0 0.0
      %5836 = vmatprep.subr.mxu0 0.0
      %5837 = vmatpush1.msra.mxu0 0.0
      %5838 = vmatprep.subr.mxu0 0.0
      %5839 = vmatpush1.msra.mxu0 0.0
      %5840 = vmatprep.subr.mxu0 0.0
      %5841 = vmatpush1.msra.mxu0 0.0
      %5842 = vmatprep.mubr.f32.mxu0 0.0
      %5843 = vmatmul.mubr.f32.gmra.mrb[0].mxu0 %v5767
      %v5844 = vpop.f32.mrb[0].mxu0
      %v5845 = vadd.f32 0.0, %v5844
      %v5846 = vpop.f32.mrb[0].mxu0
      %v5847 = vadd.f32 0.0, %v5846
      %5848 = vmatprep.mubr.f32.mxu0 0.0
      %5849 = vmatmul.mubr.f32.gmra.mrb[0].mxu0 %v5770
      %v5850 = vpop.f32.mrb[0].mxu0
      %v5851 = vadd.f32 0.0, %v5850
      %v5852 = vpop.f32.mrb[0].mxu0
      %v5853 = vadd.f32 0.0, %v5852
      %5854 = vmatprep.mubr.f32.mxu0 0.0
      %5855 = vmatmul.mubr.f32.gmra.mrb[0].mxu0 %v5773
      %v5856 = vpop.f32.mrb[0].mxu0
      %v5857 = vadd.f32 0.0, %v5856
      %v5858 = vpop.f32.mrb[0].mxu0
      %v5859 = vadd.f32 0.0, %v5858
      %5860 = vmatprep.mubr.f32.mxu0 0.0
      %5861 = vmatmul.mubr.f32.gmra.mrb[0].mxu0 %v5776
      %v5862 = vpop.f32.mrb[0].mxu0
      %v5863 = vadd.f32 0.0, %v5862
      %v5864 = vpop.f32.mrb[0].mxu0
      %v5865 = vadd.f32 0.0, %v5864
      %5866 = vdwg.mxu0
      %v5867 = vadd.f32 %v5753, %v5845
      %v5868 = vadd.f32 %v5754, %v5847
      %v5869 = vadd.f32 %v5755, %v5851
      %v5870 = vadd.f32 %v5756, %v5853
      %v5871 = vadd.f32 %v5757, %v5857
      %v5872 = vadd.f32 %v5758, %v5859
      %v5873 = vadd.f32 %v5759, %v5863
      %v5874 = vadd.f32 %v5760, %v5865
      %5875 = vrot.lane.b32.xlu0 %v2879, 127
      %v5876 = vpop.permute.xlu0 %5875
      %5877 = vrot.lane.b32.xlu0 %v2881, 127
      %v5878 = vpop.permute.xlu0 %5877
      %5879 = vrot.lane.b32.xlu0 %v2883, 127
      %v5880 = vpop.permute.xlu0 %5879
      %5881 = vrot.lane.b32.xlu0 %v2885, 127
      %v5882 = vpop.permute.xlu0 %5881
      %5883 = vrot.lane.b32.xlu0 %v2880, 127
      %v5884 = vpop.permute.xlu0 %5883
      %5885 = vrot.lane.b32.xlu0 %v2882, 127
      %v5886 = vpop.permute.xlu0 %5885
      %5887 = vrot.lane.b32.xlu0 %v2884, 127
      %v5888 = vpop.permute.xlu0 %5887
      %5889 = vrot.lane.b32.xlu0 %v2886, 127
      %v5890 = vpop.permute.xlu0 %5889
      %v5891 = vsel %vm1635, %v5876, %v5884
      %v5892 = vsel %vm1635, %v5878, %v5886
      %v5893 = vsel %vm1635, %v5880, %v5888
      %v5894 = vsel %vm1635, %v5882, %v5890
      %v5895 = vsel %vm1635, %v5884, %v5876
      %v5896 = vsel %vm1635, %v5886, %v5878
      %v5897 = vsel %vm1635, %v5888, %v5880
      %v5898 = vsel %vm1635, %v5890, %v5882
      %v5899 = vmul.f32 %v5891, %v1647
      %v5900 = vmul.f32 %v5895, %v1651
      %v5901 = vmul.f32 %v5892, %v1647
      %v5902 = vmul.f32 %v5896, %v1651
      %v5903 = vmul.f32 %v5893, %v1647
      %v5904 = vmul.f32 %v5897, %v1651
      %v5905 = vmul.f32 %v5894, %v1647
      %v5906 = vmul.f32 %v5898, %v1651
      %s5907 = scalar_lea.vmem %s9, 160
      %v5908 = vld [vmem:[%s5907] sm:$0xff]
      %v5909 = vld [vmem:[%s5907 + $0x8] sm:$0xff]
      %v5910 = vld [vmem:[%s5907 + $0x10] sm:$0xff]
      %v5911 = vld [vmem:[%s5907 + $0x18] sm:$0xff]
      %v5913 = vsel %vm560, %v5908, 0
      %v5916 = vsel %vm560, %v5909, 0
      %v5919 = vsel %vm560, %v5910, 0
      %v5922 = vsel %vm560, %v5911, 0
      %5924 = vmatprep.subr.mxu0 %v5900
      %5925 = vmatpush1.msra.mxu0 %v5899
      %5926 = vmatprep.subr.mxu0 %v5902
      %5927 = vmatpush1.msra.mxu0 %v5901
      %5928 = vmatprep.subr.mxu0 %v5904
      %5929 = vmatpush1.msra.mxu0 %v5903
      %5930 = vmatprep.subr.mxu0 %v5906
      %5931 = vmatpush1.msra.mxu0 %v5905
      %5932 = vmatprep.subr.mxu0 0.0
      %5933 = vmatpush1.msra.mxu0 0.0
      %5934 = vmatprep.subr.mxu0 0.0
      %5935 = vmatpush1.msra.mxu0 0.0
      %5936 = vmatprep.subr.mxu0 0.0
      %5937 = vmatpush1.msra.mxu0 0.0
      %5938 = vmatprep.subr.mxu0 0.0
      %5939 = vmatpush1.msra.mxu0 0.0
      %5940 = vmatprep.subr.mxu0 0.0
      %5941 = vmatpush1.msra.mxu0 0.0
      %5942 = vmatprep.subr.mxu0 0.0
      %5943 = vmatpush1.msra.mxu0 0.0
      %5944 = vmatprep.subr.mxu0 0.0
      %5945 = vmatpush1.msra.mxu0 0.0
      %5946 = vmatprep.subr.mxu0 0.0
      %5947 = vmatpush1.msra.mxu0 0.0
      %5948 = vmatprep.subr.mxu0 0.0
      %5949 = vmatpush1.msra.mxu0 0.0
      %5950 = vmatprep.subr.mxu0 0.0
      %5951 = vmatpush1.msra.mxu0 0.0
      %5952 = vmatprep.subr.mxu0 0.0
      %5953 = vmatpush1.msra.mxu0 0.0
      %5954 = vmatprep.subr.mxu0 0.0
      %5955 = vmatpush1.msra.mxu0 0.0
      %5956 = vmatprep.subr.mxu0 0.0
      %5957 = vmatpush1.msra.mxu0 0.0
      %5958 = vmatprep.subr.mxu0 0.0
      %5959 = vmatpush1.msra.mxu0 0.0
      %5960 = vmatprep.subr.mxu0 0.0
      %5961 = vmatpush1.msra.mxu0 0.0
      %5962 = vmatprep.subr.mxu0 0.0
      %5963 = vmatpush1.msra.mxu0 0.0
      %5964 = vmatprep.subr.mxu0 0.0
      %5965 = vmatpush1.msra.mxu0 0.0
      %5966 = vmatprep.subr.mxu0 0.0
      %5967 = vmatpush1.msra.mxu0 0.0
      %5968 = vmatprep.subr.mxu0 0.0
      %5969 = vmatpush1.msra.mxu0 0.0
      %5970 = vmatprep.subr.mxu0 0.0
      %5971 = vmatpush1.msra.mxu0 0.0
      %5972 = vmatprep.subr.mxu0 0.0
      %5973 = vmatpush1.msra.mxu0 0.0
      %5974 = vmatprep.subr.mxu0 0.0
      %5975 = vmatpush1.msra.mxu0 0.0
      %5976 = vmatprep.subr.mxu0 0.0
      %5977 = vmatpush1.msra.mxu0 0.0
      %5978 = vmatprep.subr.mxu0 0.0
      %5979 = vmatpush1.msra.mxu0 0.0
      %5980 = vmatprep.subr.mxu0 0.0
      %5981 = vmatpush1.msra.mxu0 0.0
      %5982 = vmatprep.subr.mxu0 0.0
      %5983 = vmatpush1.msra.mxu0 0.0
      %5984 = vmatprep.subr.mxu0 0.0
      %5985 = vmatpush1.msra.mxu0 0.0
      %5986 = vmatprep.subr.mxu0 0.0
      %5987 = vmatpush1.msra.mxu0 0.0
      %5988 = vmatprep.mubr.f32.mxu0 0.0
      %5989 = vmatmul.mubr.f32.gmra.mrb[0].mxu0 %v5913
      %v5990 = vpop.f32.mrb[0].mxu0
      %v5991 = vadd.f32 0.0, %v5990
      %v5992 = vpop.f32.mrb[0].mxu0
      %v5993 = vadd.f32 0.0, %v5992
      %5994 = vmatprep.mubr.f32.mxu0 0.0
      %5995 = vmatmul.mubr.f32.gmra.mrb[0].mxu0 %v5916
      %v5996 = vpop.f32.mrb[0].mxu0
      %v5997 = vadd.f32 0.0, %v5996
      %v5998 = vpop.f32.mrb[0].mxu0
      %v5999 = vadd.f32 0.0, %v5998
      %6000 = vmatprep.mubr.f32.mxu0 0.0
      %6001 = vmatmul.mubr.f32.gmra.mrb[0].mxu0 %v5919
      %v6002 = vpop.f32.mrb[0].mxu0
      %v6003 = vadd.f32 0.0, %v6002
      %v6004 = vpop.f32.mrb[0].mxu0
      %v6005 = vadd.f32 0.0, %v6004
      %6006 = vmatprep.mubr.f32.mxu0 0.0
      %6007 = vmatmul.mubr.f32.gmra.mrb[0].mxu0 %v5922
      %v6008 = vpop.f32.mrb[0].mxu0
      %v6009 = vadd.f32 0.0, %v6008
      %v6010 = vpop.f32.mrb[0].mxu0
      %v6011 = vadd.f32 0.0, %v6010
      %6012 = vdwg.mxu0
      %v6013 = vadd.f32 %v5867, %v5991
      %v6014 = vadd.f32 %v5868, %v5993
      %v6015 = vadd.f32 %v5869, %v5997
      %v6016 = vadd.f32 %v5870, %v5999
      %v6017 = vadd.f32 %v5871, %v6003
      %v6018 = vadd.f32 %v5872, %v6005
      %v6019 = vadd.f32 %v5873, %v6009
      %v6020 = vadd.f32 %v5874, %v6011
      %6021 = vrot.lane.b32.xlu0 %v2879, 113
      %v6022 = vpop.permute.xlu0 %6021
      %6023 = vrot.lane.b32.xlu0 %v2881, 113
      %v6024 = vpop.permute.xlu0 %6023
      %6025 = vrot.lane.b32.xlu0 %v2883, 113
      %v6026 = vpop.permute.xlu0 %6025
      %6027 = vrot.lane.b32.xlu0 %v2885, 113
      %v6028 = vpop.permute.xlu0 %6027
      %6029 = vrot.lane.b32.xlu0 %v2880, 113
      %v6030 = vpop.permute.xlu0 %6029
      %6031 = vrot.lane.b32.xlu0 %v2882, 113
      %v6032 = vpop.permute.xlu0 %6031
      %6033 = vrot.lane.b32.xlu0 %v2884, 113
      %v6034 = vpop.permute.xlu0 %6033
      %6035 = vrot.lane.b32.xlu0 %v2886, 113
      %v6036 = vpop.permute.xlu0 %6035
      %v6037 = vsel %vm1886, %v6022, %v6030
      %v6038 = vsel %vm1886, %v6024, %v6032
      %v6039 = vsel %vm1886, %v6026, %v6034
      %v6040 = vsel %vm1886, %v6028, %v6036
      %v6041 = vsel %vm1886, %v6030, %v6022
      %v6042 = vsel %vm1886, %v6032, %v6024
      %v6043 = vsel %vm1886, %v6034, %v6026
      %v6044 = vsel %vm1886, %v6036, %v6028
      %v6045 = vmul.f32 %v6037, %v1898
      %v6046 = vmul.f32 %v6041, %v1902
      %v6047 = vmul.f32 %v6038, %v1898
      %v6048 = vmul.f32 %v6042, %v1902
      %v6049 = vmul.f32 %v6039, %v1898
      %v6050 = vmul.f32 %v6043, %v1902
      %v6051 = vmul.f32 %v6040, %v1898
      %v6052 = vmul.f32 %v6044, %v1902
      %s6053 = scalar_lea.vmem %s9, 192
      %v6054 = vld [vmem:[%s6053] sm:$0xff]
      %v6055 = vld [vmem:[%s6053 + $0x8] sm:$0xff]
      %v6056 = vld [vmem:[%s6053 + $0x10] sm:$0xff]
      %v6057 = vld [vmem:[%s6053 + $0x18] sm:$0xff]
      %v6059 = vsel %vm560, %v6054, 0
      %v6062 = vsel %vm560, %v6055, 0
      %v6065 = vsel %vm560, %v6056, 0
      %v6068 = vsel %vm560, %v6057, 0
      %6070 = vmatprep.subr.mxu0 %v6046
      %6071 = vmatpush1.msra.mxu0 %v6045
      %6072 = vmatprep.subr.mxu0 %v6048
      %6073 = vmatpush1.msra.mxu0 %v6047
      %6074 = vmatprep.subr.mxu0 %v6050
      %6075 = vmatpush1.msra.mxu0 %v6049
      %6076 = vmatprep.subr.mxu0 %v6052
      %6077 = vmatpush1.msra.mxu0 %v6051
      %6078 = vmatprep.subr.mxu0 0.0
      %6079 = vmatpush1.msra.mxu0 0.0
      %6080 = vmatprep.subr.mxu0 0.0
      %6081 = vmatpush1.msra.mxu0 0.0
      %6082 = vmatprep.subr.mxu0 0.0
      %6083 = vmatpush1.msra.mxu0 0.0
      %6084 = vmatprep.subr.mxu0 0.0
      %6085 = vmatpush1.msra.mxu0 0.0
      %6086 = vmatprep.subr.mxu0 0.0
      %6087 = vmatpush1.msra.mxu0 0.0
      %6088 = vmatprep.subr.mxu0 0.0
      %6089 = vmatpush1.msra.mxu0 0.0
      %6090 = vmatprep.subr.mxu0 0.0
      %6091 = vmatpush1.msra.mxu0 0.0
      %6092 = vmatprep.subr.mxu0 0.0
      %6093 = vmatpush1.msra.mxu0 0.0
      %6094 = vmatprep.subr.mxu0 0.0
      %6095 = vmatpush1.msra.mxu0 0.0
      %6096 = vmatprep.subr.mxu0 0.0
      %6097 = vmatpush1.msra.mxu0 0.0
      %6098 = vmatprep.subr.mxu0 0.0
      %6099 = vmatpush1.msra.mxu0 0.0
      %6100 = vmatprep.subr.mxu0 0.0
      %6101 = vmatpush1.msra.mxu0 0.0
      %6102 = vmatprep.subr.mxu0 0.0
      %6103 = vmatpush1.msra.mxu0 0.0
      %6104 = vmatprep.subr.mxu0 0.0
      %6105 = vmatpush1.msra.mxu0 0.0
      %6106 = vmatprep.subr.mxu0 0.0
      %6107 = vmatpush1.msra.mxu0 0.0
      %6108 = vmatprep.subr.mxu0 0.0
      %6109 = vmatpush1.msra.mxu0 0.0
      %6110 = vmatprep.subr.mxu0 0.0
      %6111 = vmatpush1.msra.mxu0 0.0
      %6112 = vmatprep.subr.mxu0 0.0
      %6113 = vmatpush1.msra.mxu0 0.0
      %6114 = vmatprep.subr.mxu0 0.0
      %6115 = vmatpush1.msra.mxu0 0.0
      %6116 = vmatprep.subr.mxu0 0.0
      %6117 = vmatpush1.msra.mxu0 0.0
      %6118 = vmatprep.subr.mxu0 0.0
      %6119 = vmatpush1.msra.mxu0 0.0
      %6120 = vmatprep.subr.mxu0 0.0
      %6121 = vmatpush1.msra.mxu0 0.0
      %6122 = vmatprep.subr.mxu0 0.0
      %6123 = vmatpush1.msra.mxu0 0.0
      %6124 = vmatprep.subr.mxu0 0.0
      %6125 = vmatpush1.msra.mxu0 0.0
      %6126 = vmatprep.subr.mxu0 0.0
      %6127 = vmatpush1.msra.mxu0 0.0
      %6128 = vmatprep.subr.mxu0 0.0
      %6129 = vmatpush1.msra.mxu0 0.0
      %6130 = vmatprep.subr.mxu0 0.0
      %6131 = vmatpush1.msra.mxu0 0.0
      %6132 = vmatprep.subr.mxu0 0.0
      %6133 = vmatpush1.msra.mxu0 0.0
      %6134 = vmatprep.mubr.f32.mxu0 0.0
      %6135 = vmatmul.mubr.f32.gmra.mrb[0].mxu0 %v6059
      %v6136 = vpop.f32.mrb[0].mxu0
      %v6137 = vadd.f32 0.0, %v6136
      %v6138 = vpop.f32.mrb[0].mxu0
      %v6139 = vadd.f32 0.0, %v6138
      %6140 = vmatprep.mubr.f32.mxu0 0.0
      %6141 = vmatmul.mubr.f32.gmra.mrb[0].mxu0 %v6062
      %v6142 = vpop.f32.mrb[0].mxu0
      %v6143 = vadd.f32 0.0, %v6142
      %v6144 = vpop.f32.mrb[0].mxu0
      %v6145 = vadd.f32 0.0, %v6144
      %6146 = vmatprep.mubr.f32.mxu0 0.0
      %6147 = vmatmul.mubr.f32.gmra.mrb[0].mxu0 %v6065
      %v6148 = vpop.f32.mrb[0].mxu0
      %v6149 = vadd.f32 0.0, %v6148
      %v6150 = vpop.f32.mrb[0].mxu0
      %v6151 = vadd.f32 0.0, %v6150
      %6152 = vmatprep.mubr.f32.mxu0 0.0
      %6153 = vmatmul.mubr.f32.gmra.mrb[0].mxu0 %v6068
      %v6154 = vpop.f32.mrb[0].mxu0
      %v6155 = vadd.f32 0.0, %v6154
      %v6156 = vpop.f32.mrb[0].mxu0
      %v6157 = vadd.f32 0.0, %v6156
      %6158 = vdwg.mxu0
      %v6159 = vadd.f32 %v6013, %v6137
      %v6160 = vadd.f32 %v6014, %v6139
      %v6161 = vadd.f32 %v6015, %v6143
      %v6162 = vadd.f32 %v6016, %v6145
      %v6163 = vadd.f32 %v6017, %v6149
      %v6164 = vadd.f32 %v6018, %v6151
      %v6165 = vadd.f32 %v6019, %v6155
      %v6166 = vadd.f32 %v6020, %v6157
      %6167 = vrot.lane.b32.xlu0 %v2879, 112
      %v6168 = vpop.permute.xlu0 %6167
      %6169 = vrot.lane.b32.xlu0 %v2881, 112
      %v6170 = vpop.permute.xlu0 %6169
      %6171 = vrot.lane.b32.xlu0 %v2883, 112
      %v6172 = vpop.permute.xlu0 %6171
      %6173 = vrot.lane.b32.xlu0 %v2885, 112
      %v6174 = vpop.permute.xlu0 %6173
      %6175 = vrot.lane.b32.xlu0 %v2880, 112
      %v6176 = vpop.permute.xlu0 %6175
      %6177 = vrot.lane.b32.xlu0 %v2882, 112
      %v6178 = vpop.permute.xlu0 %6177
      %6179 = vrot.lane.b32.xlu0 %v2884, 112
      %v6180 = vpop.permute.xlu0 %6179
      %6181 = vrot.lane.b32.xlu0 %v2886, 112
      %v6182 = vpop.permute.xlu0 %6181
      %v6183 = vsel %vm2137, %v6168, %v6176
      %v6184 = vsel %vm2137, %v6170, %v6178
      %v6185 = vsel %vm2137, %v6172, %v6180
      %v6186 = vsel %vm2137, %v6174, %v6182
      %v6187 = vsel %vm2137, %v6176, %v6168
      %v6188 = vsel %vm2137, %v6178, %v6170
      %v6189 = vsel %vm2137, %v6180, %v6172
      %v6190 = vsel %vm2137, %v6182, %v6174
      %v6191 = vmul.f32 %v6183, %v2149
      %v6192 = vmul.f32 %v6187, %v2153
      %v6193 = vmul.f32 %v6184, %v2149
      %v6194 = vmul.f32 %v6188, %v2153
      %v6195 = vmul.f32 %v6185, %v2149
      %v6196 = vmul.f32 %v6189, %v2153
      %v6197 = vmul.f32 %v6186, %v2149
      %v6198 = vmul.f32 %v6190, %v2153
      %s6199 = scalar_lea.vmem %s9, 224
      %v6200 = vld [vmem:[%s6199] sm:$0xff]
      %v6201 = vld [vmem:[%s6199 + $0x8] sm:$0xff]
      %v6202 = vld [vmem:[%s6199 + $0x10] sm:$0xff]
      %v6203 = vld [vmem:[%s6199 + $0x18] sm:$0xff]
      %v6205 = vsel %vm560, %v6200, 0
      %v6208 = vsel %vm560, %v6201, 0
      %v6211 = vsel %vm560, %v6202, 0
      %v6214 = vsel %vm560, %v6203, 0
      %6216 = vmatprep.subr.mxu0 %v6192
      %6217 = vmatpush1.msra.mxu0 %v6191
      %6218 = vmatprep.subr.mxu0 %v6194
      %6219 = vmatpush1.msra.mxu0 %v6193
      %6220 = vmatprep.subr.mxu0 %v6196
      %6221 = vmatpush1.msra.mxu0 %v6195
      %6222 = vmatprep.subr.mxu0 %v6198
      %6223 = vmatpush1.msra.mxu0 %v6197
      %6224 = vmatprep.subr.mxu0 0.0
      %6225 = vmatpush1.msra.mxu0 0.0
      %6226 = vmatprep.subr.mxu0 0.0
      %6227 = vmatpush1.msra.mxu0 0.0
      %6228 = vmatprep.subr.mxu0 0.0
      %6229 = vmatpush1.msra.mxu0 0.0
      %6230 = vmatprep.subr.mxu0 0.0
      %6231 = vmatpush1.msra.mxu0 0.0
      %6232 = vmatprep.subr.mxu0 0.0
      %6233 = vmatpush1.msra.mxu0 0.0
      %6234 = vmatprep.subr.mxu0 0.0
      %6235 = vmatpush1.msra.mxu0 0.0
      %6236 = vmatprep.subr.mxu0 0.0
      %6237 = vmatpush1.msra.mxu0 0.0
      %6238 = vmatprep.subr.mxu0 0.0
      %6239 = vmatpush1.msra.mxu0 0.0
      %6240 = vmatprep.subr.mxu0 0.0
      %6241 = vmatpush1.msra.mxu0 0.0
      %6242 = vmatprep.subr.mxu0 0.0
      %6243 = vmatpush1.msra.mxu0 0.0
      %6244 = vmatprep.subr.mxu0 0.0
      %6245 = vmatpush1.msra.mxu0 0.0
      %6246 = vmatprep.subr.mxu0 0.0
      %6247 = vmatpush1.msra.mxu0 0.0
      %6248 = vmatprep.subr.mxu0 0.0
      %6249 = vmatpush1.msra.mxu0 0.0
      %6250 = vmatprep.subr.mxu0 0.0
      %6251 = vmatpush1.msra.mxu0 0.0
      %6252 = vmatprep.subr.mxu0 0.0
      %6253 = vmatpush1.msra.mxu0 0.0
      %6254 = vmatprep.subr.mxu0 0.0
      %6255 = vmatpush1.msra.mxu0 0.0
      %6256 = vmatprep.subr.mxu0 0.0
      %6257 = vmatpush1.msra.mxu0 0.0
      %6258 = vmatprep.subr.mxu0 0.0
      %6259 = vmatpush1.msra.mxu0 0.0
      %6260 = vmatprep.subr.mxu0 0.0
      %6261 = vmatpush1.msra.mxu0 0.0
      %6262 = vmatprep.subr.mxu0 0.0
      %6263 = vmatpush1.msra.mxu0 0.0
      %6264 = vmatprep.subr.mxu0 0.0
      %6265 = vmatpush1.msra.mxu0 0.0
      %6266 = vmatprep.subr.mxu0 0.0
      %6267 = vmatpush1.msra.mxu0 0.0
      %6268 = vmatprep.subr.mxu0 0.0
      %6269 = vmatpush1.msra.mxu0 0.0
      %6270 = vmatprep.subr.mxu0 0.0
      %6271 = vmatpush1.msra.mxu0 0.0
      %6272 = vmatprep.subr.mxu0 0.0
      %6273 = vmatpush1.msra.mxu0 0.0
      %6274 = vmatprep.subr.mxu0 0.0
      %6275 = vmatpush1.msra.mxu0 0.0
      %6276 = vmatprep.subr.mxu0 0.0
      %6277 = vmatpush1.msra.mxu0 0.0
      %6278 = vmatprep.subr.mxu0 0.0
      %6279 = vmatpush1.msra.mxu0 0.0
      %6280 = vmatprep.mubr.f32.mxu0 0.0
      %6281 = vmatmul.mubr.f32.gmra.mrb[0].mxu0 %v6205
      %v6282 = vpop.f32.mrb[0].mxu0
      %v6283 = vadd.f32 0.0, %v6282
      %v6284 = vpop.f32.mrb[0].mxu0
      %v6285 = vadd.f32 0.0, %v6284
      %6286 = vmatprep.mubr.f32.mxu0 0.0
      %6287 = vmatmul.mubr.f32.gmra.mrb[0].mxu0 %v6208
      %v6288 = vpop.f32.mrb[0].mxu0
      %v6289 = vadd.f32 0.0, %v6288
      %v6290 = vpop.f32.mrb[0].mxu0
      %v6291 = vadd.f32 0.0, %v6290
      %6292 = vmatprep.mubr.f32.mxu0 0.0
      %6293 = vmatmul.mubr.f32.gmra.mrb[0].mxu0 %v6211
      %v6294 = vpop.f32.mrb[0].mxu0
      %v6295 = vadd.f32 0.0, %v6294
      %v6296 = vpop.f32.mrb[0].mxu0
      %v6297 = vadd.f32 0.0, %v6296
      %6298 = vmatprep.mubr.f32.mxu0 0.0
      %6299 = vmatmul.mubr.f32.gmra.mrb[0].mxu0 %v6214
      %v6300 = vpop.f32.mrb[0].mxu0
      %v6301 = vadd.f32 0.0, %v6300
      %v6302 = vpop.f32.mrb[0].mxu0
      %v6303 = vadd.f32 0.0, %v6302
      %6304 = vdwg.mxu0
      %v6305 = vadd.f32 %v6159, %v6283
      %v6306 = vadd.f32 %v6160, %v6285
      %v6307 = vadd.f32 %v6161, %v6289
      %v6308 = vadd.f32 %v6162, %v6291
      %v6309 = vadd.f32 %v6163, %v6295
      %v6310 = vadd.f32 %v6164, %v6297
      %v6311 = vadd.f32 %v6165, %v6301
      %v6312 = vadd.f32 %v6166, %v6303
      %6313 = vrot.lane.b32.xlu0 %v2879, 111
      %v6314 = vpop.permute.xlu0 %6313
      %6315 = vrot.lane.b32.xlu0 %v2881, 111
      %v6316 = vpop.permute.xlu0 %6315
      %6317 = vrot.lane.b32.xlu0 %v2883, 111
      %v6318 = vpop.permute.xlu0 %6317
      %6319 = vrot.lane.b32.xlu0 %v2885, 111
      %v6320 = vpop.permute.xlu0 %6319
      %6321 = vrot.lane.b32.xlu0 %v2880, 111
      %v6322 = vpop.permute.xlu0 %6321
      %6323 = vrot.lane.b32.xlu0 %v2882, 111
      %v6324 = vpop.permute.xlu0 %6323
      %6325 = vrot.lane.b32.xlu0 %v2884, 111
      %v6326 = vpop.permute.xlu0 %6325
      %6327 = vrot.lane.b32.xlu0 %v2886, 111
      %v6328 = vpop.permute.xlu0 %6327
      %v6329 = vsel %vm2388, %v6314, %v6322
      %v6330 = vsel %vm2388, %v6316, %v6324
      %v6331 = vsel %vm2388, %v6318, %v6326
      %v6332 = vsel %vm2388, %v6320, %v6328
      %v6333 = vsel %vm2388, %v6322, %v6314
      %v6334 = vsel %vm2388, %v6324, %v6316
      %v6335 = vsel %vm2388, %v6326, %v6318
      %v6336 = vsel %vm2388, %v6328, %v6320
      %v6337 = vmul.f32 %v6329, %v2400
      %v6338 = vmul.f32 %v6333, %v2404
      %v6339 = vmul.f32 %v6330, %v2400
      %v6340 = vmul.f32 %v6334, %v2404
      %v6341 = vmul.f32 %v6331, %v2400
      %v6342 = vmul.f32 %v6335, %v2404
      %v6343 = vmul.f32 %v6332, %v2400
      %v6344 = vmul.f32 %v6336, %v2404
      %s6345 = scalar_lea.vmem %s9, 256
      %v6346 = vld [vmem:[%s6345] sm:$0xff]
      %v6347 = vld [vmem:[%s6345 + $0x8] sm:$0xff]
      %v6348 = vld [vmem:[%s6345 + $0x10] sm:$0xff]
      %v6349 = vld [vmem:[%s6345 + $0x18] sm:$0xff]
      %v6351 = vsel %vm560, %v6346, 0
      %v6354 = vsel %vm560, %v6347, 0
      %v6357 = vsel %vm560, %v6348, 0
      %v6360 = vsel %vm560, %v6349, 0
      %6362 = vmatprep.subr.mxu0 %v6338
      %6363 = vmatpush1.msra.mxu0 %v6337
      %6364 = vmatprep.subr.mxu0 %v6340
      %6365 = vmatpush1.msra.mxu0 %v6339
      %6366 = vmatprep.subr.mxu0 %v6342
      %6367 = vmatpush1.msra.mxu0 %v6341
      %6368 = vmatprep.subr.mxu0 %v6344
      %6369 = vmatpush1.msra.mxu0 %v6343
      %6370 = vmatprep.subr.mxu0 0.0
      %6371 = vmatpush1.msra.mxu0 0.0
      %6372 = vmatprep.subr.mxu0 0.0
      %6373 = vmatpush1.msra.mxu0 0.0
      %6374 = vmatprep.subr.mxu0 0.0
      %6375 = vmatpush1.msra.mxu0 0.0
      %6376 = vmatprep.subr.mxu0 0.0
      %6377 = vmatpush1.msra.mxu0 0.0
      %6378 = vmatprep.subr.mxu0 0.0
      %6379 = vmatpush1.msra.mxu0 0.0
      %6380 = vmatprep.subr.mxu0 0.0
      %6381 = vmatpush1.msra.mxu0 0.0
      %6382 = vmatprep.subr.mxu0 0.0
      %6383 = vmatpush1.msra.mxu0 0.0
      %6384 = vmatprep.subr.mxu0 0.0
      %6385 = vmatpush1.msra.mxu0 0.0
      %6386 = vmatprep.subr.mxu0 0.0
      %6387 = vmatpush1.msra.mxu0 0.0
      %6388 = vmatprep.subr.mxu0 0.0
      %6389 = vmatpush1.msra.mxu0 0.0
      %6390 = vmatprep.subr.mxu0 0.0
      %6391 = vmatpush1.msra.mxu0 0.0
      %6392 = vmatprep.subr.mxu0 0.0
      %6393 = vmatpush1.msra.mxu0 0.0
      %6394 = vmatprep.subr.mxu0 0.0
      %6395 = vmatpush1.msra.mxu0 0.0
      %6396 = vmatprep.subr.mxu0 0.0
      %6397 = vmatpush1.msra.mxu0 0.0
      %6398 = vmatprep.subr.mxu0 0.0
      %6399 = vmatpush1.msra.mxu0 0.0
      %6400 = vmatprep.subr.mxu0 0.0
      %6401 = vmatpush1.msra.mxu0 0.0
      %6402 = vmatprep.subr.mxu0 0.0
      %6403 = vmatpush1.msra.mxu0 0.0
      %6404 = vmatprep.subr.mxu0 0.0
      %6405 = vmatpush1.msra.mxu0 0.0
      %6406 = vmatprep.subr.mxu0 0.0
      %6407 = vmatpush1.msra.mxu0 0.0
      %6408 = vmatprep.subr.mxu0 0.0
      %6409 = vmatpush1.msra.mxu0 0.0
      %6410 = vmatprep.subr.mxu0 0.0
      %6411 = vmatpush1.msra.mxu0 0.0
      %6412 = vmatprep.subr.mxu0 0.0
      %6413 = vmatpush1.msra.mxu0 0.0
      %6414 = vmatprep.subr.mxu0 0.0
      %6415 = vmatpush1.msra.mxu0 0.0
      %6416 = vmatprep.subr.mxu0 0.0
      %6417 = vmatpush1.msra.mxu0 0.0
      %6418 = vmatprep.subr.mxu0 0.0
      %6419 = vmatpush1.msra.mxu0 0.0
      %6420 = vmatprep.subr.mxu0 0.0
      %6421 = vmatpush1.msra.mxu0 0.0
      %6422 = vmatprep.subr.mxu0 0.0
      %6423 = vmatpush1.msra.mxu0 0.0
      %6424 = vmatprep.subr.mxu0 0.0
      %6425 = vmatpush1.msra.mxu0 0.0
      %6426 = vmatprep.mubr.f32.mxu0 0.0
      %6427 = vmatmul.mubr.f32.gmra.mrb[0].mxu0 %v6351
      %v6428 = vpop.f32.mrb[0].mxu0
      %v6429 = vadd.f32 0.0, %v6428
      %v6430 = vpop.f32.mrb[0].mxu0
      %v6431 = vadd.f32 0.0, %v6430
      %6432 = vmatprep.mubr.f32.mxu0 0.0
      %6433 = vmatmul.mubr.f32.gmra.mrb[0].mxu0 %v6354
      %v6434 = vpop.f32.mrb[0].mxu0
      %v6435 = vadd.f32 0.0, %v6434
      %v6436 = vpop.f32.mrb[0].mxu0
      %v6437 = vadd.f32 0.0, %v6436
      %6438 = vmatprep.mubr.f32.mxu0 0.0
      %6439 = vmatmul.mubr.f32.gmra.mrb[0].mxu0 %v6357
      %v6440 = vpop.f32.mrb[0].mxu0
      %v6441 = vadd.f32 0.0, %v6440
      %v6442 = vpop.f32.mrb[0].mxu0
      %v6443 = vadd.f32 0.0, %v6442
      %6444 = vmatprep.mubr.f32.mxu0 0.0
      %6445 = vmatmul.mubr.f32.gmra.mrb[0].mxu0 %v6360
      %v6446 = vpop.f32.mrb[0].mxu0
      %v6447 = vadd.f32 0.0, %v6446
      %v6448 = vpop.f32.mrb[0].mxu0
      %v6449 = vadd.f32 0.0, %v6448
      %6450 = vdwg.mxu0
      %v6451 = vadd.f32 %v6305, %v6429
      %v6452 = vadd.f32 %v6306, %v6431
      %v6453 = vadd.f32 %v6307, %v6435
      %v6454 = vadd.f32 %v6308, %v6437
      %v6455 = vadd.f32 %v6309, %v6441
      %v6456 = vadd.f32 %v6310, %v6443
      %v6457 = vadd.f32 %v6311, %v6447
      %v6458 = vadd.f32 %v6312, %v6449
      %v6459 = vld [vmem:[%s10] sm:$0xff]
      %v6460 = vld [vmem:[%s10 + $0x8] sm:$0xff]
      %v6461 = vld [vmem:[%s10 + $0x10] sm:$0xff]
      %v6462 = vld [vmem:[%s10 + $0x18] sm:$0xff]
      %6464 = vset.pattern.permute.xlu0 0
      %6465 = vperm.xlu0 %6464, %v6459
      %v6466 = vpop.permute.xlu0 %6465
      %6469 = vset.pattern.permute.xlu0 0
      %6470 = vperm.xlu0 %6469, %v6460
      %v6471 = vpop.permute.xlu0 %6470
      %6474 = vset.pattern.permute.xlu0 0
      %6475 = vperm.xlu0 %6474, %v6461
      %v6476 = vpop.permute.xlu0 %6475
      %6479 = vset.pattern.permute.xlu0 0
      %6480 = vperm.xlu0 %6479, %v6462
      %v6481 = vpop.permute.xlu0 %6480
      %v6483 = vadd.f32 %v6451, %v6466
      %v6484 = vadd.f32 %v6452, %v6466
      %v6485 = vadd.f32 %v6453, %v6471
      %v6486 = vadd.f32 %v6454, %v6471
      %v6487 = vadd.f32 %v6455, %v6476
      %v6488 = vadd.f32 %v6456, %v6476
      %v6489 = vadd.f32 %v6457, %v6481
      %v6490 = vadd.f32 %v6458, %v6481
      %v6491 = vxor.u32 %v6483, 2147483648
      %v6492 = vxor.u32 %v6484, 2147483648
      %v6493 = vxor.u32 %v6485, 2147483648
      %v6494 = vxor.u32 %v6486, 2147483648
      %v6495 = vxor.u32 %v6487, 2147483648
      %v6496 = vxor.u32 %v6488, 2147483648
      %v6497 = vxor.u32 %v6489, 2147483648
      %v6498 = vxor.u32 %v6490, 2147483648
      %v6499 = vmul.f32 %v6491, 1.442695
      %v6500 = vpow.pop %v6499
      %v6501 = vmul.f32 %v6492, 1.442695
      %v6502 = vpow.pop %v6501
      %v6503 = vmul.f32 %v6493, 1.442695
      %v6504 = vpow.pop %v6503
      %v6505 = vmul.f32 %v6494, 1.442695
      %v6506 = vpow.pop %v6505
      %v6507 = vmul.f32 %v6495, 1.442695
      %v6508 = vpow.pop %v6507
      %v6509 = vmul.f32 %v6496, 1.442695
      %v6510 = vpow.pop %v6509
      %v6511 = vmul.f32 %v6497, 1.442695
      %v6512 = vpow.pop %v6511
      %v6513 = vmul.f32 %v6498, 1.442695
      %v6514 = vpow.pop %v6513
      %v6515 = vadd.f32 %v6500, 1.0
      %v6516 = vadd.f32 %v6502, 1.0
      %v6517 = vadd.f32 %v6504, 1.0
      %v6518 = vadd.f32 %v6506, 1.0
      %v6519 = vadd.f32 %v6508, 1.0
      %v6520 = vadd.f32 %v6510, 1.0
      %v6521 = vadd.f32 %v6512, 1.0
      %v6522 = vadd.f32 %v6514, 1.0
      %v6523 = vrcp.pop %v6515
      %v6524 = vmul.f32 1.0, %v6523
      %v6525 = vrcp.pop %v6516
      %v6526 = vmul.f32 1.0, %v6525
      %v6527 = vrcp.pop %v6517
      %v6528 = vmul.f32 1.0, %v6527
      %v6529 = vrcp.pop %v6518
      %v6530 = vmul.f32 1.0, %v6529
      %v6531 = vrcp.pop %v6519
      %v6532 = vmul.f32 1.0, %v6531
      %v6533 = vrcp.pop %v6520
      %v6534 = vmul.f32 1.0, %v6533
      %v6535 = vrcp.pop %v6521
      %v6536 = vmul.f32 1.0, %v6535
      %v6537 = vrcp.pop %v6522
      %v6538 = vmul.f32 1.0, %v6537
      %v6539 = vmul.f32 %v6483, %v6524
      %v6540 = vmul.f32 %v6484, %v6526
      %v6541 = vmul.f32 %v6485, %v6528
      %v6542 = vmul.f32 %v6486, %v6530
      %v6543 = vmul.f32 %v6487, %v6532
      %v6544 = vmul.f32 %v6488, %v6534
      %v6545 = vmul.f32 %v6489, %v6536
      %v6546 = vmul.f32 %v6490, %v6538
      %v6547 = vld [vmem:[%s11] sm:$0xff]
      %v6548 = vld [vmem:[%s11 + $0x8] sm:$0xff]
      %v6549 = vld [vmem:[%s12] sm:$0xff]
      %v6550 = vld [vmem:[%s12 + $0x8] sm:$0xff]
      %6552 = vset.pattern.permute.xlu0 0
      %6553 = vperm.xlu0 %6552, %v6549
      %v6554 = vpop.permute.xlu0 %6553
      %6557 = vset.pattern.permute.xlu0 0
      %6558 = vperm.xlu0 %6557, %v6550
      %v6559 = vpop.permute.xlu0 %6558
      %v6562 = vsel %vm560, %v6547, 0
      %v6565 = vsel %vm560, %v6548, 0
      %6567 = vmatprep.subr.mxu0 %v6540
      %6568 = vmatpush1.msra.mxu0 %v6539
      %6569 = vmatprep.subr.mxu0 %v6542
      %6570 = vmatpush1.msra.mxu0 %v6541
      %6571 = vmatprep.subr.mxu0 %v6544
      %6572 = vmatpush1.msra.mxu0 %v6543
      %6573 = vmatprep.subr.mxu0 %v6546
      %6574 = vmatpush1.msra.mxu0 %v6545
      %6575 = vmatprep.subr.mxu0 0.0
      %6576 = vmatpush1.msra.mxu0 0.0
      %6577 = vmatprep.subr.mxu0 0.0
      %6578 = vmatpush1.msra.mxu0 0.0
      %6579 = vmatprep.subr.mxu0 0.0
      %6580 = vmatpush1.msra.mxu0 0.0
      %6581 = vmatprep.subr.mxu0 0.0
      %6582 = vmatpush1.msra.mxu0 0.0
      %6583 = vmatprep.subr.mxu0 0.0
      %6584 = vmatpush1.msra.mxu0 0.0
      %6585 = vmatprep.subr.mxu0 0.0
      %6586 = vmatpush1.msra.mxu0 0.0
      %6587 = vmatprep.subr.mxu0 0.0
      %6588 = vmatpush1.msra.mxu0 0.0
      %6589 = vmatprep.subr.mxu0 0.0
      %6590 = vmatpush1.msra.mxu0 0.0
      %6591 = vmatprep.subr.mxu0 0.0
      %6592 = vmatpush1.msra.mxu0 0.0
      %6593 = vmatprep.subr.mxu0 0.0
      %6594 = vmatpush1.msra.mxu0 0.0
      %6595 = vmatprep.subr.mxu0 0.0
      %6596 = vmatpush1.msra.mxu0 0.0
      %6597 = vmatprep.subr.mxu0 0.0
      %6598 = vmatpush1.msra.mxu0 0.0
      %6599 = vmatprep.subr.mxu0 0.0
      %6600 = vmatpush1.msra.mxu0 0.0
      %6601 = vmatprep.subr.mxu0 0.0
      %6602 = vmatpush1.msra.mxu0 0.0
      %6603 = vmatprep.subr.mxu0 0.0
      %6604 = vmatpush1.msra.mxu0 0.0
      %6605 = vmatprep.subr.mxu0 0.0
      %6606 = vmatpush1.msra.mxu0 0.0
      %6607 = vmatprep.subr.mxu0 0.0
      %6608 = vmatpush1.msra.mxu0 0.0
      %6609 = vmatprep.subr.mxu0 0.0
      %6610 = vmatpush1.msra.mxu0 0.0
      %6611 = vmatprep.subr.mxu0 0.0
      %6612 = vmatpush1.msra.mxu0 0.0
      %6613 = vmatprep.subr.mxu0 0.0
      %6614 = vmatpush1.msra.mxu0 0.0
      %6615 = vmatprep.subr.mxu0 0.0
      %6616 = vmatpush1.msra.mxu0 0.0
      %6617 = vmatprep.subr.mxu0 0.0
      %6618 = vmatpush1.msra.mxu0 0.0
      %6619 = vmatprep.subr.mxu0 0.0
      %6620 = vmatpush1.msra.mxu0 0.0
      %6621 = vmatprep.subr.mxu0 0.0
      %6622 = vmatpush1.msra.mxu0 0.0
      %6623 = vmatprep.subr.mxu0 0.0
      %6624 = vmatpush1.msra.mxu0 0.0
      %6625 = vmatprep.subr.mxu0 0.0
      %6626 = vmatpush1.msra.mxu0 0.0
      %6627 = vmatprep.subr.mxu0 0.0
      %6628 = vmatpush1.msra.mxu0 0.0
      %6629 = vmatprep.subr.mxu0 0.0
      %6630 = vmatpush1.msra.mxu0 0.0
      %6631 = vmatprep.mubr.f32.mxu0 0.0
      %6632 = vmatmul.mubr.f32.gmra.mrb[0].mxu0 %v6562
      %v6633 = vpop.f32.mrb[0].mxu0
      %v6634 = vadd.f32 %v6554, %v6633
      %v6635 = vpop.f32.mrb[0].mxu0
      %v6636 = vadd.f32 %v6554, %v6635
      %6637 = vmatprep.mubr.f32.mxu0 0.0
      %6638 = vmatmul.mubr.f32.gmra.mrb[0].mxu0 %v6565
      %v6639 = vpop.f32.mrb[0].mxu0
      %v6640 = vadd.f32 %v6559, %v6639
      %v6641 = vpop.f32.mrb[0].mxu0
      %v6642 = vadd.f32 %v6559, %v6641
      %6643 = vdwg.mxu0
      %v6644 = vlaneseq
      %v6645 = vshrl.u32 %v6644, 7
      %v6646 = vadd.s32 %v6645, 8
      %v6647 = vcvt.s32.f32 %v6645
      %v6648 = vcvt.s32.f32 %v6646
      %v6649 = vmax.f32 %v5148, %v5154
      %v6650 = vrot.slane %v6649, 4
      %v6651 = vmax.f32 %v6649, %v6650
      %v6652 = vrot.slane %v6651, 2
      %v6653 = vmax.f32 %v6651, %v6652
      %v6654 = vrot.slane %v6653, 1
      %v6655 = vmax.f32 %v6653, %v6654
      %v6656 = vmax.f32 %v5150, %v5156
      %v6657 = vrot.slane %v6656, 4
      %v6658 = vmax.f32 %v6656, %v6657
      %v6659 = vrot.slane %v6658, 2
      %v6660 = vmax.f32 %v6658, %v6659
      %v6661 = vrot.slane %v6660, 1
      %v6662 = vmax.f32 %v6660, %v6661
      %v6663 = vsub.f32 %v5148, %v6655
      %v6664 = vsub.f32 %v5150, %v6662
      %v6665 = vsub.f32 %v5154, %v6655
      %v6666 = vsub.f32 %v5156, %v6662
      %v6667 = vmul.f32 %v6663, 1.442695
      %v6668 = vpow.pop %v6667
      %v6669 = vmul.f32 %v6664, 1.442695
      %v6670 = vpow.pop %v6669
      %v6671 = vmul.f32 %v6665, 1.442695
      %v6672 = vpow.pop %v6671
      %v6673 = vmul.f32 %v6666, 1.442695
      %v6674 = vpow.pop %v6673
      %v6675 = vadd.f32 %v6668, %v6672
      %v6676 = vrot.slane %v6675, 4
      %v6677 = vadd.f32 %v6675, %v6676
      %v6678 = vrot.slane %v6677, 2
      %v6679 = vadd.f32 %v6677, %v6678
      %v6680 = vrot.slane %v6679, 1
      %v6681 = vadd.f32 %v6679, %v6680
      %v6682 = vadd.f32 %v6670, %v6674
      %v6683 = vrot.slane %v6682, 4
      %v6684 = vadd.f32 %v6682, %v6683
      %v6685 = vrot.slane %v6684, 2
      %v6686 = vadd.f32 %v6684, %v6685
      %v6687 = vrot.slane %v6686, 1
      %v6688 = vadd.f32 %v6686, %v6687
      %v6689 = vmul.f32 %v6668, %v6647
      %v6690 = vmul.f32 %v6670, %v6647
      %v6691 = vmul.f32 %v6672, %v6648
      %v6692 = vmul.f32 %v6674, %v6648
      %v6693 = vadd.f32 %v6689, %v6691
      %v6694 = vrot.slane %v6693, 4
      %v6695 = vadd.f32 %v6693, %v6694
      %v6696 = vrot.slane %v6695, 2
      %v6697 = vadd.f32 %v6695, %v6696
      %v6698 = vrot.slane %v6697, 1
      %v6699 = vadd.f32 %v6697, %v6698
      %v6700 = vadd.f32 %v6690, %v6692
      %v6701 = vrot.slane %v6700, 4
      %v6702 = vadd.f32 %v6700, %v6701
      %v6703 = vrot.slane %v6702, 2
      %v6704 = vadd.f32 %v6702, %v6703
      %v6705 = vrot.slane %v6704, 1
      %v6706 = vadd.f32 %v6704, %v6705
      %v6707 = vrcp.pop %v6681
      %v6708 = vrcp.pop %v6688
      %v6709 = vmul.f32 %v6699, %v6707
      %v6710 = vmul.f32 %v6706, %v6708
      %v6711 = vmax.f32 %v5160, %v5166
      %v6712 = vrot.slane %v6711, 4
      %v6713 = vmax.f32 %v6711, %v6712
      %v6714 = vrot.slane %v6713, 2
      %v6715 = vmax.f32 %v6713, %v6714
      %v6716 = vrot.slane %v6715, 1
      %v6717 = vmax.f32 %v6715, %v6716
      %v6718 = vmax.f32 %v5162, %v5168
      %v6719 = vrot.slane %v6718, 4
      %v6720 = vmax.f32 %v6718, %v6719
      %v6721 = vrot.slane %v6720, 2
      %v6722 = vmax.f32 %v6720, %v6721
      %v6723 = vrot.slane %v6722, 1
      %v6724 = vmax.f32 %v6722, %v6723
      %v6725 = vsub.f32 %v5160, %v6717
      %v6726 = vsub.f32 %v5162, %v6724
      %v6727 = vsub.f32 %v5166, %v6717
      %v6728 = vsub.f32 %v5168, %v6724
      %v6729 = vmul.f32 %v6725, 1.442695
      %v6730 = vpow.pop %v6729
      %v6731 = vmul.f32 %v6726, 1.442695
      %v6732 = vpow.pop %v6731
      %v6733 = vmul.f32 %v6727, 1.442695
      %v6734 = vpow.pop %v6733
      %v6735 = vmul.f32 %v6728, 1.442695
      %v6736 = vpow.pop %v6735
      %v6737 = vadd.f32 %v6730, %v6734
      %v6738 = vrot.slane %v6737, 4
      %v6739 = vadd.f32 %v6737, %v6738
      %v6740 = vrot.slane %v6739, 2
      %v6741 = vadd.f32 %v6739, %v6740
      %v6742 = vrot.slane %v6741, 1
      %v6743 = vadd.f32 %v6741, %v6742
      %v6744 = vadd.f32 %v6732, %v6736
      %v6745 = vrot.slane %v6744, 4
      %v6746 = vadd.f32 %v6744, %v6745
      %v6747 = vrot.slane %v6746, 2
      %v6748 = vadd.f32 %v6746, %v6747
      %v6749 = vrot.slane %v6748, 1
      %v6750 = vadd.f32 %v6748, %v6749
      %v6751 = vmul.f32 %v6730, %v6647
      %v6752 = vmul.f32 %v6732, %v6647
      %v6753 = vmul.f32 %v6734, %v6648
      %v6754 = vmul.f32 %v6736, %v6648
      %v6755 = vadd.f32 %v6751, %v6753
      %v6756 = vrot.slane %v6755, 4
      %v6757 = vadd.f32 %v6755, %v6756
      %v6758 = vrot.slane %v6757, 2
      %v6759 = vadd.f32 %v6757, %v6758
      %v6760 = vrot.slane %v6759, 1
      %v6761 = vadd.f32 %v6759, %v6760
      %v6762 = vadd.f32 %v6752, %v6754
      %v6763 = vrot.slane %v6762, 4
      %v6764 = vadd.f32 %v6762, %v6763
      %v6765 = vrot.slane %v6764, 2
      %v6766 = vadd.f32 %v6764, %v6765
      %v6767 = vrot.slane %v6766, 1
      %v6768 = vadd.f32 %v6766, %v6767
      %v6769 = vrcp.pop %v6743
      %v6770 = vrcp.pop %v6750
      %v6771 = vmul.f32 %v6761, %v6769
      %v6772 = vmul.f32 %v6768, %v6770
      %v6773 = vmax.f32 %v5172, %v5178
      %v6774 = vrot.slane %v6773, 4
      %v6775 = vmax.f32 %v6773, %v6774
      %v6776 = vrot.slane %v6775, 2
      %v6777 = vmax.f32 %v6775, %v6776
      %v6778 = vrot.slane %v6777, 1
      %v6779 = vmax.f32 %v6777, %v6778
      %v6780 = vmax.f32 %v5174, %v5180
      %v6781 = vrot.slane %v6780, 4
      %v6782 = vmax.f32 %v6780, %v6781
      %v6783 = vrot.slane %v6782, 2
      %v6784 = vmax.f32 %v6782, %v6783
      %v6785 = vrot.slane %v6784, 1
      %v6786 = vmax.f32 %v6784, %v6785
      %v6787 = vsub.f32 %v5172, %v6779
      %v6788 = vsub.f32 %v5174, %v6786
      %v6789 = vsub.f32 %v5178, %v6779
      %v6790 = vsub.f32 %v5180, %v6786
      %v6791 = vmul.f32 %v6787, 1.442695
      %v6792 = vpow.pop %v6791
      %v6793 = vmul.f32 %v6788, 1.442695
      %v6794 = vpow.pop %v6793
      %v6795 = vmul.f32 %v6789, 1.442695
      %v6796 = vpow.pop %v6795
      %v6797 = vmul.f32 %v6790, 1.442695
      %v6798 = vpow.pop %v6797
      %v6799 = vadd.f32 %v6792, %v6796
      %v6800 = vrot.slane %v6799, 4
      %v6801 = vadd.f32 %v6799, %v6800
      %v6802 = vrot.slane %v6801, 2
      %v6803 = vadd.f32 %v6801, %v6802
      %v6804 = vrot.slane %v6803, 1
      %v6805 = vadd.f32 %v6803, %v6804
      %v6806 = vadd.f32 %v6794, %v6798
      %v6807 = vrot.slane %v6806, 4
      %v6808 = vadd.f32 %v6806, %v6807
      %v6809 = vrot.slane %v6808, 2
      %v6810 = vadd.f32 %v6808, %v6809
      %v6811 = vrot.slane %v6810, 1
      %v6812 = vadd.f32 %v6810, %v6811
      %v6813 = vmul.f32 %v6792, %v6647
      %v6814 = vmul.f32 %v6794, %v6647
      %v6815 = vmul.f32 %v6796, %v6648
      %v6816 = vmul.f32 %v6798, %v6648
      %v6817 = vadd.f32 %v6813, %v6815
      %v6818 = vrot.slane %v6817, 4
      %v6819 = vadd.f32 %v6817, %v6818
      %v6820 = vrot.slane %v6819, 2
      %v6821 = vadd.f32 %v6819, %v6820
      %v6822 = vrot.slane %v6821, 1
      %v6823 = vadd.f32 %v6821, %v6822
      %v6824 = vadd.f32 %v6814, %v6816
      %v6825 = vrot.slane %v6824, 4
      %v6826 = vadd.f32 %v6824, %v6825
      %v6827 = vrot.slane %v6826, 2
      %v6828 = vadd.f32 %v6826, %v6827
      %v6829 = vrot.slane %v6828, 1
      %v6830 = vadd.f32 %v6828, %v6829
      %v6831 = vrcp.pop %v6805
      %v6832 = vrcp.pop %v6812
      %v6833 = vmul.f32 %v6823, %v6831
      %v6834 = vmul.f32 %v6830, %v6832
      %v6835 = vmax.f32 %v5184, %v5190
      %v6836 = vrot.slane %v6835, 4
      %v6837 = vmax.f32 %v6835, %v6836
      %v6838 = vrot.slane %v6837, 2
      %v6839 = vmax.f32 %v6837, %v6838
      %v6840 = vrot.slane %v6839, 1
      %v6841 = vmax.f32 %v6839, %v6840
      %v6842 = vmax.f32 %v5186, %v5192
      %v6843 = vrot.slane %v6842, 4
      %v6844 = vmax.f32 %v6842, %v6843
      %v6845 = vrot.slane %v6844, 2
      %v6846 = vmax.f32 %v6844, %v6845
      %v6847 = vrot.slane %v6846, 1
      %v6848 = vmax.f32 %v6846, %v6847
      %v6849 = vsub.f32 %v5184, %v6841
      %v6850 = vsub.f32 %v5186, %v6848
      %v6851 = vsub.f32 %v5190, %v6841
      %v6852 = vsub.f32 %v5192, %v6848
      %v6853 = vmul.f32 %v6849, 1.442695
      %v6854 = vpow.pop %v6853
      %v6855 = vmul.f32 %v6850, 1.442695
      %v6856 = vpow.pop %v6855
      %v6857 = vmul.f32 %v6851, 1.442695
      %v6858 = vpow.pop %v6857
      %v6859 = vmul.f32 %v6852, 1.442695
      %v6860 = vpow.pop %v6859
      %v6861 = vadd.f32 %v6854, %v6858
      %v6862 = vrot.slane %v6861, 4
      %v6863 = vadd.f32 %v6861, %v6862
      %v6864 = vrot.slane %v6863, 2
      %v6865 = vadd.f32 %v6863, %v6864
      %v6866 = vrot.slane %v6865, 1
      %v6867 = vadd.f32 %v6865, %v6866
      %v6868 = vadd.f32 %v6856, %v6860
      %v6869 = vrot.slane %v6868, 4
      %v6870 = vadd.f32 %v6868, %v6869
      %v6871 = vrot.slane %v6870, 2
      %v6872 = vadd.f32 %v6870, %v6871
      %v6873 = vrot.slane %v6872, 1
      %v6874 = vadd.f32 %v6872, %v6873
      %v6875 = vmul.f32 %v6854, %v6647
      %v6876 = vmul.f32 %v6856, %v6647
      %v6877 = vmul.f32 %v6858, %v6648
      %v6878 = vmul.f32 %v6860, %v6648
      %v6879 = vadd.f32 %v6875, %v6877
      %v6880 = vrot.slane %v6879, 4
      %v6881 = vadd.f32 %v6879, %v6880
      %v6882 = vrot.slane %v6881, 2
      %v6883 = vadd.f32 %v6881, %v6882
      %v6884 = vrot.slane %v6883, 1
      %v6885 = vadd.f32 %v6883, %v6884
      %v6886 = vadd.f32 %v6876, %v6878
      %v6887 = vrot.slane %v6886, 4
      %v6888 = vadd.f32 %v6886, %v6887
      %v6889 = vrot.slane %v6888, 2
      %v6890 = vadd.f32 %v6888, %v6889
      %v6891 = vrot.slane %v6890, 1
      %v6892 = vadd.f32 %v6890, %v6891
      %v6893 = vrcp.pop %v6867
      %v6894 = vrcp.pop %v6874
      %v6895 = vmul.f32 %v6885, %v6893
      %v6896 = vmul.f32 %v6892, %v6894
      %v6897 = vld [vmem:[%s2] sm:$0xf]
      %v6900 = vcombine.low %v6709, %v6710
      %v6902 = vunpack.c.l.s4 1983009808
      %v6903 = vunpack.c.0.s8 %v6902
      %v6904 = vlaneseq
      %v6905 = vshrl.u32 %v6904, 7
      %v6906 = vsub.s32 %v6903, %v6905
      %v6907 = vrot.slane %v6900, %v6906
      %v6909 = vsub.f32 %v6897, %v6907
      %v6912 = vcombine.low %v6771, %v6772
      %v6914 = vunpack.c.l.s4 1983009808
      %v6915 = vunpack.c.0.s8 %v6914
      %v6916 = vlaneseq
      %v6917 = vshrl.u32 %v6916, 7
      %v6918 = vsub.s32 %v6915, %v6917
      %v6919 = vrot.slane %v6912, %v6918
      %v6920 = vrot.slane %v6919, 7
      %v6922 = vsub.f32 %v6897, %v6920
      %v6925 = vcombine.low %v6833, %v6834
      %v6927 = vunpack.c.l.s4 1983009808
      %v6928 = vunpack.c.0.s8 %v6927
      %v6929 = vlaneseq
      %v6930 = vshrl.u32 %v6929, 7
      %v6931 = vsub.s32 %v6928, %v6930
      %v6932 = vrot.slane %v6925, %v6931
      %v6934 = vadd.f32 %v6897, %v6932
      %v6937 = vcombine.low %v6895, %v6896
      %v6939 = vunpack.c.l.s4 1983009808
      %v6940 = vunpack.c.0.s8 %v6939
      %v6941 = vlaneseq
      %v6942 = vshrl.u32 %v6941, 7
      %v6943 = vsub.s32 %v6940, %v6942
      %v6944 = vrot.slane %v6937, %v6943
      %v6945 = vrot.slane %v6944, 7
      %v6947 = vadd.f32 %v6897, %v6945
      %v6948 = vadd.f32 %v6909, %v6934
      %v6949 = vmul.f32 %v6948, 0.5
      %v6950 = vadd.f32 %v6922, %v6947
      %v6951 = vmul.f32 %v6950, 0.5
      %v6952 = vsub.f32 %v6934, %v6909
      %v6953 = vsub.f32 %v6947, %v6922
      %v6955 = vlaneseq
      %v6956 = vshrl.u32 %v6955, 7
      %v6957 = vsub.s32 0, %v6956
      %v6958 = vrot.slane %v6949, %v6957
      %v6959 = vlaneseq
      %v6960 = vshrl.u32 %v6959, 7
      %v6961 = vsub.s32 2, %v6960
      %v6962 = vrot.slane %v6949, %v6961
      %v6966 = vlaneseq
      %v6967 = vshrl.u32 %v6966, 7
      %v6968 = vsub.s32 1, %v6967
      %v6969 = vrot.slane %v6951, %v6968
      %v6970 = vlaneseq
      %v6971 = vshrl.u32 %v6970, 7
      %v6972 = vsub.s32 3, %v6971
      %v6973 = vrot.slane %v6951, %v6972
      %v6977 = vlaneseq
      %v6978 = vshrl.u32 %v6977, 7
      %v6979 = vsub.s32 0, %v6978
      %v6980 = vrot.slane %v6952, %v6979
      %v6981 = vlaneseq
      %v6982 = vshrl.u32 %v6981, 7
      %v6983 = vsub.s32 2, %v6982
      %v6984 = vrot.slane %v6952, %v6983
      %v6988 = vlaneseq
      %v6989 = vshrl.u32 %v6988, 7
      %v6990 = vsub.s32 1, %v6989
      %v6991 = vrot.slane %v6953, %v6990
      %v6992 = vlaneseq
      %v6993 = vshrl.u32 %v6992, 7
      %v6994 = vsub.s32 3, %v6993
      %v6995 = vrot.slane %v6953, %v6994
      %vm6998 = vcmask 1040384
      %v6999 = vsel %vm6998, %v6958, %v6969
      %v7000 = vsel %vm6998, %v6962, %v6973
      %vm7001 = vcmask 1041408
      %v7002 = vsel %vm7001, %v6999, %v6980
      %v7003 = vsel %vm7001, %v7000, %v6984
      %vm7004 = vcmask 1042432
      %v7005 = vsel %vm7004, %v7002, %v6991
      %v7006 = vsel %vm7004, %v7003, %v6995
      %v7007 = vmul.f32 %v7005, 8.0
      %v7008 = vmul.f32 %v7006, 8.0
      %7009 = vst [vmem:[%s440] sm:$0xf] %v7007
      %7010 = vst [vmem:[%s440 + $0x8] sm:$0xf] %v7008
      %v7011 = vxor.u32 %v6634, 2147483648
      %v7012 = vxor.u32 %v6636, 2147483648
      %v7013 = vxor.u32 %v6640, 2147483648
      %v7014 = vxor.u32 %v6642, 2147483648
      %v7015 = vmul.f32 %v7011, 1.442695
      %v7016 = vpow.pop %v7015
      %v7017 = vmul.f32 %v7012, 1.442695
      %v7018 = vpow.pop %v7017
      %v7019 = vmul.f32 %v7013, 1.442695
      %v7020 = vpow.pop %v7019
      %v7021 = vmul.f32 %v7014, 1.442695
      %v7022 = vpow.pop %v7021
      %v7023 = vadd.f32 %v7016, 1.0
      %v7024 = vadd.f32 %v7018, 1.0
      %v7025 = vadd.f32 %v7020, 1.0
      %v7026 = vadd.f32 %v7022, 1.0
      %v7027 = vrcp.pop %v7023
      %v7028 = vmul.f32 1.0, %v7027
      %v7029 = vrcp.pop %v7024
      %v7030 = vmul.f32 1.0, %v7029
      %v7031 = vrcp.pop %v7025
      %v7032 = vmul.f32 1.0, %v7031
      %v7033 = vrcp.pop %v7026
      %v7034 = vmul.f32 1.0, %v7033
      %vm7039 = vcmask 1043456
      %v7040 = vrot.slane %v7028, 4
      %v7041 = vrot.slane %v7030, 4
      %v7042 = vrot.slane %v7032, 4
      %v7043 = vsel %vm7039, %v7040, %v7042
      %v7044 = vrot.slane %v7034, 4
      %v7045 = vsel %vm7039, %v7041, %v7044
      %7052 = vst [vmem:[%s440] sm:$0xf0] %v7040
      %7053 = vst [vmem:[%s440 + $0x8] sm:$0xf0] %v7041
      %7054 = vst [vmem:[%s440 + $0x10] sm:$0xff] %v7043
      %7055 = vst [vmem:[%s440 + $0x18] sm:$0xff] %v7045
      %7056 = vst [vmem:[%s440 + $0x20] sm:$0xf] %v7042
      %7057 = vst [vmem:[%s440 + $0x28] sm:$0xf] %v7044
      %p7058 = scmp.lt.s32.totalorder %s24, 1
      %s7059 = scalar_select %p7058, %s24, 1
      %s7060 = smul.addr %s7059, 6
      %s7061 = smul.addr %s7060, 8
      %s7062 = scalar_lea.vmem %s13, %s7061
      // Predicated region
      $region73: #{tpu_custom_call.1} parent=71 // pred_check
        %p7063 = pneg %p320
      $region74: #{tpu_custom_call.1} parent=71 // pred_check_branch
        %7065 = sbr.rel (%p7063) target = $region76
      $region75: #{tpu_custom_call.1} parent=71 // pred_region
        _
      $region76: #{tpu_custom_call.1} parent=71 // pred_fallthru
        _
    $region72: #{tpu_custom_call.1} parent=5 // pred_fallthru
      _
    %p7066 = scmp.le.s32.totalorder 2, %s19
    // Predicated region
    $region77: #{tpu_custom_call.1} parent=5 // pred_check
      %p7067 = pneg %p7066
    $region78: #{tpu_custom_call.1} parent=5 // pred_check_branch
      %7069 = sbr.rel (%p7067) target = $region80
    $region79: #{tpu_custom_call.1} parent=5 // pred_region
      %s7070 = ssub.s32 %s19, 2
      // Predicated region
      $region81: #{tpu_custom_call.1} parent=79 // pred_check
        %p7071 = pneg %p326
      $region82: #{tpu_custom_call.1} parent=79 // pred_check_branch
        %7073 = sbr.rel (%p7071) target = $region84
      $region83: #{tpu_custom_call.1} parent=79 // pred_region
        %p7074 = scmp.lt.s32.totalorder %s25, 1
        %s7075 = scalar_select %p7074, %s25, 1
        %s7076 = smul.addr %s7075, 6
        %s7077 = smul.addr %s7076, 8
        %s7078 = scalar_lea.vmem %s13, %s7077
      $region84: #{tpu_custom_call.1} parent=79 // pred_fallthru
        _
    $region80: #{tpu_custom_call.1} parent=5 // pred_fallthru
      _
  $region6: #{tpu_custom_call.1} parent=0 // loop_footer
    %s23 = sadd.s32 1, %s19
  $region7: #{tpu_custom_call.1} parent=0 // loop_footer_branch
    %18 = sbr.rel target = $region3
  $region8: #{tpu_custom_call.1} parent=0 // loop_exit
    _

</llo_original>
